<compile_context>
chip_gen: v5e
topology: v5e:2x2
jax: 0.10.0
libtpu: 0.0.40
codegen_flags: <defaults>
</compile_context>

<pallas_src>
import functools
import math

import jax
import jax.numpy as jnp
from jax import lax
from jax.experimental import pallas as pl
from jax.experimental.pallas import tpu as pltpu


# ----------------------------------------------------------------------------
# Generation-aware VMEM budgeting (v5e/v6e: 128 MiB, v7x: 64 MiB physical).
# ----------------------------------------------------------------------------
def _tpu_vmem_bytes():
    try:
        info = pltpu.get_tpu_info()
        for attr in ('vmem_capacity_bytes', 'vmem_bytes', 'vmem_size_bytes'):
            v = getattr(info, attr, None)
            if v:
                return int(v)
    except Exception:
        pass
    return 128 << 20


_VMEM_CAP = _tpu_vmem_bytes()
_SCAN_BUDGET = max(8 << 20, int(_VMEM_CAP * 0.35))
_SCAN_VMEM_LIMIT = int(min(_VMEM_CAP * 0.6, 110 << 20))
_MM_VMEM_LIMIT = int(min(_VMEM_CAP * 0.5, 64 << 20))


# ----------------------------------------------------------------------------
# In-kernel elementwise helpers (EUP-friendly: exp / tanh only).
# ----------------------------------------------------------------------------
def _sigmoid(x):
    return 1.0 / (1.0 + jnp.exp(-x))


def _softplus(x):
    return jnp.maximum(x, 0.0) + jnp.log(1.0 + jnp.exp(-jnp.abs(x)))


def _apply_act(x, act):
    if act == 'none':
        return x
    if act == 'gelu':
        # tanh approximation: pushes work onto the EUP slot instead of VALU.
        c0 = math.sqrt(2.0 / math.pi)
        return 0.5 * x * (1.0 + jnp.tanh(c0 * (x + 0.044715 * x * x * x)))
    if act == 'silu':
        return x * _sigmoid(x)
    if act == 'sigmoid':
        return _sigmoid(x)
    raise ValueError(act)


def _row_tile(m, cap=512):
    # >=2 grid steps whenever possible so both v7x TensorCores get work.
    if m <= 256:
        return m
    half = (m + 1) // 2
    half = ((half + 15) // 16) * 16
    return min(cap, half)


# ----------------------------------------------------------------------------
# Fused matmul (+bias +activation +optional elementwise gate/residual).
# bf16 MXU operands, f32 accumulation.
# ----------------------------------------------------------------------------
def _mm_kernel(x_ref, w_ref, b_ref, o_ref, *, act):
    acc = jnp.dot(x_ref[...], w_ref[...], preferred_element_type=jnp.float32)
    o_ref[...] = _apply_act(acc + b_ref[...], act)


def _mm_extra_kernel(x_ref, w_ref, b_ref, e_ref, o_ref, *, act, eop):
    acc = jnp.dot(x_ref[...], w_ref[...], preferred_element_type=jnp.float32)
    acc = _apply_act(acc + b_ref[...], act)
    e = e_ref[...]
    o_ref[...] = acc * e if eop == 'mul' else acc + e


@functools.partial(jax.jit, static_argnames=('act', 'eop'))
def _matmul_jit(x, w, b, e, act, eop):
    x = x.astype(jnp.bfloat16)
    w = w.astype(jnp.bfloat16)
    m, k = x.shape
    n = w.shape[1]
    b = b.astype(jnp.float32).reshape(1, n)
    tm = _row_tile(m)
    specs = [pl.BlockSpec((tm, k), lambda i: (i, 0)),
             pl.BlockSpec((k, n), lambda i: (0, 0)),
             pl.BlockSpec((1, n), lambda i: (0, 0))]
    args = [x, w, b]
    if e is None:
        kern = functools.partial(_mm_kernel, act=act)
    else:
        specs.append(pl.BlockSpec((tm, n), lambda i: (i, 0)))
        args.append(e.astype(jnp.float32))
        kern = functools.partial(_mm_extra_kernel, act=act, eop=eop)
    return pl.pallas_call(
        kern,
        out_shape=jax.ShapeDtypeStruct((m, n), jnp.float32),
        grid=(pl.cdiv(m, tm),),
        in_specs=specs,
        out_specs=pl.BlockSpec((tm, n), lambda i: (i, 0)),
        compiler_params=pltpu.CompilerParams(
            dimension_semantics=("parallel",),
            vmem_limit_bytes=_MM_VMEM_LIMIT),
    )(*args)


def matmul(x, w, b=None, act='none', extra=None, eop='add'):
    if b is None:
        b = jnp.zeros((w.shape[1],), jnp.float32)
    return _matmul_jit(x, w, b, extra, act=act, eop=eop)


# ----------------------------------------------------------------------------
# Row-wise LayerNorm (channels-last), plus fused LN * silu(z) gate variant.
# ----------------------------------------------------------------------------
def _ln_kernel(x_ref, w_ref, b_ref, o_ref, *, eps):
    x = x_ref[...]
    mu = jnp.mean(x, axis=1, keepdims=True)
    xc = x - mu
    var = jnp.mean(xc * xc, axis=1, keepdims=True)
    o_ref[...] = xc * lax.rsqrt(var + eps) * w_ref[...] + b_ref[...]


def _ln_gate_kernel(x_ref, z_ref, w_ref, b_ref, o_ref, *, eps):
    x = x_ref[...]
    mu = jnp.mean(x, axis=1, keepdims=True)
    xc = x - mu
    var = jnp.mean(xc * xc, axis=1, keepdims=True)
    y = xc * lax.rsqrt(var + eps) * w_ref[...] + b_ref[...]
    z = z_ref[...]
    o_ref[...] = y * (z * _sigmoid(z))


@functools.partial(jax.jit, static_argnames=('eps',))
def _ln_jit(x, w, b, eps):
    m, c = x.shape
    tm = _row_tile(m)
    return pl.pallas_call(
        functools.partial(_ln_kernel, eps=eps),
        out_shape=jax.ShapeDtypeStruct((m, c), jnp.float32),
        grid=(pl.cdiv(m, tm),),
        in_specs=[pl.BlockSpec((tm, c), lambda i: (i, 0)),
                  pl.BlockSpec((1, c), lambda i: (0, 0)),
                  pl.BlockSpec((1, c), lambda i: (0, 0))],
        out_specs=pl.BlockSpec((tm, c), lambda i: (i, 0)),
        compiler_params=pltpu.CompilerParams(dimension_semantics=("parallel",)),
    )(x, w.reshape(1, c), b.reshape(1, c))


def layernorm2d(x, w, b, eps=1e-6):
    return _ln_jit(x.astype(jnp.float32), w.astype(jnp.float32),
                   b.astype(jnp.float32), eps=eps)


@functools.partial(jax.jit, static_argnames=('eps',))
def _ln_gate_jit(x, z, w, b, eps):
    m, c = x.shape
    tm = _row_tile(m)
    return pl.pallas_call(
        functools.partial(_ln_gate_kernel, eps=eps),
        out_shape=jax.ShapeDtypeStruct((m, c), jnp.float32),
        grid=(pl.cdiv(m, tm),),
        in_specs=[pl.BlockSpec((tm, c), lambda i: (i, 0)),
                  pl.BlockSpec((tm, c), lambda i: (i, 0)),
                  pl.BlockSpec((1, c), lambda i: (0, 0)),
                  pl.BlockSpec((1, c), lambda i: (0, 0))],
        out_specs=pl.BlockSpec((tm, c), lambda i: (i, 0)),
        compiler_params=pltpu.CompilerParams(dimension_semantics=("parallel",)),
    )(x, z, w.reshape(1, c), b.reshape(1, c))


def ln_silu_gate(x, z, w, b, eps=1e-5):
    return _ln_gate_jit(x.astype(jnp.float32), z.astype(jnp.float32),
                        w.astype(jnp.float32), b.astype(jnp.float32), eps=eps)


# ----------------------------------------------------------------------------
# GroupNorm: (groups, cg) params broadcast in-kernel (no HBM broadcast_to),
# optional fused activation.
# TODO(synk): tile the hw axis with two-pass stats for very large images.
# ----------------------------------------------------------------------------
def _gn_kernel(x_ref, w_ref, b_ref, o_ref, *, eps, act):
    x = x_ref[0]                                   # (G, cg, hw)
    denom = float(x.shape[1] * x.shape[2])
    s1 = jnp.sum(x, axis=2, keepdims=True)
    mu = jnp.sum(s1, axis=1, keepdims=True) / denom
    xc = x - mu
    v1 = jnp.sum(xc * xc, axis=2, keepdims=True)
    var = jnp.sum(v1, axis=1, keepdims=True) / denom
    y = (xc * lax.rsqrt(var + eps) * w_ref[...][:, :, None]
         + b_ref[...][:, :, None])
    o_ref[0] = _apply_act(y, act)


@functools.partial(jax.jit, static_argnames=('groups', 'eps', 'act'))
def groupnorm(x, w, b, groups=4, eps=1e-5, act='none'):
    bsz, c, h, wd = x.shape
    cg = c // groups
    hw = h * wd
    xg = x.reshape(bsz, groups, cg, hw).astype(jnp.float32)
    wg = w.reshape(groups, cg).astype(jnp.float32)
    bg = b.reshape(groups, cg).astype(jnp.float32)
    out = pl.pallas_call(
        functools.partial(_gn_kernel, eps=eps, act=act),
        out_shape=jax.ShapeDtypeStruct((bsz, groups, cg, hw), jnp.float32),
        grid=(bsz,),
        in_specs=[pl.BlockSpec((1, groups, cg, hw), lambda i: (i, 0, 0, 0)),
                  pl.BlockSpec((groups, cg), lambda i: (0, 0)),
                  pl.BlockSpec((groups, cg), lambda i: (0, 0))],
        out_specs=pl.BlockSpec((1, groups, cg, hw), lambda i: (i, 0, 0, 0)),
        compiler_params=pltpu.CompilerParams(dimension_semantics=("parallel",)),
    )(xg, wg, bg)
    return out.reshape(bsz, c, h, wd)


# ----------------------------------------------------------------------------
# Elementwise kernels: lane-dense flattening (last dim a multiple of 128
# whenever possible), VMEM-friendly tiles.
# ----------------------------------------------------------------------------
def _ew_kernel(x_ref, o_ref, *, act):
    o_ref[...] = _apply_act(x_ref[...], act)


@functools.partial(jax.jit, static_argnames=('act',))
def ew_unary(x, act):
    shape = x.shape
    n = x.size
    lane = next((c for c in (1024, 512, 256, 128) if n % c == 0), None)
    xf = x.astype(jnp.float32)
    x2 = xf.reshape(n // lane, lane) if lane else xf.reshape(1, n)
    m, c = x2.shape
    tm, tc = min(256, m), min(1024, c)
    y = pl.pallas_call(
        functools.partial(_ew_kernel, act=act),
        out_shape=jax.ShapeDtypeStruct((m, c), jnp.float32),
        grid=(pl.cdiv(m, tm), pl.cdiv(c, tc)),
        in_specs=[pl.BlockSpec((tm, tc), lambda i, j: (i, j))],
        out_specs=pl.BlockSpec((tm, tc), lambda i, j: (i, j)),
        compiler_params=pltpu.CompilerParams(
            dimension_semantics=("parallel", "parallel")),
    )(x2)
    return y.reshape(shape)


def _ewb_kernel(a_ref, b_ref, o_ref, *, op):
    a = a_ref[...]
    b = b_ref[...]
    o_ref[...] = a * b if op == 'mul' else a + b


@functools.partial(jax.jit, static_argnames=('op',))
def _ew_binary_jit(a2, b2, op):
    m, c = a2.shape
    tm, tc = min(256, m), min(1024, c)
    return pl.pallas_call(
        functools.partial(_ewb_kernel, op=op),
        out_shape=jax.ShapeDtypeStruct((m, c), jnp.float32),
        grid=(pl.cdiv(m, tm), pl.cdiv(c, tc)),
        in_specs=[pl.BlockSpec((tm, tc), lambda i, j: (i, j)),
                  pl.BlockSpec((tm, tc), lambda i, j: (i, j))],
        out_specs=pl.BlockSpec((tm, tc), lambda i, j: (i, j)),
        compiler_params=pltpu.CompilerParams(
            dimension_semantics=("parallel", "parallel")),
    )(a2, b2)


def ew_binary(a2, b2, op):
    return _ew_binary_jit(a2.astype(jnp.float32), b2.astype(jnp.float32), op=op)


# ----------------------------------------------------------------------------
# Depthwise 3x3 conv, channels-last (lane-dense over C), fused activation.
# TODO(synk): tile over H with a halo instead of whole padded image per batch
#             for very large spatial sizes.
# ----------------------------------------------------------------------------
def _dw_kernel(xp_ref, w_ref, b_ref, o_ref, *, H, W, act):
    C = o_ref.shape[3]
    acc = jnp.zeros((H, W, C), jnp.float32)
    for k in range(9):
        ky, kx = divmod(k, 3)
        acc = acc + xp_ref[0, ky:ky + H, kx:kx + W, :] * w_ref[k][None, None, :]
    acc = acc + b_ref[...][None, :, :]
    o_ref[0] = _apply_act(acc, act)


@functools.partial(jax.jit, static_argnames=('act',))
def _dw_jit(x_hwc, w, b, act):
    bsz, h, wd, c = x_hwc.shape
    xp = jnp.pad(x_hwc, ((0, 0), (1, 1), (1, 1), (0, 0)))
    return pl.pallas_call(
        functools.partial(_dw_kernel, H=h, W=wd, act=act),
        out_shape=jax.ShapeDtypeStruct((bsz, h, wd, c), jnp.float32),
        grid=(bsz,),
        in_specs=[pl.BlockSpec((1, h + 2, wd + 2, c), lambda i: (i, 0, 0, 0)),
                  pl.BlockSpec((9, c), lambda i: (0, 0)),
                  pl.BlockSpec((1, c), lambda i: (0, 0))],
        out_specs=pl.BlockSpec((1, h, wd, c), lambda i: (i, 0, 0, 0)),
        compiler_params=pltpu.CompilerParams(dimension_semantics=("parallel",)),
    )(xp, w, b.reshape(1, c))


def depthwise3x3(x_hwc, w, b=None, act='none'):
    c = x_hwc.shape[-1]
    if b is None:
        b = jnp.zeros((c,), jnp.float32)
    return _dw_jit(x_hwc.astype(jnp.float32), w.astype(jnp.float32),
                   b.astype(jnp.float32), act=act)


# ----------------------------------------------------------------------------
# 3x3 conv: in-kernel 9-tap shifted-load conv (no im2col).  9 bf16 MXU
# matmuls of (H*W, Cin) @ (Cin, Cout) accumulated in f32.
# ----------------------------------------------------------------------------
def _conv3_kernel(xp_ref, w_ref, b_ref, o_ref, *, H, W, act):
    cin = xp_ref.shape[-1]
    cout = o_ref.shape[-1]
    acc = jnp.zeros((H * W, cout), jnp.float32)
    for k in range(9):
        ky, kx = divmod(k, 3)
        patch = xp_ref[0, ky:ky + H, kx:kx + W, :].reshape(H * W, cin)
        acc = acc + jnp.dot(patch.astype(jnp.bfloat16), w_ref[k],
                            preferred_element_type=jnp.float32)
    o_ref[0] = _apply_act(acc + b_ref[...], act)


@functools.partial(jax.jit, static_argnames=('act',))
def conv3x3_nchw(x, w, b, act='none'):
    bsz, c, h, wd = x.shape
    cout = w.shape[-1]
    xh = x.transpose(0, 2, 3, 1).astype(jnp.float32)
    xp = jnp.pad(xh, ((0, 0), (1, 1), (1, 1), (0, 0)))
    wk = w.reshape(9, c, cout).astype(jnp.bfloat16)
    bb = b.reshape(1, cout).astype(jnp.float32)
    y = pl.pallas_call(
        functools.partial(_conv3_kernel, H=h, W=wd, act=act),
        out_shape=jax.ShapeDtypeStruct((bsz, h * wd, cout), jnp.float32),
        grid=(bsz,),
        in_specs=[pl.BlockSpec((1, h + 2, wd + 2, c), lambda i: (i, 0, 0, 0)),
                  pl.BlockSpec((9, c, cout), lambda i: (0, 0, 0)),
                  pl.BlockSpec((1, cout), lambda i: (0, 0))],
        out_specs=pl.BlockSpec((1, h * wd, cout), lambda i: (i, 0, 0)),
        compiler_params=pltpu.CompilerParams(
            dimension_semantics=("parallel",),
            vmem_limit_bytes=_MM_VMEM_LIMIT),
    )(xp, wk, bb)
    return y.reshape(bsz, h, wd, cout).transpose(0, 3, 1, 2)


# ----------------------------------------------------------------------------
# Batched 4-direction x_proj + dt_proj.  Directions 2/3 share the unflipped
# inputs of directions 0/1 (index_map k % 2); reversal is handled in the scan.
# ----------------------------------------------------------------------------
def _xproj_kernel(x_ref, xw_ref, dtw_ref, dl_ref, b_ref, c_ref, *, r, n):
    x = x_ref[0].astype(jnp.bfloat16)
    dbl = jnp.dot(x, xw_ref[0], preferred_element_type=jnp.float32)
    dl_ref[0] = jnp.dot(dbl[:, :r].astype(jnp.bfloat16), dtw_ref[0],
                        preferred_element_type=jnp.float32)
    b_ref[0] = dbl[:, r:r + n]
    c_ref[0] = dbl[:, r + n:r + 2 * n]


@functools.partial(jax.jit, static_argnames=('r', 'n'))
def xproj_4dir(xs2, xw, dtw, *, r, n):
    _, M, d = xs2.shape                     # xs2: (2, M, d) unflipped dirs
    xw = xw.astype(jnp.bfloat16)
    dtw = dtw.astype(jnp.bfloat16)
    tr = _row_tile(M)
    return pl.pallas_call(
        functools.partial(_xproj_kernel, r=r, n=n),
        out_shape=(jax.ShapeDtypeStruct((4, M, d), jnp.float32),
                   jax.ShapeDtypeStruct((4, M, n), jnp.float32),
                   jax.ShapeDtypeStruct((4, M, n), jnp.float32)),
        grid=(4, pl.cdiv(M, tr)),
        in_specs=[pl.BlockSpec((1, tr, d), lambda k, i: (k % 2, i, 0)),
                  pl.BlockSpec((1, d, r + 2 * n), lambda k, i: (k, 0, 0)),
                  pl.BlockSpec((1, r, d), lambda k, i: (k, 0, 0))],
        out_specs=(pl.BlockSpec((1, tr, d), lambda k, i: (k, i, 0)),
                   pl.BlockSpec((1, tr, n), lambda k, i: (k, i, 0)),
                   pl.BlockSpec((1, tr, n), lambda k, i: (k, i, 0))),
        compiler_params=pltpu.CompilerParams(
            dimension_semantics=("parallel", "parallel")),
    )(xs2, xw, dtw)


# ----------------------------------------------------------------------------
# Selective scan (S6), chunked over the sequence with the SSM state in a VMEM
# scratch across chunks.  Reverse directions (gi // bsz >= 2) walk chunks and
# in-chunk timesteps backwards; h history is written in-place into inp_scr
# (inp[t] is dead after step t), saving one (tch,n,d) scratch.
# TODO(synk): block multiple groups per grid step for small d_inner stages.
# ----------------------------------------------------------------------------
def _scan_kernel(u_ref, dl_ref, b_ref, c_ref, a_ref, d_ref, db_ref, y_ref,
                 h_scr, da_scr, inp_scr, *, bsz):
    ci = pl.program_id(1)
    rev = (pl.program_id(0) // bsz) // 2          # 0: forward, 1: reversed

    @pl.when(ci == 0)
    def _init():
        h_scr[...] = jnp.zeros_like(h_scr)

    A = a_ref[0]                                   # (N, D)
    u = u_ref[0]                                   # (T, D)
    dt = _softplus(dl_ref[0] + db_ref[0])          # (T, D)
    da_scr[...] = jnp.exp(dt[:, None, :] * A[None, :, :])            # (T, N, D)
    inp_scr[...] = b_ref[0][:, :, None] * (dt * u)[:, None, :]       # (T, N, D)

    T = u.shape[0]

    def body(t, h):
        idx = rev * (T - 1 - t) + (1 - rev) * t
        h = (da_scr[pl.ds(idx, 1), :, :][0] * h
             + inp_scr[pl.ds(idx, 1), :, :][0])
        inp_scr[pl.ds(idx, 1), :, :] = h[None]
        return h

    unroll = 4 if T % 4 == 0 else 1
    h_scr[...] = lax.fori_loop(0, T, body, h_scr[...], unroll=unroll)

    cmat = c_ref[0]                                # (T, N)
    y = d_ref[0] * u                               # (T, D)
    for j in range(cmat.shape[1]):
        y = y + cmat[:, j:j + 1] * inp_scr[:, j, :]
    y_ref[0] = y


def _pick_chunk(L, d, n, budget):
    if L <= 128:
        return L
    per_pos = 4 * (2 * n * d + 2 * (3 * d + 2 * n))
    t = max(8, budget // max(per_pos, 1))
    for cand in (512, 256, 128, 64, 32, 16, 8):
        if cand <= t and cand <= L:
            return cand
    return 8


@functools.partial(jax.jit, static_argnames=('bsz',))
def selective_scan(u2, dl, bm, cmat, a_t, dv, dtb, *, bsz):
    # u2: (2*bsz, L, d) unflipped dirs; dl/bm/cmat: (4*bsz, L, .)
    g, L, d = dl.shape
    n = a_t.shape[1]
    tch = _pick_chunk(L, d, n, _SCAN_BUDGET)
    Lp = ((L + tch - 1) // tch) * tch
    if Lp != L:
        pad = ((0, 0), (0, Lp - L), (0, 0))
        u2 = jnp.pad(u2, pad)
        dl = jnp.pad(dl, pad)
        bm = jnp.pad(bm, pad)
        cmat = jnp.pad(cmat, pad)
    nch = Lp // tch
    two_b = 2 * bsz

    def _chunk(gi, ci):
        rv = (gi // bsz) // 2
        return rv * (nch - 1 - ci) + (1 - rv) * ci

    u_map = lambda gi, ci: (gi % two_b, _chunk(gi, ci), 0)
    s_map = lambda gi, ci: (gi, _chunk(gi, ci), 0)
    kmap = lambda gi, ci: (gi // bsz, 0, 0)

    y = pl.pallas_call(
        functools.partial(_scan_kernel, bsz=bsz),
        out_shape=jax.ShapeDtypeStruct((g, Lp, d), jnp.float32),
        grid=(g, nch),
        in_specs=[pl.BlockSpec((1, tch, d), u_map),
                  pl.BlockSpec((1, tch, d), s_map),
                  pl.BlockSpec((1, tch, n), s_map),
                  pl.BlockSpec((1, tch, n), s_map),
                  pl.BlockSpec((1, n, d), kmap),
                  pl.BlockSpec((1, 1, d), kmap),
                  pl.BlockSpec((1, 1, d), kmap)],
        out_specs=pl.BlockSpec((1, tch, d), s_map),
        scratch_shapes=[pltpu.VMEM((n, d), jnp.float32),
                        pltpu.VMEM((tch, n, d), jnp.float32),
                        pltpu.VMEM((tch, n, d), jnp.float32)],
        compiler_params=pltpu.CompilerParams(
            dimension_semantics=("parallel", "arbitrary"),
            vmem_limit_bytes=_SCAN_VMEM_LIMIT),
    )(u2, dl, bm, cmat, a_t, dv, dtb)
    return y[:, :L] if Lp != L else y


# ----------------------------------------------------------------------------
# Spatial-attention dilated 7x7 conv (2->1 channels): direct VPU kernel.
# ----------------------------------------------------------------------------
def _satt_kernel(xp_ref, w_ref, b_ref, o_ref, *, H, W):
    acc = jnp.zeros((H, W), jnp.float32)
    for c in range(2):
        for k in range(49):
            ky, kx = divmod(k, 7)
            acc = acc + xp_ref[0, c, ky * 3:ky * 3 + H, kx * 3:kx * 3 + W] * w_ref[c, k]
    o_ref[0, 0] = _sigmoid(acc + b_ref[0])


@jax.jit
def spatial_att(t, w, b):
    bsz, _, h, wd = t.shape
    a = jnp.concatenate([jnp.mean(t, 1, keepdims=True),
                         jnp.max(t, 1, keepdims=True)], axis=1)
    ap = jnp.pad(a.astype(jnp.float32), ((0, 0), (0, 0), (9, 9), (9, 9)))
    return pl.pallas_call(
        functools.partial(_satt_kernel, H=h, W=wd),
        out_shape=jax.ShapeDtypeStruct((bsz, 1, h, wd), jnp.float32),
        grid=(bsz,),
        in_specs=[pl.BlockSpec((1, 2, h + 18, wd + 18), lambda i: (i, 0, 0, 0)),
                  pl.BlockSpec(memory_space=pltpu.MemorySpace.SMEM),
                  pl.BlockSpec(memory_space=pltpu.MemorySpace.SMEM)],
        out_specs=pl.BlockSpec((1, 1, h, wd), lambda i: (i, 0, 0, 0)),
        compiler_params=pltpu.CompilerParams(dimension_semantics=("parallel",)),
    )(ap, w.astype(jnp.float32), b.astype(jnp.float32))


# ----------------------------------------------------------------------------
# Final 1x1 conv to a single class: VPU channel reduce.
# ----------------------------------------------------------------------------
def _c1_kernel(x_ref, w_ref, b_ref, o_ref, *, C):
    acc = x_ref[0, 0] * w_ref[0]
    for c in range(1, C):
        acc = acc + x_ref[0, c] * w_ref[c]
    o_ref[0, 0] = acc + b_ref[0]


@jax.jit
def conv1x1_to1(x, w, b):
    bsz, c, h, wd = x.shape
    return pl.pallas_call(
        functools.partial(_c1_kernel, C=c),
        out_shape=jax.ShapeDtypeStruct((bsz, 1, h, wd), jnp.float32),
        grid=(bsz,),
        in_specs=[pl.BlockSpec((1, c, h, wd), lambda i: (i, 0, 0, 0)),
                  pl.BlockSpec(memory_space=pltpu.MemorySpace.SMEM),
                  pl.BlockSpec(memory_space=pltpu.MemorySpace.SMEM)],
        out_specs=pl.BlockSpec((1, 1, h, wd), lambda i: (i, 0, 0, 0)),
        compiler_params=pltpu.CompilerParams(dimension_semantics=("parallel",)),
    )(x.astype(jnp.float32), w.reshape(c).astype(jnp.float32),
      b.reshape(1).astype(jnp.float32))


# ----------------------------------------------------------------------------
# Pool / upsample glue (XLA).
# ----------------------------------------------------------------------------
@jax.jit
def maxpool2(x):
    bsz, c, h, wd = x.shape
    return x.reshape(bsz, c, h // 2, 2, wd // 2, 2).max(axis=(3, 5))


@jax.jit
def upsample2x(x):
    # F.interpolate(scale_factor=2, mode='bilinear', align_corners=True)
    bsz, c, h, wd = x.shape
    ho, wo = 2 * h, 2 * wd

    def coords(n_in, n_out):
        if n_in == 1:
            zi = jnp.zeros((n_out,), jnp.int32)
            return jnp.zeros((n_out,), jnp.float32), zi, zi
        s = (n_in - 1) / (n_out - 1)
        src = jnp.arange(n_out, dtype=jnp.float32) * s
        i0 = jnp.clip(jnp.floor(src).astype(jnp.int32), 0, n_in - 2)
        return src - i0.astype(jnp.float32), i0, i0 + 1

    fy, y0, y1 = coords(h, ho)
    fx, x0, x1 = coords(wd, wo)
    rows = (x[:, :, y0, :] * (1.0 - fy)[None, None, :, None]
            + x[:, :, y1, :] * fy[None, None, :, None])
    return (rows[:, :, :, x0] * (1.0 - fx)[None, None, None, :]
            + rows[:, :, :, x1] * fx[None, None, None, :])


# ----------------------------------------------------------------------------
# SS2D (VMamba selective-scan 2D) forward, channels-last in/out.
# ----------------------------------------------------------------------------
def ss2d_fwd(p, x_hwc):
    bsz, h, w, cmod = x_hwc.shape
    d, r, n = p['d_inner'], p['dt_rank'], p['d_state']
    L = h * w
    M = bsz * L
    xz = matmul(x_hwc.reshape(M, cmod), p['in_proj_w'])
    xh, z = xz[:, :d], xz[:, d:]
    xc = depthwise3x3(xh.reshape(bsz, h, w, d), p['conv_w'], p['conv_b'],
                      act='silu')                                    # (B,H,W,d)

    u0 = xc.reshape(bsz, L, d)
    u1 = xc.transpose(0, 2, 1, 3).reshape(bsz, L, d)
    xs2 = jnp.concatenate([u0, u1], axis=0)                          # (2B,L,d)

    dl, bm, cmat = xproj_4dir(xs2.reshape(2, M, d), p['x_proj_w'], p['dt_w'],
                              r=r, n=n)

    a_t = jnp.transpose(-jnp.exp(p['A_log']), (0, 2, 1))             # (4,n,d)
    y = selective_scan(xs2, dl.reshape(4 * bsz, L, d),
                       bm.reshape(4 * bsz, L, n), cmat.reshape(4 * bsz, L, n),
                       a_t, p['D'][:, None, :], p['dt_b'][:, None, :],
                       bsz=bsz)                                       # (4B,L,d)
    y4 = y.reshape(4, bsz, L, d)

    def wh_to_hw(t):
        return t.reshape(bsz, w, h, d).transpose(0, 2, 1, 3).reshape(bsz, L, d)

    ysum = y4[0] + wh_to_hw(y4[1]) + y4[2] + wh_to_hw(y4[3])
    y_rows = ln_silu_gate(ysum.reshape(M, d), z,
                          p['out_norm_w'], p['out_norm_b'], eps=1e-5)
    out = matmul(y_rows, p['out_proj_w'])
    return out.reshape(bsz, h, w, cmod)


# ----------------------------------------------------------------------------
# Local_SS2D / H_SS2D / Block forwards (channels-last internally).
# ----------------------------------------------------------------------------
def local_ss2d_fwd(p, x_hwc, scale=1.0):
    bsz, h, w, c = x_hwc.shape
    c2 = c // 2
    M = bsz * h * w
    rows = layernorm2d(x_hwc.reshape(M, c), p['pre_w'], p['pre_b'], eps=1e-6)
    xn = rows.reshape(bsz, h, w, c)
    x1 = depthwise3x3(xn[..., :c2], p['dw_w'], None)
    x2 = ss2d_fwd(p['ss2d'], xn[..., c2:])
    # channel interleave matches torch.cat([x1.unsqueeze(2), x2.unsqueeze(2)],
    # dim=2).reshape(B, 2*C, a, b)
    xc = jnp.stack([x1, x2], axis=-1).reshape(bsz, h, w, c)
    postw = p['post_w'] * scale
    postb = p['post_b'] * scale
    return layernorm2d(xc.reshape(M, c), postw, postb, eps=1e-6).reshape(bsz, h, w, c)


def h_ss2d_fwd(p, x_hwc, gamma=None, residual=None):
    bsz, h, w, c = x_hwc.shape
    dims = p['dims']
    order = len(dims)
    M = bsz * h * w
    fused = matmul(x_hwc.reshape(M, c), p['proj_in']['w'], p['proj_in']['b'])
    pwa = fused[:, :dims[0]]
    abc = fused[:, dims[0]:]
    dw_rows = local_ss2d_fwd(p['dwconv'], abc.reshape(bsz, h, w, sum(dims)),
                             scale=p['scale']).reshape(M, sum(dims))
    offs = [0]
    for dd in dims:
        offs.append(offs[-1] + dd)
    xx = ew_binary(pwa, dw_rows[:, offs[0]:offs[1]], 'mul')
    xx = ss2d_fwd(p['ss2d_in'], xx.reshape(bsz, h, w, dims[0])).reshape(M, dims[0])
    for i in range(order - 1):
        gate = dw_rows[:, offs[i + 1]:offs[i + 2]]
        xx = matmul(xx, p['pws'][i]['w'], p['pws'][i]['b'], extra=gate, eop='mul')
        xx = ss2d_fwd(p['ss2d'][i], xx.reshape(bsz, h, w, dims[i + 1])).reshape(
            M, dims[i + 1])
    wout, bout = p['proj_out']['w'], p['proj_out']['b']
    if gamma is not None:                       # fold layer-scale into proj_out
        wout = wout * gamma[None, :]
        bout = bout * gamma
    if residual is not None:                    # fuse residual add
        return matmul(xx, wout, bout, extra=residual, eop='add')
    return matmul(xx, wout, bout)


def block_fwd(p, x):
    bsz, c, h, w = x.shape
    x_rows = x.transpose(0, 2, 3, 1).reshape(-1, c).astype(jnp.float32)
    hh = layernorm2d(x_rows, p['norm1_w'], p['norm1_b'], eps=1e-6)
    x_rows = h_ss2d_fwd(p['hss2d'], hh.reshape(bsz, h, w, c),
                        gamma=p['gamma1'], residual=x_rows)
    y = layernorm2d(x_rows, p['norm2_w'], p['norm2_b'], eps=1e-6)
    y = matmul(y, p['pw1']['w'], p['pw1']['b'], act='gelu')
    w2 = p['pw2']['w'] * p['gamma2'][None, :]   # fold gamma2 into pw2
    b2 = p['pw2']['b'] * p['gamma2']
    x_rows = matmul(y, w2, b2, extra=x_rows, eop='add')
    return x_rows.reshape(bsz, h, w, c).transpose(0, 3, 1, 2)


# ----------------------------------------------------------------------------
# SC attention bridge.
# ----------------------------------------------------------------------------
def channel_att(p, ts):
    pooled = jnp.concatenate([jnp.mean(t, axis=(2, 3)) for t in ts], axis=1)
    lc = pooled.shape[1]
    ap = jnp.pad(pooled, ((0, 0), (1, 1)))
    w = p['conv1d_w']
    a = w[0] * ap[:, 0:lc] + w[1] * ap[:, 1:lc + 1] + w[2] * ap[:, 2:lc + 2]
    return [matmul(a, lin['w'], lin['b'], act='sigmoid')[:, :, None, None]
            for lin in p['atts']]


def sc_att_bridge(p, ts):
    r = ts
    satt = [spatial_att(t, p['satt']['w'], p['satt']['b']) for t in ts]
    ts = tuple(s * t for s, t in zip(satt, ts))
    r_ = ts
    ts = tuple(a + b for a, b in zip(ts, r))
    catt = channel_att(p['catt'], ts)
    ts = tuple(c * t for c, t in zip(catt, ts))
    return tuple(a + b for a, b in zip(ts, r_))


# ----------------------------------------------------------------------------
# Deterministic parameter initialization (synthetic; not a checkpoint load).
# ----------------------------------------------------------------------------
_KEY = [jax.random.PRNGKey(0)]


def _nk():
    _KEY[0], k = jax.random.split(_KEY[0])
    return k


def _rand(shape, std=0.02):
    return std * jax.random.normal(_nk(), shape, dtype=jnp.float32)


def init_conv3x3(cin, cout):
    return {'w': _rand((9 * cin, cout), math.sqrt(2.0 / (9 * cout))),
            'b': jnp.zeros((cout,), jnp.float32)}


def init_conv1x1(cin, cout):
    return {'w': _rand((cin, cout), math.sqrt(2.0 / cout)),
            'b': jnp.zeros((cout,), jnp.float32)}


def init_linear(cin, cout):
    return {'w': _rand((cin, cout), 0.02), 'b': jnp.zeros((cout,), jnp.float32)}


def init_ss2d(d_model, d_state=16):
    d_inner = 2 * d_model
    r = max(1, math.ceil(d_model / 16))
    a = jnp.tile(jnp.arange(1, d_state + 1, dtype=jnp.float32)[None, None, :],
                 (4, d_inner, 1))
    return dict(
        d_inner=d_inner, dt_rank=r, d_state=d_state,
        in_proj_w=_rand((d_model, 2 * d_inner)),
        conv_w=_rand((9, d_inner), math.sqrt(2.0 / 9)),
        conv_b=jnp.zeros((d_inner,), jnp.float32),
        x_proj_w=_rand((4, d_inner, r + 2 * d_state)),
        dt_w=_rand((4, r, d_inner), r ** -0.5),
        dt_b=_rand((4, d_inner), 0.1),
        A_log=jnp.log(a),
        D=jnp.ones((4, d_inner), jnp.float32),
        out_norm_w=jnp.ones((d_inner,), jnp.float32),
        out_norm_b=jnp.zeros((d_inner,), jnp.float32),
        out_proj_w=_rand((d_inner, d_model)),
    )


def init_local_ss2d(dim):
    return dict(pre_w=jnp.ones((dim,), jnp.float32),
                pre_b=jnp.zeros((dim,), jnp.float32),
                dw_w=_rand((9, dim // 2), math.sqrt(2.0 / 9)),
                ss2d=init_ss2d(dim // 2),
                post_w=jnp.ones((dim,), jnp.float32),
                post_b=jnp.zeros((dim,), jnp.float32))


def init_h_ss2d(dim, order, s):
    dims = [dim // 2 ** i for i in range(order)][::-1]
    return dict(dims=dims, scale=s,
                proj_in=init_conv1x1(dim, 2 * dim),
                dwconv=init_local_ss2d(sum(dims)),
                proj_out=init_conv1x1(dim, dim),
                pws=[init_conv1x1(dims[i], dims[i + 1]) for i in range(order - 1)],
                ss2d_in=init_ss2d(dims[0]),
                ss2d=[init_ss2d(dims[i + 1]) for i in range(order - 1)])


def init_block(dim, order, s):
    return dict(norm1_w=jnp.ones((dim,), jnp.float32),
                norm1_b=jnp.zeros((dim,), jnp.float32),
                hss2d=init_h_ss2d(dim, order, s),
                norm2_w=jnp.ones((dim,), jnp.float32),
                norm2_b=jnp.zeros((dim,), jnp.float32),
                pw1=init_linear(dim, 4 * dim),
                pw2=init_linear(4 * dim, dim),
                gamma1=1e-6 * jnp.ones((dim,), jnp.float32),
                gamma2=1e-6 * jnp.ones((dim,), jnp.float32))


def init_h_vmunet(num_classes=1, input_channels=3,
                  c_list=(8, 16, 32, 64, 128, 256), depths=(2, 2, 2, 2)):
    orders = [2, 3, 4, 5]
    s = 1.0 / 3.0
    P = {'c_list': list(c_list)}
    P['enc1'] = init_conv3x3(input_channels, c_list[0])
    P['enc2'] = init_conv3x3(c_list[0], c_list[1])
    P['enc3_blocks'] = [init_block(c_list[1], orders[0], s) for _ in range(depths[0])]
    P['enc3_conv'] = init_conv3x3(c_list[1], c_list[2])
    P['enc4_blocks'] = [init_block(c_list[2], orders[1], s) for _ in range(depths[1])]
    P['enc4_conv'] = init_conv3x3(c_list[2], c_list[3])
    P['enc5_blocks'] = [init_block(c_list[3], orders[2], s) for _ in range(depths[2])]
    P['enc5_conv'] = init_conv3x3(c_list[3], c_list[4])
    P['enc6_blocks'] = [init_block(c_list[4], orders[3], s) for _ in range(depths[3])]
    P['enc6_conv'] = init_conv3x3(c_list[4], c_list[5])
    P['dec1_blocks'] = [init_block(c_list[5], orders[3], s) for _ in range(depths[3])]
    P['dec1_conv'] = init_conv3x3(c_list[5], c_list[4])
    P['dec2_blocks'] = [init_block(c_list[4], orders[2], s) for _ in range(depths[2])]
    P['dec2_conv'] = init_conv3x3(c_list[4], c_list[3])
    P['dec3_blocks'] = [init_block(c_list[3], orders[1], s) for _ in range(depths[1])]
    P['dec3_conv'] = init_conv3x3(c_list[3], c_list[2])
    P['dec4_blocks'] = [init_block(c_list[2], orders[0], s) for _ in range(depths[0])]
    P['dec4_conv'] = init_conv3x3(c_list[2], c_list[1])
    P['dec5_conv'] = init_conv3x3(c_list[1], c_list[0])
    for name, c in zip(['ebn1', 'ebn2', 'ebn3', 'ebn4', 'ebn5',
                        'dbn1', 'dbn2', 'dbn3', 'dbn4', 'dbn5'],
                       [c_list[0], c_list[1], c_list[2], c_list[3], c_list[4],
                        c_list[4], c_list[3], c_list[2], c_list[1], c_list[0]]):
        P[name] = {'w': jnp.ones((c,), jnp.float32), 'b': jnp.zeros((c,), jnp.float32)}
    P['final'] = init_conv1x1(c_list[0], num_classes)
    c_sum = sum(c_list[:-1])
    P['scab'] = dict(
        satt=dict(w=_rand((2, 49), math.sqrt(2.0 / 49)),
                  b=jnp.zeros((1,), jnp.float32)),
        catt=dict(conv1d_w=_rand((3,), math.sqrt(2.0 / 3)),
                  atts=[init_linear(c_sum, c) for c in c_list[:-1]]))
    return P


# ----------------------------------------------------------------------------
# Full H_vmunet forward.
# ----------------------------------------------------------------------------
def h_vmunet_forward(P, x):
    def enc_stage(blocks, conv, gn, h):
        for bp in blocks:
            h = block_fwd(bp, h)
        h = conv3x3_nchw(h, conv['w'], conv['b'])
        h = groupnorm(h, gn['w'], gn['b'])
        return ew_unary(maxpool2(h), 'gelu')

    out = conv3x3_nchw(x, P['enc1']['w'], P['enc1']['b'])
    out = groupnorm(out, P['ebn1']['w'], P['ebn1']['b'])
    out = ew_unary(maxpool2(out), 'gelu'); t1 = out
    out = conv3x3_nchw(out, P['enc2']['w'], P['enc2']['b'])
    out = groupnorm(out, P['ebn2']['w'], P['ebn2']['b'])
    out = ew_unary(maxpool2(out), 'gelu'); t2 = out
    out = enc_stage(P['enc3_blocks'], P['enc3_conv'], P['ebn3'], out); t3 = out
    out = enc_stage(P['enc4_blocks'], P['enc4_conv'], P['ebn4'], out); t4 = out
    out = enc_stage(P['enc5_blocks'], P['enc5_conv'], P['ebn5'], out); t5 = out

    t1, t2, t3, t4, t5 = sc_att_bridge(P['scab'], (t1, t2, t3, t4, t5))

    for bp in P['enc6_blocks']:
        out = block_fwd(bp, out)
    out = conv3x3_nchw(out, P['enc6_conv']['w'], P['enc6_conv']['b'], act='gelu')

    for bp in P['dec1_blocks']:
        out = block_fwd(bp, out)
    out = conv3x3_nchw(out, P['dec1_conv']['w'], P['dec1_conv']['b'])
    out5 = groupnorm(out, P['dbn1']['w'], P['dbn1']['b'], act='gelu') + t5

    def dec_stage(blocks, conv, gn, h, skip):
        for bp in blocks:
            h = block_fwd(bp, h)
        h = conv3x3_nchw(h, conv['w'], conv['b'])
        h = groupnorm(h, gn['w'], gn['b'])
        h = upsample2x(h)
        return ew_unary(h, 'gelu') + skip

    out4 = dec_stage(P['dec2_blocks'], P['dec2_conv'], P['dbn2'], out5, t4)
    out3 = dec_stage(P['dec3_blocks'], P['dec3_conv'], P['dbn3'], out4, t3)
    out2 = dec_stage(P['dec4_blocks'], P['dec4_conv'], P['dbn4'], out3, t2)

    o = conv3x3_nchw(out2, P['dec5_conv']['w'], P['dec5_conv']['b'])
    o = groupnorm(o, P['dbn5']['w'], P['dbn5']['b'])
    out1 = ew_unary(upsample2x(o), 'gelu') + t1

    o = conv1x1_to1(out1, P['final']['w'], P['final']['b'])
    o = upsample2x(o)
    return ew_unary(o, 'sigmoid')


if __name__ == "__main__":
    params = init_h_vmunet()
    x = jax.random.normal(jax.random.PRNGKey(0), (2, 3, 32, 32), jnp.float32)
    y = h_vmunet_forward(params, x)
    y = jax.block_until_ready(y)
    assert y.shape == (2, 1, 32, 32), y.shape
    assert bool(jnp.all(jnp.isfinite(y)))
    print("KERNEL_OK")
</pallas_src>

<mosaic_0001>
module attributes {stable_mosaic.version = 11 : i64} {
  func.func @_conv3_kernel(%arg0: i32, %arg1: memref<1x34x34x3xf32, #tpu.memory_space<vmem>>, %arg2: memref<9x3x8xbf16, #tpu.memory_space<vmem>>, %arg3: memref<1x8xf32, #tpu.memory_space<vmem>>, %arg4: memref<1x1024x8xf32, #tpu.memory_space<vmem>>) attributes {dimension_semantics = [#tpu.dimension_semantics<parallel>], iteration_bounds = array<i64: 2>, scalar_prefetch = 0 : i64, scratch_operands = 0 : i64, tpu.core_type = #tpu.core_type<tc>, window_params = [{transform_indices = @transform_0, window_bounds = array<i64: 1, 34, 34, 3>}, {pipeline_mode = #tpu.pipeline_mode<synchronous>, transform_indices = @transform_1, window_bounds = array<i64: 9, 3, 8>}, {pipeline_mode = #tpu.pipeline_mode<synchronous>, transform_indices = @transform_2, window_bounds = array<i64: 1, 8>}, {transform_indices = @transform_3, window_bounds = array<i64: 1, 1024, 8>}]} {
    %cst = arith.constant 0.000000e+00 : f32
    %0 = vector.broadcast %cst : f32 to vector<1024x8xf32>
    %c0 = arith.constant 0 : index
    %c0_0 = arith.constant 0 : index
    %c0_1 = arith.constant 0 : index
    %c0_2 = arith.constant 0 : index
    %1 = vector.load %arg1[%c0, %c0_0, %c0_1, %c0_2] : memref<1x34x34x3xf32, #tpu.memory_space<vmem>>, vector<1x32x32x3xf32>
    %2 = vector.shape_cast %1 : vector<1x32x32x3xf32> to vector<32x32x3xf32>
    %3 = vector.shape_cast %2 : vector<32x32x3xf32> to vector<1024x3xf32>
    %4 = arith.truncf %3 : vector<1024x3xf32> to vector<1024x3xbf16>
    %c0_3 = arith.constant 0 : index
    %c0_4 = arith.constant 0 : index
    %c0_5 = arith.constant 0 : index
    %5 = vector.load %arg2[%c0_3, %c0_4, %c0_5] : memref<9x3x8xbf16, #tpu.memory_space<vmem>>, vector<1x3x8xbf16>
    %6 = vector.shape_cast %5 : vector<1x3x8xbf16> to vector<3x8xbf16>
    %cst_6 = arith.constant dense<0.000000e+00> : vector<1024x8xf32>
    %7 = tpu.matmul %4, %6, %cst_6 {dimension_numbers = #tpu.dot_dimension_numbers<[1], [0], [0], [1], [0, 0, 1, 1], [], []>} : vector<1024x3xbf16>, vector<3x8xbf16>, vector<1024x8xf32> -> vector<1024x8xf32>
    %8 = arith.addf %0, %7 : vector<1024x8xf32>
    %c0_7 = arith.constant 0 : index
    %c0_8 = arith.constant 0 : index
    %c1 = arith.constant 1 : index
    %c0_9 = arith.constant 0 : index
    %9 = vector.load %arg1[%c0_7, %c0_8, %c1, %c0_9] : memref<1x34x34x3xf32, #tpu.memory_space<vmem>>, vector<1x32x32x3xf32>
    %10 = vector.shape_cast %9 : vector<1x32x32x3xf32> to vector<32x32x3xf32>
    %11 = vector.shape_cast %10 : vector<32x32x3xf32> to vector<1024x3xf32>
    %12 = arith.truncf %11 : vector<1024x3xf32> to vector<1024x3xbf16>
    %c1_10 = arith.constant 1 : index
    %c0_11 = arith.constant 0 : index
    %c0_12 = arith.constant 0 : index
    %13 = vector.load %arg2[%c1_10, %c0_11, %c0_12] : memref<9x3x8xbf16, #tpu.memory_space<vmem>>, vector<1x3x8xbf16>
    %14 = vector.shape_cast %13 : vector<1x3x8xbf16> to vector<3x8xbf16>
    %cst_13 = arith.constant dense<0.000000e+00> : vector<1024x8xf32>
    %15 = tpu.matmul %12, %14, %cst_13 {dimension_numbers = #tpu.dot_dimension_numbers<[1], [0], [0], [1], [0, 0, 1, 1], [], []>} : vector<1024x3xbf16>, vector<3x8xbf16>, vector<1024x8xf32> -> vector<1024x8xf32>
    %16 = arith.addf %8, %15 : vector<1024x8xf32>
    %c0_14 = arith.constant 0 : index
    %c0_15 = arith.constant 0 : index
    %c2 = arith.constant 2 : index
    %c0_16 = arith.constant 0 : index
    %17 = vector.load %arg1[%c0_14, %c0_15, %c2, %c0_16] : memref<1x34x34x3xf32, #tpu.memory_space<vmem>>, vector<1x32x32x3xf32>
    %18 = vector.shape_cast %17 : vector<1x32x32x3xf32> to vector<32x32x3xf32>
    %19 = vector.shape_cast %18 : vector<32x32x3xf32> to vector<1024x3xf32>
    %20 = arith.truncf %19 : vector<1024x3xf32> to vector<1024x3xbf16>
    %c2_17 = arith.constant 2 : index
    %c0_18 = arith.constant 0 : index
    %c0_19 = arith.constant 0 : index
    %21 = vector.load %arg2[%c2_17, %c0_18, %c0_19] : memref<9x3x8xbf16, #tpu.memory_space<vmem>>, vector<1x3x8xbf16>
    %22 = vector.shape_cast %21 : vector<1x3x8xbf16> to vector<3x8xbf16>
    %cst_20 = arith.constant dense<0.000000e+00> : vector<1024x8xf32>
    %23 = tpu.matmul %20, %22, %cst_20 {dimension_numbers = #tpu.dot_dimension_numbers<[1], [0], [0], [1], [0, 0, 1, 1], [], []>} : vector<1024x3xbf16>, vector<3x8xbf16>, vector<1024x8xf32> -> vector<1024x8xf32>
    %24 = arith.addf %16, %23 : vector<1024x8xf32>
    %c0_21 = arith.constant 0 : index
    %c1_22 = arith.constant 1 : index
    %c0_23 = arith.constant 0 : index
    %c0_24 = arith.constant 0 : index
    %25 = vector.load %arg1[%c0_21, %c1_22, %c0_23, %c0_24] : memref<1x34x34x3xf32, #tpu.memory_space<vmem>>, vector<1x32x32x3xf32>
    %26 = vector.shape_cast %25 : vector<1x32x32x3xf32> to vector<32x32x3xf32>
    %27 = vector.shape_cast %26 : vector<32x32x3xf32> to vector<1024x3xf32>
    %28 = arith.truncf %27 : vector<1024x3xf32> to vector<1024x3xbf16>
    %c3 = arith.constant 3 : index
    %c0_25 = arith.constant 0 : index
    %c0_26 = arith.constant 0 : index
    %29 = vector.load %arg2[%c3, %c0_25, %c0_26] : memref<9x3x8xbf16, #tpu.memory_space<vmem>>, vector<1x3x8xbf16>
    %30 = vector.shape_cast %29 : vector<1x3x8xbf16> to vector<3x8xbf16>
    %cst_27 = arith.constant dense<0.000000e+00> : vector<1024x8xf32>
    %31 = tpu.matmul %28, %30, %cst_27 {dimension_numbers = #tpu.dot_dimension_numbers<[1], [0], [0], [1], [0, 0, 1, 1], [], []>} : vector<1024x3xbf16>, vector<3x8xbf16>, vector<1024x8xf32> -> vector<1024x8xf32>
    %32 = arith.addf %24, %31 : vector<1024x8xf32>
    %c0_28 = arith.constant 0 : index
    %c1_29 = arith.constant 1 : index
    %c1_30 = arith.constant 1 : index
    %c0_31 = arith.constant 0 : index
    %33 = vector.load %arg1[%c0_28, %c1_29, %c1_30, %c0_31] : memref<1x34x34x3xf32, #tpu.memory_space<vmem>>, vector<1x32x32x3xf32>
    %34 = vector.shape_cast %33 : vector<1x32x32x3xf32> to vector<32x32x3xf32>
    %35 = vector.shape_cast %34 : vector<32x32x3xf32> to vector<1024x3xf32>
    %36 = arith.truncf %35 : vector<1024x3xf32> to vector<1024x3xbf16>
    %c4 = arith.constant 4 : index
    %c0_32 = arith.constant 0 : index
    %c0_33 = arith.constant 0 : index
    %37 = vector.load %arg2[%c4, %c0_32, %c0_33] : memref<9x3x8xbf16, #tpu.memory_space<vmem>>, vector<1x3x8xbf16>
    %38 = vector.shape_cast %37 : vector<1x3x8xbf16> to vector<3x8xbf16>
    %cst_34 = arith.constant dense<0.000000e+00> : vector<1024x8xf32>
    %39 = tpu.matmul %36, %38, %cst_34 {dimension_numbers = #tpu.dot_dimension_numbers<[1], [0], [0], [1], [0, 0, 1, 1], [], []>} : vector<1024x3xbf16>, vector<3x8xbf16>, vector<1024x8xf32> -> vector<1024x8xf32>
    %40 = arith.addf %32, %39 : vector<1024x8xf32>
    %c0_35 = arith.constant 0 : index
    %c1_36 = arith.constant 1 : index
    %c2_37 = arith.constant 2 : index
    %c0_38 = arith.constant 0 : index
    %41 = vector.load %arg1[%c0_35, %c1_36, %c2_37, %c0_38] : memref<1x34x34x3xf32, #tpu.memory_space<vmem>>, vector<1x32x32x3xf32>
    %42 = vector.shape_cast %41 : vector<1x32x32x3xf32> to vector<32x32x3xf32>
    %43 = vector.shape_cast %42 : vector<32x32x3xf32> to vector<1024x3xf32>
    %44 = arith.truncf %43 : vector<1024x3xf32> to vector<1024x3xbf16>
    %c5 = arith.constant 5 : index
    %c0_39 = arith.constant 0 : index
    %c0_40 = arith.constant 0 : index
    %45 = vector.load %arg2[%c5, %c0_39, %c0_40] : memref<9x3x8xbf16, #tpu.memory_space<vmem>>, vector<1x3x8xbf16>
    %46 = vector.shape_cast %45 : vector<1x3x8xbf16> to vector<3x8xbf16>
    %cst_41 = arith.constant dense<0.000000e+00> : vector<1024x8xf32>
    %47 = tpu.matmul %44, %46, %cst_41 {dimension_numbers = #tpu.dot_dimension_numbers<[1], [0], [0], [1], [0, 0, 1, 1], [], []>} : vector<1024x3xbf16>, vector<3x8xbf16>, vector<1024x8xf32> -> vector<1024x8xf32>
    %48 = arith.addf %40, %47 : vector<1024x8xf32>
    %c0_42 = arith.constant 0 : index
    %c2_43 = arith.constant 2 : index
    %c0_44 = arith.constant 0 : index
    %c0_45 = arith.constant 0 : index
    %49 = vector.load %arg1[%c0_42, %c2_43, %c0_44, %c0_45] : memref<1x34x34x3xf32, #tpu.memory_space<vmem>>, vector<1x32x32x3xf32>
    %50 = vector.shape_cast %49 : vector<1x32x32x3xf32> to vector<32x32x3xf32>
    %51 = vector.shape_cast %50 : vector<32x32x3xf32> to vector<1024x3xf32>
    %52 = arith.truncf %51 : vector<1024x3xf32> to vector<1024x3xbf16>
    %c6 = arith.constant 6 : index
    %c0_46 = arith.constant 0 : index
    %c0_47 = arith.constant 0 : index
    %53 = vector.load %arg2[%c6, %c0_46, %c0_47] : memref<9x3x8xbf16, #tpu.memory_space<vmem>>, vector<1x3x8xbf16>
    %54 = vector.shape_cast %53 : vector<1x3x8xbf16> to vector<3x8xbf16>
    %cst_48 = arith.constant dense<0.000000e+00> : vector<1024x8xf32>
    %55 = tpu.matmul %52, %54, %cst_48 {dimension_numbers = #tpu.dot_dimension_numbers<[1], [0], [0], [1], [0, 0, 1, 1], [], []>} : vector<1024x3xbf16>, vector<3x8xbf16>, vector<1024x8xf32> -> vector<1024x8xf32>
    %56 = arith.addf %48, %55 : vector<1024x8xf32>
    %c0_49 = arith.constant 0 : index
    %c2_50 = arith.constant 2 : index
    %c1_51 = arith.constant 1 : index
    %c0_52 = arith.constant 0 : index
    %57 = vector.load %arg1[%c0_49, %c2_50, %c1_51, %c0_52] : memref<1x34x34x3xf32, #tpu.memory_space<vmem>>, vector<1x32x32x3xf32>
    %58 = vector.shape_cast %57 : vector<1x32x32x3xf32> to vector<32x32x3xf32>
    %59 = vector.shape_cast %58 : vector<32x32x3xf32> to vector<1024x3xf32>
    %60 = arith.truncf %59 : vector<1024x3xf32> to vector<1024x3xbf16>
    %c7 = arith.constant 7 : index
    %c0_53 = arith.constant 0 : index
    %c0_54 = arith.constant 0 : index
    %61 = vector.load %arg2[%c7, %c0_53, %c0_54] : memref<9x3x8xbf16, #tpu.memory_space<vmem>>, vector<1x3x8xbf16>
    %62 = vector.shape_cast %61 : vector<1x3x8xbf16> to vector<3x8xbf16>
    %cst_55 = arith.constant dense<0.000000e+00> : vector<1024x8xf32>
    %63 = tpu.matmul %60, %62, %cst_55 {dimension_numbers = #tpu.dot_dimension_numbers<[1], [0], [0], [1], [0, 0, 1, 1], [], []>} : vector<1024x3xbf16>, vector<3x8xbf16>, vector<1024x8xf32> -> vector<1024x8xf32>
    %64 = arith.addf %56, %63 : vector<1024x8xf32>
    %c0_56 = arith.constant 0 : index
    %c2_57 = arith.constant 2 : index
    %c2_58 = arith.constant 2 : index
    %c0_59 = arith.constant 0 : index
    %65 = vector.load %arg1[%c0_56, %c2_57, %c2_58, %c0_59] : memref<1x34x34x3xf32, #tpu.memory_space<vmem>>, vector<1x32x32x3xf32>
    %66 = vector.shape_cast %65 : vector<1x32x32x3xf32> to vector<32x32x3xf32>
    %67 = vector.shape_cast %66 : vector<32x32x3xf32> to vector<1024x3xf32>
    %68 = arith.truncf %67 : vector<1024x3xf32> to vector<1024x3xbf16>
    %c8 = arith.constant 8 : index
    %c0_60 = arith.constant 0 : index
    %c0_61 = arith.constant 0 : index
    %69 = vector.load %arg2[%c8, %c0_60, %c0_61] : memref<9x3x8xbf16, #tpu.memory_space<vmem>>, vector<1x3x8xbf16>
    %70 = vector.shape_cast %69 : vector<1x3x8xbf16> to vector<3x8xbf16>
    %cst_62 = arith.constant dense<0.000000e+00> : vector<1024x8xf32>
    %71 = tpu.matmul %68, %70, %cst_62 {dimension_numbers = #tpu.dot_dimension_numbers<[1], [0], [0], [1], [0, 0, 1, 1], [], []>} : vector<1024x3xbf16>, vector<3x8xbf16>, vector<1024x8xf32> -> vector<1024x8xf32>
    %72 = arith.addf %64, %71 : vector<1024x8xf32>
    %c0_63 = arith.constant 0 : index
    %c0_64 = arith.constant 0 : index
    %73 = vector.load %arg3[%c0_63, %c0_64] : memref<1x8xf32, #tpu.memory_space<vmem>>, vector<1x8xf32>
    %74 = vector.broadcast %73 : vector<1x8xf32> to vector<1024x8xf32>
    %75 = arith.addf %72, %74 : vector<1024x8xf32>
    %c0_65 = arith.constant 0 : index
    %c0_66 = arith.constant 0 : index
    %c0_67 = arith.constant 0 : index
    %76 = vector.load %arg4[%c0_65, %c0_66, %c0_67] : memref<1x1024x8xf32, #tpu.memory_space<vmem>>, vector<1x1024x8xf32>
    %77 = vector.shape_cast %76 : vector<1x1024x8xf32> to vector<1024x8xf32>
    %78 = vector.shape_cast %75 : vector<1024x8xf32> to vector<1x1024x8xf32>
    tpu.vector_store %arg4[%c0_65, %c0_66, %c0_67], %78 {strides = array<i32>} : memref<1x1024x8xf32, #tpu.memory_space<vmem>>, vector<1x1024x8xf32>,
    return
  }
  func.func @transform_0(%arg0: i32) -> (i32, i32, i32, i32) {
    %c0_i32 = arith.constant 0 : i32
    %c0_i32_0 = arith.constant 0 : i32
    %c0_i32_1 = arith.constant 0 : i32
    %c0_i32_2 = arith.constant 0 : i32
    return %arg0, %c0_i32, %c0_i32_0, %c0_i32_1 : i32, i32, i32, i32
  }
  func.func @transform_1(%arg0: i32) -> (i32, i32, i32) {
    %c0_i32 = arith.constant 0 : i32
    %c0_i32_0 = arith.constant 0 : i32
    %c0_i32_1 = arith.constant 0 : i32
    %c0_i32_2 = arith.constant 0 : i32
    return %c0_i32, %c0_i32_0, %c0_i32_1 : i32, i32, i32
  }
  func.func @transform_2(%arg0: i32) -> (i32, i32) {
    %c0_i32 = arith.constant 0 : i32
    %c0_i32_0 = arith.constant 0 : i32
    %c0_i32_1 = arith.constant 0 : i32
    return %c0_i32, %c0_i32_0 : i32, i32
  }
  func.func @transform_3(%arg0: i32) -> (i32, i32, i32) {
    %c0_i32 = arith.constant 0 : i32
    %c0_i32_0 = arith.constant 0 : i32
    %c0_i32_1 = arith.constant 0 : i32
    return %arg0, %c0_i32, %c0_i32_0 : i32, i32, i32
  }
}

</mosaic_0001>

<llo_original>
// kernel: conv3x3_nchw.1
$region0: #{conv3x3_nchw.1}
  #allocation0 [shape = 'u32[]', space=smem, size = 0x4, offset = 0x4, fixed_abs, tag = 'smem constant byte address 0x4 - core index']
  #allocation1 [shape = 'u32[72,128]{1,0:T(1,128)}', space=vmem, size = 0x9000, scoped, tag = 'internal scratch']
  %s0 = inlined_call_operand.vmem [shape: f32[2,34,34,3], index: 0, kind: input, shape index: {}]
  %s1 = inlined_call_operand.vmem [shape: bf16[9,3,8], index: 1, kind: input, shape index: {}]
  %s2 = inlined_call_operand.vmem [shape: f32[1,8], index: 2, kind: input, shape index: {}]
  %s3 = inlined_call_operand.vmem [shape: f32[2,1024,8], index: 3, kind: output, shape index: {}]
  %s4 = sld [smem:[#allocation0]]
  $region45: #{conv3x3_nchw.1} parent=0
    _
  %s6 = ssub.s32 1, %s4
  %s7 = scalar_select 0, %s6, %s4
  loop: start=0, step=1, limit=4
  $region2: #{conv3x3_nchw.1} parent=0 // loop_pre_header
    _
  $region3: #{conv3x3_nchw.1} parent=0 // loop_header
    %s9 = sphi 0, %s13
    %p10 = scmp.ge.s32.totalorder %s9, 4
    %s19 = sphi 0, %s21
    %s22 = sphi 0, %s19
    %s23 = sphi 0, %s22
    %s39 = sphi 0, %s23
    %s43 = sphi 0, %s43
    %s45 = sphi 0, %s43
    %s46 = sphi 0, %s45
    %s60 = sphi 0, %s46
    %s64 = sphi 0, %s64
    %s66 = sphi 0, %s64
    %s67 = sphi 0, %s66
    %s81 = sphi 0, %s67
    %s87 = sphi 0, %s89
    %s90 = sphi 0, %s87
    %s91 = sphi 0, %s90
    %s107 = sphi 0, %s91
  $region4: #{conv3x3_nchw.1} parent=0 // loop_header_branch
    %12 = sbr.rel (%p10) target = $region8
  $region5: #{conv3x3_nchw.1} parent=0 // loop_body
    %s14 = ssub.s32 %s9, 1
    %s15 = ssub.s32 %s9, 2
    %s16 = sadd.s32 %s9, 1
    %s17 = ssub.s32 %s9, %s16
    %p18 = scmp.eq.s32.totalorder %s17, 0
    %s20 = sadd.s32 %s19, 1
    %s21 = scalar_select %p18, %s19, %s20
    %p24 = pneg %p18
    %p25 = scmp.eq.s32.totalorder %s9, 1
    %p26 = por %p24, %p25
    %p27 = scmp.ne.s32.totalorder %s19, %s22
    %p28 = scmp.eq.s32.totalorder %s9, 0
    %p29 = por %p27, %p28
    %p30 = scmp.ne.s32.totalorder %s19, %s22
    %p31 = scmp.eq.s32.totalorder %s14, 1
    %p32 = por %p30, %p31
    %p33 = scmp.ne.s32.totalorder %s22, %s23
    %p34 = scmp.eq.s32.totalorder %s14, 0
    %p35 = por %p33, %p34
    %p36 = scmp.ne.s32.totalorder %s22, %s23
    %p37 = scmp.eq.s32.totalorder %s15, 1
    %p38 = por %p36, %p37
    %p40 = scmp.ne.s32.totalorder %s23, %s39
    %p41 = scmp.eq.s32.totalorder %s15, 0
    %p42 = por %p40, %p41
    %s44 = sadd.s32 %s43, 1
    %p47 = scmp.eq.s32.totalorder %s9, 1
    %p48 = scmp.ne.s32.totalorder %s43, %s45
    %p49 = scmp.eq.s32.totalorder %s9, 0
    %p50 = por %p48, %p49
    %p51 = scmp.ne.s32.totalorder %s43, %s45
    %p52 = scmp.eq.s32.totalorder %s14, 1
    %p53 = por %p51, %p52
    %p54 = scmp.ne.s32.totalorder %s45, %s46
    %p55 = scmp.eq.s32.totalorder %s14, 0
    %p56 = por %p54, %p55
    %p57 = scmp.ne.s32.totalorder %s45, %s46
    %p58 = scmp.eq.s32.totalorder %s15, 1
    %p59 = por %p57, %p58
    %p61 = scmp.ne.s32.totalorder %s46, %s60
    %p62 = scmp.eq.s32.totalorder %s15, 0
    %p63 = por %p61, %p62
    %s65 = sadd.s32 %s64, 1
    %p68 = scmp.eq.s32.totalorder %s9, 1
    %p69 = scmp.ne.s32.totalorder %s64, %s66
    %p70 = scmp.eq.s32.totalorder %s9, 0
    %p71 = por %p69, %p70
    %p72 = scmp.ne.s32.totalorder %s64, %s66
    %p73 = scmp.eq.s32.totalorder %s14, 1
    %p74 = por %p72, %p73
    %p75 = scmp.ne.s32.totalorder %s66, %s67
    %p76 = scmp.eq.s32.totalorder %s14, 0
    %p77 = por %p75, %p76
    %p78 = scmp.ne.s32.totalorder %s66, %s67
    %p79 = scmp.eq.s32.totalorder %s15, 1
    %p80 = por %p78, %p79
    %p82 = scmp.ne.s32.totalorder %s67, %s81
    %p83 = scmp.eq.s32.totalorder %s15, 0
    %p84 = por %p82, %p83
    %s85 = ssub.s32 %s9, %s16
    %p86 = scmp.eq.s32.totalorder %s85, 0
    %s88 = sadd.s32 %s87, 1
    %s89 = scalar_select %p86, %s87, %s88
    %p92 = pneg %p86
    %p93 = scmp.eq.s32.totalorder %s9, 1
    %p94 = por %p92, %p93
    %p95 = scmp.ne.s32.totalorder %s87, %s90
    %p96 = scmp.eq.s32.totalorder %s9, 0
    %p97 = por %p95, %p96
    %p98 = scmp.ne.s32.totalorder %s87, %s90
    %p99 = scmp.eq.s32.totalorder %s14, 1
    %p100 = por %p98, %p99
    %p101 = scmp.ne.s32.totalorder %s90, %s91
    %p102 = scmp.eq.s32.totalorder %s14, 0
    %p103 = por %p101, %p102
    %p104 = scmp.ne.s32.totalorder %s90, %s91
    %p105 = scmp.eq.s32.totalorder %s15, 1
    %p106 = por %p104, %p105
    %p108 = scmp.ne.s32.totalorder %s91, %s107
    %p109 = scmp.eq.s32.totalorder %s15, 0
    %p110 = por %p108, %p109
    %p111 = scmp.le.s32.totalorder 1, %s9
    %p112 = scmp.lt.s32.totalorder %s9, 3
    %p113 = pnand %p111, %p112
    %p114 = pneg %p113
    // Predicated region
    $region9: #{conv3x3_nchw.1} parent=5 // pred_check
      _
    $region10: #{conv3x3_nchw.1} parent=5 // pred_check_branch
      %116 = sbr.rel (%p113) target = $region12
    $region11: #{conv3x3_nchw.1} parent=5 // pred_region
      %s117 = ssub.s32 %s9, 1
      // Predicated region
      $region13: #{conv3x3_nchw.1} parent=11 // pred_check
        %p118 = pneg %p56
      $region14: #{conv3x3_nchw.1} parent=11 // pred_check_branch
        %120 = sbr.rel (%p118) target = $region16
      $region15: #{conv3x3_nchw.1} parent=11 // pred_region
        _
      $region16: #{conv3x3_nchw.1} parent=11 // pred_fallthru
        _
      // Predicated region
      $region17: #{conv3x3_nchw.1} parent=11 // pred_check
        %p121 = pneg %p77
      $region18: #{conv3x3_nchw.1} parent=11 // pred_check_branch
        %123 = sbr.rel (%p121) target = $region20
      $region19: #{conv3x3_nchw.1} parent=11 // pred_region
        _
      $region20: #{conv3x3_nchw.1} parent=11 // pred_fallthru
        _
    $region12: #{conv3x3_nchw.1} parent=5 // pred_fallthru
      _
    %p124 = scmp.lt.s32.totalorder %s9, 2
    // Predicated region
    $region21: #{conv3x3_nchw.1} parent=5 // pred_check
      %p125 = pneg %p124
    $region22: #{conv3x3_nchw.1} parent=5 // pred_check_branch
      %127 = sbr.rel (%p125) target = $region24
    $region23: #{conv3x3_nchw.1} parent=5 // pred_region
      // Predicated region
      $region25: #{conv3x3_nchw.1} parent=23 // pred_check
        %p128 = pneg %p29
      $region26: #{conv3x3_nchw.1} parent=23 // pred_check_branch
        %130 = sbr.rel (%p128) target = $region28
      $region27: #{conv3x3_nchw.1} parent=23 // pred_region
        %p131 = scmp.lt.s32.totalorder %s9, 1
        %s132 = scalar_select %p131, %s9, 1
        %s133 = smul.addr %s132, 170
        %s134 = smul.addr %s133, 8
        %s135 = scalar_lea.vmem %s0, %s134
      $region28: #{conv3x3_nchw.1} parent=23 // pred_fallthru
        _
    $region24: #{conv3x3_nchw.1} parent=5 // pred_fallthru
      _
    %p136 = scmp.le.s32.totalorder 1, %s9
    %p137 = scmp.lt.s32.totalorder %s9, 3
    %p138 = pnand %p136, %p137
    %p139 = pneg %p138
    // Predicated region
    $region29: #{conv3x3_nchw.1} parent=5 // pred_check
      _
    $region30: #{conv3x3_nchw.1} parent=5 // pred_check_branch
      %141 = sbr.rel (%p138) target = $region32
    $region31: #{conv3x3_nchw.1} parent=5 // pred_region
      %s142 = ssub.s32 %s9, 1
      %p143 = scmp.lt.s32.totalorder %s14, 1
      %s144 = scalar_select %p143, %s14, 1
      %s145 = smul.addr %s144, 170
      %s146 = smul.addr %s145, 8
      %s147 = scalar_lea.vmem %s0, %s146
      %p148 = pneg %p35
      %p149 = pneg %p32
      %p150 = pneg %p56
      %p151 = pneg %p53
      %p152 = pneg %p77
      %p153 = pneg %p74
      %p154 = pneg %p103
      %p155 = pneg %p100
      %p156 = scmp.lt.s32.totalorder %s14, 1
      %s157 = scalar_select %p156, %s14, 1
      %s158 = smul.addr %s157, 128
      %s159 = smul.addr %s158, 8
      %s160 = scalar_lea.vmem %s3, %s159
      %p161 = scmp.lt.s32.totalorder %s14, 1
      %s162 = scalar_select %p161, %s14, 1
      %s163 = smul.addr %s162, 170
      %s164 = smul.addr %s163, 8
      %s165 = scalar_lea.vmem %s0, %s164
      %p166 = scmp.lt.s32.totalorder %s14, 1
      %s167 = scalar_select %p166, %s14, 1
      %s168 = smul.addr %s167, 128
      %s169 = smul.addr %s168, 8
      %s170 = scalar_lea.vmem %s3, %s169
      %v172 = vld [vmem:[%s165] sm:$0xff]
      %v173 = vld [vmem:[%s165 + $0x8] sm:$0xff]
      %v174 = vld [vmem:[%s165 + $0x10] sm:$0xff]
      %v175 = vld [vmem:[%s165 + $0x18] sm:$0xff]
      %v176 = vld [vmem:[%s165 + $0x28] sm:$0xff]
      %v177 = vld [vmem:[%s165 + $0x30] sm:$0xff]
      %v178 = vld [vmem:[%s165 + $0x38] sm:$0xff]
      %v179 = vld [vmem:[%s165 + $0x40] sm:$0xff]
      %v180 = vld [vmem:[%s165 + $0x50] sm:$0xff]
      %v181 = vld [vmem:[%s165 + $0x58] sm:$0xff]
      %v182 = vld [vmem:[%s165 + $0x60] sm:$0xff]
      %v183 = vld [vmem:[%s165 + $0x68] sm:$0xff]
      %v184 = vld [vmem:[%s165 + $0x78] sm:$0xff]
      %v185 = vld [vmem:[%s165 + $0x80] sm:$0xff]
      %v186 = vld [vmem:[%s165 + $0x88] sm:$0xff]
      %v187 = vld [vmem:[%s165 + $0x90] sm:$0xff]
      %v188 = vld [vmem:[%s165 + $0xa0] sm:$0xff]
      %v189 = vld [vmem:[%s165 + $0xa8] sm:$0xff]
      %v190 = vld [vmem:[%s165 + $0xb0] sm:$0xff]
      %v191 = vld [vmem:[%s165 + $0xb8] sm:$0xff]
      %v192 = vld [vmem:[%s165 + $0xc8] sm:$0xff]
      %v193 = vld [vmem:[%s165 + $0xd0] sm:$0xff]
      %v194 = vld [vmem:[%s165 + $0xd8] sm:$0xff]
      %v195 = vld [vmem:[%s165 + $0xe0] sm:$0xff]
      %v196 = vld [vmem:[%s165 + $0xf0] sm:$0xff]
      %v197 = vld [vmem:[%s165 + $0xf8] sm:$0xff]
      %v198 = vld [vmem:[%s165 + $0x100] sm:$0xff]
      %v199 = vld [vmem:[%s165 + $0x108] sm:$0xff]
      %v200 = vld [vmem:[%s165 + $0x118] sm:$0xff]
      %v201 = vld [vmem:[%s165 + $0x120] sm:$0xff]
      %v202 = vld [vmem:[%s165 + $0x128] sm:$0xff]
      %v203 = vld [vmem:[%s165 + $0x130] sm:$0xff]
      %v204 = vld [vmem:[%s165 + $0x140] sm:$0xff]
      %v205 = vld [vmem:[%s165 + $0x148] sm:$0xff]
      %v206 = vld [vmem:[%s165 + $0x150] sm:$0xff]
      %v207 = vld [vmem:[%s165 + $0x158] sm:$0xff]
      %v208 = vld [vmem:[%s165 + $0x168] sm:$0xff]
      %v209 = vld [vmem:[%s165 + $0x170] sm:$0xff]
      %v210 = vld [vmem:[%s165 + $0x178] sm:$0xff]
      %v211 = vld [vmem:[%s165 + $0x180] sm:$0xff]
      %v212 = vld [vmem:[%s165 + $0x190] sm:$0xff]
      %v213 = vld [vmem:[%s165 + $0x198] sm:$0xff]
      %v214 = vld [vmem:[%s165 + $0x1a0] sm:$0xff]
      %v215 = vld [vmem:[%s165 + $0x1a8] sm:$0xff]
      %v216 = vld [vmem:[%s165 + $0x1b8] sm:$0xff]
      %v217 = vld [vmem:[%s165 + $0x1c0] sm:$0xff]
      %v218 = vld [vmem:[%s165 + $0x1c8] sm:$0xff]
      %v219 = vld [vmem:[%s165 + $0x1d0] sm:$0xff]
      %v220 = vld [vmem:[%s165 + $0x1e0] sm:$0xff]
      %v221 = vld [vmem:[%s165 + $0x1e8] sm:$0xff]
      %v222 = vld [vmem:[%s165 + $0x1f0] sm:$0xff]
      %v223 = vld [vmem:[%s165 + $0x1f8] sm:$0xff]
      %v224 = vld [vmem:[%s165 + $0x208] sm:$0xff]
      %v225 = vld [vmem:[%s165 + $0x210] sm:$0xff]
      %v226 = vld [vmem:[%s165 + $0x218] sm:$0xff]
      %v227 = vld [vmem:[%s165 + $0x220] sm:$0xff]
      %v228 = vld [vmem:[%s165 + $0x230] sm:$0xff]
      %v229 = vld [vmem:[%s165 + $0x238] sm:$0xff]
      %v230 = vld [vmem:[%s165 + $0x240] sm:$0xff]
      %v231 = vld [vmem:[%s165 + $0x248] sm:$0xff]
      %v232 = vld [vmem:[%s165 + $0x258] sm:$0xff]
      %v233 = vld [vmem:[%s165 + $0x260] sm:$0xff]
      %v234 = vld [vmem:[%s165 + $0x268] sm:$0xff]
      %v235 = vld [vmem:[%s165 + $0x270] sm:$0xff]
      %v236 = vld [vmem:[%s165 + $0x280] sm:$0xff]
      %v237 = vld [vmem:[%s165 + $0x288] sm:$0xff]
      %v238 = vld [vmem:[%s165 + $0x290] sm:$0xff]
      %v239 = vld [vmem:[%s165 + $0x298] sm:$0xff]
      %v240 = vld [vmem:[%s165 + $0x2a8] sm:$0xff]
      %v241 = vld [vmem:[%s165 + $0x2b0] sm:$0xff]
      %v242 = vld [vmem:[%s165 + $0x2b8] sm:$0xff]
      %v243 = vld [vmem:[%s165 + $0x2c0] sm:$0xff]
      %v244 = vld [vmem:[%s165 + $0x2d0] sm:$0xff]
      %v245 = vld [vmem:[%s165 + $0x2d8] sm:$0xff]
      %v246 = vld [vmem:[%s165 + $0x2e0] sm:$0xff]
      %v247 = vld [vmem:[%s165 + $0x2e8] sm:$0xff]
      %v248 = vld [vmem:[%s165 + $0x2f8] sm:$0xff]
      %v249 = vld [vmem:[%s165 + $0x300] sm:$0xff]
      %v250 = vld [vmem:[%s165 + $0x308] sm:$0xff]
      %v251 = vld [vmem:[%s165 + $0x310] sm:$0xff]
      %v252 = vld [vmem:[%s165 + $0x320] sm:$0xff]
      %v253 = vld [vmem:[%s165 + $0x328] sm:$0xff]
      %v254 = vld [vmem:[%s165 + $0x330] sm:$0xff]
      %v255 = vld [vmem:[%s165 + $0x338] sm:$0xff]
      %v256 = vld [vmem:[%s165 + $0x348] sm:$0xff]
      %v257 = vld [vmem:[%s165 + $0x350] sm:$0xff]
      %v258 = vld [vmem:[%s165 + $0x358] sm:$0xff]
      %v259 = vld [vmem:[%s165 + $0x360] sm:$0xff]
      %v260 = vld [vmem:[%s165 + $0x370] sm:$0xff]
      %v261 = vld [vmem:[%s165 + $0x378] sm:$0xff]
      %v262 = vld [vmem:[%s165 + $0x380] sm:$0xff]
      %v263 = vld [vmem:[%s165 + $0x388] sm:$0xff]
      %v264 = vld [vmem:[%s165 + $0x398] sm:$0xff]
      %v265 = vld [vmem:[%s165 + $0x3a0] sm:$0xff]
      %v266 = vld [vmem:[%s165 + $0x3a8] sm:$0xff]
      %v267 = vld [vmem:[%s165 + $0x3b0] sm:$0xff]
      %v268 = vld [vmem:[%s165 + $0x3c0] sm:$0xff]
      %v269 = vld [vmem:[%s165 + $0x3c8] sm:$0xff]
      %v270 = vld [vmem:[%s165 + $0x3d0] sm:$0xff]
      %v271 = vld [vmem:[%s165 + $0x3d8] sm:$0xff]
      %v272 = vld [vmem:[%s165 + $0x3e8] sm:$0xff]
      %v273 = vld [vmem:[%s165 + $0x3f0] sm:$0xff]
      %v274 = vld [vmem:[%s165 + $0x3f8] sm:$0xff]
      %v275 = vld [vmem:[%s165 + $0x400] sm:$0xff]
      %v276 = vld [vmem:[%s165 + $0x410] sm:$0xff]
      %v277 = vld [vmem:[%s165 + $0x418] sm:$0xff]
      %v278 = vld [vmem:[%s165 + $0x420] sm:$0xff]
      %v279 = vld [vmem:[%s165 + $0x428] sm:$0xff]
      %v280 = vld [vmem:[%s165 + $0x438] sm:$0xff]
      %v281 = vld [vmem:[%s165 + $0x440] sm:$0xff]
      %v282 = vld [vmem:[%s165 + $0x448] sm:$0xff]
      %v283 = vld [vmem:[%s165 + $0x450] sm:$0xff]
      %v284 = vld [vmem:[%s165 + $0x460] sm:$0xff]
      %v285 = vld [vmem:[%s165 + $0x468] sm:$0xff]
      %v286 = vld [vmem:[%s165 + $0x470] sm:$0xff]
      %v287 = vld [vmem:[%s165 + $0x478] sm:$0xff]
      %v288 = vld [vmem:[%s165 + $0x488] sm:$0xff]
      %v289 = vld [vmem:[%s165 + $0x490] sm:$0xff]
      %v290 = vld [vmem:[%s165 + $0x498] sm:$0xff]
      %v291 = vld [vmem:[%s165 + $0x4a0] sm:$0xff]
      %v292 = vld [vmem:[%s165 + $0x4b0] sm:$0xff]
      %v293 = vld [vmem:[%s165 + $0x4b8] sm:$0xff]
      %v294 = vld [vmem:[%s165 + $0x4c0] sm:$0xff]
      %v295 = vld [vmem:[%s165 + $0x4c8] sm:$0xff]
      %v296 = vld [vmem:[%s165 + $0x4d8] sm:$0xff]
      %v297 = vld [vmem:[%s165 + $0x4e0] sm:$0xff]
      %v298 = vld [vmem:[%s165 + $0x4e8] sm:$0xff]
      %v299 = vld [vmem:[%s165 + $0x4f0] sm:$0xff]
      %v300 = vpack.c.bf16 %v173, %v172
      %v301 = vpack.c.bf16 %v175, %v174
      %v302 = vpack.c.bf16 %v177, %v176
      %v303 = vpack.c.bf16 %v179, %v178
      %v304 = vpack.c.bf16 %v181, %v180
      %v305 = vpack.c.bf16 %v183, %v182
      %v306 = vpack.c.bf16 %v185, %v184
      %v307 = vpack.c.bf16 %v187, %v186
      %v308 = vpack.c.bf16 %v189, %v188
      %v309 = vpack.c.bf16 %v191, %v190
      %v310 = vpack.c.bf16 %v193, %v192
      %v311 = vpack.c.bf16 %v195, %v194
      %v312 = vpack.c.bf16 %v197, %v196
      %v313 = vpack.c.bf16 %v199, %v198
      %v314 = vpack.c.bf16 %v201, %v200
      %v315 = vpack.c.bf16 %v203, %v202
      %v316 = vpack.c.bf16 %v205, %v204
      %v317 = vpack.c.bf16 %v207, %v206
      %v318 = vpack.c.bf16 %v209, %v208
      %v319 = vpack.c.bf16 %v211, %v210
      %v320 = vpack.c.bf16 %v213, %v212
      %v321 = vpack.c.bf16 %v215, %v214
      %v322 = vpack.c.bf16 %v217, %v216
      %v323 = vpack.c.bf16 %v219, %v218
      %v324 = vpack.c.bf16 %v221, %v220
      %v325 = vpack.c.bf16 %v223, %v222
      %v326 = vpack.c.bf16 %v225, %v224
      %v327 = vpack.c.bf16 %v227, %v226
      %v328 = vpack.c.bf16 %v229, %v228
      %v329 = vpack.c.bf16 %v231, %v230
      %v330 = vpack.c.bf16 %v233, %v232
      %v331 = vpack.c.bf16 %v235, %v234
      %v332 = vpack.c.bf16 %v237, %v236
      %v333 = vpack.c.bf16 %v239, %v238
      %v334 = vpack.c.bf16 %v241, %v240
      %v335 = vpack.c.bf16 %v243, %v242
      %v336 = vpack.c.bf16 %v245, %v244
      %v337 = vpack.c.bf16 %v247, %v246
      %v338 = vpack.c.bf16 %v249, %v248
      %v339 = vpack.c.bf16 %v251, %v250
      %v340 = vpack.c.bf16 %v253, %v252
      %v341 = vpack.c.bf16 %v255, %v254
      %v342 = vpack.c.bf16 %v257, %v256
      %v343 = vpack.c.bf16 %v259, %v258
      %v344 = vpack.c.bf16 %v261, %v260
      %v345 = vpack.c.bf16 %v263, %v262
      %v346 = vpack.c.bf16 %v265, %v264
      %v347 = vpack.c.bf16 %v267, %v266
      %v348 = vpack.c.bf16 %v269, %v268
      %v349 = vpack.c.bf16 %v271, %v270
      %v350 = vpack.c.bf16 %v273, %v272
      %v351 = vpack.c.bf16 %v275, %v274
      %v352 = vpack.c.bf16 %v277, %v276
      %v353 = vpack.c.bf16 %v279, %v278
      %v354 = vpack.c.bf16 %v281, %v280
      %v355 = vpack.c.bf16 %v283, %v282
      %v356 = vpack.c.bf16 %v285, %v284
      %v357 = vpack.c.bf16 %v287, %v286
      %v358 = vpack.c.bf16 %v289, %v288
      %v359 = vpack.c.bf16 %v291, %v290
      %v360 = vpack.c.bf16 %v293, %v292
      %v361 = vpack.c.bf16 %v295, %v294
      %v362 = vpack.c.bf16 %v297, %v296
      %v363 = vpack.c.bf16 %v299, %v298
      %v364 = vld [vmem:[%s1] sm:$0x3]
      %v365 = vld [vmem:[%s165 + $0x1] sm:$0xff]
      %v366 = vld [vmem:[%s165 + $0x9] sm:$0xff]
      %v367 = vld [vmem:[%s165 + $0x11] sm:$0xff]
      %v368 = vld [vmem:[%s165 + $0x19] sm:$0xff]
      %v369 = vld [vmem:[%s165 + $0x29] sm:$0xff]
      %v370 = vld [vmem:[%s165 + $0x31] sm:$0xff]
      %v371 = vld [vmem:[%s165 + $0x39] sm:$0xff]
      %v372 = vld [vmem:[%s165 + $0x41] sm:$0xff]
      %v373 = vld [vmem:[%s165 + $0x51] sm:$0xff]
      %v374 = vld [vmem:[%s165 + $0x59] sm:$0xff]
      %v375 = vld [vmem:[%s165 + $0x61] sm:$0xff]
      %v376 = vld [vmem:[%s165 + $0x69] sm:$0xff]
      %v377 = vld [vmem:[%s165 + $0x79] sm:$0xff]
      %v378 = vld [vmem:[%s165 + $0x81] sm:$0xff]
      %v379 = vld [vmem:[%s165 + $0x89] sm:$0xff]
      %v380 = vld [vmem:[%s165 + $0x91] sm:$0xff]
      %v381 = vld [vmem:[%s165 + $0xa1] sm:$0xff]
      %v382 = vld [vmem:[%s165 + $0xa9] sm:$0xff]
      %v383 = vld [vmem:[%s165 + $0xb1] sm:$0xff]
      %v384 = vld [vmem:[%s165 + $0xb9] sm:$0xff]
      %v385 = vld [vmem:[%s165 + $0xc9] sm:$0xff]
      %v386 = vld [vmem:[%s165 + $0xd1] sm:$0xff]
      %v387 = vld [vmem:[%s165 + $0xd9] sm:$0xff]
      %v388 = vld [vmem:[%s165 + $0xe1] sm:$0xff]
      %v389 = vld [vmem:[%s165 + $0xf1] sm:$0xff]
      %v390 = vld [vmem:[%s165 + $0xf9] sm:$0xff]
      %v391 = vld [vmem:[%s165 + $0x101] sm:$0xff]
      %v392 = vld [vmem:[%s165 + $0x109] sm:$0xff]
      %v393 = vld [vmem:[%s165 + $0x119] sm:$0xff]
      %v394 = vld [vmem:[%s165 + $0x121] sm:$0xff]
      %v395 = vld [vmem:[%s165 + $0x129] sm:$0xff]
      %v396 = vld [vmem:[%s165 + $0x131] sm:$0xff]
      %v397 = vld [vmem:[%s165 + $0x141] sm:$0xff]
      %v398 = vld [vmem:[%s165 + $0x149] sm:$0xff]
      %v399 = vld [vmem:[%s165 + $0x151] sm:$0xff]
      %v400 = vld [vmem:[%s165 + $0x159] sm:$0xff]
      %v401 = vld [vmem:[%s165 + $0x169] sm:$0xff]
      %v402 = vld [vmem:[%s165 + $0x171] sm:$0xff]
      %v403 = vld [vmem:[%s165 + $0x179] sm:$0xff]
      %v404 = vld [vmem:[%s165 + $0x181] sm:$0xff]
      %v405 = vld [vmem:[%s165 + $0x191] sm:$0xff]
      %v406 = vld [vmem:[%s165 + $0x199] sm:$0xff]
      %v407 = vld [vmem:[%s165 + $0x1a1] sm:$0xff]
      %v408 = vld [vmem:[%s165 + $0x1a9] sm:$0xff]
      %v409 = vld [vmem:[%s165 + $0x1b9] sm:$0xff]
      %v410 = vld [vmem:[%s165 + $0x1c1] sm:$0xff]
      %v411 = vld [vmem:[%s165 + $0x1c9] sm:$0xff]
      %v412 = vld [vmem:[%s165 + $0x1d1] sm:$0xff]
      %v413 = vld [vmem:[%s165 + $0x1e1] sm:$0xff]
      %v414 = vld [vmem:[%s165 + $0x1e9] sm:$0xff]
      %v415 = vld [vmem:[%s165 + $0x1f1] sm:$0xff]
      %v416 = vld [vmem:[%s165 + $0x1f9] sm:$0xff]
      %v417 = vld [vmem:[%s165 + $0x209] sm:$0xff]
      %v418 = vld [vmem:[%s165 + $0x211] sm:$0xff]
      %v419 = vld [vmem:[%s165 + $0x219] sm:$0xff]
      %v420 = vld [vmem:[%s165 + $0x221] sm:$0xff]
      %v421 = vld [vmem:[%s165 + $0x231] sm:$0xff]
      %v422 = vld [vmem:[%s165 + $0x239] sm:$0xff]
      %v423 = vld [vmem:[%s165 + $0x241] sm:$0xff]
      %v424 = vld [vmem:[%s165 + $0x249] sm:$0xff]
      %v425 = vld [vmem:[%s165 + $0x259] sm:$0xff]
      %v426 = vld [vmem:[%s165 + $0x261] sm:$0xff]
      %v427 = vld [vmem:[%s165 + $0x269] sm:$0xff]
      %v428 = vld [vmem:[%s165 + $0x271] sm:$0xff]
      %v429 = vld [vmem:[%s165 + $0x281] sm:$0xff]
      %v430 = vld [vmem:[%s165 + $0x289] sm:$0xff]
      %v431 = vld [vmem:[%s165 + $0x291] sm:$0xff]
      %v432 = vld [vmem:[%s165 + $0x299] sm:$0xff]
      %v433 = vld [vmem:[%s165 + $0x2a9] sm:$0xff]
      %v434 = vld [vmem:[%s165 + $0x2b1] sm:$0xff]
      %v435 = vld [vmem:[%s165 + $0x2b9] sm:$0xff]
      %v436 = vld [vmem:[%s165 + $0x2c1] sm:$0xff]
      %v437 = vld [vmem:[%s165 + $0x2d1] sm:$0xff]
      %v438 = vld [vmem:[%s165 + $0x2d9] sm:$0xff]
      %v439 = vld [vmem:[%s165 + $0x2e1] sm:$0xff]
      %v440 = vld [vmem:[%s165 + $0x2e9] sm:$0xff]
      %v441 = vld [vmem:[%s165 + $0x2f9] sm:$0xff]
      %v442 = vld [vmem:[%s165 + $0x301] sm:$0xff]
      %v443 = vld [vmem:[%s165 + $0x309] sm:$0xff]
      %v444 = vld [vmem:[%s165 + $0x311] sm:$0xff]
      %v445 = vld [vmem:[%s165 + $0x321] sm:$0xff]
      %v446 = vld [vmem:[%s165 + $0x329] sm:$0xff]
      %v447 = vld [vmem:[%s165 + $0x331] sm:$0xff]
      %v448 = vld [vmem:[%s165 + $0x339] sm:$0xff]
      %v449 = vld [vmem:[%s165 + $0x349] sm:$0xff]
      %v450 = vld [vmem:[%s165 + $0x351] sm:$0xff]
      %v451 = vld [vmem:[%s165 + $0x359] sm:$0xff]
      %v452 = vld [vmem:[%s165 + $0x361] sm:$0xff]
      %v453 = vld [vmem:[%s165 + $0x371] sm:$0xff]
      %v454 = vld [vmem:[%s165 + $0x379] sm:$0xff]
      %v455 = vld [vmem:[%s165 + $0x381] sm:$0xff]
      %v456 = vld [vmem:[%s165 + $0x389] sm:$0xff]
      %v457 = vld [vmem:[%s165 + $0x399] sm:$0xff]
      %v458 = vld [vmem:[%s165 + $0x3a1] sm:$0xff]
      %v459 = vld [vmem:[%s165 + $0x3a9] sm:$0xff]
      %v460 = vld [vmem:[%s165 + $0x3b1] sm:$0xff]
      %v461 = vld [vmem:[%s165 + $0x3c1] sm:$0xff]
      %v462 = vld [vmem:[%s165 + $0x3c9] sm:$0xff]
      %v463 = vld [vmem:[%s165 + $0x3d1] sm:$0xff]
      %v464 = vld [vmem:[%s165 + $0x3d9] sm:$0xff]
      %v465 = vld [vmem:[%s165 + $0x3e9] sm:$0xff]
      %v466 = vld [vmem:[%s165 + $0x3f1] sm:$0xff]
      %v467 = vld [vmem:[%s165 + $0x3f9] sm:$0xff]
      %v468 = vld [vmem:[%s165 + $0x401] sm:$0xff]
      %v469 = vld [vmem:[%s165 + $0x411] sm:$0xff]
      %v470 = vld [vmem:[%s165 + $0x419] sm:$0xff]
      %v471 = vld [vmem:[%s165 + $0x421] sm:$0xff]
      %v472 = vld [vmem:[%s165 + $0x429] sm:$0xff]
      %v473 = vld [vmem:[%s165 + $0x439] sm:$0xff]
      %v474 = vld [vmem:[%s165 + $0x441] sm:$0xff]
      %v475 = vld [vmem:[%s165 + $0x449] sm:$0xff]
      %v476 = vld [vmem:[%s165 + $0x451] sm:$0xff]
      %v477 = vld [vmem:[%s165 + $0x461] sm:$0xff]
      %v478 = vld [vmem:[%s165 + $0x469] sm:$0xff]
      %v479 = vld [vmem:[%s165 + $0x471] sm:$0xff]
      %v480 = vld [vmem:[%s165 + $0x479] sm:$0xff]
      %v481 = vld [vmem:[%s165 + $0x489] sm:$0xff]
      %v482 = vld [vmem:[%s165 + $0x491] sm:$0xff]
      %v483 = vld [vmem:[%s165 + $0x499] sm:$0xff]
      %v484 = vld [vmem:[%s165 + $0x4a1] sm:$0xff]
      %v485 = vld [vmem:[%s165 + $0x4b1] sm:$0xff]
      %v486 = vld [vmem:[%s165 + $0x4b9] sm:$0xff]
      %v487 = vld [vmem:[%s165 + $0x4c1] sm:$0xff]
      %v488 = vld [vmem:[%s165 + $0x4c9] sm:$0xff]
      %v489 = vld [vmem:[%s165 + $0x4d9] sm:$0xff]
      %v490 = vld [vmem:[%s165 + $0x4e1] sm:$0xff]
      %v491 = vld [vmem:[%s165 + $0x4e9] sm:$0xff]
      %v492 = vld [vmem:[%s165 + $0x4f1] sm:$0xff]
      %v493 = vpack.c.bf16 %v366, %v365
      %v494 = vpack.c.bf16 %v368, %v367
      %v495 = vpack.c.bf16 %v370, %v369
      %v496 = vpack.c.bf16 %v372, %v371
      %v497 = vpack.c.bf16 %v374, %v373
      %v498 = vpack.c.bf16 %v376, %v375
      %v499 = vpack.c.bf16 %v378, %v377
      %v500 = vpack.c.bf16 %v380, %v379
      %v501 = vpack.c.bf16 %v382, %v381
      %v502 = vpack.c.bf16 %v384, %v383
      %v503 = vpack.c.bf16 %v386, %v385
      %v504 = vpack.c.bf16 %v388, %v387
      %v505 = vpack.c.bf16 %v390, %v389
      %v506 = vpack.c.bf16 %v392, %v391
      %v507 = vpack.c.bf16 %v394, %v393
      %v508 = vpack.c.bf16 %v396, %v395
      %v509 = vpack.c.bf16 %v398, %v397
      %v510 = vpack.c.bf16 %v400, %v399
      %v511 = vpack.c.bf16 %v402, %v401
      %v512 = vpack.c.bf16 %v404, %v403
      %v513 = vpack.c.bf16 %v406, %v405
      %v514 = vpack.c.bf16 %v408, %v407
      %v515 = vpack.c.bf16 %v410, %v409
      %v516 = vpack.c.bf16 %v412, %v411
      %v517 = vpack.c.bf16 %v414, %v413
      %v518 = vpack.c.bf16 %v416, %v415
      %v519 = vpack.c.bf16 %v418, %v417
      %v520 = vpack.c.bf16 %v420, %v419
      %v521 = vpack.c.bf16 %v422, %v421
      %v522 = vpack.c.bf16 %v424, %v423
      %v523 = vpack.c.bf16 %v426, %v425
      %v524 = vpack.c.bf16 %v428, %v427
      %v525 = vpack.c.bf16 %v430, %v429
      %v526 = vpack.c.bf16 %v432, %v431
      %v527 = vpack.c.bf16 %v434, %v433
      %v528 = vpack.c.bf16 %v436, %v435
      %v529 = vpack.c.bf16 %v438, %v437
      %v530 = vpack.c.bf16 %v440, %v439
      %v531 = vpack.c.bf16 %v442, %v441
      %v532 = vpack.c.bf16 %v444, %v443
      %v533 = vpack.c.bf16 %v446, %v445
      %v534 = vpack.c.bf16 %v448, %v447
      %v535 = vpack.c.bf16 %v450, %v449
      %v536 = vpack.c.bf16 %v452, %v451
      %v537 = vpack.c.bf16 %v454, %v453
      %v538 = vpack.c.bf16 %v456, %v455
      %v539 = vpack.c.bf16 %v458, %v457
      %v540 = vpack.c.bf16 %v460, %v459
      %v541 = vpack.c.bf16 %v462, %v461
      %v542 = vpack.c.bf16 %v464, %v463
      %v543 = vpack.c.bf16 %v466, %v465
      %v544 = vpack.c.bf16 %v468, %v467
      %v545 = vpack.c.bf16 %v470, %v469
      %v546 = vpack.c.bf16 %v472, %v471
      %v547 = vpack.c.bf16 %v474, %v473
      %v548 = vpack.c.bf16 %v476, %v475
      %v549 = vpack.c.bf16 %v478, %v477
      %v550 = vpack.c.bf16 %v480, %v479
      %v551 = vpack.c.bf16 %v482, %v481
      %v552 = vpack.c.bf16 %v484, %v483
      %v553 = vpack.c.bf16 %v486, %v485
      %v554 = vpack.c.bf16 %v488, %v487
      %v555 = vpack.c.bf16 %v490, %v489
      %v556 = vpack.c.bf16 %v492, %v491
      %s557 = scalar_lea.vmem %s1, 2
      %v558 = vld [vmem:[%s557] sm:$0x3]
      %vm559 = vcmask 23552
      %v561 = vsel %vm559, %v493, 0
      %v564 = vsel %vm559, %v494, 0
      %v567 = vsel %vm559, %v495, 0
      %v570 = vsel %vm559, %v496, 0
      %v573 = vsel %vm559, %v497, 0
      %v576 = vsel %vm559, %v498, 0
      %v579 = vsel %vm559, %v499, 0
      %v582 = vsel %vm559, %v500, 0
      %v585 = vsel %vm559, %v501, 0
      %v588 = vsel %vm559, %v502, 0
      %v591 = vsel %vm559, %v503, 0
      %v594 = vsel %vm559, %v504, 0
      %v597 = vsel %vm559, %v505, 0
      %v600 = vsel %vm559, %v506, 0
      %v603 = vsel %vm559, %v507, 0
      %v606 = vsel %vm559, %v508, 0
      %v609 = vsel %vm559, %v509, 0
      %v612 = vsel %vm559, %v510, 0
      %v615 = vsel %vm559, %v511, 0
      %v618 = vsel %vm559, %v512, 0
      %v621 = vsel %vm559, %v513, 0
      %v624 = vsel %vm559, %v514, 0
      %v627 = vsel %vm559, %v515, 0
      %v630 = vsel %vm559, %v516, 0
      %v633 = vsel %vm559, %v517, 0
      %v636 = vsel %vm559, %v518, 0
      %v639 = vsel %vm559, %v519, 0
      %v642 = vsel %vm559, %v520, 0
      %v645 = vsel %vm559, %v521, 0
      %v648 = vsel %vm559, %v522, 0
      %v651 = vsel %vm559, %v523, 0
      %v654 = vsel %vm559, %v524, 0
      %v657 = vsel %vm559, %v525, 0
      %v660 = vsel %vm559, %v526, 0
      %v663 = vsel %vm559, %v527, 0
      %v666 = vsel %vm559, %v528, 0
      %v669 = vsel %vm559, %v529, 0
      %v672 = vsel %vm559, %v530, 0
      %v675 = vsel %vm559, %v531, 0
      %v678 = vsel %vm559, %v532, 0
      %v681 = vsel %vm559, %v533, 0
      %v684 = vsel %vm559, %v534, 0
      %v687 = vsel %vm559, %v535, 0
      %v690 = vsel %vm559, %v536, 0
      %v693 = vsel %vm559, %v537, 0
      %v696 = vsel %vm559, %v538, 0
      %v699 = vsel %vm559, %v539, 0
      %v702 = vsel %vm559, %v540, 0
      %v705 = vsel %vm559, %v541, 0
      %v708 = vsel %vm559, %v542, 0
      %v711 = vsel %vm559, %v543, 0
      %v714 = vsel %vm559, %v544, 0
      %v717 = vsel %vm559, %v545, 0
      %v720 = vsel %vm559, %v546, 0
      %v723 = vsel %vm559, %v547, 0
      %v726 = vsel %vm559, %v548, 0
      %v729 = vsel %vm559, %v549, 0
      %v732 = vsel %vm559, %v550, 0
      %v735 = vsel %vm559, %v551, 0
      %v738 = vsel %vm559, %v552, 0
      %v741 = vsel %vm559, %v553, 0
      %v744 = vsel %vm559, %v554, 0
      %v747 = vsel %vm559, %v555, 0
      %v750 = vsel %vm559, %v556, 0
      %vm752 = vcmask 1040384
      %vm753 = vcmask 1041408
      %v754 = vsel %vm752, 4294967295, 65535
      %v755 = vsel %vm753, %v754, 0
      %v757 = vand.u32 %v558, %v755
      %759 = vmatpush.bf16.msra.mxu0 0
      %760 = vmatpush.bf16.msra.mxu0 0
      %761 = vmatpush.bf16.msra.mxu0 0
      %762 = vmatpush.bf16.msra.mxu0 0
      %763 = vmatpush.bf16.msra.mxu0 0
      %764 = vmatpush.bf16.msra.mxu0 0
      %765 = vmatpush.bf16.msra.mxu0 0
      %766 = vmatpush.bf16.msra.mxu0 %v757
      %767 = vmatmul.bf16.gmra.mxu0 %v561
      %v768 = vpop.f32.mrf.mxu0
      %v769 = vadd.f32 0.0, %v768
      %v770 = vpop.f32.mrf.mxu0
      %v771 = vadd.f32 0.0, %v770
      %772 = vmatmul.bf16.gmra.mxu0 %v564
      %v773 = vpop.f32.mrf.mxu0
      %v774 = vadd.f32 0.0, %v773
      %v775 = vpop.f32.mrf.mxu0
      %v776 = vadd.f32 0.0, %v775
      %777 = vmatmul.bf16.gmra.mxu0 %v567
      %v778 = vpop.f32.mrf.mxu0
      %v779 = vadd.f32 0.0, %v778
      %v780 = vpop.f32.mrf.mxu0
      %v781 = vadd.f32 0.0, %v780
      %782 = vmatmul.bf16.gmra.mxu0 %v570
      %v783 = vpop.f32.mrf.mxu0
      %v784 = vadd.f32 0.0, %v783
      %v785 = vpop.f32.mrf.mxu0
      %v786 = vadd.f32 0.0, %v785
      %787 = vmatmul.bf16.gmra.mxu0 %v573
      %v788 = vpop.f32.mrf.mxu0
      %v789 = vadd.f32 0.0, %v788
      %v790 = vpop.f32.mrf.mxu0
      %v791 = vadd.f32 0.0, %v790
      %792 = vmatmul.bf16.gmra.mxu0 %v576
      %v793 = vpop.f32.mrf.mxu0
      %v794 = vadd.f32 0.0, %v793
      %v795 = vpop.f32.mrf.mxu0
      %v796 = vadd.f32 0.0, %v795
      %797 = vmatmul.bf16.gmra.mxu0 %v579
      %v798 = vpop.f32.mrf.mxu0
      %v799 = vadd.f32 0.0, %v798
      %v800 = vpop.f32.mrf.mxu0
      %v801 = vadd.f32 0.0, %v800
      %802 = vmatmul.bf16.gmra.mxu0 %v582
      %v803 = vpop.f32.mrf.mxu0
      %v804 = vadd.f32 0.0, %v803
      %v805 = vpop.f32.mrf.mxu0
      %v806 = vadd.f32 0.0, %v805
      %807 = vmatmul.bf16.gmra.mxu0 %v585
      %v808 = vpop.f32.mrf.mxu0
      %v809 = vadd.f32 0.0, %v808
      %v810 = vpop.f32.mrf.mxu0
      %v811 = vadd.f32 0.0, %v810
      %812 = vmatmul.bf16.gmra.mxu0 %v588
      %v813 = vpop.f32.mrf.mxu0
      %v814 = vadd.f32 0.0, %v813
      %v815 = vpop.f32.mrf.mxu0
      %v816 = vadd.f32 0.0, %v815
      %817 = vmatmul.bf16.gmra.mxu0 %v591
      %v818 = vpop.f32.mrf.mxu0
      %v819 = vadd.f32 0.0, %v818
      %v820 = vpop.f32.mrf.mxu0
      %v821 = vadd.f32 0.0, %v820
      %822 = vmatmul.bf16.gmra.mxu0 %v594
      %v823 = vpop.f32.mrf.mxu0
      %v824 = vadd.f32 0.0, %v823
      %v825 = vpop.f32.mrf.mxu0
      %v826 = vadd.f32 0.0, %v825
      %827 = vmatmul.bf16.gmra.mxu0 %v597
      %v828 = vpop.f32.mrf.mxu0
      %v829 = vadd.f32 0.0, %v828
      %v830 = vpop.f32.mrf.mxu0
      %v831 = vadd.f32 0.0, %v830
      %832 = vmatmul.bf16.gmra.mxu0 %v600
      %v833 = vpop.f32.mrf.mxu0
      %v834 = vadd.f32 0.0, %v833
      %v835 = vpop.f32.mrf.mxu0
      %v836 = vadd.f32 0.0, %v835
      %837 = vmatmul.bf16.gmra.mxu0 %v603
      %v838 = vpop.f32.mrf.mxu0
      %v839 = vadd.f32 0.0, %v838
      %v840 = vpop.f32.mrf.mxu0
      %v841 = vadd.f32 0.0, %v840
      %842 = vmatmul.bf16.gmra.mxu0 %v606
      %v843 = vpop.f32.mrf.mxu0
      %v844 = vadd.f32 0.0, %v843
      %v845 = vpop.f32.mrf.mxu0
      %v846 = vadd.f32 0.0, %v845
      %847 = vmatmul.bf16.gmra.mxu0 %v609
      %v848 = vpop.f32.mrf.mxu0
      %v849 = vadd.f32 0.0, %v848
      %v850 = vpop.f32.mrf.mxu0
      %v851 = vadd.f32 0.0, %v850
      %852 = vmatmul.bf16.gmra.mxu0 %v612
      %v853 = vpop.f32.mrf.mxu0
      %v854 = vadd.f32 0.0, %v853
      %v855 = vpop.f32.mrf.mxu0
      %v856 = vadd.f32 0.0, %v855
      %857 = vmatmul.bf16.gmra.mxu0 %v615
      %v858 = vpop.f32.mrf.mxu0
      %v859 = vadd.f32 0.0, %v858
      %v860 = vpop.f32.mrf.mxu0
      %v861 = vadd.f32 0.0, %v860
      %862 = vmatmul.bf16.gmra.mxu0 %v618
      %v863 = vpop.f32.mrf.mxu0
      %v864 = vadd.f32 0.0, %v863
      %v865 = vpop.f32.mrf.mxu0
      %v866 = vadd.f32 0.0, %v865
      %867 = vmatmul.bf16.gmra.mxu0 %v621
      %v868 = vpop.f32.mrf.mxu0
      %v869 = vadd.f32 0.0, %v868
      %v870 = vpop.f32.mrf.mxu0
      %v871 = vadd.f32 0.0, %v870
      %872 = vmatmul.bf16.gmra.mxu0 %v624
      %v873 = vpop.f32.mrf.mxu0
      %v874 = vadd.f32 0.0, %v873
      %v875 = vpop.f32.mrf.mxu0
      %v876 = vadd.f32 0.0, %v875
      %877 = vmatmul.bf16.gmra.mxu0 %v627
      %v878 = vpop.f32.mrf.mxu0
      %v879 = vadd.f32 0.0, %v878
      %v880 = vpop.f32.mrf.mxu0
      %v881 = vadd.f32 0.0, %v880
      %882 = vmatmul.bf16.gmra.mxu0 %v630
      %v883 = vpop.f32.mrf.mxu0
      %v884 = vadd.f32 0.0, %v883
      %v885 = vpop.f32.mrf.mxu0
      %v886 = vadd.f32 0.0, %v885
      %887 = vmatmul.bf16.gmra.mxu0 %v633
      %v888 = vpop.f32.mrf.mxu0
      %v889 = vadd.f32 0.0, %v888
      %v890 = vpop.f32.mrf.mxu0
      %v891 = vadd.f32 0.0, %v890
      %892 = vmatmul.bf16.gmra.mxu0 %v636
      %v893 = vpop.f32.mrf.mxu0
      %v894 = vadd.f32 0.0, %v893
      %v895 = vpop.f32.mrf.mxu0
      %v896 = vadd.f32 0.0, %v895
      %897 = vmatmul.bf16.gmra.mxu0 %v639
      %v898 = vpop.f32.mrf.mxu0
      %v899 = vadd.f32 0.0, %v898
      %v900 = vpop.f32.mrf.mxu0
      %v901 = vadd.f32 0.0, %v900
      %902 = vmatmul.bf16.gmra.mxu0 %v642
      %v903 = vpop.f32.mrf.mxu0
      %v904 = vadd.f32 0.0, %v903
      %v905 = vpop.f32.mrf.mxu0
      %v906 = vadd.f32 0.0, %v905
      %907 = vmatmul.bf16.gmra.mxu0 %v645
      %v908 = vpop.f32.mrf.mxu0
      %v909 = vadd.f32 0.0, %v908
      %v910 = vpop.f32.mrf.mxu0
      %v911 = vadd.f32 0.0, %v910
      %912 = vmatmul.bf16.gmra.mxu0 %v648
      %v913 = vpop.f32.mrf.mxu0
      %v914 = vadd.f32 0.0, %v913
      %v915 = vpop.f32.mrf.mxu0
      %v916 = vadd.f32 0.0, %v915
      %917 = vmatmul.bf16.gmra.mxu0 %v651
      %v918 = vpop.f32.mrf.mxu0
      %v919 = vadd.f32 0.0, %v918
      %v920 = vpop.f32.mrf.mxu0
      %v921 = vadd.f32 0.0, %v920
      %922 = vmatmul.bf16.gmra.mxu0 %v654
      %v923 = vpop.f32.mrf.mxu0
      %v924 = vadd.f32 0.0, %v923
      %v925 = vpop.f32.mrf.mxu0
      %v926 = vadd.f32 0.0, %v925
      %927 = vmatmul.bf16.gmra.mxu0 %v657
      %v928 = vpop.f32.mrf.mxu0
      %v929 = vadd.f32 0.0, %v928
      %v930 = vpop.f32.mrf.mxu0
      %v931 = vadd.f32 0.0, %v930
      %932 = vmatmul.bf16.gmra.mxu0 %v660
      %v933 = vpop.f32.mrf.mxu0
      %v934 = vadd.f32 0.0, %v933
      %v935 = vpop.f32.mrf.mxu0
      %v936 = vadd.f32 0.0, %v935
      %937 = vmatmul.bf16.gmra.mxu0 %v663
      %v938 = vpop.f32.mrf.mxu0
      %v939 = vadd.f32 0.0, %v938
      %v940 = vpop.f32.mrf.mxu0
      %v941 = vadd.f32 0.0, %v940
      %942 = vmatmul.bf16.gmra.mxu0 %v666
      %v943 = vpop.f32.mrf.mxu0
      %v944 = vadd.f32 0.0, %v943
      %v945 = vpop.f32.mrf.mxu0
      %v946 = vadd.f32 0.0, %v945
      %947 = vmatmul.bf16.gmra.mxu0 %v669
      %v948 = vpop.f32.mrf.mxu0
      %v949 = vadd.f32 0.0, %v948
      %v950 = vpop.f32.mrf.mxu0
      %v951 = vadd.f32 0.0, %v950
      %952 = vmatmul.bf16.gmra.mxu0 %v672
      %v953 = vpop.f32.mrf.mxu0
      %v954 = vadd.f32 0.0, %v953
      %v955 = vpop.f32.mrf.mxu0
      %v956 = vadd.f32 0.0, %v955
      %957 = vmatmul.bf16.gmra.mxu0 %v675
      %v958 = vpop.f32.mrf.mxu0
      %v959 = vadd.f32 0.0, %v958
      %v960 = vpop.f32.mrf.mxu0
      %v961 = vadd.f32 0.0, %v960
      %962 = vmatmul.bf16.gmra.mxu0 %v678
      %v963 = vpop.f32.mrf.mxu0
      %v964 = vadd.f32 0.0, %v963
      %v965 = vpop.f32.mrf.mxu0
      %v966 = vadd.f32 0.0, %v965
      %967 = vmatmul.bf16.gmra.mxu0 %v681
      %v968 = vpop.f32.mrf.mxu0
      %v969 = vadd.f32 0.0, %v968
      %v970 = vpop.f32.mrf.mxu0
      %v971 = vadd.f32 0.0, %v970
      %972 = vmatmul.bf16.gmra.mxu0 %v684
      %v973 = vpop.f32.mrf.mxu0
      %v974 = vadd.f32 0.0, %v973
      %v975 = vpop.f32.mrf.mxu0
      %v976 = vadd.f32 0.0, %v975
      %977 = vmatmul.bf16.gmra.mxu0 %v687
      %v978 = vpop.f32.mrf.mxu0
      %v979 = vadd.f32 0.0, %v978
      %v980 = vpop.f32.mrf.mxu0
      %v981 = vadd.f32 0.0, %v980
      %982 = vmatmul.bf16.gmra.mxu0 %v690
      %v983 = vpop.f32.mrf.mxu0
      %v984 = vadd.f32 0.0, %v983
      %v985 = vpop.f32.mrf.mxu0
      %v986 = vadd.f32 0.0, %v985
      %987 = vmatmul.bf16.gmra.mxu0 %v693
      %v988 = vpop.f32.mrf.mxu0
      %v989 = vadd.f32 0.0, %v988
      %v990 = vpop.f32.mrf.mxu0
      %v991 = vadd.f32 0.0, %v990
      %992 = vmatmul.bf16.gmra.mxu0 %v696
      %v993 = vpop.f32.mrf.mxu0
      %v994 = vadd.f32 0.0, %v993
      %v995 = vpop.f32.mrf.mxu0
      %v996 = vadd.f32 0.0, %v995
      %997 = vmatmul.bf16.gmra.mxu0 %v699
      %v998 = vpop.f32.mrf.mxu0
      %v999 = vadd.f32 0.0, %v998
      %v1000 = vpop.f32.mrf.mxu0
      %v1001 = vadd.f32 0.0, %v1000
      %1002 = vmatmul.bf16.gmra.mxu0 %v702
      %v1003 = vpop.f32.mrf.mxu0
      %v1004 = vadd.f32 0.0, %v1003
      %v1005 = vpop.f32.mrf.mxu0
      %v1006 = vadd.f32 0.0, %v1005
      %1007 = vmatmul.bf16.gmra.mxu0 %v705
      %v1008 = vpop.f32.mrf.mxu0
      %v1009 = vadd.f32 0.0, %v1008
      %v1010 = vpop.f32.mrf.mxu0
      %v1011 = vadd.f32 0.0, %v1010
      %1012 = vmatmul.bf16.gmra.mxu0 %v708
      %v1013 = vpop.f32.mrf.mxu0
      %v1014 = vadd.f32 0.0, %v1013
      %v1015 = vpop.f32.mrf.mxu0
      %v1016 = vadd.f32 0.0, %v1015
      %1017 = vmatmul.bf16.gmra.mxu0 %v711
      %v1018 = vpop.f32.mrf.mxu0
      %v1019 = vadd.f32 0.0, %v1018
      %v1020 = vpop.f32.mrf.mxu0
      %v1021 = vadd.f32 0.0, %v1020
      %1022 = vmatmul.bf16.gmra.mxu0 %v714
      %v1023 = vpop.f32.mrf.mxu0
      %v1024 = vadd.f32 0.0, %v1023
      %v1025 = vpop.f32.mrf.mxu0
      %v1026 = vadd.f32 0.0, %v1025
      %1027 = vmatmul.bf16.gmra.mxu0 %v717
      %v1028 = vpop.f32.mrf.mxu0
      %v1029 = vadd.f32 0.0, %v1028
      %v1030 = vpop.f32.mrf.mxu0
      %v1031 = vadd.f32 0.0, %v1030
      %1032 = vmatmul.bf16.gmra.mxu0 %v720
      %v1033 = vpop.f32.mrf.mxu0
      %v1034 = vadd.f32 0.0, %v1033
      %v1035 = vpop.f32.mrf.mxu0
      %v1036 = vadd.f32 0.0, %v1035
      %1037 = vmatmul.bf16.gmra.mxu0 %v723
      %v1038 = vpop.f32.mrf.mxu0
      %v1039 = vadd.f32 0.0, %v1038
      %v1040 = vpop.f32.mrf.mxu0
      %v1041 = vadd.f32 0.0, %v1040
      %1042 = vmatmul.bf16.gmra.mxu0 %v726
      %v1043 = vpop.f32.mrf.mxu0
      %v1044 = vadd.f32 0.0, %v1043
      %v1045 = vpop.f32.mrf.mxu0
      %v1046 = vadd.f32 0.0, %v1045
      %1047 = vmatmul.bf16.gmra.mxu0 %v729
      %v1048 = vpop.f32.mrf.mxu0
      %v1049 = vadd.f32 0.0, %v1048
      %v1050 = vpop.f32.mrf.mxu0
      %v1051 = vadd.f32 0.0, %v1050
      %1052 = vmatmul.bf16.gmra.mxu0 %v732
      %v1053 = vpop.f32.mrf.mxu0
      %v1054 = vadd.f32 0.0, %v1053
      %v1055 = vpop.f32.mrf.mxu0
      %v1056 = vadd.f32 0.0, %v1055
      %1057 = vmatmul.bf16.gmra.mxu0 %v735
      %v1058 = vpop.f32.mrf.mxu0
      %v1059 = vadd.f32 0.0, %v1058
      %v1060 = vpop.f32.mrf.mxu0
      %v1061 = vadd.f32 0.0, %v1060
      %1062 = vmatmul.bf16.gmra.mxu0 %v738
      %v1063 = vpop.f32.mrf.mxu0
      %v1064 = vadd.f32 0.0, %v1063
      %v1065 = vpop.f32.mrf.mxu0
      %v1066 = vadd.f32 0.0, %v1065
      %1067 = vmatmul.bf16.gmra.mxu0 %v741
      %v1068 = vpop.f32.mrf.mxu0
      %v1069 = vadd.f32 0.0, %v1068
      %v1070 = vpop.f32.mrf.mxu0
      %v1071 = vadd.f32 0.0, %v1070
      %1072 = vmatmul.bf16.gmra.mxu0 %v744
      %v1073 = vpop.f32.mrf.mxu0
      %v1074 = vadd.f32 0.0, %v1073
      %v1075 = vpop.f32.mrf.mxu0
      %v1076 = vadd.f32 0.0, %v1075
      %1077 = vmatmul.bf16.gmra.mxu0 %v747
      %v1078 = vpop.f32.mrf.mxu0
      %v1079 = vadd.f32 0.0, %v1078
      %v1080 = vpop.f32.mrf.mxu0
      %v1081 = vadd.f32 0.0, %v1080
      %1082 = vmatmul.bf16.gmra.mxu0 %v750
      %v1083 = vpop.f32.mrf.mxu0
      %v1084 = vadd.f32 0.0, %v1083
      %v1085 = vpop.f32.mrf.mxu0
      %v1086 = vadd.f32 0.0, %v1085
      %1087 = vdwg.mxu0
      %v1089 = vsel %vm559, %v300, 0
      %v1092 = vsel %vm559, %v301, 0
      %v1095 = vsel %vm559, %v302, 0
      %v1098 = vsel %vm559, %v303, 0
      %v1101 = vsel %vm559, %v304, 0
      %v1104 = vsel %vm559, %v305, 0
      %v1107 = vsel %vm559, %v306, 0
      %v1110 = vsel %vm559, %v307, 0
      %v1113 = vsel %vm559, %v308, 0
      %v1116 = vsel %vm559, %v309, 0
      %v1119 = vsel %vm559, %v310, 0
      %v1122 = vsel %vm559, %v311, 0
      %v1125 = vsel %vm559, %v312, 0
      %v1128 = vsel %vm559, %v313, 0
      %v1131 = vsel %vm559, %v314, 0
      %v1134 = vsel %vm559, %v315, 0
      %v1137 = vsel %vm559, %v316, 0
      %v1140 = vsel %vm559, %v317, 0
      %v1143 = vsel %vm559, %v318, 0
      %v1146 = vsel %vm559, %v319, 0
      %v1149 = vsel %vm559, %v320, 0
      %v1152 = vsel %vm559, %v321, 0
      %v1155 = vsel %vm559, %v322, 0
      %v1158 = vsel %vm559, %v323, 0
      %v1161 = vsel %vm559, %v324, 0
      %v1164 = vsel %vm559, %v325, 0
      %v1167 = vsel %vm559, %v326, 0
      %v1170 = vsel %vm559, %v327, 0
      %v1173 = vsel %vm559, %v328, 0
      %v1176 = vsel %vm559, %v329, 0
      %v1179 = vsel %vm559, %v330, 0
      %v1182 = vsel %vm559, %v331, 0
      %v1185 = vsel %vm559, %v332, 0
      %v1188 = vsel %vm559, %v333, 0
      %v1191 = vsel %vm559, %v334, 0
      %v1194 = vsel %vm559, %v335, 0
      %v1197 = vsel %vm559, %v336, 0
      %v1200 = vsel %vm559, %v337, 0
      %v1203 = vsel %vm559, %v338, 0
      %v1206 = vsel %vm559, %v339, 0
      %v1209 = vsel %vm559, %v340, 0
      %v1212 = vsel %vm559, %v341, 0
      %v1215 = vsel %vm559, %v342, 0
      %v1218 = vsel %vm559, %v343, 0
      %v1221 = vsel %vm559, %v344, 0
      %v1224 = vsel %vm559, %v345, 0
      %v1227 = vsel %vm559, %v346, 0
      %v1230 = vsel %vm559, %v347, 0
      %v1233 = vsel %vm559, %v348, 0
      %v1236 = vsel %vm559, %v349, 0
      %v1239 = vsel %vm559, %v350, 0
      %v1242 = vsel %vm559, %v351, 0
      %v1245 = vsel %vm559, %v352, 0
      %v1248 = vsel %vm559, %v353, 0
      %v1251 = vsel %vm559, %v354, 0
      %v1254 = vsel %vm559, %v355, 0
      %v1257 = vsel %vm559, %v356, 0
      %v1260 = vsel %vm559, %v357, 0
      %v1263 = vsel %vm559, %v358, 0
      %v1266 = vsel %vm559, %v359, 0
      %v1269 = vsel %vm559, %v360, 0
      %v1272 = vsel %vm559, %v361, 0
      %v1275 = vsel %vm559, %v362, 0
      %v1278 = vsel %vm559, %v363, 0
      %v1281 = vand.u32 %v364, %v755
      %1283 = vmatpush.bf16.msra.mxu0 0
      %1284 = vmatpush.bf16.msra.mxu0 0
      %1285 = vmatpush.bf16.msra.mxu0 0
      %1286 = vmatpush.bf16.msra.mxu0 0
      %1287 = vmatpush.bf16.msra.mxu0 0
      %1288 = vmatpush.bf16.msra.mxu0 0
      %1289 = vmatpush.bf16.msra.mxu0 0
      %1290 = vmatpush.bf16.msra.mxu0 %v1281
      %1291 = vmatmul.bf16.gmra.mxu0 %v1089
      %v1292 = vpop.f32.mrf.mxu0
      %v1293 = vadd.f32 %v769, %v1292
      %v1294 = vpop.f32.mrf.mxu0
      %v1295 = vadd.f32 %v771, %v1294
      %1296 = vmatmul.bf16.gmra.mxu0 %v1092
      %v1297 = vpop.f32.mrf.mxu0
      %v1298 = vadd.f32 %v774, %v1297
      %v1299 = vpop.f32.mrf.mxu0
      %v1300 = vadd.f32 %v776, %v1299
      %1301 = vmatmul.bf16.gmra.mxu0 %v1095
      %v1302 = vpop.f32.mrf.mxu0
      %v1303 = vadd.f32 %v779, %v1302
      %v1304 = vpop.f32.mrf.mxu0
      %v1305 = vadd.f32 %v781, %v1304
      %1306 = vmatmul.bf16.gmra.mxu0 %v1098
      %v1307 = vpop.f32.mrf.mxu0
      %v1308 = vadd.f32 %v784, %v1307
      %v1309 = vpop.f32.mrf.mxu0
      %v1310 = vadd.f32 %v786, %v1309
      %1311 = vmatmul.bf16.gmra.mxu0 %v1101
      %v1312 = vpop.f32.mrf.mxu0
      %v1313 = vadd.f32 %v789, %v1312
      %v1314 = vpop.f32.mrf.mxu0
      %v1315 = vadd.f32 %v791, %v1314
      %1316 = vmatmul.bf16.gmra.mxu0 %v1104
      %v1317 = vpop.f32.mrf.mxu0
      %v1318 = vadd.f32 %v794, %v1317
      %v1319 = vpop.f32.mrf.mxu0
      %v1320 = vadd.f32 %v796, %v1319
      %1321 = vmatmul.bf16.gmra.mxu0 %v1107
      %v1322 = vpop.f32.mrf.mxu0
      %v1323 = vadd.f32 %v799, %v1322
      %v1324 = vpop.f32.mrf.mxu0
      %v1325 = vadd.f32 %v801, %v1324
      %1326 = vmatmul.bf16.gmra.mxu0 %v1110
      %v1327 = vpop.f32.mrf.mxu0
      %v1328 = vadd.f32 %v804, %v1327
      %v1329 = vpop.f32.mrf.mxu0
      %v1330 = vadd.f32 %v806, %v1329
      %1331 = vmatmul.bf16.gmra.mxu0 %v1113
      %v1332 = vpop.f32.mrf.mxu0
      %v1333 = vadd.f32 %v809, %v1332
      %v1334 = vpop.f32.mrf.mxu0
      %v1335 = vadd.f32 %v811, %v1334
      %1336 = vmatmul.bf16.gmra.mxu0 %v1116
      %v1337 = vpop.f32.mrf.mxu0
      %v1338 = vadd.f32 %v814, %v1337
      %v1339 = vpop.f32.mrf.mxu0
      %v1340 = vadd.f32 %v816, %v1339
      %1341 = vmatmul.bf16.gmra.mxu0 %v1119
      %v1342 = vpop.f32.mrf.mxu0
      %v1343 = vadd.f32 %v819, %v1342
      %v1344 = vpop.f32.mrf.mxu0
      %v1345 = vadd.f32 %v821, %v1344
      %1346 = vmatmul.bf16.gmra.mxu0 %v1122
      %v1347 = vpop.f32.mrf.mxu0
      %v1348 = vadd.f32 %v824, %v1347
      %v1349 = vpop.f32.mrf.mxu0
      %v1350 = vadd.f32 %v826, %v1349
      %1351 = vmatmul.bf16.gmra.mxu0 %v1125
      %v1352 = vpop.f32.mrf.mxu0
      %v1353 = vadd.f32 %v829, %v1352
      %v1354 = vpop.f32.mrf.mxu0
      %v1355 = vadd.f32 %v831, %v1354
      %1356 = vmatmul.bf16.gmra.mxu0 %v1128
      %v1357 = vpop.f32.mrf.mxu0
      %v1358 = vadd.f32 %v834, %v1357
      %v1359 = vpop.f32.mrf.mxu0
      %v1360 = vadd.f32 %v836, %v1359
      %1361 = vmatmul.bf16.gmra.mxu0 %v1131
      %v1362 = vpop.f32.mrf.mxu0
      %v1363 = vadd.f32 %v839, %v1362
      %v1364 = vpop.f32.mrf.mxu0
      %v1365 = vadd.f32 %v841, %v1364
      %1366 = vmatmul.bf16.gmra.mxu0 %v1134
      %v1367 = vpop.f32.mrf.mxu0
      %v1368 = vadd.f32 %v844, %v1367
      %v1369 = vpop.f32.mrf.mxu0
      %v1370 = vadd.f32 %v846, %v1369
      %1371 = vmatmul.bf16.gmra.mxu0 %v1137
      %v1372 = vpop.f32.mrf.mxu0
      %v1373 = vadd.f32 %v849, %v1372
      %v1374 = vpop.f32.mrf.mxu0
      %v1375 = vadd.f32 %v851, %v1374
      %1376 = vmatmul.bf16.gmra.mxu0 %v1140
      %v1377 = vpop.f32.mrf.mxu0
      %v1378 = vadd.f32 %v854, %v1377
      %v1379 = vpop.f32.mrf.mxu0
      %v1380 = vadd.f32 %v856, %v1379
      %1381 = vmatmul.bf16.gmra.mxu0 %v1143
      %v1382 = vpop.f32.mrf.mxu0
      %v1383 = vadd.f32 %v859, %v1382
      %v1384 = vpop.f32.mrf.mxu0
      %v1385 = vadd.f32 %v861, %v1384
      %1386 = vmatmul.bf16.gmra.mxu0 %v1146
      %v1387 = vpop.f32.mrf.mxu0
      %v1388 = vadd.f32 %v864, %v1387
      %v1389 = vpop.f32.mrf.mxu0
      %v1390 = vadd.f32 %v866, %v1389
      %1391 = vmatmul.bf16.gmra.mxu0 %v1149
      %v1392 = vpop.f32.mrf.mxu0
      %v1393 = vadd.f32 %v869, %v1392
      %v1394 = vpop.f32.mrf.mxu0
      %v1395 = vadd.f32 %v871, %v1394
      %1396 = vmatmul.bf16.gmra.mxu0 %v1152
      %v1397 = vpop.f32.mrf.mxu0
      %v1398 = vadd.f32 %v874, %v1397
      %v1399 = vpop.f32.mrf.mxu0
      %v1400 = vadd.f32 %v876, %v1399
      %1401 = vmatmul.bf16.gmra.mxu0 %v1155
      %v1402 = vpop.f32.mrf.mxu0
      %v1403 = vadd.f32 %v879, %v1402
      %v1404 = vpop.f32.mrf.mxu0
      %v1405 = vadd.f32 %v881, %v1404
      %1406 = vmatmul.bf16.gmra.mxu0 %v1158
      %v1407 = vpop.f32.mrf.mxu0
      %v1408 = vadd.f32 %v884, %v1407
      %v1409 = vpop.f32.mrf.mxu0
      %v1410 = vadd.f32 %v886, %v1409
      %1411 = vmatmul.bf16.gmra.mxu0 %v1161
      %v1412 = vpop.f32.mrf.mxu0
      %v1413 = vadd.f32 %v889, %v1412
      %v1414 = vpop.f32.mrf.mxu0
      %v1415 = vadd.f32 %v891, %v1414
      %1416 = vmatmul.bf16.gmra.mxu0 %v1164
      %v1417 = vpop.f32.mrf.mxu0
      %v1418 = vadd.f32 %v894, %v1417
      %v1419 = vpop.f32.mrf.mxu0
      %v1420 = vadd.f32 %v896, %v1419
      %1421 = vmatmul.bf16.gmra.mxu0 %v1167
      %v1422 = vpop.f32.mrf.mxu0
      %v1423 = vadd.f32 %v899, %v1422
      %v1424 = vpop.f32.mrf.mxu0
      %v1425 = vadd.f32 %v901, %v1424
      %1426 = vmatmul.bf16.gmra.mxu0 %v1170
      %v1427 = vpop.f32.mrf.mxu0
      %v1428 = vadd.f32 %v904, %v1427
      %v1429 = vpop.f32.mrf.mxu0
      %v1430 = vadd.f32 %v906, %v1429
      %1431 = vmatmul.bf16.gmra.mxu0 %v1173
      %v1432 = vpop.f32.mrf.mxu0
      %v1433 = vadd.f32 %v909, %v1432
      %v1434 = vpop.f32.mrf.mxu0
      %v1435 = vadd.f32 %v911, %v1434
      %1436 = vmatmul.bf16.gmra.mxu0 %v1176
      %v1437 = vpop.f32.mrf.mxu0
      %v1438 = vadd.f32 %v914, %v1437
      %v1439 = vpop.f32.mrf.mxu0
      %v1440 = vadd.f32 %v916, %v1439
      %1441 = vmatmul.bf16.gmra.mxu0 %v1179
      %v1442 = vpop.f32.mrf.mxu0
      %v1443 = vadd.f32 %v919, %v1442
      %v1444 = vpop.f32.mrf.mxu0
      %v1445 = vadd.f32 %v921, %v1444
      %1446 = vmatmul.bf16.gmra.mxu0 %v1182
      %v1447 = vpop.f32.mrf.mxu0
      %v1448 = vadd.f32 %v924, %v1447
      %v1449 = vpop.f32.mrf.mxu0
      %v1450 = vadd.f32 %v926, %v1449
      %1451 = vmatmul.bf16.gmra.mxu0 %v1185
      %v1452 = vpop.f32.mrf.mxu0
      %v1453 = vadd.f32 %v929, %v1452
      %v1454 = vpop.f32.mrf.mxu0
      %v1455 = vadd.f32 %v931, %v1454
      %1456 = vmatmul.bf16.gmra.mxu0 %v1188
      %v1457 = vpop.f32.mrf.mxu0
      %v1458 = vadd.f32 %v934, %v1457
      %v1459 = vpop.f32.mrf.mxu0
      %v1460 = vadd.f32 %v936, %v1459
      %1461 = vmatmul.bf16.gmra.mxu0 %v1191
      %v1462 = vpop.f32.mrf.mxu0
      %v1463 = vadd.f32 %v939, %v1462
      %v1464 = vpop.f32.mrf.mxu0
      %v1465 = vadd.f32 %v941, %v1464
      %1466 = vmatmul.bf16.gmra.mxu0 %v1194
      %v1467 = vpop.f32.mrf.mxu0
      %v1468 = vadd.f32 %v944, %v1467
      %v1469 = vpop.f32.mrf.mxu0
      %v1470 = vadd.f32 %v946, %v1469
      %1471 = vmatmul.bf16.gmra.mxu0 %v1197
      %v1472 = vpop.f32.mrf.mxu0
      %v1473 = vadd.f32 %v949, %v1472
      %v1474 = vpop.f32.mrf.mxu0
      %v1475 = vadd.f32 %v951, %v1474
      %1476 = vmatmul.bf16.gmra.mxu0 %v1200
      %v1477 = vpop.f32.mrf.mxu0
      %v1478 = vadd.f32 %v954, %v1477
      %v1479 = vpop.f32.mrf.mxu0
      %v1480 = vadd.f32 %v956, %v1479
      %1481 = vmatmul.bf16.gmra.mxu0 %v1203
      %v1482 = vpop.f32.mrf.mxu0
      %v1483 = vadd.f32 %v959, %v1482
      %v1484 = vpop.f32.mrf.mxu0
      %v1485 = vadd.f32 %v961, %v1484
      %1486 = vmatmul.bf16.gmra.mxu0 %v1206
      %v1487 = vpop.f32.mrf.mxu0
      %v1488 = vadd.f32 %v964, %v1487
      %v1489 = vpop.f32.mrf.mxu0
      %v1490 = vadd.f32 %v966, %v1489
      %1491 = vmatmul.bf16.gmra.mxu0 %v1209
      %v1492 = vpop.f32.mrf.mxu0
      %v1493 = vadd.f32 %v969, %v1492
      %v1494 = vpop.f32.mrf.mxu0
      %v1495 = vadd.f32 %v971, %v1494
      %1496 = vmatmul.bf16.gmra.mxu0 %v1212
      %v1497 = vpop.f32.mrf.mxu0
      %v1498 = vadd.f32 %v974, %v1497
      %v1499 = vpop.f32.mrf.mxu0
      %v1500 = vadd.f32 %v976, %v1499
      %1501 = vmatmul.bf16.gmra.mxu0 %v1215
      %v1502 = vpop.f32.mrf.mxu0
      %v1503 = vadd.f32 %v979, %v1502
      %v1504 = vpop.f32.mrf.mxu0
      %v1505 = vadd.f32 %v981, %v1504
      %1506 = vmatmul.bf16.gmra.mxu0 %v1218
      %v1507 = vpop.f32.mrf.mxu0
      %v1508 = vadd.f32 %v984, %v1507
      %v1509 = vpop.f32.mrf.mxu0
      %v1510 = vadd.f32 %v986, %v1509
      %1511 = vmatmul.bf16.gmra.mxu0 %v1221
      %v1512 = vpop.f32.mrf.mxu0
      %v1513 = vadd.f32 %v989, %v1512
      %v1514 = vpop.f32.mrf.mxu0
      %v1515 = vadd.f32 %v991, %v1514
      %1516 = vmatmul.bf16.gmra.mxu0 %v1224
      %v1517 = vpop.f32.mrf.mxu0
      %v1518 = vadd.f32 %v994, %v1517
      %v1519 = vpop.f32.mrf.mxu0
      %v1520 = vadd.f32 %v996, %v1519
      %1521 = vmatmul.bf16.gmra.mxu0 %v1227
      %v1522 = vpop.f32.mrf.mxu0
      %v1523 = vadd.f32 %v999, %v1522
      %v1524 = vpop.f32.mrf.mxu0
      %v1525 = vadd.f32 %v1001, %v1524
      %1526 = vmatmul.bf16.gmra.mxu0 %v1230
      %v1527 = vpop.f32.mrf.mxu0
      %v1528 = vadd.f32 %v1004, %v1527
      %v1529 = vpop.f32.mrf.mxu0
      %v1530 = vadd.f32 %v1006, %v1529
      %1531 = vmatmul.bf16.gmra.mxu0 %v1233
      %v1532 = vpop.f32.mrf.mxu0
      %v1533 = vadd.f32 %v1009, %v1532
      %v1534 = vpop.f32.mrf.mxu0
      %v1535 = vadd.f32 %v1011, %v1534
      %1536 = vmatmul.bf16.gmra.mxu0 %v1236
      %v1537 = vpop.f32.mrf.mxu0
      %v1538 = vadd.f32 %v1014, %v1537
      %v1539 = vpop.f32.mrf.mxu0
      %v1540 = vadd.f32 %v1016, %v1539
      %1541 = vmatmul.bf16.gmra.mxu0 %v1239
      %v1542 = vpop.f32.mrf.mxu0
      %v1543 = vadd.f32 %v1019, %v1542
      %v1544 = vpop.f32.mrf.mxu0
      %v1545 = vadd.f32 %v1021, %v1544
      %1546 = vmatmul.bf16.gmra.mxu0 %v1242
      %v1547 = vpop.f32.mrf.mxu0
      %v1548 = vadd.f32 %v1024, %v1547
      %v1549 = vpop.f32.mrf.mxu0
      %v1550 = vadd.f32 %v1026, %v1549
      %1551 = vmatmul.bf16.gmra.mxu0 %v1245
      %v1552 = vpop.f32.mrf.mxu0
      %v1553 = vadd.f32 %v1029, %v1552
      %v1554 = vpop.f32.mrf.mxu0
      %v1555 = vadd.f32 %v1031, %v1554
      %1556 = vmatmul.bf16.gmra.mxu0 %v1248
      %v1557 = vpop.f32.mrf.mxu0
      %v1558 = vadd.f32 %v1034, %v1557
      %v1559 = vpop.f32.mrf.mxu0
      %v1560 = vadd.f32 %v1036, %v1559
      %1561 = vmatmul.bf16.gmra.mxu0 %v1251
      %v1562 = vpop.f32.mrf.mxu0
      %v1563 = vadd.f32 %v1039, %v1562
      %v1564 = vpop.f32.mrf.mxu0
      %v1565 = vadd.f32 %v1041, %v1564
      %1566 = vmatmul.bf16.gmra.mxu0 %v1254
      %v1567 = vpop.f32.mrf.mxu0
      %v1568 = vadd.f32 %v1044, %v1567
      %v1569 = vpop.f32.mrf.mxu0
      %v1570 = vadd.f32 %v1046, %v1569
      %1571 = vmatmul.bf16.gmra.mxu0 %v1257
      %v1572 = vpop.f32.mrf.mxu0
      %v1573 = vadd.f32 %v1049, %v1572
      %v1574 = vpop.f32.mrf.mxu0
      %v1575 = vadd.f32 %v1051, %v1574
      %1576 = vmatmul.bf16.gmra.mxu0 %v1260
      %v1577 = vpop.f32.mrf.mxu0
      %v1578 = vadd.f32 %v1054, %v1577
      %v1579 = vpop.f32.mrf.mxu0
      %v1580 = vadd.f32 %v1056, %v1579
      %1581 = vmatmul.bf16.gmra.mxu0 %v1263
      %v1582 = vpop.f32.mrf.mxu0
      %v1583 = vadd.f32 %v1059, %v1582
      %v1584 = vpop.f32.mrf.mxu0
      %v1585 = vadd.f32 %v1061, %v1584
      %1586 = vmatmul.bf16.gmra.mxu0 %v1266
      %v1587 = vpop.f32.mrf.mxu0
      %v1588 = vadd.f32 %v1064, %v1587
      %v1589 = vpop.f32.mrf.mxu0
      %v1590 = vadd.f32 %v1066, %v1589
      %1591 = vmatmul.bf16.gmra.mxu0 %v1269
      %v1592 = vpop.f32.mrf.mxu0
      %v1593 = vadd.f32 %v1069, %v1592
      %v1594 = vpop.f32.mrf.mxu0
      %v1595 = vadd.f32 %v1071, %v1594
      %1596 = vmatmul.bf16.gmra.mxu0 %v1272
      %v1597 = vpop.f32.mrf.mxu0
      %v1598 = vadd.f32 %v1074, %v1597
      %v1599 = vpop.f32.mrf.mxu0
      %v1600 = vadd.f32 %v1076, %v1599
      %1601 = vmatmul.bf16.gmra.mxu0 %v1275
      %v1602 = vpop.f32.mrf.mxu0
      %v1603 = vadd.f32 %v1079, %v1602
      %v1604 = vpop.f32.mrf.mxu0
      %v1605 = vadd.f32 %v1081, %v1604
      %1606 = vmatmul.bf16.gmra.mxu0 %v1278
      %v1607 = vpop.f32.mrf.mxu0
      %v1608 = vadd.f32 %v1084, %v1607
      %v1609 = vpop.f32.mrf.mxu0
      %v1610 = vadd.f32 %v1086, %v1609
      %1611 = vdwg.mxu0
      %v1612 = vld [vmem:[%s165 + $0x2] sm:$0xff]
      %v1613 = vld [vmem:[%s165 + $0xa] sm:$0xff]
      %v1614 = vld [vmem:[%s165 + $0x12] sm:$0xff]
      %v1615 = vld [vmem:[%s165 + $0x1a] sm:$0xff]
      %v1616 = vld [vmem:[%s165 + $0x2a] sm:$0xff]
      %v1617 = vld [vmem:[%s165 + $0x32] sm:$0xff]
      %v1618 = vld [vmem:[%s165 + $0x3a] sm:$0xff]
      %v1619 = vld [vmem:[%s165 + $0x42] sm:$0xff]
      %v1620 = vld [vmem:[%s165 + $0x52] sm:$0xff]
      %v1621 = vld [vmem:[%s165 + $0x5a] sm:$0xff]
      %v1622 = vld [vmem:[%s165 + $0x62] sm:$0xff]
      %v1623 = vld [vmem:[%s165 + $0x6a] sm:$0xff]
      %v1624 = vld [vmem:[%s165 + $0x7a] sm:$0xff]
      %v1625 = vld [vmem:[%s165 + $0x82] sm:$0xff]
      %v1626 = vld [vmem:[%s165 + $0x8a] sm:$0xff]
      %v1627 = vld [vmem:[%s165 + $0x92] sm:$0xff]
      %v1628 = vld [vmem:[%s165 + $0xa2] sm:$0xff]
      %v1629 = vld [vmem:[%s165 + $0xaa] sm:$0xff]
      %v1630 = vld [vmem:[%s165 + $0xb2] sm:$0xff]
      %v1631 = vld [vmem:[%s165 + $0xba] sm:$0xff]
      %v1632 = vld [vmem:[%s165 + $0xca] sm:$0xff]
      %v1633 = vld [vmem:[%s165 + $0xd2] sm:$0xff]
      %v1634 = vld [vmem:[%s165 + $0xda] sm:$0xff]
      %v1635 = vld [vmem:[%s165 + $0xe2] sm:$0xff]
      %v1636 = vld [vmem:[%s165 + $0xf2] sm:$0xff]
      %v1637 = vld [vmem:[%s165 + $0xfa] sm:$0xff]
      %v1638 = vld [vmem:[%s165 + $0x102] sm:$0xff]
      %v1639 = vld [vmem:[%s165 + $0x10a] sm:$0xff]
      %v1640 = vld [vmem:[%s165 + $0x11a] sm:$0xff]
      %v1641 = vld [vmem:[%s165 + $0x122] sm:$0xff]
      %v1642 = vld [vmem:[%s165 + $0x12a] sm:$0xff]
      %v1643 = vld [vmem:[%s165 + $0x132] sm:$0xff]
      %v1644 = vld [vmem:[%s165 + $0x142] sm:$0xff]
      %v1645 = vld [vmem:[%s165 + $0x14a] sm:$0xff]
      %v1646 = vld [vmem:[%s165 + $0x152] sm:$0xff]
      %v1647 = vld [vmem:[%s165 + $0x15a] sm:$0xff]
      %v1648 = vld [vmem:[%s165 + $0x16a] sm:$0xff]
      %v1649 = vld [vmem:[%s165 + $0x172] sm:$0xff]
      %v1650 = vld [vmem:[%s165 + $0x17a] sm:$0xff]
      %v1651 = vld [vmem:[%s165 + $0x182] sm:$0xff]
      %v1652 = vld [vmem:[%s165 + $0x192] sm:$0xff]
      %v1653 = vld [vmem:[%s165 + $0x19a] sm:$0xff]
      %v1654 = vld [vmem:[%s165 + $0x1a2] sm:$0xff]
      %v1655 = vld [vmem:[%s165 + $0x1aa] sm:$0xff]
      %v1656 = vld [vmem:[%s165 + $0x1ba] sm:$0xff]
      %v1657 = vld [vmem:[%s165 + $0x1c2] sm:$0xff]
      %v1658 = vld [vmem:[%s165 + $0x1ca] sm:$0xff]
      %v1659 = vld [vmem:[%s165 + $0x1d2] sm:$0xff]
      %v1660 = vld [vmem:[%s165 + $0x1e2] sm:$0xff]
      %v1661 = vld [vmem:[%s165 + $0x1ea] sm:$0xff]
      %v1662 = vld [vmem:[%s165 + $0x1f2] sm:$0xff]
      %v1663 = vld [vmem:[%s165 + $0x1fa] sm:$0xff]
      %v1664 = vld [vmem:[%s165 + $0x20a] sm:$0xff]
      %v1665 = vld [vmem:[%s165 + $0x212] sm:$0xff]
      %v1666 = vld [vmem:[%s165 + $0x21a] sm:$0xff]
      %v1667 = vld [vmem:[%s165 + $0x222] sm:$0xff]
      %v1668 = vld [vmem:[%s165 + $0x232] sm:$0xff]
      %v1669 = vld [vmem:[%s165 + $0x23a] sm:$0xff]
      %v1670 = vld [vmem:[%s165 + $0x242] sm:$0xff]
      %v1671 = vld [vmem:[%s165 + $0x24a] sm:$0xff]
      %v1672 = vld [vmem:[%s165 + $0x25a] sm:$0xff]
      %v1673 = vld [vmem:[%s165 + $0x262] sm:$0xff]
      %v1674 = vld [vmem:[%s165 + $0x26a] sm:$0xff]
      %v1675 = vld [vmem:[%s165 + $0x272] sm:$0xff]
      %v1676 = vld [vmem:[%s165 + $0x282] sm:$0xff]
      %v1677 = vld [vmem:[%s165 + $0x28a] sm:$0xff]
      %v1678 = vld [vmem:[%s165 + $0x292] sm:$0xff]
      %v1679 = vld [vmem:[%s165 + $0x29a] sm:$0xff]
      %v1680 = vld [vmem:[%s165 + $0x2aa] sm:$0xff]
      %v1681 = vld [vmem:[%s165 + $0x2b2] sm:$0xff]
      %v1682 = vld [vmem:[%s165 + $0x2ba] sm:$0xff]
      %v1683 = vld [vmem:[%s165 + $0x2c2] sm:$0xff]
      %v1684 = vld [vmem:[%s165 + $0x2d2] sm:$0xff]
      %v1685 = vld [vmem:[%s165 + $0x2da] sm:$0xff]
      %v1686 = vld [vmem:[%s165 + $0x2e2] sm:$0xff]
      %v1687 = vld [vmem:[%s165 + $0x2ea] sm:$0xff]
      %v1688 = vld [vmem:[%s165 + $0x2fa] sm:$0xff]
      %v1689 = vld [vmem:[%s165 + $0x302] sm:$0xff]
      %v1690 = vld [vmem:[%s165 + $0x30a] sm:$0xff]
      %v1691 = vld [vmem:[%s165 + $0x312] sm:$0xff]
      %v1692 = vld [vmem:[%s165 + $0x322] sm:$0xff]
      %v1693 = vld [vmem:[%s165 + $0x32a] sm:$0xff]
      %v1694 = vld [vmem:[%s165 + $0x332] sm:$0xff]
      %v1695 = vld [vmem:[%s165 + $0x33a] sm:$0xff]
      %v1696 = vld [vmem:[%s165 + $0x34a] sm:$0xff]
      %v1697 = vld [vmem:[%s165 + $0x352] sm:$0xff]
      %v1698 = vld [vmem:[%s165 + $0x35a] sm:$0xff]
      %v1699 = vld [vmem:[%s165 + $0x362] sm:$0xff]
      %v1700 = vld [vmem:[%s165 + $0x372] sm:$0xff]
      %v1701 = vld [vmem:[%s165 + $0x37a] sm:$0xff]
      %v1702 = vld [vmem:[%s165 + $0x382] sm:$0xff]
      %v1703 = vld [vmem:[%s165 + $0x38a] sm:$0xff]
      %v1704 = vld [vmem:[%s165 + $0x39a] sm:$0xff]
      %v1705 = vld [vmem:[%s165 + $0x3a2] sm:$0xff]
      %v1706 = vld [vmem:[%s165 + $0x3aa] sm:$0xff]
      %v1707 = vld [vmem:[%s165 + $0x3b2] sm:$0xff]
      %v1708 = vld [vmem:[%s165 + $0x3c2] sm:$0xff]
      %v1709 = vld [vmem:[%s165 + $0x3ca] sm:$0xff]
      %v1710 = vld [vmem:[%s165 + $0x3d2] sm:$0xff]
      %v1711 = vld [vmem:[%s165 + $0x3da] sm:$0xff]
      %v1712 = vld [vmem:[%s165 + $0x3ea] sm:$0xff]
      %v1713 = vld [vmem:[%s165 + $0x3f2] sm:$0xff]
      %v1714 = vld [vmem:[%s165 + $0x3fa] sm:$0xff]
      %v1715 = vld [vmem:[%s165 + $0x402] sm:$0xff]
      %v1716 = vld [vmem:[%s165 + $0x412] sm:$0xff]
      %v1717 = vld [vmem:[%s165 + $0x41a] sm:$0xff]
      %v1718 = vld [vmem:[%s165 + $0x422] sm:$0xff]
      %v1719 = vld [vmem:[%s165 + $0x42a] sm:$0xff]
      %v1720 = vld [vmem:[%s165 + $0x43a] sm:$0xff]
      %v1721 = vld [vmem:[%s165 + $0x442] sm:$0xff]
      %v1722 = vld [vmem:[%s165 + $0x44a] sm:$0xff]
      %v1723 = vld [vmem:[%s165 + $0x452] sm:$0xff]
      %v1724 = vld [vmem:[%s165 + $0x462] sm:$0xff]
      %v1725 = vld [vmem:[%s165 + $0x46a] sm:$0xff]
      %v1726 = vld [vmem:[%s165 + $0x472] sm:$0xff]
      %v1727 = vld [vmem:[%s165 + $0x47a] sm:$0xff]
      %v1728 = vld [vmem:[%s165 + $0x48a] sm:$0xff]
      %v1729 = vld [vmem:[%s165 + $0x492] sm:$0xff]
      %v1730 = vld [vmem:[%s165 + $0x49a] sm:$0xff]
      %v1731 = vld [vmem:[%s165 + $0x4a2] sm:$0xff]
      %v1732 = vld [vmem:[%s165 + $0x4b2] sm:$0xff]
      %v1733 = vld [vmem:[%s165 + $0x4ba] sm:$0xff]
      %v1734 = vld [vmem:[%s165 + $0x4c2] sm:$0xff]
      %v1735 = vld [vmem:[%s165 + $0x4ca] sm:$0xff]
      %v1736 = vld [vmem:[%s165 + $0x4da] sm:$0xff]
      %v1737 = vld [vmem:[%s165 + $0x4e2] sm:$0xff]
      %v1738 = vld [vmem:[%s165 + $0x4ea] sm:$0xff]
      %v1739 = vld [vmem:[%s165 + $0x4f2] sm:$0xff]
      %v1740 = vpack.c.bf16 %v1613, %v1612
      %v1741 = vpack.c.bf16 %v1615, %v1614
      %v1742 = vpack.c.bf16 %v1617, %v1616
      %v1743 = vpack.c.bf16 %v1619, %v1618
      %v1744 = vpack.c.bf16 %v1621, %v1620
      %v1745 = vpack.c.bf16 %v1623, %v1622
      %v1746 = vpack.c.bf16 %v1625, %v1624
      %v1747 = vpack.c.bf16 %v1627, %v1626
      %v1748 = vpack.c.bf16 %v1629, %v1628
      %v1749 = vpack.c.bf16 %v1631, %v1630
      %v1750 = vpack.c.bf16 %v1633, %v1632
      %v1751 = vpack.c.bf16 %v1635, %v1634
      %v1752 = vpack.c.bf16 %v1637, %v1636
      %v1753 = vpack.c.bf16 %v1639, %v1638
      %v1754 = vpack.c.bf16 %v1641, %v1640
      %v1755 = vpack.c.bf16 %v1643, %v1642
      %v1756 = vpack.c.bf16 %v1645, %v1644
      %v1757 = vpack.c.bf16 %v1647, %v1646
      %v1758 = vpack.c.bf16 %v1649, %v1648
      %v1759 = vpack.c.bf16 %v1651, %v1650
      %v1760 = vpack.c.bf16 %v1653, %v1652
      %v1761 = vpack.c.bf16 %v1655, %v1654
      %v1762 = vpack.c.bf16 %v1657, %v1656
      %v1763 = vpack.c.bf16 %v1659, %v1658
      %v1764 = vpack.c.bf16 %v1661, %v1660
      %v1765 = vpack.c.bf16 %v1663, %v1662
      %v1766 = vpack.c.bf16 %v1665, %v1664
      %v1767 = vpack.c.bf16 %v1667, %v1666
      %v1768 = vpack.c.bf16 %v1669, %v1668
      %v1769 = vpack.c.bf16 %v1671, %v1670
      %v1770 = vpack.c.bf16 %v1673, %v1672
      %v1771 = vpack.c.bf16 %v1675, %v1674
      %v1772 = vpack.c.bf16 %v1677, %v1676
      %v1773 = vpack.c.bf16 %v1679, %v1678
      %v1774 = vpack.c.bf16 %v1681, %v1680
      %v1775 = vpack.c.bf16 %v1683, %v1682
      %v1776 = vpack.c.bf16 %v1685, %v1684
      %v1777 = vpack.c.bf16 %v1687, %v1686
      %v1778 = vpack.c.bf16 %v1689, %v1688
      %v1779 = vpack.c.bf16 %v1691, %v1690
      %v1780 = vpack.c.bf16 %v1693, %v1692
      %v1781 = vpack.c.bf16 %v1695, %v1694
      %v1782 = vpack.c.bf16 %v1697, %v1696
      %v1783 = vpack.c.bf16 %v1699, %v1698
      %v1784 = vpack.c.bf16 %v1701, %v1700
      %v1785 = vpack.c.bf16 %v1703, %v1702
      %v1786 = vpack.c.bf16 %v1705, %v1704
      %v1787 = vpack.c.bf16 %v1707, %v1706
      %v1788 = vpack.c.bf16 %v1709, %v1708
      %v1789 = vpack.c.bf16 %v1711, %v1710
      %v1790 = vpack.c.bf16 %v1713, %v1712
      %v1791 = vpack.c.bf16 %v1715, %v1714
      %v1792 = vpack.c.bf16 %v1717, %v1716
      %v1793 = vpack.c.bf16 %v1719, %v1718
      %v1794 = vpack.c.bf16 %v1721, %v1720
      %v1795 = vpack.c.bf16 %v1723, %v1722
      %v1796 = vpack.c.bf16 %v1725, %v1724
      %v1797 = vpack.c.bf16 %v1727, %v1726
      %v1798 = vpack.c.bf16 %v1729, %v1728
      %v1799 = vpack.c.bf16 %v1731, %v1730
      %v1800 = vpack.c.bf16 %v1733, %v1732
      %v1801 = vpack.c.bf16 %v1735, %v1734
      %v1802 = vpack.c.bf16 %v1737, %v1736
      %v1803 = vpack.c.bf16 %v1739, %v1738
      %s1804 = scalar_lea.vmem %s1, 4
      %v1805 = vld [vmem:[%s1804] sm:$0x3]
      %v1807 = vsel %vm559, %v1740, 0
      %v1810 = vsel %vm559, %v1741, 0
      %v1813 = vsel %vm559, %v1742, 0
      %v1816 = vsel %vm559, %v1743, 0
      %v1819 = vsel %vm559, %v1744, 0
      %v1822 = vsel %vm559, %v1745, 0
      %v1825 = vsel %vm559, %v1746, 0
      %v1828 = vsel %vm559, %v1747, 0
      %v1831 = vsel %vm559, %v1748, 0
      %v1834 = vsel %vm559, %v1749, 0
      %v1837 = vsel %vm559, %v1750, 0
      %v1840 = vsel %vm559, %v1751, 0
      %v1843 = vsel %vm559, %v1752, 0
      %v1846 = vsel %vm559, %v1753, 0
      %v1849 = vsel %vm559, %v1754, 0
      %v1852 = vsel %vm559, %v1755, 0
      %v1855 = vsel %vm559, %v1756, 0
      %v1858 = vsel %vm559, %v1757, 0
      %v1861 = vsel %vm559, %v1758, 0
      %v1864 = vsel %vm559, %v1759, 0
      %v1867 = vsel %vm559, %v1760, 0
      %v1870 = vsel %vm559, %v1761, 0
      %v1873 = vsel %vm559, %v1762, 0
      %v1876 = vsel %vm559, %v1763, 0
      %v1879 = vsel %vm559, %v1764, 0
      %v1882 = vsel %vm559, %v1765, 0
      %v1885 = vsel %vm559, %v1766, 0
      %v1888 = vsel %vm559, %v1767, 0
      %v1891 = vsel %vm559, %v1768, 0
      %v1894 = vsel %vm559, %v1769, 0
      %v1897 = vsel %vm559, %v1770, 0
      %v1900 = vsel %vm559, %v1771, 0
      %v1903 = vsel %vm559, %v1772, 0
      %v1906 = vsel %vm559, %v1773, 0
      %v1909 = vsel %vm559, %v1774, 0
      %v1912 = vsel %vm559, %v1775, 0
      %v1915 = vsel %vm559, %v1776, 0
      %v1918 = vsel %vm559, %v1777, 0
      %v1921 = vsel %vm559, %v1778, 0
      %v1924 = vsel %vm559, %v1779, 0
      %v1927 = vsel %vm559, %v1780, 0
      %v1930 = vsel %vm559, %v1781, 0
      %v1933 = vsel %vm559, %v1782, 0
      %v1936 = vsel %vm559, %v1783, 0
      %v1939 = vsel %vm559, %v1784, 0
      %v1942 = vsel %vm559, %v1785, 0
      %v1945 = vsel %vm559, %v1786, 0
      %v1948 = vsel %vm559, %v1787, 0
      %v1951 = vsel %vm559, %v1788, 0
      %v1954 = vsel %vm559, %v1789, 0
      %v1957 = vsel %vm559, %v1790, 0
      %v1960 = vsel %vm559, %v1791, 0
      %v1963 = vsel %vm559, %v1792, 0
      %v1966 = vsel %vm559, %v1793, 0
      %v1969 = vsel %vm559, %v1794, 0
      %v1972 = vsel %vm559, %v1795, 0
      %v1975 = vsel %vm559, %v1796, 0
      %v1978 = vsel %vm559, %v1797, 0
      %v1981 = vsel %vm559, %v1798, 0
      %v1984 = vsel %vm559, %v1799, 0
      %v1987 = vsel %vm559, %v1800, 0
      %v1990 = vsel %vm559, %v1801, 0
      %v1993 = vsel %vm559, %v1802, 0
      %v1996 = vsel %vm559, %v1803, 0
      %v1999 = vand.u32 %v1805, %v755
      %2001 = vmatpush.bf16.msra.mxu0 0
      %2002 = vmatpush.bf16.msra.mxu0 0
      %2003 = vmatpush.bf16.msra.mxu0 0
      %2004 = vmatpush.bf16.msra.mxu0 0
      %2005 = vmatpush.bf16.msra.mxu0 0
      %2006 = vmatpush.bf16.msra.mxu0 0
      %2007 = vmatpush.bf16.msra.mxu0 0
      %2008 = vmatpush.bf16.msra.mxu0 %v1999
      %2009 = vmatmul.bf16.gmra.mxu0 %v1807
      %v2010 = vpop.f32.mrf.mxu0
      %v2011 = vadd.f32 0.0, %v2010
      %v2012 = vpop.f32.mrf.mxu0
      %v2013 = vadd.f32 0.0, %v2012
      %2014 = vmatmul.bf16.gmra.mxu0 %v1810
      %v2015 = vpop.f32.mrf.mxu0
      %v2016 = vadd.f32 0.0, %v2015
      %v2017 = vpop.f32.mrf.mxu0
      %v2018 = vadd.f32 0.0, %v2017
      %2019 = vmatmul.bf16.gmra.mxu0 %v1813
      %v2020 = vpop.f32.mrf.mxu0
      %v2021 = vadd.f32 0.0, %v2020
      %v2022 = vpop.f32.mrf.mxu0
      %v2023 = vadd.f32 0.0, %v2022
      %2024 = vmatmul.bf16.gmra.mxu0 %v1816
      %v2025 = vpop.f32.mrf.mxu0
      %v2026 = vadd.f32 0.0, %v2025
      %v2027 = vpop.f32.mrf.mxu0
      %v2028 = vadd.f32 0.0, %v2027
      %2029 = vmatmul.bf16.gmra.mxu0 %v1819
      %v2030 = vpop.f32.mrf.mxu0
      %v2031 = vadd.f32 0.0, %v2030
      %v2032 = vpop.f32.mrf.mxu0
      %v2033 = vadd.f32 0.0, %v2032
      %2034 = vmatmul.bf16.gmra.mxu0 %v1822
      %v2035 = vpop.f32.mrf.mxu0
      %v2036 = vadd.f32 0.0, %v2035
      %v2037 = vpop.f32.mrf.mxu0
      %v2038 = vadd.f32 0.0, %v2037
      %2039 = vmatmul.bf16.gmra.mxu0 %v1825
      %v2040 = vpop.f32.mrf.mxu0
      %v2041 = vadd.f32 0.0, %v2040
      %v2042 = vpop.f32.mrf.mxu0
      %v2043 = vadd.f32 0.0, %v2042
      %2044 = vmatmul.bf16.gmra.mxu0 %v1828
      %v2045 = vpop.f32.mrf.mxu0
      %v2046 = vadd.f32 0.0, %v2045
      %v2047 = vpop.f32.mrf.mxu0
      %v2048 = vadd.f32 0.0, %v2047
      %2049 = vmatmul.bf16.gmra.mxu0 %v1831
      %v2050 = vpop.f32.mrf.mxu0
      %v2051 = vadd.f32 0.0, %v2050
      %v2052 = vpop.f32.mrf.mxu0
      %v2053 = vadd.f32 0.0, %v2052
      %2054 = vmatmul.bf16.gmra.mxu0 %v1834
      %v2055 = vpop.f32.mrf.mxu0
      %v2056 = vadd.f32 0.0, %v2055
      %v2057 = vpop.f32.mrf.mxu0
      %v2058 = vadd.f32 0.0, %v2057
      %2059 = vmatmul.bf16.gmra.mxu0 %v1837
      %v2060 = vpop.f32.mrf.mxu0
      %v2061 = vadd.f32 0.0, %v2060
      %v2062 = vpop.f32.mrf.mxu0
      %v2063 = vadd.f32 0.0, %v2062
      %2064 = vmatmul.bf16.gmra.mxu0 %v1840
      %v2065 = vpop.f32.mrf.mxu0
      %v2066 = vadd.f32 0.0, %v2065
      %v2067 = vpop.f32.mrf.mxu0
      %v2068 = vadd.f32 0.0, %v2067
      %2069 = vmatmul.bf16.gmra.mxu0 %v1843
      %v2070 = vpop.f32.mrf.mxu0
      %v2071 = vadd.f32 0.0, %v2070
      %v2072 = vpop.f32.mrf.mxu0
      %v2073 = vadd.f32 0.0, %v2072
      %2074 = vmatmul.bf16.gmra.mxu0 %v1846
      %v2075 = vpop.f32.mrf.mxu0
      %v2076 = vadd.f32 0.0, %v2075
      %v2077 = vpop.f32.mrf.mxu0
      %v2078 = vadd.f32 0.0, %v2077
      %2079 = vmatmul.bf16.gmra.mxu0 %v1849
      %v2080 = vpop.f32.mrf.mxu0
      %v2081 = vadd.f32 0.0, %v2080
      %v2082 = vpop.f32.mrf.mxu0
      %v2083 = vadd.f32 0.0, %v2082
      %2084 = vmatmul.bf16.gmra.mxu0 %v1852
      %v2085 = vpop.f32.mrf.mxu0
      %v2086 = vadd.f32 0.0, %v2085
      %v2087 = vpop.f32.mrf.mxu0
      %v2088 = vadd.f32 0.0, %v2087
      %2089 = vmatmul.bf16.gmra.mxu0 %v1855
      %v2090 = vpop.f32.mrf.mxu0
      %v2091 = vadd.f32 0.0, %v2090
      %v2092 = vpop.f32.mrf.mxu0
      %v2093 = vadd.f32 0.0, %v2092
      %2094 = vmatmul.bf16.gmra.mxu0 %v1858
      %v2095 = vpop.f32.mrf.mxu0
      %v2096 = vadd.f32 0.0, %v2095
      %v2097 = vpop.f32.mrf.mxu0
      %v2098 = vadd.f32 0.0, %v2097
      %2099 = vmatmul.bf16.gmra.mxu0 %v1861
      %v2100 = vpop.f32.mrf.mxu0
      %v2101 = vadd.f32 0.0, %v2100
      %v2102 = vpop.f32.mrf.mxu0
      %v2103 = vadd.f32 0.0, %v2102
      %2104 = vmatmul.bf16.gmra.mxu0 %v1864
      %v2105 = vpop.f32.mrf.mxu0
      %v2106 = vadd.f32 0.0, %v2105
      %v2107 = vpop.f32.mrf.mxu0
      %v2108 = vadd.f32 0.0, %v2107
      %2109 = vmatmul.bf16.gmra.mxu0 %v1867
      %v2110 = vpop.f32.mrf.mxu0
      %v2111 = vadd.f32 0.0, %v2110
      %v2112 = vpop.f32.mrf.mxu0
      %v2113 = vadd.f32 0.0, %v2112
      %2114 = vmatmul.bf16.gmra.mxu0 %v1870
      %v2115 = vpop.f32.mrf.mxu0
      %v2116 = vadd.f32 0.0, %v2115
      %v2117 = vpop.f32.mrf.mxu0
      %v2118 = vadd.f32 0.0, %v2117
      %2119 = vmatmul.bf16.gmra.mxu0 %v1873
      %v2120 = vpop.f32.mrf.mxu0
      %v2121 = vadd.f32 0.0, %v2120
      %v2122 = vpop.f32.mrf.mxu0
      %v2123 = vadd.f32 0.0, %v2122
      %2124 = vmatmul.bf16.gmra.mxu0 %v1876
      %v2125 = vpop.f32.mrf.mxu0
      %v2126 = vadd.f32 0.0, %v2125
      %v2127 = vpop.f32.mrf.mxu0
      %v2128 = vadd.f32 0.0, %v2127
      %2129 = vmatmul.bf16.gmra.mxu0 %v1879
      %v2130 = vpop.f32.mrf.mxu0
      %v2131 = vadd.f32 0.0, %v2130
      %v2132 = vpop.f32.mrf.mxu0
      %v2133 = vadd.f32 0.0, %v2132
      %2134 = vmatmul.bf16.gmra.mxu0 %v1882
      %v2135 = vpop.f32.mrf.mxu0
      %v2136 = vadd.f32 0.0, %v2135
      %v2137 = vpop.f32.mrf.mxu0
      %v2138 = vadd.f32 0.0, %v2137
      %2139 = vmatmul.bf16.gmra.mxu0 %v1885
      %v2140 = vpop.f32.mrf.mxu0
      %v2141 = vadd.f32 0.0, %v2140
      %v2142 = vpop.f32.mrf.mxu0
      %v2143 = vadd.f32 0.0, %v2142
      %2144 = vmatmul.bf16.gmra.mxu0 %v1888
      %v2145 = vpop.f32.mrf.mxu0
      %v2146 = vadd.f32 0.0, %v2145
      %v2147 = vpop.f32.mrf.mxu0
      %v2148 = vadd.f32 0.0, %v2147
      %2149 = vmatmul.bf16.gmra.mxu0 %v1891
      %v2150 = vpop.f32.mrf.mxu0
      %v2151 = vadd.f32 0.0, %v2150
      %v2152 = vpop.f32.mrf.mxu0
      %v2153 = vadd.f32 0.0, %v2152
      %2154 = vmatmul.bf16.gmra.mxu0 %v1894
      %v2155 = vpop.f32.mrf.mxu0
      %v2156 = vadd.f32 0.0, %v2155
      %v2157 = vpop.f32.mrf.mxu0
      %v2158 = vadd.f32 0.0, %v2157
      %2159 = vmatmul.bf16.gmra.mxu0 %v1897
      %v2160 = vpop.f32.mrf.mxu0
      %v2161 = vadd.f32 0.0, %v2160
      %v2162 = vpop.f32.mrf.mxu0
      %v2163 = vadd.f32 0.0, %v2162
      %2164 = vmatmul.bf16.gmra.mxu0 %v1900
      %v2165 = vpop.f32.mrf.mxu0
      %v2166 = vadd.f32 0.0, %v2165
      %v2167 = vpop.f32.mrf.mxu0
      %v2168 = vadd.f32 0.0, %v2167
      %2169 = vmatmul.bf16.gmra.mxu0 %v1903
      %v2170 = vpop.f32.mrf.mxu0
      %v2171 = vadd.f32 0.0, %v2170
      %v2172 = vpop.f32.mrf.mxu0
      %v2173 = vadd.f32 0.0, %v2172
      %2174 = vmatmul.bf16.gmra.mxu0 %v1906
      %v2175 = vpop.f32.mrf.mxu0
      %v2176 = vadd.f32 0.0, %v2175
      %v2177 = vpop.f32.mrf.mxu0
      %v2178 = vadd.f32 0.0, %v2177
      %2179 = vmatmul.bf16.gmra.mxu0 %v1909
      %v2180 = vpop.f32.mrf.mxu0
      %v2181 = vadd.f32 0.0, %v2180
      %v2182 = vpop.f32.mrf.mxu0
      %v2183 = vadd.f32 0.0, %v2182
      %2184 = vmatmul.bf16.gmra.mxu0 %v1912
      %v2185 = vpop.f32.mrf.mxu0
      %v2186 = vadd.f32 0.0, %v2185
      %v2187 = vpop.f32.mrf.mxu0
      %v2188 = vadd.f32 0.0, %v2187
      %2189 = vmatmul.bf16.gmra.mxu0 %v1915
      %v2190 = vpop.f32.mrf.mxu0
      %v2191 = vadd.f32 0.0, %v2190
      %v2192 = vpop.f32.mrf.mxu0
      %v2193 = vadd.f32 0.0, %v2192
      %2194 = vmatmul.bf16.gmra.mxu0 %v1918
      %v2195 = vpop.f32.mrf.mxu0
      %v2196 = vadd.f32 0.0, %v2195
      %v2197 = vpop.f32.mrf.mxu0
      %v2198 = vadd.f32 0.0, %v2197
      %2199 = vmatmul.bf16.gmra.mxu0 %v1921
      %v2200 = vpop.f32.mrf.mxu0
      %v2201 = vadd.f32 0.0, %v2200
      %v2202 = vpop.f32.mrf.mxu0
      %v2203 = vadd.f32 0.0, %v2202
      %2204 = vmatmul.bf16.gmra.mxu0 %v1924
      %v2205 = vpop.f32.mrf.mxu0
      %v2206 = vadd.f32 0.0, %v2205
      %v2207 = vpop.f32.mrf.mxu0
      %v2208 = vadd.f32 0.0, %v2207
      %2209 = vmatmul.bf16.gmra.mxu0 %v1927
      %v2210 = vpop.f32.mrf.mxu0
      %v2211 = vadd.f32 0.0, %v2210
      %v2212 = vpop.f32.mrf.mxu0
      %v2213 = vadd.f32 0.0, %v2212
      %2214 = vmatmul.bf16.gmra.mxu0 %v1930
      %v2215 = vpop.f32.mrf.mxu0
      %v2216 = vadd.f32 0.0, %v2215
      %v2217 = vpop.f32.mrf.mxu0
      %v2218 = vadd.f32 0.0, %v2217
      %2219 = vmatmul.bf16.gmra.mxu0 %v1933
      %v2220 = vpop.f32.mrf.mxu0
      %v2221 = vadd.f32 0.0, %v2220
      %v2222 = vpop.f32.mrf.mxu0
      %v2223 = vadd.f32 0.0, %v2222
      %2224 = vmatmul.bf16.gmra.mxu0 %v1936
      %v2225 = vpop.f32.mrf.mxu0
      %v2226 = vadd.f32 0.0, %v2225
      %v2227 = vpop.f32.mrf.mxu0
      %v2228 = vadd.f32 0.0, %v2227
      %2229 = vmatmul.bf16.gmra.mxu0 %v1939
      %v2230 = vpop.f32.mrf.mxu0
      %v2231 = vadd.f32 0.0, %v2230
      %v2232 = vpop.f32.mrf.mxu0
      %v2233 = vadd.f32 0.0, %v2232
      %2234 = vmatmul.bf16.gmra.mxu0 %v1942
      %v2235 = vpop.f32.mrf.mxu0
      %v2236 = vadd.f32 0.0, %v2235
      %v2237 = vpop.f32.mrf.mxu0
      %v2238 = vadd.f32 0.0, %v2237
      %2239 = vmatmul.bf16.gmra.mxu0 %v1945
      %v2240 = vpop.f32.mrf.mxu0
      %v2241 = vadd.f32 0.0, %v2240
      %v2242 = vpop.f32.mrf.mxu0
      %v2243 = vadd.f32 0.0, %v2242
      %2244 = vmatmul.bf16.gmra.mxu0 %v1948
      %v2245 = vpop.f32.mrf.mxu0
      %v2246 = vadd.f32 0.0, %v2245
      %v2247 = vpop.f32.mrf.mxu0
      %v2248 = vadd.f32 0.0, %v2247
      %2249 = vmatmul.bf16.gmra.mxu0 %v1951
      %v2250 = vpop.f32.mrf.mxu0
      %v2251 = vadd.f32 0.0, %v2250
      %v2252 = vpop.f32.mrf.mxu0
      %v2253 = vadd.f32 0.0, %v2252
      %2254 = vmatmul.bf16.gmra.mxu0 %v1954
      %v2255 = vpop.f32.mrf.mxu0
      %v2256 = vadd.f32 0.0, %v2255
      %v2257 = vpop.f32.mrf.mxu0
      %v2258 = vadd.f32 0.0, %v2257
      %2259 = vmatmul.bf16.gmra.mxu0 %v1957
      %v2260 = vpop.f32.mrf.mxu0
      %v2261 = vadd.f32 0.0, %v2260
      %v2262 = vpop.f32.mrf.mxu0
      %v2263 = vadd.f32 0.0, %v2262
      %2264 = vmatmul.bf16.gmra.mxu0 %v1960
      %v2265 = vpop.f32.mrf.mxu0
      %v2266 = vadd.f32 0.0, %v2265
      %v2267 = vpop.f32.mrf.mxu0
      %v2268 = vadd.f32 0.0, %v2267
      %2269 = vmatmul.bf16.gmra.mxu0 %v1963
      %v2270 = vpop.f32.mrf.mxu0
      %v2271 = vadd.f32 0.0, %v2270
      %v2272 = vpop.f32.mrf.mxu0
      %v2273 = vadd.f32 0.0, %v2272
      %2274 = vmatmul.bf16.gmra.mxu0 %v1966
      %v2275 = vpop.f32.mrf.mxu0
      %v2276 = vadd.f32 0.0, %v2275
      %v2277 = vpop.f32.mrf.mxu0
      %v2278 = vadd.f32 0.0, %v2277
      %2279 = vmatmul.bf16.gmra.mxu0 %v1969
      %v2280 = vpop.f32.mrf.mxu0
      %v2281 = vadd.f32 0.0, %v2280
      %v2282 = vpop.f32.mrf.mxu0
      %v2283 = vadd.f32 0.0, %v2282
      %2284 = vmatmul.bf16.gmra.mxu0 %v1972
      %v2285 = vpop.f32.mrf.mxu0
      %v2286 = vadd.f32 0.0, %v2285
      %v2287 = vpop.f32.mrf.mxu0
      %v2288 = vadd.f32 0.0, %v2287
      %2289 = vmatmul.bf16.gmra.mxu0 %v1975
      %v2290 = vpop.f32.mrf.mxu0
      %v2291 = vadd.f32 0.0, %v2290
      %v2292 = vpop.f32.mrf.mxu0
      %v2293 = vadd.f32 0.0, %v2292
      %2294 = vmatmul.bf16.gmra.mxu0 %v1978
      %v2295 = vpop.f32.mrf.mxu0
      %v2296 = vadd.f32 0.0, %v2295
      %v2297 = vpop.f32.mrf.mxu0
      %v2298 = vadd.f32 0.0, %v2297
      %2299 = vmatmul.bf16.gmra.mxu0 %v1981
      %v2300 = vpop.f32.mrf.mxu0
      %v2301 = vadd.f32 0.0, %v2300
      %v2302 = vpop.f32.mrf.mxu0
      %v2303 = vadd.f32 0.0, %v2302
      %2304 = vmatmul.bf16.gmra.mxu0 %v1984
      %v2305 = vpop.f32.mrf.mxu0
      %v2306 = vadd.f32 0.0, %v2305
      %v2307 = vpop.f32.mrf.mxu0
      %v2308 = vadd.f32 0.0, %v2307
      %2309 = vmatmul.bf16.gmra.mxu0 %v1987
      %v2310 = vpop.f32.mrf.mxu0
      %v2311 = vadd.f32 0.0, %v2310
      %v2312 = vpop.f32.mrf.mxu0
      %v2313 = vadd.f32 0.0, %v2312
      %2314 = vmatmul.bf16.gmra.mxu0 %v1990
      %v2315 = vpop.f32.mrf.mxu0
      %v2316 = vadd.f32 0.0, %v2315
      %v2317 = vpop.f32.mrf.mxu0
      %v2318 = vadd.f32 0.0, %v2317
      %2319 = vmatmul.bf16.gmra.mxu0 %v1993
      %v2320 = vpop.f32.mrf.mxu0
      %v2321 = vadd.f32 0.0, %v2320
      %v2322 = vpop.f32.mrf.mxu0
      %v2323 = vadd.f32 0.0, %v2322
      %2324 = vmatmul.bf16.gmra.mxu0 %v1996
      %v2325 = vpop.f32.mrf.mxu0
      %v2326 = vadd.f32 0.0, %v2325
      %v2327 = vpop.f32.mrf.mxu0
      %v2328 = vadd.f32 0.0, %v2327
      %2329 = vdwg.mxu0
      %v2330 = vadd.f32 %v1293, %v2011
      %v2331 = vadd.f32 %v1295, %v2013
      %v2332 = vadd.f32 %v1298, %v2016
      %v2333 = vadd.f32 %v1300, %v2018
      %v2334 = vadd.f32 %v1303, %v2021
      %v2335 = vadd.f32 %v1305, %v2023
      %v2336 = vadd.f32 %v1308, %v2026
      %v2337 = vadd.f32 %v1310, %v2028
      %v2338 = vadd.f32 %v1313, %v2031
      %v2339 = vadd.f32 %v1315, %v2033
      %v2340 = vadd.f32 %v1318, %v2036
      %v2341 = vadd.f32 %v1320, %v2038
      %v2342 = vadd.f32 %v1323, %v2041
      %v2343 = vadd.f32 %v1325, %v2043
      %v2344 = vadd.f32 %v1328, %v2046
      %v2345 = vadd.f32 %v1330, %v2048
      %v2346 = vadd.f32 %v1333, %v2051
      %v2347 = vadd.f32 %v1335, %v2053
      %v2348 = vadd.f32 %v1338, %v2056
      %v2349 = vadd.f32 %v1340, %v2058
      %v2350 = vadd.f32 %v1343, %v2061
      %v2351 = vadd.f32 %v1345, %v2063
      %v2352 = vadd.f32 %v1348, %v2066
      %v2353 = vadd.f32 %v1350, %v2068
      %v2354 = vadd.f32 %v1353, %v2071
      %v2355 = vadd.f32 %v1355, %v2073
      %v2356 = vadd.f32 %v1358, %v2076
      %v2357 = vadd.f32 %v1360, %v2078
      %v2358 = vadd.f32 %v1363, %v2081
      %v2359 = vadd.f32 %v1365, %v2083
      %v2360 = vadd.f32 %v1368, %v2086
      %v2361 = vadd.f32 %v1370, %v2088
      %v2362 = vadd.f32 %v1373, %v2091
      %v2363 = vadd.f32 %v1375, %v2093
      %v2364 = vadd.f32 %v1378, %v2096
      %v2365 = vadd.f32 %v1380, %v2098
      %v2366 = vadd.f32 %v1383, %v2101
      %v2367 = vadd.f32 %v1385, %v2103
      %v2368 = vadd.f32 %v1388, %v2106
      %v2369 = vadd.f32 %v1390, %v2108
      %v2370 = vadd.f32 %v1393, %v2111
      %v2371 = vadd.f32 %v1395, %v2113
      %v2372 = vadd.f32 %v1398, %v2116
      %v2373 = vadd.f32 %v1400, %v2118
      %v2374 = vadd.f32 %v1403, %v2121
      %v2375 = vadd.f32 %v1405, %v2123
      %v2376 = vadd.f32 %v1408, %v2126
      %v2377 = vadd.f32 %v1410, %v2128
      %v2378 = vadd.f32 %v1413, %v2131
      %v2379 = vadd.f32 %v1415, %v2133
      %v2380 = vadd.f32 %v1418, %v2136
      %v2381 = vadd.f32 %v1420, %v2138
      %v2382 = vadd.f32 %v1423, %v2141
      %v2383 = vadd.f32 %v1425, %v2143
      %v2384 = vadd.f32 %v1428, %v2146
      %v2385 = vadd.f32 %v1430, %v2148
      %v2386 = vadd.f32 %v1433, %v2151
      %v2387 = vadd.f32 %v1435, %v2153
      %v2388 = vadd.f32 %v1438, %v2156
      %v2389 = vadd.f32 %v1440, %v2158
      %v2390 = vadd.f32 %v1443, %v2161
      %v2391 = vadd.f32 %v1445, %v2163
      %v2392 = vadd.f32 %v1448, %v2166
      %v2393 = vadd.f32 %v1450, %v2168
      %v2394 = vadd.f32 %v1453, %v2171
      %v2395 = vadd.f32 %v1455, %v2173
      %v2396 = vadd.f32 %v1458, %v2176
      %v2397 = vadd.f32 %v1460, %v2178
      %v2398 = vadd.f32 %v1463, %v2181
      %v2399 = vadd.f32 %v1465, %v2183
      %v2400 = vadd.f32 %v1468, %v2186
      %v2401 = vadd.f32 %v1470, %v2188
      %v2402 = vadd.f32 %v1473, %v2191
      %v2403 = vadd.f32 %v1475, %v2193
      %v2404 = vadd.f32 %v1478, %v2196
      %v2405 = vadd.f32 %v1480, %v2198
      %v2406 = vadd.f32 %v1483, %v2201
      %v2407 = vadd.f32 %v1485, %v2203
      %v2408 = vadd.f32 %v1488, %v2206
      %v2409 = vadd.f32 %v1490, %v2208
      %v2410 = vadd.f32 %v1493, %v2211
      %v2411 = vadd.f32 %v1495, %v2213
      %v2412 = vadd.f32 %v1498, %v2216
      %v2413 = vadd.f32 %v1500, %v2218
      %v2414 = vadd.f32 %v1503, %v2221
      %v2415 = vadd.f32 %v1505, %v2223
      %v2416 = vadd.f32 %v1508, %v2226
      %v2417 = vadd.f32 %v1510, %v2228
      %v2418 = vadd.f32 %v1513, %v2231
      %v2419 = vadd.f32 %v1515, %v2233
      %v2420 = vadd.f32 %v1518, %v2236
      %v2421 = vadd.f32 %v1520, %v2238
      %v2422 = vadd.f32 %v1523, %v2241
      %v2423 = vadd.f32 %v1525, %v2243
      %v2424 = vadd.f32 %v1528, %v2246
      %v2425 = vadd.f32 %v1530, %v2248
      %v2426 = vadd.f32 %v1533, %v2251
      %v2427 = vadd.f32 %v1535, %v2253
      %v2428 = vadd.f32 %v1538, %v2256
      %v2429 = vadd.f32 %v1540, %v2258
      %v2430 = vadd.f32 %v1543, %v2261
      %v2431 = vadd.f32 %v1545, %v2263
      %v2432 = vadd.f32 %v1548, %v2266
      %v2433 = vadd.f32 %v1550, %v2268
      %v2434 = vadd.f32 %v1553, %v2271
      %v2435 = vadd.f32 %v1555, %v2273
      %v2436 = vadd.f32 %v1558, %v2276
      %v2437 = vadd.f32 %v1560, %v2278
      %v2438 = vadd.f32 %v1563, %v2281
      %v2439 = vadd.f32 %v1565, %v2283
      %v2440 = vadd.f32 %v1568, %v2286
      %v2441 = vadd.f32 %v1570, %v2288
      %v2442 = vadd.f32 %v1573, %v2291
      %v2443 = vadd.f32 %v1575, %v2293
      %v2444 = vadd.f32 %v1578, %v2296
      %v2445 = vadd.f32 %v1580, %v2298
      %v2446 = vadd.f32 %v1583, %v2301
      %v2447 = vadd.f32 %v1585, %v2303
      %v2448 = vadd.f32 %v1588, %v2306
      %v2449 = vadd.f32 %v1590, %v2308
      %v2450 = vadd.f32 %v1593, %v2311
      %v2451 = vadd.f32 %v1595, %v2313
      %v2452 = vadd.f32 %v1598, %v2316
      %v2453 = vadd.f32 %v1600, %v2318
      %v2454 = vadd.f32 %v1603, %v2321
      %v2455 = vadd.f32 %v1605, %v2323
      %v2456 = vadd.f32 %v1608, %v2326
      %v2457 = vadd.f32 %v1610, %v2328
      %s2458 = scalar_lea.vmem %s165, 40
      %v2459 = vld [vmem:[%s2458] sm:$0xff]
      %v2460 = vld [vmem:[%s2458 + $0x8] sm:$0xff]
      %v2461 = vld [vmem:[%s2458 + $0x10] sm:$0xff]
      %v2462 = vld [vmem:[%s2458 + $0x18] sm:$0xff]
      %v2463 = vld [vmem:[%s2458 + $0x28] sm:$0xff]
      %v2464 = vld [vmem:[%s2458 + $0x30] sm:$0xff]
      %v2465 = vld [vmem:[%s2458 + $0x38] sm:$0xff]
      %v2466 = vld [vmem:[%s2458 + $0x40] sm:$0xff]
      %v2467 = vld [vmem:[%s2458 + $0x50] sm:$0xff]
      %v2468 = vld [vmem:[%s2458 + $0x58] sm:$0xff]
      %v2469 = vld [vmem:[%s2458 + $0x60] sm:$0xff]
      %v2470 = vld [vmem:[%s2458 + $0x68] sm:$0xff]
      %v2471 = vld [vmem:[%s2458 + $0x78] sm:$0xff]
      %v2472 = vld [vmem:[%s2458 + $0x80] sm:$0xff]
      %v2473 = vld [vmem:[%s2458 + $0x88] sm:$0xff]
      %v2474 = vld [vmem:[%s2458 + $0x90] sm:$0xff]
      %v2475 = vld [vmem:[%s2458 + $0xa0] sm:$0xff]
      %v2476 = vld [vmem:[%s2458 + $0xa8] sm:$0xff]
      %v2477 = vld [vmem:[%s2458 + $0xb0] sm:$0xff]
      %v2478 = vld [vmem:[%s2458 + $0xb8] sm:$0xff]
      %v2479 = vld [vmem:[%s2458 + $0xc8] sm:$0xff]
      %v2480 = vld [vmem:[%s2458 + $0xd0] sm:$0xff]
      %v2481 = vld [vmem:[%s2458 + $0xd8] sm:$0xff]
      %v2482 = vld [vmem:[%s2458 + $0xe0] sm:$0xff]
      %v2483 = vld [vmem:[%s2458 + $0xf0] sm:$0xff]
      %v2484 = vld [vmem:[%s2458 + $0xf8] sm:$0xff]
      %v2485 = vld [vmem:[%s2458 + $0x100] sm:$0xff]
      %v2486 = vld [vmem:[%s2458 + $0x108] sm:$0xff]
      %v2487 = vld [vmem:[%s2458 + $0x118] sm:$0xff]
      %v2488 = vld [vmem:[%s2458 + $0x120] sm:$0xff]
      %v2489 = vld [vmem:[%s2458 + $0x128] sm:$0xff]
      %v2490 = vld [vmem:[%s2458 + $0x130] sm:$0xff]
      %v2491 = vld [vmem:[%s2458 + $0x140] sm:$0xff]
      %v2492 = vld [vmem:[%s2458 + $0x148] sm:$0xff]
      %v2493 = vld [vmem:[%s2458 + $0x150] sm:$0xff]
      %v2494 = vld [vmem:[%s2458 + $0x158] sm:$0xff]
      %v2495 = vld [vmem:[%s2458 + $0x168] sm:$0xff]
      %v2496 = vld [vmem:[%s2458 + $0x170] sm:$0xff]
      %v2497 = vld [vmem:[%s2458 + $0x178] sm:$0xff]
      %v2498 = vld [vmem:[%s2458 + $0x180] sm:$0xff]
      %v2499 = vld [vmem:[%s2458 + $0x190] sm:$0xff]
      %v2500 = vld [vmem:[%s2458 + $0x198] sm:$0xff]
      %v2501 = vld [vmem:[%s2458 + $0x1a0] sm:$0xff]
      %v2502 = vld [vmem:[%s2458 + $0x1a8] sm:$0xff]
      %v2503 = vld [vmem:[%s2458 + $0x1b8] sm:$0xff]
      %v2504 = vld [vmem:[%s2458 + $0x1c0] sm:$0xff]
      %v2505 = vld [vmem:[%s2458 + $0x1c8] sm:$0xff]
      %v2506 = vld [vmem:[%s2458 + $0x1d0] sm:$0xff]
      %v2507 = vld [vmem:[%s2458 + $0x1e0] sm:$0xff]
      %v2508 = vld [vmem:[%s2458 + $0x1e8] sm:$0xff]
      %v2509 = vld [vmem:[%s2458 + $0x1f0] sm:$0xff]
      %v2510 = vld [vmem:[%s2458 + $0x1f8] sm:$0xff]
      %v2511 = vld [vmem:[%s2458 + $0x208] sm:$0xff]
      %v2512 = vld [vmem:[%s2458 + $0x210] sm:$0xff]
      %v2513 = vld [vmem:[%s2458 + $0x218] sm:$0xff]
      %v2514 = vld [vmem:[%s2458 + $0x220] sm:$0xff]
      %v2515 = vld [vmem:[%s2458 + $0x230] sm:$0xff]
      %v2516 = vld [vmem:[%s2458 + $0x238] sm:$0xff]
      %v2517 = vld [vmem:[%s2458 + $0x240] sm:$0xff]
      %v2518 = vld [vmem:[%s2458 + $0x248] sm:$0xff]
      %v2519 = vld [vmem:[%s2458 + $0x258] sm:$0xff]
      %v2520 = vld [vmem:[%s2458 + $0x260] sm:$0xff]
      %v2521 = vld [vmem:[%s2458 + $0x268] sm:$0xff]
      %v2522 = vld [vmem:[%s2458 + $0x270] sm:$0xff]
      %v2523 = vld [vmem:[%s2458 + $0x280] sm:$0xff]
      %v2524 = vld [vmem:[%s2458 + $0x288] sm:$0xff]
      %v2525 = vld [vmem:[%s2458 + $0x290] sm:$0xff]
      %v2526 = vld [vmem:[%s2458 + $0x298] sm:$0xff]
      %v2527 = vld [vmem:[%s2458 + $0x2a8] sm:$0xff]
      %v2528 = vld [vmem:[%s2458 + $0x2b0] sm:$0xff]
      %v2529 = vld [vmem:[%s2458 + $0x2b8] sm:$0xff]
      %v2530 = vld [vmem:[%s2458 + $0x2c0] sm:$0xff]
      %v2531 = vld [vmem:[%s2458 + $0x2d0] sm:$0xff]
      %v2532 = vld [vmem:[%s2458 + $0x2d8] sm:$0xff]
      %v2533 = vld [vmem:[%s2458 + $0x2e0] sm:$0xff]
      %v2534 = vld [vmem:[%s2458 + $0x2e8] sm:$0xff]
      %v2535 = vld [vmem:[%s2458 + $0x2f8] sm:$0xff]
      %v2536 = vld [vmem:[%s2458 + $0x300] sm:$0xff]
      %v2537 = vld [vmem:[%s2458 + $0x308] sm:$0xff]
      %v2538 = vld [vmem:[%s2458 + $0x310] sm:$0xff]
      %v2539 = vld [vmem:[%s2458 + $0x320] sm:$0xff]
      %v2540 = vld [vmem:[%s2458 + $0x328] sm:$0xff]
      %v2541 = vld [vmem:[%s2458 + $0x330] sm:$0xff]
      %v2542 = vld [vmem:[%s2458 + $0x338] sm:$0xff]
      %v2543 = vld [vmem:[%s2458 + $0x348] sm:$0xff]
      %v2544 = vld [vmem:[%s2458 + $0x350] sm:$0xff]
      %v2545 = vld [vmem:[%s2458 + $0x358] sm:$0xff]
      %v2546 = vld [vmem:[%s2458 + $0x360] sm:$0xff]
      %v2547 = vld [vmem:[%s2458 + $0x370] sm:$0xff]
      %v2548 = vld [vmem:[%s2458 + $0x378] sm:$0xff]
      %v2549 = vld [vmem:[%s2458 + $0x380] sm:$0xff]
      %v2550 = vld [vmem:[%s2458 + $0x388] sm:$0xff]
      %v2551 = vld [vmem:[%s2458 + $0x398] sm:$0xff]
      %v2552 = vld [vmem:[%s2458 + $0x3a0] sm:$0xff]
      %v2553 = vld [vmem:[%s2458 + $0x3a8] sm:$0xff]
      %v2554 = vld [vmem:[%s2458 + $0x3b0] sm:$0xff]
      %v2555 = vld [vmem:[%s2458 + $0x3c0] sm:$0xff]
      %v2556 = vld [vmem:[%s2458 + $0x3c8] sm:$0xff]
      %v2557 = vld [vmem:[%s2458 + $0x3d0] sm:$0xff]
      %v2558 = vld [vmem:[%s2458 + $0x3d8] sm:$0xff]
      %v2559 = vld [vmem:[%s2458 + $0x3e8] sm:$0xff]
      %v2560 = vld [vmem:[%s2458 + $0x3f0] sm:$0xff]
      %v2561 = vld [vmem:[%s2458 + $0x3f8] sm:$0xff]
      %v2562 = vld [vmem:[%s2458 + $0x400] sm:$0xff]
      %v2563 = vld [vmem:[%s2458 + $0x410] sm:$0xff]
      %v2564 = vld [vmem:[%s2458 + $0x418] sm:$0xff]
      %v2565 = vld [vmem:[%s2458 + $0x420] sm:$0xff]
      %v2566 = vld [vmem:[%s2458 + $0x428] sm:$0xff]
      %v2567 = vld [vmem:[%s2458 + $0x438] sm:$0xff]
      %v2568 = vld [vmem:[%s2458 + $0x440] sm:$0xff]
      %v2569 = vld [vmem:[%s2458 + $0x448] sm:$0xff]
      %v2570 = vld [vmem:[%s2458 + $0x450] sm:$0xff]
      %v2571 = vld [vmem:[%s2458 + $0x460] sm:$0xff]
      %v2572 = vld [vmem:[%s2458 + $0x468] sm:$0xff]
      %v2573 = vld [vmem:[%s2458 + $0x470] sm:$0xff]
      %v2574 = vld [vmem:[%s2458 + $0x478] sm:$0xff]
      %v2575 = vld [vmem:[%s2458 + $0x488] sm:$0xff]
      %v2576 = vld [vmem:[%s2458 + $0x490] sm:$0xff]
      %v2577 = vld [vmem:[%s2458 + $0x498] sm:$0xff]
      %v2578 = vld [vmem:[%s2458 + $0x4a0] sm:$0xff]
      %v2579 = vld [vmem:[%s2458 + $0x4b0] sm:$0xff]
      %v2580 = vld [vmem:[%s2458 + $0x4b8] sm:$0xff]
      %v2581 = vld [vmem:[%s2458 + $0x4c0] sm:$0xff]
      %v2582 = vld [vmem:[%s2458 + $0x4c8] sm:$0xff]
      %v2583 = vld [vmem:[%s2458 + $0x4d8] sm:$0xff]
      %v2584 = vld [vmem:[%s2458 + $0x4e0] sm:$0xff]
      %v2585 = vld [vmem:[%s2458 + $0x4e8] sm:$0xff]
      %v2586 = vld [vmem:[%s2458 + $0x4f0] sm:$0xff]
      %v2587 = vpack.c.bf16 %v2460, %v2459
      %v2588 = vpack.c.bf16 %v2462, %v2461
      %v2589 = vpack.c.bf16 %v2464, %v2463
      %v2590 = vpack.c.bf16 %v2466, %v2465
      %v2591 = vpack.c.bf16 %v2468, %v2467
      %v2592 = vpack.c.bf16 %v2470, %v2469
      %v2593 = vpack.c.bf16 %v2472, %v2471
      %v2594 = vpack.c.bf16 %v2474, %v2473
      %v2595 = vpack.c.bf16 %v2476, %v2475
      %v2596 = vpack.c.bf16 %v2478, %v2477
      %v2597 = vpack.c.bf16 %v2480, %v2479
      %v2598 = vpack.c.bf16 %v2482, %v2481
      %v2599 = vpack.c.bf16 %v2484, %v2483
      %v2600 = vpack.c.bf16 %v2486, %v2485
      %v2601 = vpack.c.bf16 %v2488, %v2487
      %v2602 = vpack.c.bf16 %v2490, %v2489
      %v2603 = vpack.c.bf16 %v2492, %v2491
      %v2604 = vpack.c.bf16 %v2494, %v2493
      %v2605 = vpack.c.bf16 %v2496, %v2495
      %v2606 = vpack.c.bf16 %v2498, %v2497
      %v2607 = vpack.c.bf16 %v2500, %v2499
      %v2608 = vpack.c.bf16 %v2502, %v2501
      %v2609 = vpack.c.bf16 %v2504, %v2503
      %v2610 = vpack.c.bf16 %v2506, %v2505
      %v2611 = vpack.c.bf16 %v2508, %v2507
      %v2612 = vpack.c.bf16 %v2510, %v2509
      %v2613 = vpack.c.bf16 %v2512, %v2511
      %v2614 = vpack.c.bf16 %v2514, %v2513
      %v2615 = vpack.c.bf16 %v2516, %v2515
      %v2616 = vpack.c.bf16 %v2518, %v2517
      %v2617 = vpack.c.bf16 %v2520, %v2519
      %v2618 = vpack.c.bf16 %v2522, %v2521
      %v2619 = vpack.c.bf16 %v2524, %v2523
      %v2620 = vpack.c.bf16 %v2526, %v2525
      %v2621 = vpack.c.bf16 %v2528, %v2527
      %v2622 = vpack.c.bf16 %v2530, %v2529
      %v2623 = vpack.c.bf16 %v2532, %v2531
      %v2624 = vpack.c.bf16 %v2534, %v2533
      %v2625 = vpack.c.bf16 %v2536, %v2535
      %v2626 = vpack.c.bf16 %v2538, %v2537
      %v2627 = vpack.c.bf16 %v2540, %v2539
      %v2628 = vpack.c.bf16 %v2542, %v2541
      %v2629 = vpack.c.bf16 %v2544, %v2543
      %v2630 = vpack.c.bf16 %v2546, %v2545
      %v2631 = vpack.c.bf16 %v2548, %v2547
      %v2632 = vpack.c.bf16 %v2550, %v2549
      %v2633 = vpack.c.bf16 %v2552, %v2551
      %v2634 = vpack.c.bf16 %v2554, %v2553
      %v2635 = vpack.c.bf16 %v2556, %v2555
      %v2636 = vpack.c.bf16 %v2558, %v2557
      %v2637 = vpack.c.bf16 %v2560, %v2559
      %v2638 = vpack.c.bf16 %v2562, %v2561
      %v2639 = vpack.c.bf16 %v2564, %v2563
      %v2640 = vpack.c.bf16 %v2566, %v2565
      %v2641 = vpack.c.bf16 %v2568, %v2567
      %v2642 = vpack.c.bf16 %v2570, %v2569
      %v2643 = vpack.c.bf16 %v2572, %v2571
      %v2644 = vpack.c.bf16 %v2574, %v2573
      %v2645 = vpack.c.bf16 %v2576, %v2575
      %v2646 = vpack.c.bf16 %v2578, %v2577
      %v2647 = vpack.c.bf16 %v2580, %v2579
      %v2648 = vpack.c.bf16 %v2582, %v2581
      %v2649 = vpack.c.bf16 %v2584, %v2583
      %v2650 = vpack.c.bf16 %v2586, %v2585
      %s2651 = scalar_lea.vmem %s1, 6
      %v2652 = vld [vmem:[%s2651] sm:$0x3]
      %v2654 = vsel %vm559, %v2587, 0
      %v2657 = vsel %vm559, %v2588, 0
      %v2660 = vsel %vm559, %v2589, 0
      %v2663 = vsel %vm559, %v2590, 0
      %v2666 = vsel %vm559, %v2591, 0
      %v2669 = vsel %vm559, %v2592, 0
      %v2672 = vsel %vm559, %v2593, 0
      %v2675 = vsel %vm559, %v2594, 0
      %v2678 = vsel %vm559, %v2595, 0
      %v2681 = vsel %vm559, %v2596, 0
      %v2684 = vsel %vm559, %v2597, 0
      %v2687 = vsel %vm559, %v2598, 0
      %v2690 = vsel %vm559, %v2599, 0
      %v2693 = vsel %vm559, %v2600, 0
      %v2696 = vsel %vm559, %v2601, 0
      %v2699 = vsel %vm559, %v2602, 0
      %v2702 = vsel %vm559, %v2603, 0
      %v2705 = vsel %vm559, %v2604, 0
      %v2708 = vsel %vm559, %v2605, 0
      %v2711 = vsel %vm559, %v2606, 0
      %v2714 = vsel %vm559, %v2607, 0
      %v2717 = vsel %vm559, %v2608, 0
      %v2720 = vsel %vm559, %v2609, 0
      %v2723 = vsel %vm559, %v2610, 0
      %v2726 = vsel %vm559, %v2611, 0
      %v2729 = vsel %vm559, %v2612, 0
      %v2732 = vsel %vm559, %v2613, 0
      %v2735 = vsel %vm559, %v2614, 0
      %v2738 = vsel %vm559, %v2615, 0
      %v2741 = vsel %vm559, %v2616, 0
      %v2744 = vsel %vm559, %v2617, 0
      %v2747 = vsel %vm559, %v2618, 0
      %v2750 = vsel %vm559, %v2619, 0
      %v2753 = vsel %vm559, %v2620, 0
      %v2756 = vsel %vm559, %v2621, 0
      %v2759 = vsel %vm559, %v2622, 0
      %v2762 = vsel %vm559, %v2623, 0
      %v2765 = vsel %vm559, %v2624, 0
      %v2768 = vsel %vm559, %v2625, 0
      %v2771 = vsel %vm559, %v2626, 0
      %v2774 = vsel %vm559, %v2627, 0
      %v2777 = vsel %vm559, %v2628, 0
      %v2780 = vsel %vm559, %v2629, 0
      %v2783 = vsel %vm559, %v2630, 0
      %v2786 = vsel %vm559, %v2631, 0
      %v2789 = vsel %vm559, %v2632, 0
      %v2792 = vsel %vm559, %v2633, 0
      %v2795 = vsel %vm559, %v2634, 0
      %v2798 = vsel %vm559, %v2635, 0
      %v2801 = vsel %vm559, %v2636, 0
      %v2804 = vsel %vm559, %v2637, 0
      %v2807 = vsel %vm559, %v2638, 0
      %v2810 = vsel %vm559, %v2639, 0
      %v2813 = vsel %vm559, %v2640, 0
      %v2816 = vsel %vm559, %v2641, 0
      %v2819 = vsel %vm559, %v2642, 0
      %v2822 = vsel %vm559, %v2643, 0
      %v2825 = vsel %vm559, %v2644, 0
      %v2828 = vsel %vm559, %v2645, 0
      %v2831 = vsel %vm559, %v2646, 0
      %v2834 = vsel %vm559, %v2647, 0
      %v2837 = vsel %vm559, %v2648, 0
      %v2840 = vsel %vm559, %v2649, 0
      %v2843 = vsel %vm559, %v2650, 0
      %v2846 = vand.u32 %v2652, %v755
      %2848 = vmatpush.bf16.msra.mxu0 0
      %2849 = vmatpush.bf16.msra.mxu0 0
      %2850 = vmatpush.bf16.msra.mxu0 0
      %2851 = vmatpush.bf16.msra.mxu0 0
      %2852 = vmatpush.bf16.msra.mxu0 0
      %2853 = vmatpush.bf16.msra.mxu0 0
      %2854 = vmatpush.bf16.msra.mxu0 0
      %2855 = vmatpush.bf16.msra.mxu0 %v2846
      %2856 = vmatmul.bf16.gmra.mxu0 %v2654
      %v2857 = vpop.f32.mrf.mxu0
      %v2858 = vadd.f32 0.0, %v2857
      %v2859 = vpop.f32.mrf.mxu0
      %v2860 = vadd.f32 0.0, %v2859
      %2861 = vmatmul.bf16.gmra.mxu0 %v2657
      %v2862 = vpop.f32.mrf.mxu0
      %v2863 = vadd.f32 0.0, %v2862
      %v2864 = vpop.f32.mrf.mxu0
      %v2865 = vadd.f32 0.0, %v2864
      %2866 = vmatmul.bf16.gmra.mxu0 %v2660
      %v2867 = vpop.f32.mrf.mxu0
      %v2868 = vadd.f32 0.0, %v2867
      %v2869 = vpop.f32.mrf.mxu0
      %v2870 = vadd.f32 0.0, %v2869
      %2871 = vmatmul.bf16.gmra.mxu0 %v2663
      %v2872 = vpop.f32.mrf.mxu0
      %v2873 = vadd.f32 0.0, %v2872
      %v2874 = vpop.f32.mrf.mxu0
      %v2875 = vadd.f32 0.0, %v2874
      %2876 = vmatmul.bf16.gmra.mxu0 %v2666
      %v2877 = vpop.f32.mrf.mxu0
      %v2878 = vadd.f32 0.0, %v2877
      %v2879 = vpop.f32.mrf.mxu0
      %v2880 = vadd.f32 0.0, %v2879
      %2881 = vmatmul.bf16.gmra.mxu0 %v2669
      %v2882 = vpop.f32.mrf.mxu0
      %v2883 = vadd.f32 0.0, %v2882
      %v2884 = vpop.f32.mrf.mxu0
      %v2885 = vadd.f32 0.0, %v2884
      %2886 = vmatmul.bf16.gmra.mxu0 %v2672
      %v2887 = vpop.f32.mrf.mxu0
      %v2888 = vadd.f32 0.0, %v2887
      %v2889 = vpop.f32.mrf.mxu0
      %v2890 = vadd.f32 0.0, %v2889
      %2891 = vmatmul.bf16.gmra.mxu0 %v2675
      %v2892 = vpop.f32.mrf.mxu0
      %v2893 = vadd.f32 0.0, %v2892
      %v2894 = vpop.f32.mrf.mxu0
      %v2895 = vadd.f32 0.0, %v2894
      %2896 = vmatmul.bf16.gmra.mxu0 %v2678
      %v2897 = vpop.f32.mrf.mxu0
      %v2898 = vadd.f32 0.0, %v2897
      %v2899 = vpop.f32.mrf.mxu0
      %v2900 = vadd.f32 0.0, %v2899
      %2901 = vmatmul.bf16.gmra.mxu0 %v2681
      %v2902 = vpop.f32.mrf.mxu0
      %v2903 = vadd.f32 0.0, %v2902
      %v2904 = vpop.f32.mrf.mxu0
      %v2905 = vadd.f32 0.0, %v2904
      %2906 = vmatmul.bf16.gmra.mxu0 %v2684
      %v2907 = vpop.f32.mrf.mxu0
      %v2908 = vadd.f32 0.0, %v2907
      %v2909 = vpop.f32.mrf.mxu0
      %v2910 = vadd.f32 0.0, %v2909
      %2911 = vmatmul.bf16.gmra.mxu0 %v2687
      %v2912 = vpop.f32.mrf.mxu0
      %v2913 = vadd.f32 0.0, %v2912
      %v2914 = vpop.f32.mrf.mxu0
      %v2915 = vadd.f32 0.0, %v2914
      %2916 = vmatmul.bf16.gmra.mxu0 %v2690
      %v2917 = vpop.f32.mrf.mxu0
      %v2918 = vadd.f32 0.0, %v2917
      %v2919 = vpop.f32.mrf.mxu0
      %v2920 = vadd.f32 0.0, %v2919
      %2921 = vmatmul.bf16.gmra.mxu0 %v2693
      %v2922 = vpop.f32.mrf.mxu0
      %v2923 = vadd.f32 0.0, %v2922
      %v2924 = vpop.f32.mrf.mxu0
      %v2925 = vadd.f32 0.0, %v2924
      %2926 = vmatmul.bf16.gmra.mxu0 %v2696
      %v2927 = vpop.f32.mrf.mxu0
      %v2928 = vadd.f32 0.0, %v2927
      %v2929 = vpop.f32.mrf.mxu0
      %v2930 = vadd.f32 0.0, %v2929
      %2931 = vmatmul.bf16.gmra.mxu0 %v2699
      %v2932 = vpop.f32.mrf.mxu0
      %v2933 = vadd.f32 0.0, %v2932
      %v2934 = vpop.f32.mrf.mxu0
      %v2935 = vadd.f32 0.0, %v2934
      %2936 = vmatmul.bf16.gmra.mxu0 %v2702
      %v2937 = vpop.f32.mrf.mxu0
      %v2938 = vadd.f32 0.0, %v2937
      %v2939 = vpop.f32.mrf.mxu0
      %v2940 = vadd.f32 0.0, %v2939
      %2941 = vmatmul.bf16.gmra.mxu0 %v2705
      %v2942 = vpop.f32.mrf.mxu0
      %v2943 = vadd.f32 0.0, %v2942
      %v2944 = vpop.f32.mrf.mxu0
      %v2945 = vadd.f32 0.0, %v2944
      %2946 = vmatmul.bf16.gmra.mxu0 %v2708
      %v2947 = vpop.f32.mrf.mxu0
      %v2948 = vadd.f32 0.0, %v2947
      %v2949 = vpop.f32.mrf.mxu0
      %v2950 = vadd.f32 0.0, %v2949
      %2951 = vmatmul.bf16.gmra.mxu0 %v2711
      %v2952 = vpop.f32.mrf.mxu0
      %v2953 = vadd.f32 0.0, %v2952
      %v2954 = vpop.f32.mrf.mxu0
      %v2955 = vadd.f32 0.0, %v2954
      %2956 = vmatmul.bf16.gmra.mxu0 %v2714
      %v2957 = vpop.f32.mrf.mxu0
      %v2958 = vadd.f32 0.0, %v2957
      %v2959 = vpop.f32.mrf.mxu0
      %v2960 = vadd.f32 0.0, %v2959
      %2961 = vmatmul.bf16.gmra.mxu0 %v2717
      %v2962 = vpop.f32.mrf.mxu0
      %v2963 = vadd.f32 0.0, %v2962
      %v2964 = vpop.f32.mrf.mxu0
      %v2965 = vadd.f32 0.0, %v2964
      %2966 = vmatmul.bf16.gmra.mxu0 %v2720
      %v2967 = vpop.f32.mrf.mxu0
      %v2968 = vadd.f32 0.0, %v2967
      %v2969 = vpop.f32.mrf.mxu0
      %v2970 = vadd.f32 0.0, %v2969
      %2971 = vmatmul.bf16.gmra.mxu0 %v2723
      %v2972 = vpop.f32.mrf.mxu0
      %v2973 = vadd.f32 0.0, %v2972
      %v2974 = vpop.f32.mrf.mxu0
      %v2975 = vadd.f32 0.0, %v2974
      %2976 = vmatmul.bf16.gmra.mxu0 %v2726
      %v2977 = vpop.f32.mrf.mxu0
      %v2978 = vadd.f32 0.0, %v2977
      %v2979 = vpop.f32.mrf.mxu0
      %v2980 = vadd.f32 0.0, %v2979
      %2981 = vmatmul.bf16.gmra.mxu0 %v2729
      %v2982 = vpop.f32.mrf.mxu0
      %v2983 = vadd.f32 0.0, %v2982
      %v2984 = vpop.f32.mrf.mxu0
      %v2985 = vadd.f32 0.0, %v2984
      %2986 = vmatmul.bf16.gmra.mxu0 %v2732
      %v2987 = vpop.f32.mrf.mxu0
      %v2988 = vadd.f32 0.0, %v2987
      %v2989 = vpop.f32.mrf.mxu0
      %v2990 = vadd.f32 0.0, %v2989
      %2991 = vmatmul.bf16.gmra.mxu0 %v2735
      %v2992 = vpop.f32.mrf.mxu0
      %v2993 = vadd.f32 0.0, %v2992
      %v2994 = vpop.f32.mrf.mxu0
      %v2995 = vadd.f32 0.0, %v2994
      %2996 = vmatmul.bf16.gmra.mxu0 %v2738
      %v2997 = vpop.f32.mrf.mxu0
      %v2998 = vadd.f32 0.0, %v2997
      %v2999 = vpop.f32.mrf.mxu0
      %v3000 = vadd.f32 0.0, %v2999
      %3001 = vmatmul.bf16.gmra.mxu0 %v2741
      %v3002 = vpop.f32.mrf.mxu0
      %v3003 = vadd.f32 0.0, %v3002
      %v3004 = vpop.f32.mrf.mxu0
      %v3005 = vadd.f32 0.0, %v3004
      %3006 = vmatmul.bf16.gmra.mxu0 %v2744
      %v3007 = vpop.f32.mrf.mxu0
      %v3008 = vadd.f32 0.0, %v3007
      %v3009 = vpop.f32.mrf.mxu0
      %v3010 = vadd.f32 0.0, %v3009
      %3011 = vmatmul.bf16.gmra.mxu0 %v2747
      %v3012 = vpop.f32.mrf.mxu0
      %v3013 = vadd.f32 0.0, %v3012
      %v3014 = vpop.f32.mrf.mxu0
      %v3015 = vadd.f32 0.0, %v3014
      %3016 = vmatmul.bf16.gmra.mxu0 %v2750
      %v3017 = vpop.f32.mrf.mxu0
      %v3018 = vadd.f32 0.0, %v3017
      %v3019 = vpop.f32.mrf.mxu0
      %v3020 = vadd.f32 0.0, %v3019
      %3021 = vmatmul.bf16.gmra.mxu0 %v2753
      %v3022 = vpop.f32.mrf.mxu0
      %v3023 = vadd.f32 0.0, %v3022
      %v3024 = vpop.f32.mrf.mxu0
      %v3025 = vadd.f32 0.0, %v3024
      %3026 = vmatmul.bf16.gmra.mxu0 %v2756
      %v3027 = vpop.f32.mrf.mxu0
      %v3028 = vadd.f32 0.0, %v3027
      %v3029 = vpop.f32.mrf.mxu0
      %v3030 = vadd.f32 0.0, %v3029
      %3031 = vmatmul.bf16.gmra.mxu0 %v2759
      %v3032 = vpop.f32.mrf.mxu0
      %v3033 = vadd.f32 0.0, %v3032
      %v3034 = vpop.f32.mrf.mxu0
      %v3035 = vadd.f32 0.0, %v3034
      %3036 = vmatmul.bf16.gmra.mxu0 %v2762
      %v3037 = vpop.f32.mrf.mxu0
      %v3038 = vadd.f32 0.0, %v3037
      %v3039 = vpop.f32.mrf.mxu0
      %v3040 = vadd.f32 0.0, %v3039
      %3041 = vmatmul.bf16.gmra.mxu0 %v2765
      %v3042 = vpop.f32.mrf.mxu0
      %v3043 = vadd.f32 0.0, %v3042
      %v3044 = vpop.f32.mrf.mxu0
      %v3045 = vadd.f32 0.0, %v3044
      %3046 = vmatmul.bf16.gmra.mxu0 %v2768
      %v3047 = vpop.f32.mrf.mxu0
      %v3048 = vadd.f32 0.0, %v3047
      %v3049 = vpop.f32.mrf.mxu0
      %v3050 = vadd.f32 0.0, %v3049
      %3051 = vmatmul.bf16.gmra.mxu0 %v2771
      %v3052 = vpop.f32.mrf.mxu0
      %v3053 = vadd.f32 0.0, %v3052
      %v3054 = vpop.f32.mrf.mxu0
      %v3055 = vadd.f32 0.0, %v3054
      %3056 = vmatmul.bf16.gmra.mxu0 %v2774
      %v3057 = vpop.f32.mrf.mxu0
      %v3058 = vadd.f32 0.0, %v3057
      %v3059 = vpop.f32.mrf.mxu0
      %v3060 = vadd.f32 0.0, %v3059
      %3061 = vmatmul.bf16.gmra.mxu0 %v2777
      %v3062 = vpop.f32.mrf.mxu0
      %v3063 = vadd.f32 0.0, %v3062
      %v3064 = vpop.f32.mrf.mxu0
      %v3065 = vadd.f32 0.0, %v3064
      %3066 = vmatmul.bf16.gmra.mxu0 %v2780
      %v3067 = vpop.f32.mrf.mxu0
      %v3068 = vadd.f32 0.0, %v3067
      %v3069 = vpop.f32.mrf.mxu0
      %v3070 = vadd.f32 0.0, %v3069
      %3071 = vmatmul.bf16.gmra.mxu0 %v2783
      %v3072 = vpop.f32.mrf.mxu0
      %v3073 = vadd.f32 0.0, %v3072
      %v3074 = vpop.f32.mrf.mxu0
      %v3075 = vadd.f32 0.0, %v3074
      %3076 = vmatmul.bf16.gmra.mxu0 %v2786
      %v3077 = vpop.f32.mrf.mxu0
      %v3078 = vadd.f32 0.0, %v3077
      %v3079 = vpop.f32.mrf.mxu0
      %v3080 = vadd.f32 0.0, %v3079
      %3081 = vmatmul.bf16.gmra.mxu0 %v2789
      %v3082 = vpop.f32.mrf.mxu0
      %v3083 = vadd.f32 0.0, %v3082
      %v3084 = vpop.f32.mrf.mxu0
      %v3085 = vadd.f32 0.0, %v3084
      %3086 = vmatmul.bf16.gmra.mxu0 %v2792
      %v3087 = vpop.f32.mrf.mxu0
      %v3088 = vadd.f32 0.0, %v3087
      %v3089 = vpop.f32.mrf.mxu0
      %v3090 = vadd.f32 0.0, %v3089
      %3091 = vmatmul.bf16.gmra.mxu0 %v2795
      %v3092 = vpop.f32.mrf.mxu0
      %v3093 = vadd.f32 0.0, %v3092
      %v3094 = vpop.f32.mrf.mxu0
      %v3095 = vadd.f32 0.0, %v3094
      %3096 = vmatmul.bf16.gmra.mxu0 %v2798
      %v3097 = vpop.f32.mrf.mxu0
      %v3098 = vadd.f32 0.0, %v3097
      %v3099 = vpop.f32.mrf.mxu0
      %v3100 = vadd.f32 0.0, %v3099
      %3101 = vmatmul.bf16.gmra.mxu0 %v2801
      %v3102 = vpop.f32.mrf.mxu0
      %v3103 = vadd.f32 0.0, %v3102
      %v3104 = vpop.f32.mrf.mxu0
      %v3105 = vadd.f32 0.0, %v3104
      %3106 = vmatmul.bf16.gmra.mxu0 %v2804
      %v3107 = vpop.f32.mrf.mxu0
      %v3108 = vadd.f32 0.0, %v3107
      %v3109 = vpop.f32.mrf.mxu0
      %v3110 = vadd.f32 0.0, %v3109
      %3111 = vmatmul.bf16.gmra.mxu0 %v2807
      %v3112 = vpop.f32.mrf.mxu0
      %v3113 = vadd.f32 0.0, %v3112
      %v3114 = vpop.f32.mrf.mxu0
      %v3115 = vadd.f32 0.0, %v3114
      %3116 = vmatmul.bf16.gmra.mxu0 %v2810
      %v3117 = vpop.f32.mrf.mxu0
      %v3118 = vadd.f32 0.0, %v3117
      %v3119 = vpop.f32.mrf.mxu0
      %v3120 = vadd.f32 0.0, %v3119
      %3121 = vmatmul.bf16.gmra.mxu0 %v2813
      %v3122 = vpop.f32.mrf.mxu0
      %v3123 = vadd.f32 0.0, %v3122
      %v3124 = vpop.f32.mrf.mxu0
      %v3125 = vadd.f32 0.0, %v3124
      %3126 = vmatmul.bf16.gmra.mxu0 %v2816
      %v3127 = vpop.f32.mrf.mxu0
      %v3128 = vadd.f32 0.0, %v3127
      %v3129 = vpop.f32.mrf.mxu0
      %v3130 = vadd.f32 0.0, %v3129
      %3131 = vmatmul.bf16.gmra.mxu0 %v2819
      %v3132 = vpop.f32.mrf.mxu0
      %v3133 = vadd.f32 0.0, %v3132
      %v3134 = vpop.f32.mrf.mxu0
      %v3135 = vadd.f32 0.0, %v3134
      %3136 = vmatmul.bf16.gmra.mxu0 %v2822
      %v3137 = vpop.f32.mrf.mxu0
      %v3138 = vadd.f32 0.0, %v3137
      %v3139 = vpop.f32.mrf.mxu0
      %v3140 = vadd.f32 0.0, %v3139
      %3141 = vmatmul.bf16.gmra.mxu0 %v2825
      %v3142 = vpop.f32.mrf.mxu0
      %v3143 = vadd.f32 0.0, %v3142
      %v3144 = vpop.f32.mrf.mxu0
      %v3145 = vadd.f32 0.0, %v3144
      %3146 = vmatmul.bf16.gmra.mxu0 %v2828
      %v3147 = vpop.f32.mrf.mxu0
      %v3148 = vadd.f32 0.0, %v3147
      %v3149 = vpop.f32.mrf.mxu0
      %v3150 = vadd.f32 0.0, %v3149
      %3151 = vmatmul.bf16.gmra.mxu0 %v2831
      %v3152 = vpop.f32.mrf.mxu0
      %v3153 = vadd.f32 0.0, %v3152
      %v3154 = vpop.f32.mrf.mxu0
      %v3155 = vadd.f32 0.0, %v3154
      %3156 = vmatmul.bf16.gmra.mxu0 %v2834
      %v3157 = vpop.f32.mrf.mxu0
      %v3158 = vadd.f32 0.0, %v3157
      %v3159 = vpop.f32.mrf.mxu0
      %v3160 = vadd.f32 0.0, %v3159
      %3161 = vmatmul.bf16.gmra.mxu0 %v2837
      %v3162 = vpop.f32.mrf.mxu0
      %v3163 = vadd.f32 0.0, %v3162
      %v3164 = vpop.f32.mrf.mxu0
      %v3165 = vadd.f32 0.0, %v3164
      %3166 = vmatmul.bf16.gmra.mxu0 %v2840
      %v3167 = vpop.f32.mrf.mxu0
      %v3168 = vadd.f32 0.0, %v3167
      %v3169 = vpop.f32.mrf.mxu0
      %v3170 = vadd.f32 0.0, %v3169
      %3171 = vmatmul.bf16.gmra.mxu0 %v2843
      %v3172 = vpop.f32.mrf.mxu0
      %v3173 = vadd.f32 0.0, %v3172
      %v3174 = vpop.f32.mrf.mxu0
      %v3175 = vadd.f32 0.0, %v3174
      %3176 = vdwg.mxu0
      %v3177 = vadd.f32 %v2330, %v2858
      %v3178 = vadd.f32 %v2331, %v2860
      %v3179 = vadd.f32 %v2332, %v2863
      %v3180 = vadd.f32 %v2333, %v2865
      %v3181 = vadd.f32 %v2334, %v2868
      %v3182 = vadd.f32 %v2335, %v2870
      %v3183 = vadd.f32 %v2336, %v2873
      %v3184 = vadd.f32 %v2337, %v2875
      %v3185 = vadd.f32 %v2338, %v2878
      %v3186 = vadd.f32 %v2339, %v2880
      %v3187 = vadd.f32 %v2340, %v2883
      %v3188 = vadd.f32 %v2341, %v2885
      %v3189 = vadd.f32 %v2342, %v2888
      %v3190 = vadd.f32 %v2343, %v2890
      %v3191 = vadd.f32 %v2344, %v2893
      %v3192 = vadd.f32 %v2345, %v2895
      %v3193 = vadd.f32 %v2346, %v2898
      %v3194 = vadd.f32 %v2347, %v2900
      %v3195 = vadd.f32 %v2348, %v2903
      %v3196 = vadd.f32 %v2349, %v2905
      %v3197 = vadd.f32 %v2350, %v2908
      %v3198 = vadd.f32 %v2351, %v2910
      %v3199 = vadd.f32 %v2352, %v2913
      %v3200 = vadd.f32 %v2353, %v2915
      %v3201 = vadd.f32 %v2354, %v2918
      %v3202 = vadd.f32 %v2355, %v2920
      %v3203 = vadd.f32 %v2356, %v2923
      %v3204 = vadd.f32 %v2357, %v2925
      %v3205 = vadd.f32 %v2358, %v2928
      %v3206 = vadd.f32 %v2359, %v2930
      %v3207 = vadd.f32 %v2360, %v2933
      %v3208 = vadd.f32 %v2361, %v2935
      %v3209 = vadd.f32 %v2362, %v2938
      %v3210 = vadd.f32 %v2363, %v2940
      %v3211 = vadd.f32 %v2364, %v2943
      %v3212 = vadd.f32 %v2365, %v2945
      %v3213 = vadd.f32 %v2366, %v2948
      %v3214 = vadd.f32 %v2367, %v2950
      %v3215 = vadd.f32 %v2368, %v2953
      %v3216 = vadd.f32 %v2369, %v2955
      %v3217 = vadd.f32 %v2370, %v2958
      %v3218 = vadd.f32 %v2371, %v2960
      %v3219 = vadd.f32 %v2372, %v2963
      %v3220 = vadd.f32 %v2373, %v2965
      %v3221 = vadd.f32 %v2374, %v2968
      %v3222 = vadd.f32 %v2375, %v2970
      %v3223 = vadd.f32 %v2376, %v2973
      %v3224 = vadd.f32 %v2377, %v2975
      %v3225 = vadd.f32 %v2378, %v2978
      %v3226 = vadd.f32 %v2379, %v2980
      %v3227 = vadd.f32 %v2380, %v2983
      %v3228 = vadd.f32 %v2381, %v2985
      %v3229 = vadd.f32 %v2382, %v2988
      %v3230 = vadd.f32 %v2383, %v2990
      %v3231 = vadd.f32 %v2384, %v2993
      %v3232 = vadd.f32 %v2385, %v2995
      %v3233 = vadd.f32 %v2386, %v2998
      %v3234 = vadd.f32 %v2387, %v3000
      %v3235 = vadd.f32 %v2388, %v3003
      %v3236 = vadd.f32 %v2389, %v3005
      %v3237 = vadd.f32 %v2390, %v3008
      %v3238 = vadd.f32 %v2391, %v3010
      %v3239 = vadd.f32 %v2392, %v3013
      %v3240 = vadd.f32 %v2393, %v3015
      %v3241 = vadd.f32 %v2394, %v3018
      %v3242 = vadd.f32 %v2395, %v3020
      %v3243 = vadd.f32 %v2396, %v3023
      %v3244 = vadd.f32 %v2397, %v3025
      %v3245 = vadd.f32 %v2398, %v3028
      %v3246 = vadd.f32 %v2399, %v3030
      %v3247 = vadd.f32 %v2400, %v3033
      %v3248 = vadd.f32 %v2401, %v3035
      %v3249 = vadd.f32 %v2402, %v3038
      %v3250 = vadd.f32 %v2403, %v3040
      %v3251 = vadd.f32 %v2404, %v3043
      %v3252 = vadd.f32 %v2405, %v3045
      %v3253 = vadd.f32 %v2406, %v3048
      %v3254 = vadd.f32 %v2407, %v3050
      %v3255 = vadd.f32 %v2408, %v3053
      %v3256 = vadd.f32 %v2409, %v3055
      %v3257 = vadd.f32 %v2410, %v3058
      %v3258 = vadd.f32 %v2411, %v3060
      %v3259 = vadd.f32 %v2412, %v3063
      %v3260 = vadd.f32 %v2413, %v3065
      %v3261 = vadd.f32 %v2414, %v3068
      %v3262 = vadd.f32 %v2415, %v3070
      %v3263 = vadd.f32 %v2416, %v3073
      %v3264 = vadd.f32 %v2417, %v3075
      %v3265 = vadd.f32 %v2418, %v3078
      %v3266 = vadd.f32 %v2419, %v3080
      %v3267 = vadd.f32 %v2420, %v3083
      %v3268 = vadd.f32 %v2421, %v3085
      %v3269 = vadd.f32 %v2422, %v3088
      %v3270 = vadd.f32 %v2423, %v3090
      %v3271 = vadd.f32 %v2424, %v3093
      %v3272 = vadd.f32 %v2425, %v3095
      %v3273 = vadd.f32 %v2426, %v3098
      %v3274 = vadd.f32 %v2427, %v3100
      %v3275 = vadd.f32 %v2428, %v3103
      %v3276 = vadd.f32 %v2429, %v3105
      %v3277 = vadd.f32 %v2430, %v3108
      %v3278 = vadd.f32 %v2431, %v3110
      %v3279 = vadd.f32 %v2432, %v3113
      %v3280 = vadd.f32 %v2433, %v3115
      %v3281 = vadd.f32 %v2434, %v3118
      %v3282 = vadd.f32 %v2435, %v3120
      %v3283 = vadd.f32 %v2436, %v3123
      %v3284 = vadd.f32 %v2437, %v3125
      %v3285 = vadd.f32 %v2438, %v3128
      %v3286 = vadd.f32 %v2439, %v3130
      %v3287 = vadd.f32 %v2440, %v3133
      %v3288 = vadd.f32 %v2441, %v3135
      %v3289 = vadd.f32 %v2442, %v3138
      %v3290 = vadd.f32 %v2443, %v3140
      %v3291 = vadd.f32 %v2444, %v3143
      %v3292 = vadd.f32 %v2445, %v3145
      %v3293 = vadd.f32 %v2446, %v3148
      %v3294 = vadd.f32 %v2447, %v3150
      %v3295 = vadd.f32 %v2448, %v3153
      %v3296 = vadd.f32 %v2449, %v3155
      %v3297 = vadd.f32 %v2450, %v3158
      %v3298 = vadd.f32 %v2451, %v3160
      %v3299 = vadd.f32 %v2452, %v3163
      %v3300 = vadd.f32 %v2453, %v3165
      %v3301 = vadd.f32 %v2454, %v3168
      %v3302 = vadd.f32 %v2455, %v3170
      %v3303 = vadd.f32 %v2456, %v3173
      %v3304 = vadd.f32 %v2457, %v3175
      %v3305 = vld [vmem:[%s2458 + $0x1] sm:$0xff]
      %v3306 = vld [vmem:[%s2458 + $0x9] sm:$0xff]
      %v3307 = vld [vmem:[%s2458 + $0x11] sm:$0xff]
      %v3308 = vld [vmem:[%s2458 + $0x19] sm:$0xff]
      %v3309 = vld [vmem:[%s2458 + $0x29] sm:$0xff]
      %v3310 = vld [vmem:[%s2458 + $0x31] sm:$0xff]
      %v3311 = vld [vmem:[%s2458 + $0x39] sm:$0xff]
      %v3312 = vld [vmem:[%s2458 + $0x41] sm:$0xff]
      %v3313 = vld [vmem:[%s2458 + $0x51] sm:$0xff]
      %v3314 = vld [vmem:[%s2458 + $0x59] sm:$0xff]
      %v3315 = vld [vmem:[%s2458 + $0x61] sm:$0xff]
      %v3316 = vld [vmem:[%s2458 + $0x69] sm:$0xff]
      %v3317 = vld [vmem:[%s2458 + $0x79] sm:$0xff]
      %v3318 = vld [vmem:[%s2458 + $0x81] sm:$0xff]
      %v3319 = vld [vmem:[%s2458 + $0x89] sm:$0xff]
      %v3320 = vld [vmem:[%s2458 + $0x91] sm:$0xff]
      %v3321 = vld [vmem:[%s2458 + $0xa1] sm:$0xff]
      %v3322 = vld [vmem:[%s2458 + $0xa9] sm:$0xff]
      %v3323 = vld [vmem:[%s2458 + $0xb1] sm:$0xff]
      %v3324 = vld [vmem:[%s2458 + $0xb9] sm:$0xff]
      %v3325 = vld [vmem:[%s2458 + $0xc9] sm:$0xff]
      %v3326 = vld [vmem:[%s2458 + $0xd1] sm:$0xff]
      %v3327 = vld [vmem:[%s2458 + $0xd9] sm:$0xff]
      %v3328 = vld [vmem:[%s2458 + $0xe1] sm:$0xff]
      %v3329 = vld [vmem:[%s2458 + $0xf1] sm:$0xff]
      %v3330 = vld [vmem:[%s2458 + $0xf9] sm:$0xff]
      %v3331 = vld [vmem:[%s2458 + $0x101] sm:$0xff]
      %v3332 = vld [vmem:[%s2458 + $0x109] sm:$0xff]
      %v3333 = vld [vmem:[%s2458 + $0x119] sm:$0xff]
      %v3334 = vld [vmem:[%s2458 + $0x121] sm:$0xff]
      %v3335 = vld [vmem:[%s2458 + $0x129] sm:$0xff]
      %v3336 = vld [vmem:[%s2458 + $0x131] sm:$0xff]
      %v3337 = vld [vmem:[%s2458 + $0x141] sm:$0xff]
      %v3338 = vld [vmem:[%s2458 + $0x149] sm:$0xff]
      %v3339 = vld [vmem:[%s2458 + $0x151] sm:$0xff]
      %v3340 = vld [vmem:[%s2458 + $0x159] sm:$0xff]
      %v3341 = vld [vmem:[%s2458 + $0x169] sm:$0xff]
      %v3342 = vld [vmem:[%s2458 + $0x171] sm:$0xff]
      %v3343 = vld [vmem:[%s2458 + $0x179] sm:$0xff]
      %v3344 = vld [vmem:[%s2458 + $0x181] sm:$0xff]
      %v3345 = vld [vmem:[%s2458 + $0x191] sm:$0xff]
      %v3346 = vld [vmem:[%s2458 + $0x199] sm:$0xff]
      %v3347 = vld [vmem:[%s2458 + $0x1a1] sm:$0xff]
      %v3348 = vld [vmem:[%s2458 + $0x1a9] sm:$0xff]
      %v3349 = vld [vmem:[%s2458 + $0x1b9] sm:$0xff]
      %v3350 = vld [vmem:[%s2458 + $0x1c1] sm:$0xff]
      %v3351 = vld [vmem:[%s2458 + $0x1c9] sm:$0xff]
      %v3352 = vld [vmem:[%s2458 + $0x1d1] sm:$0xff]
      %v3353 = vld [vmem:[%s2458 + $0x1e1] sm:$0xff]
      %v3354 = vld [vmem:[%s2458 + $0x1e9] sm:$0xff]
      %v3355 = vld [vmem:[%s2458 + $0x1f1] sm:$0xff]
      %v3356 = vld [vmem:[%s2458 + $0x1f9] sm:$0xff]
      %v3357 = vld [vmem:[%s2458 + $0x209] sm:$0xff]
      %v3358 = vld [vmem:[%s2458 + $0x211] sm:$0xff]
      %v3359 = vld [vmem:[%s2458 + $0x219] sm:$0xff]
      %v3360 = vld [vmem:[%s2458 + $0x221] sm:$0xff]
      %v3361 = vld [vmem:[%s2458 + $0x231] sm:$0xff]
      %v3362 = vld [vmem:[%s2458 + $0x239] sm:$0xff]
      %v3363 = vld [vmem:[%s2458 + $0x241] sm:$0xff]
      %v3364 = vld [vmem:[%s2458 + $0x249] sm:$0xff]
      %v3365 = vld [vmem:[%s2458 + $0x259] sm:$0xff]
      %v3366 = vld [vmem:[%s2458 + $0x261] sm:$0xff]
      %v3367 = vld [vmem:[%s2458 + $0x269] sm:$0xff]
      %v3368 = vld [vmem:[%s2458 + $0x271] sm:$0xff]
      %v3369 = vld [vmem:[%s2458 + $0x281] sm:$0xff]
      %v3370 = vld [vmem:[%s2458 + $0x289] sm:$0xff]
      %v3371 = vld [vmem:[%s2458 + $0x291] sm:$0xff]
      %v3372 = vld [vmem:[%s2458 + $0x299] sm:$0xff]
      %v3373 = vld [vmem:[%s2458 + $0x2a9] sm:$0xff]
      %v3374 = vld [vmem:[%s2458 + $0x2b1] sm:$0xff]
      %v3375 = vld [vmem:[%s2458 + $0x2b9] sm:$0xff]
      %v3376 = vld [vmem:[%s2458 + $0x2c1] sm:$0xff]
      %v3377 = vld [vmem:[%s2458 + $0x2d1] sm:$0xff]
      %v3378 = vld [vmem:[%s2458 + $0x2d9] sm:$0xff]
      %v3379 = vld [vmem:[%s2458 + $0x2e1] sm:$0xff]
      %v3380 = vld [vmem:[%s2458 + $0x2e9] sm:$0xff]
      %v3381 = vld [vmem:[%s2458 + $0x2f9] sm:$0xff]
      %v3382 = vld [vmem:[%s2458 + $0x301] sm:$0xff]
      %v3383 = vld [vmem:[%s2458 + $0x309] sm:$0xff]
      %v3384 = vld [vmem:[%s2458 + $0x311] sm:$0xff]
      %v3385 = vld [vmem:[%s2458 + $0x321] sm:$0xff]
      %v3386 = vld [vmem:[%s2458 + $0x329] sm:$0xff]
      %v3387 = vld [vmem:[%s2458 + $0x331] sm:$0xff]
      %v3388 = vld [vmem:[%s2458 + $0x339] sm:$0xff]
      %v3389 = vld [vmem:[%s2458 + $0x349] sm:$0xff]
      %v3390 = vld [vmem:[%s2458 + $0x351] sm:$0xff]
      %v3391 = vld [vmem:[%s2458 + $0x359] sm:$0xff]
      %v3392 = vld [vmem:[%s2458 + $0x361] sm:$0xff]
      %v3393 = vld [vmem:[%s2458 + $0x371] sm:$0xff]
      %v3394 = vld [vmem:[%s2458 + $0x379] sm:$0xff]
      %v3395 = vld [vmem:[%s2458 + $0x381] sm:$0xff]
      %v3396 = vld [vmem:[%s2458 + $0x389] sm:$0xff]
      %v3397 = vld [vmem:[%s2458 + $0x399] sm:$0xff]
      %v3398 = vld [vmem:[%s2458 + $0x3a1] sm:$0xff]
      %v3399 = vld [vmem:[%s2458 + $0x3a9] sm:$0xff]
      %v3400 = vld [vmem:[%s2458 + $0x3b1] sm:$0xff]
      %v3401 = vld [vmem:[%s2458 + $0x3c1] sm:$0xff]
      %v3402 = vld [vmem:[%s2458 + $0x3c9] sm:$0xff]
      %v3403 = vld [vmem:[%s2458 + $0x3d1] sm:$0xff]
      %v3404 = vld [vmem:[%s2458 + $0x3d9] sm:$0xff]
      %v3405 = vld [vmem:[%s2458 + $0x3e9] sm:$0xff]
      %v3406 = vld [vmem:[%s2458 + $0x3f1] sm:$0xff]
      %v3407 = vld [vmem:[%s2458 + $0x3f9] sm:$0xff]
      %v3408 = vld [vmem:[%s2458 + $0x401] sm:$0xff]
      %v3409 = vld [vmem:[%s2458 + $0x411] sm:$0xff]
      %v3410 = vld [vmem:[%s2458 + $0x419] sm:$0xff]
      %v3411 = vld [vmem:[%s2458 + $0x421] sm:$0xff]
      %v3412 = vld [vmem:[%s2458 + $0x429] sm:$0xff]
      %v3413 = vld [vmem:[%s2458 + $0x439] sm:$0xff]
      %v3414 = vld [vmem:[%s2458 + $0x441] sm:$0xff]
      %v3415 = vld [vmem:[%s2458 + $0x449] sm:$0xff]
      %v3416 = vld [vmem:[%s2458 + $0x451] sm:$0xff]
      %v3417 = vld [vmem:[%s2458 + $0x461] sm:$0xff]
      %v3418 = vld [vmem:[%s2458 + $0x469] sm:$0xff]
      %v3419 = vld [vmem:[%s2458 + $0x471] sm:$0xff]
      %v3420 = vld [vmem:[%s2458 + $0x479] sm:$0xff]
      %v3421 = vld [vmem:[%s2458 + $0x489] sm:$0xff]
      %v3422 = vld [vmem:[%s2458 + $0x491] sm:$0xff]
      %v3423 = vld [vmem:[%s2458 + $0x499] sm:$0xff]
      %v3424 = vld [vmem:[%s2458 + $0x4a1] sm:$0xff]
      %v3425 = vld [vmem:[%s2458 + $0x4b1] sm:$0xff]
      %v3426 = vld [vmem:[%s2458 + $0x4b9] sm:$0xff]
      %v3427 = vld [vmem:[%s2458 + $0x4c1] sm:$0xff]
      %v3428 = vld [vmem:[%s2458 + $0x4c9] sm:$0xff]
      %v3429 = vld [vmem:[%s2458 + $0x4d9] sm:$0xff]
      %v3430 = vld [vmem:[%s2458 + $0x4e1] sm:$0xff]
      %v3431 = vld [vmem:[%s2458 + $0x4e9] sm:$0xff]
      %v3432 = vld [vmem:[%s2458 + $0x4f1] sm:$0xff]
      %v3433 = vpack.c.bf16 %v3306, %v3305
      %v3434 = vpack.c.bf16 %v3308, %v3307
      %v3435 = vpack.c.bf16 %v3310, %v3309
      %v3436 = vpack.c.bf16 %v3312, %v3311
      %v3437 = vpack.c.bf16 %v3314, %v3313
      %v3438 = vpack.c.bf16 %v3316, %v3315
      %v3439 = vpack.c.bf16 %v3318, %v3317
      %v3440 = vpack.c.bf16 %v3320, %v3319
      %v3441 = vpack.c.bf16 %v3322, %v3321
      %v3442 = vpack.c.bf16 %v3324, %v3323
      %v3443 = vpack.c.bf16 %v3326, %v3325
      %v3444 = vpack.c.bf16 %v3328, %v3327
      %v3445 = vpack.c.bf16 %v3330, %v3329
      %v3446 = vpack.c.bf16 %v3332, %v3331
      %v3447 = vpack.c.bf16 %v3334, %v3333
      %v3448 = vpack.c.bf16 %v3336, %v3335
      %v3449 = vpack.c.bf16 %v3338, %v3337
      %v3450 = vpack.c.bf16 %v3340, %v3339
      %v3451 = vpack.c.bf16 %v3342, %v3341
      %v3452 = vpack.c.bf16 %v3344, %v3343
      %v3453 = vpack.c.bf16 %v3346, %v3345
      %v3454 = vpack.c.bf16 %v3348, %v3347
      %v3455 = vpack.c.bf16 %v3350, %v3349
      %v3456 = vpack.c.bf16 %v3352, %v3351
      %v3457 = vpack.c.bf16 %v3354, %v3353
      %v3458 = vpack.c.bf16 %v3356, %v3355
      %v3459 = vpack.c.bf16 %v3358, %v3357
      %v3460 = vpack.c.bf16 %v3360, %v3359
      %v3461 = vpack.c.bf16 %v3362, %v3361
      %v3462 = vpack.c.bf16 %v3364, %v3363
      %v3463 = vpack.c.bf16 %v3366, %v3365
      %v3464 = vpack.c.bf16 %v3368, %v3367
      %v3465 = vpack.c.bf16 %v3370, %v3369
      %v3466 = vpack.c.bf16 %v3372, %v3371
      %v3467 = vpack.c.bf16 %v3374, %v3373
      %v3468 = vpack.c.bf16 %v3376, %v3375
      %v3469 = vpack.c.bf16 %v3378, %v3377
      %v3470 = vpack.c.bf16 %v3380, %v3379
      %v3471 = vpack.c.bf16 %v3382, %v3381
      %v3472 = vpack.c.bf16 %v3384, %v3383
      %v3473 = vpack.c.bf16 %v3386, %v3385
      %v3474 = vpack.c.bf16 %v3388, %v3387
      %v3475 = vpack.c.bf16 %v3390, %v3389
      %v3476 = vpack.c.bf16 %v3392, %v3391
      %v3477 = vpack.c.bf16 %v3394, %v3393
      %v3478 = vpack.c.bf16 %v3396, %v3395
      %v3479 = vpack.c.bf16 %v3398, %v3397
      %v3480 = vpack.c.bf16 %v3400, %v3399
      %v3481 = vpack.c.bf16 %v3402, %v3401
      %v3482 = vpack.c.bf16 %v3404, %v3403
      %v3483 = vpack.c.bf16 %v3406, %v3405
      %v3484 = vpack.c.bf16 %v3408, %v3407
      %v3485 = vpack.c.bf16 %v3410, %v3409
      %v3486 = vpack.c.bf16 %v3412, %v3411
      %v3487 = vpack.c.bf16 %v3414, %v3413
      %v3488 = vpack.c.bf16 %v3416, %v3415
      %v3489 = vpack.c.bf16 %v3418, %v3417
      %v3490 = vpack.c.bf16 %v3420, %v3419
      %v3491 = vpack.c.bf16 %v3422, %v3421
      %v3492 = vpack.c.bf16 %v3424, %v3423
      %v3493 = vpack.c.bf16 %v3426, %v3425
      %v3494 = vpack.c.bf16 %v3428, %v3427
      %v3495 = vpack.c.bf16 %v3430, %v3429
      %v3496 = vpack.c.bf16 %v3432, %v3431
      %s3497 = scalar_lea.vmem %s1, 8
      %v3498 = vld [vmem:[%s3497] sm:$0x3]
      %v3500 = vsel %vm559, %v3433, 0
      %v3503 = vsel %vm559, %v3434, 0
      %v3506 = vsel %vm559, %v3435, 0
      %v3509 = vsel %vm559, %v3436, 0
      %v3512 = vsel %vm559, %v3437, 0
      %v3515 = vsel %vm559, %v3438, 0
      %v3518 = vsel %vm559, %v3439, 0
      %v3521 = vsel %vm559, %v3440, 0
      %v3524 = vsel %vm559, %v3441, 0
      %v3527 = vsel %vm559, %v3442, 0
      %v3530 = vsel %vm559, %v3443, 0
      %v3533 = vsel %vm559, %v3444, 0
      %v3536 = vsel %vm559, %v3445, 0
      %v3539 = vsel %vm559, %v3446, 0
      %v3542 = vsel %vm559, %v3447, 0
      %v3545 = vsel %vm559, %v3448, 0
      %v3548 = vsel %vm559, %v3449, 0
      %v3551 = vsel %vm559, %v3450, 0
      %v3554 = vsel %vm559, %v3451, 0
      %v3557 = vsel %vm559, %v3452, 0
      %v3560 = vsel %vm559, %v3453, 0
      %v3563 = vsel %vm559, %v3454, 0
      %v3566 = vsel %vm559, %v3455, 0
      %v3569 = vsel %vm559, %v3456, 0
      %v3572 = vsel %vm559, %v3457, 0
      %v3575 = vsel %vm559, %v3458, 0
      %v3578 = vsel %vm559, %v3459, 0
      %v3581 = vsel %vm559, %v3460, 0
      %v3584 = vsel %vm559, %v3461, 0
      %v3587 = vsel %vm559, %v3462, 0
      %v3590 = vsel %vm559, %v3463, 0
      %v3593 = vsel %vm559, %v3464, 0
      %v3596 = vsel %vm559, %v3465, 0
      %v3599 = vsel %vm559, %v3466, 0
      %v3602 = vsel %vm559, %v3467, 0
      %v3605 = vsel %vm559, %v3468, 0
      %v3608 = vsel %vm559, %v3469, 0
      %v3611 = vsel %vm559, %v3470, 0
      %v3614 = vsel %vm559, %v3471, 0
      %v3617 = vsel %vm559, %v3472, 0
      %v3620 = vsel %vm559, %v3473, 0
      %v3623 = vsel %vm559, %v3474, 0
      %v3626 = vsel %vm559, %v3475, 0
      %v3629 = vsel %vm559, %v3476, 0
      %v3632 = vsel %vm559, %v3477, 0
      %v3635 = vsel %vm559, %v3478, 0
      %v3638 = vsel %vm559, %v3479, 0
      %v3641 = vsel %vm559, %v3480, 0
      %v3644 = vsel %vm559, %v3481, 0
      %v3647 = vsel %vm559, %v3482, 0
      %v3650 = vsel %vm559, %v3483, 0
      %v3653 = vsel %vm559, %v3484, 0
      %v3656 = vsel %vm559, %v3485, 0
      %v3659 = vsel %vm559, %v3486, 0
      %v3662 = vsel %vm559, %v3487, 0
      %v3665 = vsel %vm559, %v3488, 0
      %v3668 = vsel %vm559, %v3489, 0
      %v3671 = vsel %vm559, %v3490, 0
      %v3674 = vsel %vm559, %v3491, 0
      %v3677 = vsel %vm559, %v3492, 0
      %v3680 = vsel %vm559, %v3493, 0
      %v3683 = vsel %vm559, %v3494, 0
      %v3686 = vsel %vm559, %v3495, 0
      %v3689 = vsel %vm559, %v3496, 0
      %v3692 = vand.u32 %v3498, %v755
      %3694 = vmatpush.bf16.msra.mxu0 0
      %3695 = vmatpush.bf16.msra.mxu0 0
      %3696 = vmatpush.bf16.msra.mxu0 0
      %3697 = vmatpush.bf16.msra.mxu0 0
      %3698 = vmatpush.bf16.msra.mxu0 0
      %3699 = vmatpush.bf16.msra.mxu0 0
      %3700 = vmatpush.bf16.msra.mxu0 0
      %3701 = vmatpush.bf16.msra.mxu0 %v3692
      %3702 = vmatmul.bf16.gmra.mxu0 %v3500
      %v3703 = vpop.f32.mrf.mxu0
      %v3704 = vadd.f32 0.0, %v3703
      %v3705 = vpop.f32.mrf.mxu0
      %v3706 = vadd.f32 0.0, %v3705
      %3707 = vmatmul.bf16.gmra.mxu0 %v3503
      %v3708 = vpop.f32.mrf.mxu0
      %v3709 = vadd.f32 0.0, %v3708
      %v3710 = vpop.f32.mrf.mxu0
      %v3711 = vadd.f32 0.0, %v3710
      %3712 = vmatmul.bf16.gmra.mxu0 %v3506
      %v3713 = vpop.f32.mrf.mxu0
      %v3714 = vadd.f32 0.0, %v3713
      %v3715 = vpop.f32.mrf.mxu0
      %v3716 = vadd.f32 0.0, %v3715
      %3717 = vmatmul.bf16.gmra.mxu0 %v3509
      %v3718 = vpop.f32.mrf.mxu0
      %v3719 = vadd.f32 0.0, %v3718
      %v3720 = vpop.f32.mrf.mxu0
      %v3721 = vadd.f32 0.0, %v3720
      %3722 = vmatmul.bf16.gmra.mxu0 %v3512
      %v3723 = vpop.f32.mrf.mxu0
      %v3724 = vadd.f32 0.0, %v3723
      %v3725 = vpop.f32.mrf.mxu0
      %v3726 = vadd.f32 0.0, %v3725
      %3727 = vmatmul.bf16.gmra.mxu0 %v3515
      %v3728 = vpop.f32.mrf.mxu0
      %v3729 = vadd.f32 0.0, %v3728
      %v3730 = vpop.f32.mrf.mxu0
      %v3731 = vadd.f32 0.0, %v3730
      %3732 = vmatmul.bf16.gmra.mxu0 %v3518
      %v3733 = vpop.f32.mrf.mxu0
      %v3734 = vadd.f32 0.0, %v3733
      %v3735 = vpop.f32.mrf.mxu0
      %v3736 = vadd.f32 0.0, %v3735
      %3737 = vmatmul.bf16.gmra.mxu0 %v3521
      %v3738 = vpop.f32.mrf.mxu0
      %v3739 = vadd.f32 0.0, %v3738
      %v3740 = vpop.f32.mrf.mxu0
      %v3741 = vadd.f32 0.0, %v3740
      %3742 = vmatmul.bf16.gmra.mxu0 %v3524
      %v3743 = vpop.f32.mrf.mxu0
      %v3744 = vadd.f32 0.0, %v3743
      %v3745 = vpop.f32.mrf.mxu0
      %v3746 = vadd.f32 0.0, %v3745
      %3747 = vmatmul.bf16.gmra.mxu0 %v3527
      %v3748 = vpop.f32.mrf.mxu0
      %v3749 = vadd.f32 0.0, %v3748
      %v3750 = vpop.f32.mrf.mxu0
      %v3751 = vadd.f32 0.0, %v3750
      %3752 = vmatmul.bf16.gmra.mxu0 %v3530
      %v3753 = vpop.f32.mrf.mxu0
      %v3754 = vadd.f32 0.0, %v3753
      %v3755 = vpop.f32.mrf.mxu0
      %v3756 = vadd.f32 0.0, %v3755
      %3757 = vmatmul.bf16.gmra.mxu0 %v3533
      %v3758 = vpop.f32.mrf.mxu0
      %v3759 = vadd.f32 0.0, %v3758
      %v3760 = vpop.f32.mrf.mxu0
      %v3761 = vadd.f32 0.0, %v3760
      %3762 = vmatmul.bf16.gmra.mxu0 %v3536
      %v3763 = vpop.f32.mrf.mxu0
      %v3764 = vadd.f32 0.0, %v3763
      %v3765 = vpop.f32.mrf.mxu0
      %v3766 = vadd.f32 0.0, %v3765
      %3767 = vmatmul.bf16.gmra.mxu0 %v3539
      %v3768 = vpop.f32.mrf.mxu0
      %v3769 = vadd.f32 0.0, %v3768
      %v3770 = vpop.f32.mrf.mxu0
      %v3771 = vadd.f32 0.0, %v3770
      %3772 = vmatmul.bf16.gmra.mxu0 %v3542
      %v3773 = vpop.f32.mrf.mxu0
      %v3774 = vadd.f32 0.0, %v3773
      %v3775 = vpop.f32.mrf.mxu0
      %v3776 = vadd.f32 0.0, %v3775
      %3777 = vmatmul.bf16.gmra.mxu0 %v3545
      %v3778 = vpop.f32.mrf.mxu0
      %v3779 = vadd.f32 0.0, %v3778
      %v3780 = vpop.f32.mrf.mxu0
      %v3781 = vadd.f32 0.0, %v3780
      %3782 = vmatmul.bf16.gmra.mxu0 %v3548
      %v3783 = vpop.f32.mrf.mxu0
      %v3784 = vadd.f32 0.0, %v3783
      %v3785 = vpop.f32.mrf.mxu0
      %v3786 = vadd.f32 0.0, %v3785
      %3787 = vmatmul.bf16.gmra.mxu0 %v3551
      %v3788 = vpop.f32.mrf.mxu0
      %v3789 = vadd.f32 0.0, %v3788
      %v3790 = vpop.f32.mrf.mxu0
      %v3791 = vadd.f32 0.0, %v3790
      %3792 = vmatmul.bf16.gmra.mxu0 %v3554
      %v3793 = vpop.f32.mrf.mxu0
      %v3794 = vadd.f32 0.0, %v3793
      %v3795 = vpop.f32.mrf.mxu0
      %v3796 = vadd.f32 0.0, %v3795
      %3797 = vmatmul.bf16.gmra.mxu0 %v3557
      %v3798 = vpop.f32.mrf.mxu0
      %v3799 = vadd.f32 0.0, %v3798
      %v3800 = vpop.f32.mrf.mxu0
      %v3801 = vadd.f32 0.0, %v3800
      %3802 = vmatmul.bf16.gmra.mxu0 %v3560
      %v3803 = vpop.f32.mrf.mxu0
      %v3804 = vadd.f32 0.0, %v3803
      %v3805 = vpop.f32.mrf.mxu0
      %v3806 = vadd.f32 0.0, %v3805
      %3807 = vmatmul.bf16.gmra.mxu0 %v3563
      %v3808 = vpop.f32.mrf.mxu0
      %v3809 = vadd.f32 0.0, %v3808
      %v3810 = vpop.f32.mrf.mxu0
      %v3811 = vadd.f32 0.0, %v3810
      %3812 = vmatmul.bf16.gmra.mxu0 %v3566
      %v3813 = vpop.f32.mrf.mxu0
      %v3814 = vadd.f32 0.0, %v3813
      %v3815 = vpop.f32.mrf.mxu0
      %v3816 = vadd.f32 0.0, %v3815
      %3817 = vmatmul.bf16.gmra.mxu0 %v3569
      %v3818 = vpop.f32.mrf.mxu0
      %v3819 = vadd.f32 0.0, %v3818
      %v3820 = vpop.f32.mrf.mxu0
      %v3821 = vadd.f32 0.0, %v3820
      %3822 = vmatmul.bf16.gmra.mxu0 %v3572
      %v3823 = vpop.f32.mrf.mxu0
      %v3824 = vadd.f32 0.0, %v3823
      %v3825 = vpop.f32.mrf.mxu0
      %v3826 = vadd.f32 0.0, %v3825
      %3827 = vmatmul.bf16.gmra.mxu0 %v3575
      %v3828 = vpop.f32.mrf.mxu0
      %v3829 = vadd.f32 0.0, %v3828
      %v3830 = vpop.f32.mrf.mxu0
      %v3831 = vadd.f32 0.0, %v3830
      %3832 = vmatmul.bf16.gmra.mxu0 %v3578
      %v3833 = vpop.f32.mrf.mxu0
      %v3834 = vadd.f32 0.0, %v3833
      %v3835 = vpop.f32.mrf.mxu0
      %v3836 = vadd.f32 0.0, %v3835
      %3837 = vmatmul.bf16.gmra.mxu0 %v3581
      %v3838 = vpop.f32.mrf.mxu0
      %v3839 = vadd.f32 0.0, %v3838
      %v3840 = vpop.f32.mrf.mxu0
      %v3841 = vadd.f32 0.0, %v3840
      %3842 = vmatmul.bf16.gmra.mxu0 %v3584
      %v3843 = vpop.f32.mrf.mxu0
      %v3844 = vadd.f32 0.0, %v3843
      %v3845 = vpop.f32.mrf.mxu0
      %v3846 = vadd.f32 0.0, %v3845
      %3847 = vmatmul.bf16.gmra.mxu0 %v3587
      %v3848 = vpop.f32.mrf.mxu0
      %v3849 = vadd.f32 0.0, %v3848
      %v3850 = vpop.f32.mrf.mxu0
      %v3851 = vadd.f32 0.0, %v3850
      %3852 = vmatmul.bf16.gmra.mxu0 %v3590
      %v3853 = vpop.f32.mrf.mxu0
      %v3854 = vadd.f32 0.0, %v3853
      %v3855 = vpop.f32.mrf.mxu0
      %v3856 = vadd.f32 0.0, %v3855
      %3857 = vmatmul.bf16.gmra.mxu0 %v3593
      %v3858 = vpop.f32.mrf.mxu0
      %v3859 = vadd.f32 0.0, %v3858
      %v3860 = vpop.f32.mrf.mxu0
      %v3861 = vadd.f32 0.0, %v3860
      %3862 = vmatmul.bf16.gmra.mxu0 %v3596
      %v3863 = vpop.f32.mrf.mxu0
      %v3864 = vadd.f32 0.0, %v3863
      %v3865 = vpop.f32.mrf.mxu0
      %v3866 = vadd.f32 0.0, %v3865
      %3867 = vmatmul.bf16.gmra.mxu0 %v3599
      %v3868 = vpop.f32.mrf.mxu0
      %v3869 = vadd.f32 0.0, %v3868
      %v3870 = vpop.f32.mrf.mxu0
      %v3871 = vadd.f32 0.0, %v3870
      %3872 = vmatmul.bf16.gmra.mxu0 %v3602
      %v3873 = vpop.f32.mrf.mxu0
      %v3874 = vadd.f32 0.0, %v3873
      %v3875 = vpop.f32.mrf.mxu0
      %v3876 = vadd.f32 0.0, %v3875
      %3877 = vmatmul.bf16.gmra.mxu0 %v3605
      %v3878 = vpop.f32.mrf.mxu0
      %v3879 = vadd.f32 0.0, %v3878
      %v3880 = vpop.f32.mrf.mxu0
      %v3881 = vadd.f32 0.0, %v3880
      %3882 = vmatmul.bf16.gmra.mxu0 %v3608
      %v3883 = vpop.f32.mrf.mxu0
      %v3884 = vadd.f32 0.0, %v3883
      %v3885 = vpop.f32.mrf.mxu0
      %v3886 = vadd.f32 0.0, %v3885
      %3887 = vmatmul.bf16.gmra.mxu0 %v3611
      %v3888 = vpop.f32.mrf.mxu0
      %v3889 = vadd.f32 0.0, %v3888
      %v3890 = vpop.f32.mrf.mxu0
      %v3891 = vadd.f32 0.0, %v3890
      %3892 = vmatmul.bf16.gmra.mxu0 %v3614
      %v3893 = vpop.f32.mrf.mxu0
      %v3894 = vadd.f32 0.0, %v3893
      %v3895 = vpop.f32.mrf.mxu0
      %v3896 = vadd.f32 0.0, %v3895
      %3897 = vmatmul.bf16.gmra.mxu0 %v3617
      %v3898 = vpop.f32.mrf.mxu0
      %v3899 = vadd.f32 0.0, %v3898
      %v3900 = vpop.f32.mrf.mxu0
      %v3901 = vadd.f32 0.0, %v3900
      %3902 = vmatmul.bf16.gmra.mxu0 %v3620
      %v3903 = vpop.f32.mrf.mxu0
      %v3904 = vadd.f32 0.0, %v3903
      %v3905 = vpop.f32.mrf.mxu0
      %v3906 = vadd.f32 0.0, %v3905
      %3907 = vmatmul.bf16.gmra.mxu0 %v3623
      %v3908 = vpop.f32.mrf.mxu0
      %v3909 = vadd.f32 0.0, %v3908
      %v3910 = vpop.f32.mrf.mxu0
      %v3911 = vadd.f32 0.0, %v3910
      %3912 = vmatmul.bf16.gmra.mxu0 %v3626
      %v3913 = vpop.f32.mrf.mxu0
      %v3914 = vadd.f32 0.0, %v3913
      %v3915 = vpop.f32.mrf.mxu0
      %v3916 = vadd.f32 0.0, %v3915
      %3917 = vmatmul.bf16.gmra.mxu0 %v3629
      %v3918 = vpop.f32.mrf.mxu0
      %v3919 = vadd.f32 0.0, %v3918
      %v3920 = vpop.f32.mrf.mxu0
      %v3921 = vadd.f32 0.0, %v3920
      %3922 = vmatmul.bf16.gmra.mxu0 %v3632
      %v3923 = vpop.f32.mrf.mxu0
      %v3924 = vadd.f32 0.0, %v3923
      %v3925 = vpop.f32.mrf.mxu0
      %v3926 = vadd.f32 0.0, %v3925
      %3927 = vmatmul.bf16.gmra.mxu0 %v3635
      %v3928 = vpop.f32.mrf.mxu0
      %v3929 = vadd.f32 0.0, %v3928
      %v3930 = vpop.f32.mrf.mxu0
      %v3931 = vadd.f32 0.0, %v3930
      %3932 = vmatmul.bf16.gmra.mxu0 %v3638
      %v3933 = vpop.f32.mrf.mxu0
      %v3934 = vadd.f32 0.0, %v3933
      %v3935 = vpop.f32.mrf.mxu0
      %v3936 = vadd.f32 0.0, %v3935
      %3937 = vmatmul.bf16.gmra.mxu0 %v3641
      %v3938 = vpop.f32.mrf.mxu0
      %v3939 = vadd.f32 0.0, %v3938
      %v3940 = vpop.f32.mrf.mxu0
      %v3941 = vadd.f32 0.0, %v3940
      %3942 = vmatmul.bf16.gmra.mxu0 %v3644
      %v3943 = vpop.f32.mrf.mxu0
      %v3944 = vadd.f32 0.0, %v3943
      %v3945 = vpop.f32.mrf.mxu0
      %v3946 = vadd.f32 0.0, %v3945
      %3947 = vmatmul.bf16.gmra.mxu0 %v3647
      %v3948 = vpop.f32.mrf.mxu0
      %v3949 = vadd.f32 0.0, %v3948
      %v3950 = vpop.f32.mrf.mxu0
      %v3951 = vadd.f32 0.0, %v3950
      %3952 = vmatmul.bf16.gmra.mxu0 %v3650
      %v3953 = vpop.f32.mrf.mxu0
      %v3954 = vadd.f32 0.0, %v3953
      %v3955 = vpop.f32.mrf.mxu0
      %v3956 = vadd.f32 0.0, %v3955
      %3957 = vmatmul.bf16.gmra.mxu0 %v3653
      %v3958 = vpop.f32.mrf.mxu0
      %v3959 = vadd.f32 0.0, %v3958
      %v3960 = vpop.f32.mrf.mxu0
      %v3961 = vadd.f32 0.0, %v3960
      %3962 = vmatmul.bf16.gmra.mxu0 %v3656
      %v3963 = vpop.f32.mrf.mxu0
      %v3964 = vadd.f32 0.0, %v3963
      %v3965 = vpop.f32.mrf.mxu0
      %v3966 = vadd.f32 0.0, %v3965
      %3967 = vmatmul.bf16.gmra.mxu0 %v3659
      %v3968 = vpop.f32.mrf.mxu0
      %v3969 = vadd.f32 0.0, %v3968
      %v3970 = vpop.f32.mrf.mxu0
      %v3971 = vadd.f32 0.0, %v3970
      %3972 = vmatmul.bf16.gmra.mxu0 %v3662
      %v3973 = vpop.f32.mrf.mxu0
      %v3974 = vadd.f32 0.0, %v3973
      %v3975 = vpop.f32.mrf.mxu0
      %v3976 = vadd.f32 0.0, %v3975
      %3977 = vmatmul.bf16.gmra.mxu0 %v3665
      %v3978 = vpop.f32.mrf.mxu0
      %v3979 = vadd.f32 0.0, %v3978
      %v3980 = vpop.f32.mrf.mxu0
      %v3981 = vadd.f32 0.0, %v3980
      %3982 = vmatmul.bf16.gmra.mxu0 %v3668
      %v3983 = vpop.f32.mrf.mxu0
      %v3984 = vadd.f32 0.0, %v3983
      %v3985 = vpop.f32.mrf.mxu0
      %v3986 = vadd.f32 0.0, %v3985
      %3987 = vmatmul.bf16.gmra.mxu0 %v3671
      %v3988 = vpop.f32.mrf.mxu0
      %v3989 = vadd.f32 0.0, %v3988
      %v3990 = vpop.f32.mrf.mxu0
      %v3991 = vadd.f32 0.0, %v3990
      %3992 = vmatmul.bf16.gmra.mxu0 %v3674
      %v3993 = vpop.f32.mrf.mxu0
      %v3994 = vadd.f32 0.0, %v3993
      %v3995 = vpop.f32.mrf.mxu0
      %v3996 = vadd.f32 0.0, %v3995
      %3997 = vmatmul.bf16.gmra.mxu0 %v3677
      %v3998 = vpop.f32.mrf.mxu0
      %v3999 = vadd.f32 0.0, %v3998
      %v4000 = vpop.f32.mrf.mxu0
      %v4001 = vadd.f32 0.0, %v4000
      %4002 = vmatmul.bf16.gmra.mxu0 %v3680
      %v4003 = vpop.f32.mrf.mxu0
      %v4004 = vadd.f32 0.0, %v4003
      %v4005 = vpop.f32.mrf.mxu0
      %v4006 = vadd.f32 0.0, %v4005
      %4007 = vmatmul.bf16.gmra.mxu0 %v3683
      %v4008 = vpop.f32.mrf.mxu0
      %v4009 = vadd.f32 0.0, %v4008
      %v4010 = vpop.f32.mrf.mxu0
      %v4011 = vadd.f32 0.0, %v4010
      %4012 = vmatmul.bf16.gmra.mxu0 %v3686
      %v4013 = vpop.f32.mrf.mxu0
      %v4014 = vadd.f32 0.0, %v4013
      %v4015 = vpop.f32.mrf.mxu0
      %v4016 = vadd.f32 0.0, %v4015
      %4017 = vmatmul.bf16.gmra.mxu0 %v3689
      %v4018 = vpop.f32.mrf.mxu0
      %v4019 = vadd.f32 0.0, %v4018
      %v4020 = vpop.f32.mrf.mxu0
      %v4021 = vadd.f32 0.0, %v4020
      %4022 = vdwg.mxu0
      %v4023 = vadd.f32 %v3177, %v3704
      %v4024 = vadd.f32 %v3178, %v3706
      %v4025 = vadd.f32 %v3179, %v3709
      %v4026 = vadd.f32 %v3180, %v3711
      %v4027 = vadd.f32 %v3181, %v3714
      %v4028 = vadd.f32 %v3182, %v3716
      %v4029 = vadd.f32 %v3183, %v3719
      %v4030 = vadd.f32 %v3184, %v3721
      %v4031 = vadd.f32 %v3185, %v3724
      %v4032 = vadd.f32 %v3186, %v3726
      %v4033 = vadd.f32 %v3187, %v3729
      %v4034 = vadd.f32 %v3188, %v3731
      %v4035 = vadd.f32 %v3189, %v3734
      %v4036 = vadd.f32 %v3190, %v3736
      %v4037 = vadd.f32 %v3191, %v3739
      %v4038 = vadd.f32 %v3192, %v3741
      %v4039 = vadd.f32 %v3193, %v3744
      %v4040 = vadd.f32 %v3194, %v3746
      %v4041 = vadd.f32 %v3195, %v3749
      %v4042 = vadd.f32 %v3196, %v3751
      %v4043 = vadd.f32 %v3197, %v3754
      %v4044 = vadd.f32 %v3198, %v3756
      %v4045 = vadd.f32 %v3199, %v3759
      %v4046 = vadd.f32 %v3200, %v3761
      %v4047 = vadd.f32 %v3201, %v3764
      %v4048 = vadd.f32 %v3202, %v3766
      %v4049 = vadd.f32 %v3203, %v3769
      %v4050 = vadd.f32 %v3204, %v3771
      %v4051 = vadd.f32 %v3205, %v3774
      %v4052 = vadd.f32 %v3206, %v3776
      %v4053 = vadd.f32 %v3207, %v3779
      %v4054 = vadd.f32 %v3208, %v3781
      %v4055 = vadd.f32 %v3209, %v3784
      %v4056 = vadd.f32 %v3210, %v3786
      %v4057 = vadd.f32 %v3211, %v3789
      %v4058 = vadd.f32 %v3212, %v3791
      %v4059 = vadd.f32 %v3213, %v3794
      %v4060 = vadd.f32 %v3214, %v3796
      %v4061 = vadd.f32 %v3215, %v3799
      %v4062 = vadd.f32 %v3216, %v3801
      %v4063 = vadd.f32 %v3217, %v3804
      %v4064 = vadd.f32 %v3218, %v3806
      %v4065 = vadd.f32 %v3219, %v3809
      %v4066 = vadd.f32 %v3220, %v3811
      %v4067 = vadd.f32 %v3221, %v3814
      %v4068 = vadd.f32 %v3222, %v3816
      %v4069 = vadd.f32 %v3223, %v3819
      %v4070 = vadd.f32 %v3224, %v3821
      %v4071 = vadd.f32 %v3225, %v3824
      %v4072 = vadd.f32 %v3226, %v3826
      %v4073 = vadd.f32 %v3227, %v3829
      %v4074 = vadd.f32 %v3228, %v3831
      %v4075 = vadd.f32 %v3229, %v3834
      %v4076 = vadd.f32 %v3230, %v3836
      %v4077 = vadd.f32 %v3231, %v3839
      %v4078 = vadd.f32 %v3232, %v3841
      %v4079 = vadd.f32 %v3233, %v3844
      %v4080 = vadd.f32 %v3234, %v3846
      %v4081 = vadd.f32 %v3235, %v3849
      %v4082 = vadd.f32 %v3236, %v3851
      %v4083 = vadd.f32 %v3237, %v3854
      %v4084 = vadd.f32 %v3238, %v3856
      %v4085 = vadd.f32 %v3239, %v3859
      %v4086 = vadd.f32 %v3240, %v3861
      %v4087 = vadd.f32 %v3241, %v3864
      %v4088 = vadd.f32 %v3242, %v3866
      %v4089 = vadd.f32 %v3243, %v3869
      %v4090 = vadd.f32 %v3244, %v3871
      %v4091 = vadd.f32 %v3245, %v3874
      %v4092 = vadd.f32 %v3246, %v3876
      %v4093 = vadd.f32 %v3247, %v3879
      %v4094 = vadd.f32 %v3248, %v3881
      %v4095 = vadd.f32 %v3249, %v3884
      %v4096 = vadd.f32 %v3250, %v3886
      %v4097 = vadd.f32 %v3251, %v3889
      %v4098 = vadd.f32 %v3252, %v3891
      %v4099 = vadd.f32 %v3253, %v3894
      %v4100 = vadd.f32 %v3254, %v3896
      %v4101 = vadd.f32 %v3255, %v3899
      %v4102 = vadd.f32 %v3256, %v3901
      %v4103 = vadd.f32 %v3257, %v3904
      %v4104 = vadd.f32 %v3258, %v3906
      %v4105 = vadd.f32 %v3259, %v3909
      %v4106 = vadd.f32 %v3260, %v3911
      %v4107 = vadd.f32 %v3261, %v3914
      %v4108 = vadd.f32 %v3262, %v3916
      %v4109 = vadd.f32 %v3263, %v3919
      %v4110 = vadd.f32 %v3264, %v3921
      %v4111 = vadd.f32 %v3265, %v3924
      %v4112 = vadd.f32 %v3266, %v3926
      %v4113 = vadd.f32 %v3267, %v3929
      %v4114 = vadd.f32 %v3268, %v3931
      %v4115 = vadd.f32 %v3269, %v3934
      %v4116 = vadd.f32 %v3270, %v3936
      %v4117 = vadd.f32 %v3271, %v3939
      %v4118 = vadd.f32 %v3272, %v3941
      %v4119 = vadd.f32 %v3273, %v3944
      %v4120 = vadd.f32 %v3274, %v3946
      %v4121 = vadd.f32 %v3275, %v3949
      %v4122 = vadd.f32 %v3276, %v3951
      %v4123 = vadd.f32 %v3277, %v3954
      %v4124 = vadd.f32 %v3278, %v3956
      %v4125 = vadd.f32 %v3279, %v3959
      %v4126 = vadd.f32 %v3280, %v3961
      %v4127 = vadd.f32 %v3281, %v3964
      %v4128 = vadd.f32 %v3282, %v3966
      %v4129 = vadd.f32 %v3283, %v3969
      %v4130 = vadd.f32 %v3284, %v3971
      %v4131 = vadd.f32 %v3285, %v3974
      %v4132 = vadd.f32 %v3286, %v3976
      %v4133 = vadd.f32 %v3287, %v3979
      %v4134 = vadd.f32 %v3288, %v3981
      %v4135 = vadd.f32 %v3289, %v3984
      %v4136 = vadd.f32 %v3290, %v3986
      %v4137 = vadd.f32 %v3291, %v3989
      %v4138 = vadd.f32 %v3292, %v3991
      %v4139 = vadd.f32 %v3293, %v3994
      %v4140 = vadd.f32 %v3294, %v3996
      %v4141 = vadd.f32 %v3295, %v3999
      %v4142 = vadd.f32 %v3296, %v4001
      %v4143 = vadd.f32 %v3297, %v4004
      %v4144 = vadd.f32 %v3298, %v4006
      %v4145 = vadd.f32 %v3299, %v4009
      %v4146 = vadd.f32 %v3300, %v4011
      %v4147 = vadd.f32 %v3301, %v4014
      %v4148 = vadd.f32 %v3302, %v4016
      %v4149 = vadd.f32 %v3303, %v4019
      %v4150 = vadd.f32 %v3304, %v4021
      %v4151 = vld [vmem:[%s2458 + $0x2] sm:$0xff]
      %v4152 = vld [vmem:[%s2458 + $0xa] sm:$0xff]
      %v4153 = vld [vmem:[%s2458 + $0x12] sm:$0xff]
      %v4154 = vld [vmem:[%s2458 + $0x1a] sm:$0xff]
      %v4155 = vld [vmem:[%s2458 + $0x2a] sm:$0xff]
      %v4156 = vld [vmem:[%s2458 + $0x32] sm:$0xff]
      %v4157 = vld [vmem:[%s2458 + $0x3a] sm:$0xff]
      %v4158 = vld [vmem:[%s2458 + $0x42] sm:$0xff]
      %v4159 = vld [vmem:[%s2458 + $0x52] sm:$0xff]
      %v4160 = vld [vmem:[%s2458 + $0x5a] sm:$0xff]
      %v4161 = vld [vmem:[%s2458 + $0x62] sm:$0xff]
      %v4162 = vld [vmem:[%s2458 + $0x6a] sm:$0xff]
      %v4163 = vld [vmem:[%s2458 + $0x7a] sm:$0xff]
      %v4164 = vld [vmem:[%s2458 + $0x82] sm:$0xff]
      %v4165 = vld [vmem:[%s2458 + $0x8a] sm:$0xff]
      %v4166 = vld [vmem:[%s2458 + $0x92] sm:$0xff]
      %v4167 = vld [vmem:[%s2458 + $0xa2] sm:$0xff]
      %v4168 = vld [vmem:[%s2458 + $0xaa] sm:$0xff]
      %v4169 = vld [vmem:[%s2458 + $0xb2] sm:$0xff]
      %v4170 = vld [vmem:[%s2458 + $0xba] sm:$0xff]
      %v4171 = vld [vmem:[%s2458 + $0xca] sm:$0xff]
      %v4172 = vld [vmem:[%s2458 + $0xd2] sm:$0xff]
      %v4173 = vld [vmem:[%s2458 + $0xda] sm:$0xff]
      %v4174 = vld [vmem:[%s2458 + $0xe2] sm:$0xff]
      %v4175 = vld [vmem:[%s2458 + $0xf2] sm:$0xff]
      %v4176 = vld [vmem:[%s2458 + $0xfa] sm:$0xff]
      %v4177 = vld [vmem:[%s2458 + $0x102] sm:$0xff]
      %v4178 = vld [vmem:[%s2458 + $0x10a] sm:$0xff]
      %v4179 = vld [vmem:[%s2458 + $0x11a] sm:$0xff]
      %v4180 = vld [vmem:[%s2458 + $0x122] sm:$0xff]
      %v4181 = vld [vmem:[%s2458 + $0x12a] sm:$0xff]
      %v4182 = vld [vmem:[%s2458 + $0x132] sm:$0xff]
      %v4183 = vld [vmem:[%s2458 + $0x142] sm:$0xff]
      %v4184 = vld [vmem:[%s2458 + $0x14a] sm:$0xff]
      %v4185 = vld [vmem:[%s2458 + $0x152] sm:$0xff]
      %v4186 = vld [vmem:[%s2458 + $0x15a] sm:$0xff]
      %v4187 = vld [vmem:[%s2458 + $0x16a] sm:$0xff]
      %v4188 = vld [vmem:[%s2458 + $0x172] sm:$0xff]
      %v4189 = vld [vmem:[%s2458 + $0x17a] sm:$0xff]
      %v4190 = vld [vmem:[%s2458 + $0x182] sm:$0xff]
      %v4191 = vld [vmem:[%s2458 + $0x192] sm:$0xff]
      %v4192 = vld [vmem:[%s2458 + $0x19a] sm:$0xff]
      %v4193 = vld [vmem:[%s2458 + $0x1a2] sm:$0xff]
      %v4194 = vld [vmem:[%s2458 + $0x1aa] sm:$0xff]
      %v4195 = vld [vmem:[%s2458 + $0x1ba] sm:$0xff]
      %v4196 = vld [vmem:[%s2458 + $0x1c2] sm:$0xff]
      %v4197 = vld [vmem:[%s2458 + $0x1ca] sm:$0xff]
      %v4198 = vld [vmem:[%s2458 + $0x1d2] sm:$0xff]
      %v4199 = vld [vmem:[%s2458 + $0x1e2] sm:$0xff]
      %v4200 = vld [vmem:[%s2458 + $0x1ea] sm:$0xff]
      %v4201 = vld [vmem:[%s2458 + $0x1f2] sm:$0xff]
      %v4202 = vld [vmem:[%s2458 + $0x1fa] sm:$0xff]
      %v4203 = vld [vmem:[%s2458 + $0x20a] sm:$0xff]
      %v4204 = vld [vmem:[%s2458 + $0x212] sm:$0xff]
      %v4205 = vld [vmem:[%s2458 + $0x21a] sm:$0xff]
      %v4206 = vld [vmem:[%s2458 + $0x222] sm:$0xff]
      %v4207 = vld [vmem:[%s2458 + $0x232] sm:$0xff]
      %v4208 = vld [vmem:[%s2458 + $0x23a] sm:$0xff]
      %v4209 = vld [vmem:[%s2458 + $0x242] sm:$0xff]
      %v4210 = vld [vmem:[%s2458 + $0x24a] sm:$0xff]
      %v4211 = vld [vmem:[%s2458 + $0x25a] sm:$0xff]
      %v4212 = vld [vmem:[%s2458 + $0x262] sm:$0xff]
      %v4213 = vld [vmem:[%s2458 + $0x26a] sm:$0xff]
      %v4214 = vld [vmem:[%s2458 + $0x272] sm:$0xff]
      %v4215 = vld [vmem:[%s2458 + $0x282] sm:$0xff]
      %v4216 = vld [vmem:[%s2458 + $0x28a] sm:$0xff]
      %v4217 = vld [vmem:[%s2458 + $0x292] sm:$0xff]
      %v4218 = vld [vmem:[%s2458 + $0x29a] sm:$0xff]
      %v4219 = vld [vmem:[%s2458 + $0x2aa] sm:$0xff]
      %v4220 = vld [vmem:[%s2458 + $0x2b2] sm:$0xff]
      %v4221 = vld [vmem:[%s2458 + $0x2ba] sm:$0xff]
      %v4222 = vld [vmem:[%s2458 + $0x2c2] sm:$0xff]
      %v4223 = vld [vmem:[%s2458 + $0x2d2] sm:$0xff]
      %v4224 = vld [vmem:[%s2458 + $0x2da] sm:$0xff]
      %v4225 = vld [vmem:[%s2458 + $0x2e2] sm:$0xff]
      %v4226 = vld [vmem:[%s2458 + $0x2ea] sm:$0xff]
      %v4227 = vld [vmem:[%s2458 + $0x2fa] sm:$0xff]
      %v4228 = vld [vmem:[%s2458 + $0x302] sm:$0xff]
      %v4229 = vld [vmem:[%s2458 + $0x30a] sm:$0xff]
      %v4230 = vld [vmem:[%s2458 + $0x312] sm:$0xff]
      %v4231 = vld [vmem:[%s2458 + $0x322] sm:$0xff]
      %v4232 = vld [vmem:[%s2458 + $0x32a] sm:$0xff]
      %v4233 = vld [vmem:[%s2458 + $0x332] sm:$0xff]
      %v4234 = vld [vmem:[%s2458 + $0x33a] sm:$0xff]
      %v4235 = vld [vmem:[%s2458 + $0x34a] sm:$0xff]
      %v4236 = vld [vmem:[%s2458 + $0x352] sm:$0xff]
      %v4237 = vld [vmem:[%s2458 + $0x35a] sm:$0xff]
      %v4238 = vld [vmem:[%s2458 + $0x362] sm:$0xff]
      %v4239 = vld [vmem:[%s2458 + $0x372] sm:$0xff]
      %v4240 = vld [vmem:[%s2458 + $0x37a] sm:$0xff]
      %v4241 = vld [vmem:[%s2458 + $0x382] sm:$0xff]
      %v4242 = vld [vmem:[%s2458 + $0x38a] sm:$0xff]
      %v4243 = vld [vmem:[%s2458 + $0x39a] sm:$0xff]
      %v4244 = vld [vmem:[%s2458 + $0x3a2] sm:$0xff]
      %v4245 = vld [vmem:[%s2458 + $0x3aa] sm:$0xff]
      %v4246 = vld [vmem:[%s2458 + $0x3b2] sm:$0xff]
      %v4247 = vld [vmem:[%s2458 + $0x3c2] sm:$0xff]
      %v4248 = vld [vmem:[%s2458 + $0x3ca] sm:$0xff]
      %v4249 = vld [vmem:[%s2458 + $0x3d2] sm:$0xff]
      %v4250 = vld [vmem:[%s2458 + $0x3da] sm:$0xff]
      %v4251 = vld [vmem:[%s2458 + $0x3ea] sm:$0xff]
      %v4252 = vld [vmem:[%s2458 + $0x3f2] sm:$0xff]
      %v4253 = vld [vmem:[%s2458 + $0x3fa] sm:$0xff]
      %v4254 = vld [vmem:[%s2458 + $0x402] sm:$0xff]
      %v4255 = vld [vmem:[%s2458 + $0x412] sm:$0xff]
      %v4256 = vld [vmem:[%s2458 + $0x41a] sm:$0xff]
      %v4257 = vld [vmem:[%s2458 + $0x422] sm:$0xff]
      %v4258 = vld [vmem:[%s2458 + $0x42a] sm:$0xff]
      %v4259 = vld [vmem:[%s2458 + $0x43a] sm:$0xff]
      %v4260 = vld [vmem:[%s2458 + $0x442] sm:$0xff]
      %v4261 = vld [vmem:[%s2458 + $0x44a] sm:$0xff]
      %v4262 = vld [vmem:[%s2458 + $0x452] sm:$0xff]
      %v4263 = vld [vmem:[%s2458 + $0x462] sm:$0xff]
      %v4264 = vld [vmem:[%s2458 + $0x46a] sm:$0xff]
      %v4265 = vld [vmem:[%s2458 + $0x472] sm:$0xff]
      %v4266 = vld [vmem:[%s2458 + $0x47a] sm:$0xff]
      %v4267 = vld [vmem:[%s2458 + $0x48a] sm:$0xff]
      %v4268 = vld [vmem:[%s2458 + $0x492] sm:$0xff]
      %v4269 = vld [vmem:[%s2458 + $0x49a] sm:$0xff]
      %v4270 = vld [vmem:[%s2458 + $0x4a2] sm:$0xff]
      %v4271 = vld [vmem:[%s2458 + $0x4b2] sm:$0xff]
      %v4272 = vld [vmem:[%s2458 + $0x4ba] sm:$0xff]
      %v4273 = vld [vmem:[%s2458 + $0x4c2] sm:$0xff]
      %v4274 = vld [vmem:[%s2458 + $0x4ca] sm:$0xff]
      %v4275 = vld [vmem:[%s2458 + $0x4da] sm:$0xff]
      %v4276 = vld [vmem:[%s2458 + $0x4e2] sm:$0xff]
      %v4277 = vld [vmem:[%s2458 + $0x4ea] sm:$0xff]
      %v4278 = vld [vmem:[%s2458 + $0x4f2] sm:$0xff]
      %v4279 = vpack.c.bf16 %v4152, %v4151
      %v4280 = vpack.c.bf16 %v4154, %v4153
      %v4281 = vpack.c.bf16 %v4156, %v4155
      %v4282 = vpack.c.bf16 %v4158, %v4157
      %v4283 = vpack.c.bf16 %v4160, %v4159
      %v4284 = vpack.c.bf16 %v4162, %v4161
      %v4285 = vpack.c.bf16 %v4164, %v4163
      %v4286 = vpack.c.bf16 %v4166, %v4165
      %v4287 = vpack.c.bf16 %v4168, %v4167
      %v4288 = vpack.c.bf16 %v4170, %v4169
      %v4289 = vpack.c.bf16 %v4172, %v4171
      %v4290 = vpack.c.bf16 %v4174, %v4173
      %v4291 = vpack.c.bf16 %v4176, %v4175
      %v4292 = vpack.c.bf16 %v4178, %v4177
      %v4293 = vpack.c.bf16 %v4180, %v4179
      %v4294 = vpack.c.bf16 %v4182, %v4181
      %v4295 = vpack.c.bf16 %v4184, %v4183
      %v4296 = vpack.c.bf16 %v4186, %v4185
      %v4297 = vpack.c.bf16 %v4188, %v4187
      %v4298 = vpack.c.bf16 %v4190, %v4189
      %v4299 = vpack.c.bf16 %v4192, %v4191
      %v4300 = vpack.c.bf16 %v4194, %v4193
      %v4301 = vpack.c.bf16 %v4196, %v4195
      %v4302 = vpack.c.bf16 %v4198, %v4197
      %v4303 = vpack.c.bf16 %v4200, %v4199
      %v4304 = vpack.c.bf16 %v4202, %v4201
      %v4305 = vpack.c.bf16 %v4204, %v4203
      %v4306 = vpack.c.bf16 %v4206, %v4205
      %v4307 = vpack.c.bf16 %v4208, %v4207
      %v4308 = vpack.c.bf16 %v4210, %v4209
      %v4309 = vpack.c.bf16 %v4212, %v4211
      %v4310 = vpack.c.bf16 %v4214, %v4213
      %v4311 = vpack.c.bf16 %v4216, %v4215
      %v4312 = vpack.c.bf16 %v4218, %v4217
      %v4313 = vpack.c.bf16 %v4220, %v4219
      %v4314 = vpack.c.bf16 %v4222, %v4221
      %v4315 = vpack.c.bf16 %v4224, %v4223
      %v4316 = vpack.c.bf16 %v4226, %v4225
      %v4317 = vpack.c.bf16 %v4228, %v4227
      %v4318 = vpack.c.bf16 %v4230, %v4229
      %v4319 = vpack.c.bf16 %v4232, %v4231
      %v4320 = vpack.c.bf16 %v4234, %v4233
      %v4321 = vpack.c.bf16 %v4236, %v4235
      %v4322 = vpack.c.bf16 %v4238, %v4237
      %v4323 = vpack.c.bf16 %v4240, %v4239
      %v4324 = vpack.c.bf16 %v4242, %v4241
      %v4325 = vpack.c.bf16 %v4244, %v4243
      %v4326 = vpack.c.bf16 %v4246, %v4245
      %v4327 = vpack.c.bf16 %v4248, %v4247
      %v4328 = vpack.c.bf16 %v4250, %v4249
      %v4329 = vpack.c.bf16 %v4252, %v4251
      %v4330 = vpack.c.bf16 %v4254, %v4253
      %v4331 = vpack.c.bf16 %v4256, %v4255
      %v4332 = vpack.c.bf16 %v4258, %v4257
      %v4333 = vpack.c.bf16 %v4260, %v4259
      %v4334 = vpack.c.bf16 %v4262, %v4261
      %v4335 = vpack.c.bf16 %v4264, %v4263
      %v4336 = vpack.c.bf16 %v4266, %v4265
      %v4337 = vpack.c.bf16 %v4268, %v4267
      %v4338 = vpack.c.bf16 %v4270, %v4269
      %v4339 = vpack.c.bf16 %v4272, %v4271
      %v4340 = vpack.c.bf16 %v4274, %v4273
      %v4341 = vpack.c.bf16 %v4276, %v4275
      %v4342 = vpack.c.bf16 %v4278, %v4277
      %s4343 = scalar_lea.vmem %s1, 10
      %v4344 = vld [vmem:[%s4343] sm:$0x3]
      %v4346 = vsel %vm559, %v4279, 0
      %v4349 = vsel %vm559, %v4280, 0
      %v4352 = vsel %vm559, %v4281, 0
      %v4355 = vsel %vm559, %v4282, 0
      %v4358 = vsel %vm559, %v4283, 0
      %v4361 = vsel %vm559, %v4284, 0
      %v4364 = vsel %vm559, %v4285, 0
      %v4367 = vsel %vm559, %v4286, 0
      %v4370 = vsel %vm559, %v4287, 0
      %v4373 = vsel %vm559, %v4288, 0
      %v4376 = vsel %vm559, %v4289, 0
      %v4379 = vsel %vm559, %v4290, 0
      %v4382 = vsel %vm559, %v4291, 0
      %v4385 = vsel %vm559, %v4292, 0
      %v4388 = vsel %vm559, %v4293, 0
      %v4391 = vsel %vm559, %v4294, 0
      %v4394 = vsel %vm559, %v4295, 0
      %v4397 = vsel %vm559, %v4296, 0
      %v4400 = vsel %vm559, %v4297, 0
      %v4403 = vsel %vm559, %v4298, 0
      %v4406 = vsel %vm559, %v4299, 0
      %v4409 = vsel %vm559, %v4300, 0
      %v4412 = vsel %vm559, %v4301, 0
      %v4415 = vsel %vm559, %v4302, 0
      %v4418 = vsel %vm559, %v4303, 0
      %v4421 = vsel %vm559, %v4304, 0
      %v4424 = vsel %vm559, %v4305, 0
      %v4427 = vsel %vm559, %v4306, 0
      %v4430 = vsel %vm559, %v4307, 0
      %v4433 = vsel %vm559, %v4308, 0
      %v4436 = vsel %vm559, %v4309, 0
      %v4439 = vsel %vm559, %v4310, 0
      %v4442 = vsel %vm559, %v4311, 0
      %v4445 = vsel %vm559, %v4312, 0
      %v4448 = vsel %vm559, %v4313, 0
      %v4451 = vsel %vm559, %v4314, 0
      %v4454 = vsel %vm559, %v4315, 0
      %v4457 = vsel %vm559, %v4316, 0
      %v4460 = vsel %vm559, %v4317, 0
      %v4463 = vsel %vm559, %v4318, 0
      %v4466 = vsel %vm559, %v4319, 0
      %v4469 = vsel %vm559, %v4320, 0
      %v4472 = vsel %vm559, %v4321, 0
      %v4475 = vsel %vm559, %v4322, 0
      %v4478 = vsel %vm559, %v4323, 0
      %v4481 = vsel %vm559, %v4324, 0
      %v4484 = vsel %vm559, %v4325, 0
      %v4487 = vsel %vm559, %v4326, 0
      %v4490 = vsel %vm559, %v4327, 0
      %v4493 = vsel %vm559, %v4328, 0
      %v4496 = vsel %vm559, %v4329, 0
      %v4499 = vsel %vm559, %v4330, 0
      %v4502 = vsel %vm559, %v4331, 0
      %v4505 = vsel %vm559, %v4332, 0
      %v4508 = vsel %vm559, %v4333, 0
      %v4511 = vsel %vm559, %v4334, 0
      %v4514 = vsel %vm559, %v4335, 0
      %v4517 = vsel %vm559, %v4336, 0
      %v4520 = vsel %vm559, %v4337, 0
      %v4523 = vsel %vm559, %v4338, 0
      %v4526 = vsel %vm559, %v4339, 0
      %v4529 = vsel %vm559, %v4340, 0
      %v4532 = vsel %vm559, %v4341, 0
      %v4535 = vsel %vm559, %v4342, 0
      %v4538 = vand.u32 %v4344, %v755
      %4540 = vmatpush.bf16.msra.mxu0 0
      %4541 = vmatpush.bf16.msra.mxu0 0
      %4542 = vmatpush.bf16.msra.mxu0 0
      %4543 = vmatpush.bf16.msra.mxu0 0
      %4544 = vmatpush.bf16.msra.mxu0 0
      %4545 = vmatpush.bf16.msra.mxu0 0
      %4546 = vmatpush.bf16.msra.mxu0 0
      %4547 = vmatpush.bf16.msra.mxu0 %v4538
      %4548 = vmatmul.bf16.gmra.mxu0 %v4346
      %v4549 = vpop.f32.mrf.mxu0
      %v4550 = vadd.f32 0.0, %v4549
      %v4551 = vpop.f32.mrf.mxu0
      %v4552 = vadd.f32 0.0, %v4551
      %4553 = vmatmul.bf16.gmra.mxu0 %v4349
      %v4554 = vpop.f32.mrf.mxu0
      %v4555 = vadd.f32 0.0, %v4554
      %v4556 = vpop.f32.mrf.mxu0
      %v4557 = vadd.f32 0.0, %v4556
      %4558 = vmatmul.bf16.gmra.mxu0 %v4352
      %v4559 = vpop.f32.mrf.mxu0
      %v4560 = vadd.f32 0.0, %v4559
      %v4561 = vpop.f32.mrf.mxu0
      %v4562 = vadd.f32 0.0, %v4561
      %4563 = vmatmul.bf16.gmra.mxu0 %v4355
      %v4564 = vpop.f32.mrf.mxu0
      %v4565 = vadd.f32 0.0, %v4564
      %v4566 = vpop.f32.mrf.mxu0
      %v4567 = vadd.f32 0.0, %v4566
      %4568 = vmatmul.bf16.gmra.mxu0 %v4358
      %v4569 = vpop.f32.mrf.mxu0
      %v4570 = vadd.f32 0.0, %v4569
      %v4571 = vpop.f32.mrf.mxu0
      %v4572 = vadd.f32 0.0, %v4571
      %4573 = vmatmul.bf16.gmra.mxu0 %v4361
      %v4574 = vpop.f32.mrf.mxu0
      %v4575 = vadd.f32 0.0, %v4574
      %v4576 = vpop.f32.mrf.mxu0
      %v4577 = vadd.f32 0.0, %v4576
      %4578 = vmatmul.bf16.gmra.mxu0 %v4364
      %v4579 = vpop.f32.mrf.mxu0
      %v4580 = vadd.f32 0.0, %v4579
      %v4581 = vpop.f32.mrf.mxu0
      %v4582 = vadd.f32 0.0, %v4581
      %4583 = vmatmul.bf16.gmra.mxu0 %v4367
      %v4584 = vpop.f32.mrf.mxu0
      %v4585 = vadd.f32 0.0, %v4584
      %v4586 = vpop.f32.mrf.mxu0
      %v4587 = vadd.f32 0.0, %v4586
      %4588 = vmatmul.bf16.gmra.mxu0 %v4370
      %v4589 = vpop.f32.mrf.mxu0
      %v4590 = vadd.f32 0.0, %v4589
      %v4591 = vpop.f32.mrf.mxu0
      %v4592 = vadd.f32 0.0, %v4591
      %4593 = vmatmul.bf16.gmra.mxu0 %v4373
      %v4594 = vpop.f32.mrf.mxu0
      %v4595 = vadd.f32 0.0, %v4594
      %v4596 = vpop.f32.mrf.mxu0
      %v4597 = vadd.f32 0.0, %v4596
      %4598 = vmatmul.bf16.gmra.mxu0 %v4376
      %v4599 = vpop.f32.mrf.mxu0
      %v4600 = vadd.f32 0.0, %v4599
      %v4601 = vpop.f32.mrf.mxu0
      %v4602 = vadd.f32 0.0, %v4601
      %4603 = vmatmul.bf16.gmra.mxu0 %v4379
      %v4604 = vpop.f32.mrf.mxu0
      %v4605 = vadd.f32 0.0, %v4604
      %v4606 = vpop.f32.mrf.mxu0
      %v4607 = vadd.f32 0.0, %v4606
      %4608 = vmatmul.bf16.gmra.mxu0 %v4382
      %v4609 = vpop.f32.mrf.mxu0
      %v4610 = vadd.f32 0.0, %v4609
      %v4611 = vpop.f32.mrf.mxu0
      %v4612 = vadd.f32 0.0, %v4611
      %4613 = vmatmul.bf16.gmra.mxu0 %v4385
      %v4614 = vpop.f32.mrf.mxu0
      %v4615 = vadd.f32 0.0, %v4614
      %v4616 = vpop.f32.mrf.mxu0
      %v4617 = vadd.f32 0.0, %v4616
      %4618 = vmatmul.bf16.gmra.mxu0 %v4388
      %v4619 = vpop.f32.mrf.mxu0
      %v4620 = vadd.f32 0.0, %v4619
      %v4621 = vpop.f32.mrf.mxu0
      %v4622 = vadd.f32 0.0, %v4621
      %4623 = vmatmul.bf16.gmra.mxu0 %v4391
      %v4624 = vpop.f32.mrf.mxu0
      %v4625 = vadd.f32 0.0, %v4624
      %v4626 = vpop.f32.mrf.mxu0
      %v4627 = vadd.f32 0.0, %v4626
      %4628 = vmatmul.bf16.gmra.mxu0 %v4394
      %v4629 = vpop.f32.mrf.mxu0
      %v4630 = vadd.f32 0.0, %v4629
      %v4631 = vpop.f32.mrf.mxu0
      %v4632 = vadd.f32 0.0, %v4631
      %4633 = vmatmul.bf16.gmra.mxu0 %v4397
      %v4634 = vpop.f32.mrf.mxu0
      %v4635 = vadd.f32 0.0, %v4634
      %v4636 = vpop.f32.mrf.mxu0
      %v4637 = vadd.f32 0.0, %v4636
      %4638 = vmatmul.bf16.gmra.mxu0 %v4400
      %v4639 = vpop.f32.mrf.mxu0
      %v4640 = vadd.f32 0.0, %v4639
      %v4641 = vpop.f32.mrf.mxu0
      %v4642 = vadd.f32 0.0, %v4641
      %4643 = vmatmul.bf16.gmra.mxu0 %v4403
      %v4644 = vpop.f32.mrf.mxu0
      %v4645 = vadd.f32 0.0, %v4644
      %v4646 = vpop.f32.mrf.mxu0
      %v4647 = vadd.f32 0.0, %v4646
      %4648 = vmatmul.bf16.gmra.mxu0 %v4406
      %v4649 = vpop.f32.mrf.mxu0
      %v4650 = vadd.f32 0.0, %v4649
      %v4651 = vpop.f32.mrf.mxu0
      %v4652 = vadd.f32 0.0, %v4651
      %4653 = vmatmul.bf16.gmra.mxu0 %v4409
      %v4654 = vpop.f32.mrf.mxu0
      %v4655 = vadd.f32 0.0, %v4654
      %v4656 = vpop.f32.mrf.mxu0
      %v4657 = vadd.f32 0.0, %v4656
      %4658 = vmatmul.bf16.gmra.mxu0 %v4412
      %v4659 = vpop.f32.mrf.mxu0
      %v4660 = vadd.f32 0.0, %v4659
      %v4661 = vpop.f32.mrf.mxu0
      %v4662 = vadd.f32 0.0, %v4661
      %4663 = vmatmul.bf16.gmra.mxu0 %v4415
      %v4664 = vpop.f32.mrf.mxu0
      %v4665 = vadd.f32 0.0, %v4664
      %v4666 = vpop.f32.mrf.mxu0
      %v4667 = vadd.f32 0.0, %v4666
      %4668 = vmatmul.bf16.gmra.mxu0 %v4418
      %v4669 = vpop.f32.mrf.mxu0
      %v4670 = vadd.f32 0.0, %v4669
      %v4671 = vpop.f32.mrf.mxu0
      %v4672 = vadd.f32 0.0, %v4671
      %4673 = vmatmul.bf16.gmra.mxu0 %v4421
      %v4674 = vpop.f32.mrf.mxu0
      %v4675 = vadd.f32 0.0, %v4674
      %v4676 = vpop.f32.mrf.mxu0
      %v4677 = vadd.f32 0.0, %v4676
      %4678 = vmatmul.bf16.gmra.mxu0 %v4424
      %v4679 = vpop.f32.mrf.mxu0
      %v4680 = vadd.f32 0.0, %v4679
      %v4681 = vpop.f32.mrf.mxu0
      %v4682 = vadd.f32 0.0, %v4681
      %4683 = vmatmul.bf16.gmra.mxu0 %v4427
      %v4684 = vpop.f32.mrf.mxu0
      %v4685 = vadd.f32 0.0, %v4684
      %v4686 = vpop.f32.mrf.mxu0
      %v4687 = vadd.f32 0.0, %v4686
      %4688 = vmatmul.bf16.gmra.mxu0 %v4430
      %v4689 = vpop.f32.mrf.mxu0
      %v4690 = vadd.f32 0.0, %v4689
      %v4691 = vpop.f32.mrf.mxu0
      %v4692 = vadd.f32 0.0, %v4691
      %4693 = vmatmul.bf16.gmra.mxu0 %v4433
      %v4694 = vpop.f32.mrf.mxu0
      %v4695 = vadd.f32 0.0, %v4694
      %v4696 = vpop.f32.mrf.mxu0
      %v4697 = vadd.f32 0.0, %v4696
      %4698 = vmatmul.bf16.gmra.mxu0 %v4436
      %v4699 = vpop.f32.mrf.mxu0
      %v4700 = vadd.f32 0.0, %v4699
      %v4701 = vpop.f32.mrf.mxu0
      %v4702 = vadd.f32 0.0, %v4701
      %4703 = vmatmul.bf16.gmra.mxu0 %v4439
      %v4704 = vpop.f32.mrf.mxu0
      %v4705 = vadd.f32 0.0, %v4704
      %v4706 = vpop.f32.mrf.mxu0
      %v4707 = vadd.f32 0.0, %v4706
      %4708 = vmatmul.bf16.gmra.mxu0 %v4442
      %v4709 = vpop.f32.mrf.mxu0
      %v4710 = vadd.f32 0.0, %v4709
      %v4711 = vpop.f32.mrf.mxu0
      %v4712 = vadd.f32 0.0, %v4711
      %4713 = vmatmul.bf16.gmra.mxu0 %v4445
      %v4714 = vpop.f32.mrf.mxu0
      %v4715 = vadd.f32 0.0, %v4714
      %v4716 = vpop.f32.mrf.mxu0
      %v4717 = vadd.f32 0.0, %v4716
      %4718 = vmatmul.bf16.gmra.mxu0 %v4448
      %v4719 = vpop.f32.mrf.mxu0
      %v4720 = vadd.f32 0.0, %v4719
      %v4721 = vpop.f32.mrf.mxu0
      %v4722 = vadd.f32 0.0, %v4721
      %4723 = vmatmul.bf16.gmra.mxu0 %v4451
      %v4724 = vpop.f32.mrf.mxu0
      %v4725 = vadd.f32 0.0, %v4724
      %v4726 = vpop.f32.mrf.mxu0
      %v4727 = vadd.f32 0.0, %v4726
      %4728 = vmatmul.bf16.gmra.mxu0 %v4454
      %v4729 = vpop.f32.mrf.mxu0
      %v4730 = vadd.f32 0.0, %v4729
      %v4731 = vpop.f32.mrf.mxu0
      %v4732 = vadd.f32 0.0, %v4731
      %4733 = vmatmul.bf16.gmra.mxu0 %v4457
      %v4734 = vpop.f32.mrf.mxu0
      %v4735 = vadd.f32 0.0, %v4734
      %v4736 = vpop.f32.mrf.mxu0
      %v4737 = vadd.f32 0.0, %v4736
      %4738 = vmatmul.bf16.gmra.mxu0 %v4460
      %v4739 = vpop.f32.mrf.mxu0
      %v4740 = vadd.f32 0.0, %v4739
      %v4741 = vpop.f32.mrf.mxu0
      %v4742 = vadd.f32 0.0, %v4741
      %4743 = vmatmul.bf16.gmra.mxu0 %v4463
      %v4744 = vpop.f32.mrf.mxu0
      %v4745 = vadd.f32 0.0, %v4744
      %v4746 = vpop.f32.mrf.mxu0
      %v4747 = vadd.f32 0.0, %v4746
      %4748 = vmatmul.bf16.gmra.mxu0 %v4466
      %v4749 = vpop.f32.mrf.mxu0
      %v4750 = vadd.f32 0.0, %v4749
      %v4751 = vpop.f32.mrf.mxu0
      %v4752 = vadd.f32 0.0, %v4751
      %4753 = vmatmul.bf16.gmra.mxu0 %v4469
      %v4754 = vpop.f32.mrf.mxu0
      %v4755 = vadd.f32 0.0, %v4754
      %v4756 = vpop.f32.mrf.mxu0
      %v4757 = vadd.f32 0.0, %v4756
      %4758 = vmatmul.bf16.gmra.mxu0 %v4472
      %v4759 = vpop.f32.mrf.mxu0
      %v4760 = vadd.f32 0.0, %v4759
      %v4761 = vpop.f32.mrf.mxu0
      %v4762 = vadd.f32 0.0, %v4761
      %4763 = vmatmul.bf16.gmra.mxu0 %v4475
      %v4764 = vpop.f32.mrf.mxu0
      %v4765 = vadd.f32 0.0, %v4764
      %v4766 = vpop.f32.mrf.mxu0
      %v4767 = vadd.f32 0.0, %v4766
      %4768 = vmatmul.bf16.gmra.mxu0 %v4478
      %v4769 = vpop.f32.mrf.mxu0
      %v4770 = vadd.f32 0.0, %v4769
      %v4771 = vpop.f32.mrf.mxu0
      %v4772 = vadd.f32 0.0, %v4771
      %4773 = vmatmul.bf16.gmra.mxu0 %v4481
      %v4774 = vpop.f32.mrf.mxu0
      %v4775 = vadd.f32 0.0, %v4774
      %v4776 = vpop.f32.mrf.mxu0
      %v4777 = vadd.f32 0.0, %v4776
      %4778 = vmatmul.bf16.gmra.mxu0 %v4484
      %v4779 = vpop.f32.mrf.mxu0
      %v4780 = vadd.f32 0.0, %v4779
      %v4781 = vpop.f32.mrf.mxu0
      %v4782 = vadd.f32 0.0, %v4781
      %4783 = vmatmul.bf16.gmra.mxu0 %v4487
      %v4784 = vpop.f32.mrf.mxu0
      %v4785 = vadd.f32 0.0, %v4784
      %v4786 = vpop.f32.mrf.mxu0
      %v4787 = vadd.f32 0.0, %v4786
      %4788 = vmatmul.bf16.gmra.mxu0 %v4490
      %v4789 = vpop.f32.mrf.mxu0
      %v4790 = vadd.f32 0.0, %v4789
      %v4791 = vpop.f32.mrf.mxu0
      %v4792 = vadd.f32 0.0, %v4791
      %4793 = vmatmul.bf16.gmra.mxu0 %v4493
      %v4794 = vpop.f32.mrf.mxu0
      %v4795 = vadd.f32 0.0, %v4794
      %v4796 = vpop.f32.mrf.mxu0
      %v4797 = vadd.f32 0.0, %v4796
      %4798 = vmatmul.bf16.gmra.mxu0 %v4496
      %v4799 = vpop.f32.mrf.mxu0
      %v4800 = vadd.f32 0.0, %v4799
      %v4801 = vpop.f32.mrf.mxu0
      %v4802 = vadd.f32 0.0, %v4801
      %4803 = vmatmul.bf16.gmra.mxu0 %v4499
      %v4804 = vpop.f32.mrf.mxu0
      %v4805 = vadd.f32 0.0, %v4804
      %v4806 = vpop.f32.mrf.mxu0
      %v4807 = vadd.f32 0.0, %v4806
      %4808 = vmatmul.bf16.gmra.mxu0 %v4502
      %v4809 = vpop.f32.mrf.mxu0
      %v4810 = vadd.f32 0.0, %v4809
      %v4811 = vpop.f32.mrf.mxu0
      %v4812 = vadd.f32 0.0, %v4811
      %4813 = vmatmul.bf16.gmra.mxu0 %v4505
      %v4814 = vpop.f32.mrf.mxu0
      %v4815 = vadd.f32 0.0, %v4814
      %v4816 = vpop.f32.mrf.mxu0
      %v4817 = vadd.f32 0.0, %v4816
      %4818 = vmatmul.bf16.gmra.mxu0 %v4508
      %v4819 = vpop.f32.mrf.mxu0
      %v4820 = vadd.f32 0.0, %v4819
      %v4821 = vpop.f32.mrf.mxu0
      %v4822 = vadd.f32 0.0, %v4821
      %4823 = vmatmul.bf16.gmra.mxu0 %v4511
      %v4824 = vpop.f32.mrf.mxu0
      %v4825 = vadd.f32 0.0, %v4824
      %v4826 = vpop.f32.mrf.mxu0
      %v4827 = vadd.f32 0.0, %v4826
      %4828 = vmatmul.bf16.gmra.mxu0 %v4514
      %v4829 = vpop.f32.mrf.mxu0
      %v4830 = vadd.f32 0.0, %v4829
      %v4831 = vpop.f32.mrf.mxu0
      %v4832 = vadd.f32 0.0, %v4831
      %4833 = vmatmul.bf16.gmra.mxu0 %v4517
      %v4834 = vpop.f32.mrf.mxu0
      %v4835 = vadd.f32 0.0, %v4834
      %v4836 = vpop.f32.mrf.mxu0
      %v4837 = vadd.f32 0.0, %v4836
      %4838 = vmatmul.bf16.gmra.mxu0 %v4520
      %v4839 = vpop.f32.mrf.mxu0
      %v4840 = vadd.f32 0.0, %v4839
      %v4841 = vpop.f32.mrf.mxu0
      %v4842 = vadd.f32 0.0, %v4841
      %4843 = vmatmul.bf16.gmra.mxu0 %v4523
      %v4844 = vpop.f32.mrf.mxu0
      %v4845 = vadd.f32 0.0, %v4844
      %v4846 = vpop.f32.mrf.mxu0
      %v4847 = vadd.f32 0.0, %v4846
      %4848 = vmatmul.bf16.gmra.mxu0 %v4526
      %v4849 = vpop.f32.mrf.mxu0
      %v4850 = vadd.f32 0.0, %v4849
      %v4851 = vpop.f32.mrf.mxu0
      %v4852 = vadd.f32 0.0, %v4851
      %4853 = vmatmul.bf16.gmra.mxu0 %v4529
      %v4854 = vpop.f32.mrf.mxu0
      %v4855 = vadd.f32 0.0, %v4854
      %v4856 = vpop.f32.mrf.mxu0
      %v4857 = vadd.f32 0.0, %v4856
      %4858 = vmatmul.bf16.gmra.mxu0 %v4532
      %v4859 = vpop.f32.mrf.mxu0
      %v4860 = vadd.f32 0.0, %v4859
      %v4861 = vpop.f32.mrf.mxu0
      %v4862 = vadd.f32 0.0, %v4861
      %4863 = vmatmul.bf16.gmra.mxu0 %v4535
      %v4864 = vpop.f32.mrf.mxu0
      %v4865 = vadd.f32 0.0, %v4864
      %v4866 = vpop.f32.mrf.mxu0
      %v4867 = vadd.f32 0.0, %v4866
      %4868 = vdwg.mxu0
      %v4869 = vadd.f32 %v4023, %v4550
      %v4870 = vadd.f32 %v4024, %v4552
      %v4871 = vadd.f32 %v4025, %v4555
      %v4872 = vadd.f32 %v4026, %v4557
      %v4873 = vadd.f32 %v4027, %v4560
      %v4874 = vadd.f32 %v4028, %v4562
      %v4875 = vadd.f32 %v4029, %v4565
      %v4876 = vadd.f32 %v4030, %v4567
      %v4877 = vadd.f32 %v4031, %v4570
      %v4878 = vadd.f32 %v4032, %v4572
      %v4879 = vadd.f32 %v4033, %v4575
      %v4880 = vadd.f32 %v4034, %v4577
      %v4881 = vadd.f32 %v4035, %v4580
      %v4882 = vadd.f32 %v4036, %v4582
      %v4883 = vadd.f32 %v4037, %v4585
      %v4884 = vadd.f32 %v4038, %v4587
      %v4885 = vadd.f32 %v4039, %v4590
      %v4886 = vadd.f32 %v4040, %v4592
      %v4887 = vadd.f32 %v4041, %v4595
      %v4888 = vadd.f32 %v4042, %v4597
      %v4889 = vadd.f32 %v4043, %v4600
      %v4890 = vadd.f32 %v4044, %v4602
      %v4891 = vadd.f32 %v4045, %v4605
      %v4892 = vadd.f32 %v4046, %v4607
      %v4893 = vadd.f32 %v4047, %v4610
      %v4894 = vadd.f32 %v4048, %v4612
      %v4895 = vadd.f32 %v4049, %v4615
      %v4896 = vadd.f32 %v4050, %v4617
      %v4897 = vadd.f32 %v4051, %v4620
      %v4898 = vadd.f32 %v4052, %v4622
      %v4899 = vadd.f32 %v4053, %v4625
      %v4900 = vadd.f32 %v4054, %v4627
      %v4901 = vadd.f32 %v4055, %v4630
      %v4902 = vadd.f32 %v4056, %v4632
      %v4903 = vadd.f32 %v4057, %v4635
      %v4904 = vadd.f32 %v4058, %v4637
      %v4905 = vadd.f32 %v4059, %v4640
      %v4906 = vadd.f32 %v4060, %v4642
      %v4907 = vadd.f32 %v4061, %v4645
      %v4908 = vadd.f32 %v4062, %v4647
      %v4909 = vadd.f32 %v4063, %v4650
      %v4910 = vadd.f32 %v4064, %v4652
      %v4911 = vadd.f32 %v4065, %v4655
      %v4912 = vadd.f32 %v4066, %v4657
      %v4913 = vadd.f32 %v4067, %v4660
      %v4914 = vadd.f32 %v4068, %v4662
      %v4915 = vadd.f32 %v4069, %v4665
      %v4916 = vadd.f32 %v4070, %v4667
      %v4917 = vadd.f32 %v4071, %v4670
      %v4918 = vadd.f32 %v4072, %v4672
      %v4919 = vadd.f32 %v4073, %v4675
      %v4920 = vadd.f32 %v4074, %v4677
      %v4921 = vadd.f32 %v4075, %v4680
      %v4922 = vadd.f32 %v4076, %v4682
      %v4923 = vadd.f32 %v4077, %v4685
      %v4924 = vadd.f32 %v4078, %v4687
      %v4925 = vadd.f32 %v4079, %v4690
      %v4926 = vadd.f32 %v4080, %v4692
      %v4927 = vadd.f32 %v4081, %v4695
      %v4928 = vadd.f32 %v4082, %v4697
      %v4929 = vadd.f32 %v4083, %v4700
      %v4930 = vadd.f32 %v4084, %v4702
      %v4931 = vadd.f32 %v4085, %v4705
      %v4932 = vadd.f32 %v4086, %v4707
      %v4933 = vadd.f32 %v4087, %v4710
      %v4934 = vadd.f32 %v4088, %v4712
      %v4935 = vadd.f32 %v4089, %v4715
      %v4936 = vadd.f32 %v4090, %v4717
      %v4937 = vadd.f32 %v4091, %v4720
      %v4938 = vadd.f32 %v4092, %v4722
      %v4939 = vadd.f32 %v4093, %v4725
      %v4940 = vadd.f32 %v4094, %v4727
      %v4941 = vadd.f32 %v4095, %v4730
      %v4942 = vadd.f32 %v4096, %v4732
      %v4943 = vadd.f32 %v4097, %v4735
      %v4944 = vadd.f32 %v4098, %v4737
      %v4945 = vadd.f32 %v4099, %v4740
      %v4946 = vadd.f32 %v4100, %v4742
      %v4947 = vadd.f32 %v4101, %v4745
      %v4948 = vadd.f32 %v4102, %v4747
      %v4949 = vadd.f32 %v4103, %v4750
      %v4950 = vadd.f32 %v4104, %v4752
      %v4951 = vadd.f32 %v4105, %v4755
      %v4952 = vadd.f32 %v4106, %v4757
      %v4953 = vadd.f32 %v4107, %v4760
      %v4954 = vadd.f32 %v4108, %v4762
      %v4955 = vadd.f32 %v4109, %v4765
      %v4956 = vadd.f32 %v4110, %v4767
      %v4957 = vadd.f32 %v4111, %v4770
      %v4958 = vadd.f32 %v4112, %v4772
      %v4959 = vadd.f32 %v4113, %v4775
      %v4960 = vadd.f32 %v4114, %v4777
      %v4961 = vadd.f32 %v4115, %v4780
      %v4962 = vadd.f32 %v4116, %v4782
      %v4963 = vadd.f32 %v4117, %v4785
      %v4964 = vadd.f32 %v4118, %v4787
      %v4965 = vadd.f32 %v4119, %v4790
      %v4966 = vadd.f32 %v4120, %v4792
      %v4967 = vadd.f32 %v4121, %v4795
      %v4968 = vadd.f32 %v4122, %v4797
      %v4969 = vadd.f32 %v4123, %v4800
      %v4970 = vadd.f32 %v4124, %v4802
      %v4971 = vadd.f32 %v4125, %v4805
      %v4972 = vadd.f32 %v4126, %v4807
      %v4973 = vadd.f32 %v4127, %v4810
      %v4974 = vadd.f32 %v4128, %v4812
      %v4975 = vadd.f32 %v4129, %v4815
      %v4976 = vadd.f32 %v4130, %v4817
      %v4977 = vadd.f32 %v4131, %v4820
      %v4978 = vadd.f32 %v4132, %v4822
      %v4979 = vadd.f32 %v4133, %v4825
      %v4980 = vadd.f32 %v4134, %v4827
      %v4981 = vadd.f32 %v4135, %v4830
      %v4982 = vadd.f32 %v4136, %v4832
      %v4983 = vadd.f32 %v4137, %v4835
      %v4984 = vadd.f32 %v4138, %v4837
      %v4985 = vadd.f32 %v4139, %v4840
      %v4986 = vadd.f32 %v4140, %v4842
      %v4987 = vadd.f32 %v4141, %v4845
      %v4988 = vadd.f32 %v4142, %v4847
      %v4989 = vadd.f32 %v4143, %v4850
      %v4990 = vadd.f32 %v4144, %v4852
      %v4991 = vadd.f32 %v4145, %v4855
      %v4992 = vadd.f32 %v4146, %v4857
      %v4993 = vadd.f32 %v4147, %v4860
      %v4994 = vadd.f32 %v4148, %v4862
      %v4995 = vadd.f32 %v4149, %v4865
      %v4996 = vadd.f32 %v4150, %v4867
      %s4997 = scalar_lea.vmem %s165, 80
      %v4998 = vld [vmem:[%s4997] sm:$0xff]
      %v4999 = vld [vmem:[%s4997 + $0x8] sm:$0xff]
      %v5000 = vld [vmem:[%s4997 + $0x10] sm:$0xff]
      %v5001 = vld [vmem:[%s4997 + $0x18] sm:$0xff]
      %v5002 = vld [vmem:[%s4997 + $0x28] sm:$0xff]
      %v5003 = vld [vmem:[%s4997 + $0x30] sm:$0xff]
      %v5004 = vld [vmem:[%s4997 + $0x38] sm:$0xff]
      %v5005 = vld [vmem:[%s4997 + $0x40] sm:$0xff]
      %v5006 = vld [vmem:[%s4997 + $0x50] sm:$0xff]
      %v5007 = vld [vmem:[%s4997 + $0x58] sm:$0xff]
      %v5008 = vld [vmem:[%s4997 + $0x60] sm:$0xff]
      %v5009 = vld [vmem:[%s4997 + $0x68] sm:$0xff]
      %v5010 = vld [vmem:[%s4997 + $0x78] sm:$0xff]
      %v5011 = vld [vmem:[%s4997 + $0x80] sm:$0xff]
      %v5012 = vld [vmem:[%s4997 + $0x88] sm:$0xff]
      %v5013 = vld [vmem:[%s4997 + $0x90] sm:$0xff]
      %v5014 = vld [vmem:[%s4997 + $0xa0] sm:$0xff]
      %v5015 = vld [vmem:[%s4997 + $0xa8] sm:$0xff]
      %v5016 = vld [vmem:[%s4997 + $0xb0] sm:$0xff]
      %v5017 = vld [vmem:[%s4997 + $0xb8] sm:$0xff]
      %v5018 = vld [vmem:[%s4997 + $0xc8] sm:$0xff]
      %v5019 = vld [vmem:[%s4997 + $0xd0] sm:$0xff]
      %v5020 = vld [vmem:[%s4997 + $0xd8] sm:$0xff]
      %v5021 = vld [vmem:[%s4997 + $0xe0] sm:$0xff]
      %v5022 = vld [vmem:[%s4997 + $0xf0] sm:$0xff]
      %v5023 = vld [vmem:[%s4997 + $0xf8] sm:$0xff]
      %v5024 = vld [vmem:[%s4997 + $0x100] sm:$0xff]
      %v5025 = vld [vmem:[%s4997 + $0x108] sm:$0xff]
      %v5026 = vld [vmem:[%s4997 + $0x118] sm:$0xff]
      %v5027 = vld [vmem:[%s4997 + $0x120] sm:$0xff]
      %v5028 = vld [vmem:[%s4997 + $0x128] sm:$0xff]
      %v5029 = vld [vmem:[%s4997 + $0x130] sm:$0xff]
      %v5030 = vld [vmem:[%s4997 + $0x140] sm:$0xff]
      %v5031 = vld [vmem:[%s4997 + $0x148] sm:$0xff]
      %v5032 = vld [vmem:[%s4997 + $0x150] sm:$0xff]
      %v5033 = vld [vmem:[%s4997 + $0x158] sm:$0xff]
      %v5034 = vld [vmem:[%s4997 + $0x168] sm:$0xff]
      %v5035 = vld [vmem:[%s4997 + $0x170] sm:$0xff]
      %v5036 = vld [vmem:[%s4997 + $0x178] sm:$0xff]
      %v5037 = vld [vmem:[%s4997 + $0x180] sm:$0xff]
      %v5038 = vld [vmem:[%s4997 + $0x190] sm:$0xff]
      %v5039 = vld [vmem:[%s4997 + $0x198] sm:$0xff]
      %v5040 = vld [vmem:[%s4997 + $0x1a0] sm:$0xff]
      %v5041 = vld [vmem:[%s4997 + $0x1a8] sm:$0xff]
      %v5042 = vld [vmem:[%s4997 + $0x1b8] sm:$0xff]
      %v5043 = vld [vmem:[%s4997 + $0x1c0] sm:$0xff]
      %v5044 = vld [vmem:[%s4997 + $0x1c8] sm:$0xff]
      %v5045 = vld [vmem:[%s4997 + $0x1d0] sm:$0xff]
      %v5046 = vld [vmem:[%s4997 + $0x1e0] sm:$0xff]
      %v5047 = vld [vmem:[%s4997 + $0x1e8] sm:$0xff]
      %v5048 = vld [vmem:[%s4997 + $0x1f0] sm:$0xff]
      %v5049 = vld [vmem:[%s4997 + $0x1f8] sm:$0xff]
      %v5050 = vld [vmem:[%s4997 + $0x208] sm:$0xff]
      %v5051 = vld [vmem:[%s4997 + $0x210] sm:$0xff]
      %v5052 = vld [vmem:[%s4997 + $0x218] sm:$0xff]
      %v5053 = vld [vmem:[%s4997 + $0x220] sm:$0xff]
      %v5054 = vld [vmem:[%s4997 + $0x230] sm:$0xff]
      %v5055 = vld [vmem:[%s4997 + $0x238] sm:$0xff]
      %v5056 = vld [vmem:[%s4997 + $0x240] sm:$0xff]
      %v5057 = vld [vmem:[%s4997 + $0x248] sm:$0xff]
      %v5058 = vld [vmem:[%s4997 + $0x258] sm:$0xff]
      %v5059 = vld [vmem:[%s4997 + $0x260] sm:$0xff]
      %v5060 = vld [vmem:[%s4997 + $0x268] sm:$0xff]
      %v5061 = vld [vmem:[%s4997 + $0x270] sm:$0xff]
      %v5062 = vld [vmem:[%s4997 + $0x280] sm:$0xff]
      %v5063 = vld [vmem:[%s4997 + $0x288] sm:$0xff]
      %v5064 = vld [vmem:[%s4997 + $0x290] sm:$0xff]
      %v5065 = vld [vmem:[%s4997 + $0x298] sm:$0xff]
      %v5066 = vld [vmem:[%s4997 + $0x2a8] sm:$0xff]
      %v5067 = vld [vmem:[%s4997 + $0x2b0] sm:$0xff]
      %v5068 = vld [vmem:[%s4997 + $0x2b8] sm:$0xff]
      %v5069 = vld [vmem:[%s4997 + $0x2c0] sm:$0xff]
      %v5070 = vld [vmem:[%s4997 + $0x2d0] sm:$0xff]
      %v5071 = vld [vmem:[%s4997 + $0x2d8] sm:$0xff]
      %v5072 = vld [vmem:[%s4997 + $0x2e0] sm:$0xff]
      %v5073 = vld [vmem:[%s4997 + $0x2e8] sm:$0xff]
      %v5074 = vld [vmem:[%s4997 + $0x2f8] sm:$0xff]
      %v5075 = vld [vmem:[%s4997 + $0x300] sm:$0xff]
      %v5076 = vld [vmem:[%s4997 + $0x308] sm:$0xff]
      %v5077 = vld [vmem:[%s4997 + $0x310] sm:$0xff]
      %v5078 = vld [vmem:[%s4997 + $0x320] sm:$0xff]
      %v5079 = vld [vmem:[%s4997 + $0x328] sm:$0xff]
      %v5080 = vld [vmem:[%s4997 + $0x330] sm:$0xff]
      %v5081 = vld [vmem:[%s4997 + $0x338] sm:$0xff]
      %v5082 = vld [vmem:[%s4997 + $0x348] sm:$0xff]
      %v5083 = vld [vmem:[%s4997 + $0x350] sm:$0xff]
      %v5084 = vld [vmem:[%s4997 + $0x358] sm:$0xff]
      %v5085 = vld [vmem:[%s4997 + $0x360] sm:$0xff]
      %v5086 = vld [vmem:[%s4997 + $0x370] sm:$0xff]
      %v5087 = vld [vmem:[%s4997 + $0x378] sm:$0xff]
      %v5088 = vld [vmem:[%s4997 + $0x380] sm:$0xff]
      %v5089 = vld [vmem:[%s4997 + $0x388] sm:$0xff]
      %v5090 = vld [vmem:[%s4997 + $0x398] sm:$0xff]
      %v5091 = vld [vmem:[%s4997 + $0x3a0] sm:$0xff]
      %v5092 = vld [vmem:[%s4997 + $0x3a8] sm:$0xff]
      %v5093 = vld [vmem:[%s4997 + $0x3b0] sm:$0xff]
      %v5094 = vld [vmem:[%s4997 + $0x3c0] sm:$0xff]
      %v5095 = vld [vmem:[%s4997 + $0x3c8] sm:$0xff]
      %v5096 = vld [vmem:[%s4997 + $0x3d0] sm:$0xff]
      %v5097 = vld [vmem:[%s4997 + $0x3d8] sm:$0xff]
      %v5098 = vld [vmem:[%s4997 + $0x3e8] sm:$0xff]
      %v5099 = vld [vmem:[%s4997 + $0x3f0] sm:$0xff]
      %v5100 = vld [vmem:[%s4997 + $0x3f8] sm:$0xff]
      %v5101 = vld [vmem:[%s4997 + $0x400] sm:$0xff]
      %v5102 = vld [vmem:[%s4997 + $0x410] sm:$0xff]
      %v5103 = vld [vmem:[%s4997 + $0x418] sm:$0xff]
      %v5104 = vld [vmem:[%s4997 + $0x420] sm:$0xff]
      %v5105 = vld [vmem:[%s4997 + $0x428] sm:$0xff]
      %v5106 = vld [vmem:[%s4997 + $0x438] sm:$0xff]
      %v5107 = vld [vmem:[%s4997 + $0x440] sm:$0xff]
      %v5108 = vld [vmem:[%s4997 + $0x448] sm:$0xff]
      %v5109 = vld [vmem:[%s4997 + $0x450] sm:$0xff]
      %v5110 = vld [vmem:[%s4997 + $0x460] sm:$0xff]
      %v5111 = vld [vmem:[%s4997 + $0x468] sm:$0xff]
      %v5112 = vld [vmem:[%s4997 + $0x470] sm:$0xff]
      %v5113 = vld [vmem:[%s4997 + $0x478] sm:$0xff]
      %v5114 = vld [vmem:[%s4997 + $0x488] sm:$0xff]
      %v5115 = vld [vmem:[%s4997 + $0x490] sm:$0xff]
      %v5116 = vld [vmem:[%s4997 + $0x498] sm:$0xff]
      %v5117 = vld [vmem:[%s4997 + $0x4a0] sm:$0xff]
      %v5118 = vld [vmem:[%s4997 + $0x4b0] sm:$0xff]
      %v5119 = vld [vmem:[%s4997 + $0x4b8] sm:$0xff]
      %v5120 = vld [vmem:[%s4997 + $0x4c0] sm:$0xff]
      %v5121 = vld [vmem:[%s4997 + $0x4c8] sm:$0xff]
      %v5122 = vld [vmem:[%s4997 + $0x4d8] sm:$0xff]
      %v5123 = vld [vmem:[%s4997 + $0x4e0] sm:$0xff]
      %v5124 = vld [vmem:[%s4997 + $0x4e8] sm:$0xff]
      %v5125 = vld [vmem:[%s4997 + $0x4f0] sm:$0xff]
      %v5126 = vpack.c.bf16 %v4999, %v4998
      %v5127 = vpack.c.bf16 %v5001, %v5000
      %v5128 = vpack.c.bf16 %v5003, %v5002
      %v5129 = vpack.c.bf16 %v5005, %v5004
      %v5130 = vpack.c.bf16 %v5007, %v5006
      %v5131 = vpack.c.bf16 %v5009, %v5008
      %v5132 = vpack.c.bf16 %v5011, %v5010
      %v5133 = vpack.c.bf16 %v5013, %v5012
      %v5134 = vpack.c.bf16 %v5015, %v5014
      %v5135 = vpack.c.bf16 %v5017, %v5016
      %v5136 = vpack.c.bf16 %v5019, %v5018
      %v5137 = vpack.c.bf16 %v5021, %v5020
      %v5138 = vpack.c.bf16 %v5023, %v5022
      %v5139 = vpack.c.bf16 %v5025, %v5024
      %v5140 = vpack.c.bf16 %v5027, %v5026
      %v5141 = vpack.c.bf16 %v5029, %v5028
      %v5142 = vpack.c.bf16 %v5031, %v5030
      %v5143 = vpack.c.bf16 %v5033, %v5032
      %v5144 = vpack.c.bf16 %v5035, %v5034
      %v5145 = vpack.c.bf16 %v5037, %v5036
      %v5146 = vpack.c.bf16 %v5039, %v5038
      %v5147 = vpack.c.bf16 %v5041, %v5040
      %v5148 = vpack.c.bf16 %v5043, %v5042
      %v5149 = vpack.c.bf16 %v5045, %v5044
      %v5150 = vpack.c.bf16 %v5047, %v5046
      %v5151 = vpack.c.bf16 %v5049, %v5048
      %v5152 = vpack.c.bf16 %v5051, %v5050
      %v5153 = vpack.c.bf16 %v5053, %v5052
      %v5154 = vpack.c.bf16 %v5055, %v5054
      %v5155 = vpack.c.bf16 %v5057, %v5056
      %v5156 = vpack.c.bf16 %v5059, %v5058
      %v5157 = vpack.c.bf16 %v5061, %v5060
      %v5158 = vpack.c.bf16 %v5063, %v5062
      %v5159 = vpack.c.bf16 %v5065, %v5064
      %v5160 = vpack.c.bf16 %v5067, %v5066
      %v5161 = vpack.c.bf16 %v5069, %v5068
      %v5162 = vpack.c.bf16 %v5071, %v5070
      %v5163 = vpack.c.bf16 %v5073, %v5072
      %v5164 = vpack.c.bf16 %v5075, %v5074
      %v5165 = vpack.c.bf16 %v5077, %v5076
      %v5166 = vpack.c.bf16 %v5079, %v5078
      %v5167 = vpack.c.bf16 %v5081, %v5080
      %v5168 = vpack.c.bf16 %v5083, %v5082
      %v5169 = vpack.c.bf16 %v5085, %v5084
      %v5170 = vpack.c.bf16 %v5087, %v5086
      %v5171 = vpack.c.bf16 %v5089, %v5088
      %v5172 = vpack.c.bf16 %v5091, %v5090
      %v5173 = vpack.c.bf16 %v5093, %v5092
      %v5174 = vpack.c.bf16 %v5095, %v5094
      %v5175 = vpack.c.bf16 %v5097, %v5096
      %v5176 = vpack.c.bf16 %v5099, %v5098
      %v5177 = vpack.c.bf16 %v5101, %v5100
      %v5178 = vpack.c.bf16 %v5103, %v5102
      %v5179 = vpack.c.bf16 %v5105, %v5104
      %v5180 = vpack.c.bf16 %v5107, %v5106
      %v5181 = vpack.c.bf16 %v5109, %v5108
      %v5182 = vpack.c.bf16 %v5111, %v5110
      %v5183 = vpack.c.bf16 %v5113, %v5112
      %v5184 = vpack.c.bf16 %v5115, %v5114
      %v5185 = vpack.c.bf16 %v5117, %v5116
      %v5186 = vpack.c.bf16 %v5119, %v5118
      %v5187 = vpack.c.bf16 %v5121, %v5120
      %v5188 = vpack.c.bf16 %v5123, %v5122
      %v5189 = vpack.c.bf16 %v5125, %v5124
      %s5190 = scalar_lea.vmem %s1, 12
      %v5191 = vld [vmem:[%s5190] sm:$0x3]
      %v5193 = vsel %vm559, %v5126, 0
      %v5196 = vsel %vm559, %v5127, 0
      %v5199 = vsel %vm559, %v5128, 0
      %v5202 = vsel %vm559, %v5129, 0
      %v5205 = vsel %vm559, %v5130, 0
      %v5208 = vsel %vm559, %v5131, 0
      %v5211 = vsel %vm559, %v5132, 0
      %v5214 = vsel %vm559, %v5133, 0
      %v5217 = vsel %vm559, %v5134, 0
      %v5220 = vsel %vm559, %v5135, 0
      %v5223 = vsel %vm559, %v5136, 0
      %v5226 = vsel %vm559, %v5137, 0
      %v5229 = vsel %vm559, %v5138, 0
      %v5232 = vsel %vm559, %v5139, 0
      %v5235 = vsel %vm559, %v5140, 0
      %v5238 = vsel %vm559, %v5141, 0
      %v5241 = vsel %vm559, %v5142, 0
      %v5244 = vsel %vm559, %v5143, 0
      %v5247 = vsel %vm559, %v5144, 0
      %v5250 = vsel %vm559, %v5145, 0
      %v5253 = vsel %vm559, %v5146, 0
      %v5256 = vsel %vm559, %v5147, 0
      %v5259 = vsel %vm559, %v5148, 0
      %v5262 = vsel %vm559, %v5149, 0
      %v5265 = vsel %vm559, %v5150, 0
      %v5268 = vsel %vm559, %v5151, 0
      %v5271 = vsel %vm559, %v5152, 0
      %v5274 = vsel %vm559, %v5153, 0
      %v5277 = vsel %vm559, %v5154, 0
      %v5280 = vsel %vm559, %v5155, 0
      %v5283 = vsel %vm559, %v5156, 0
      %v5286 = vsel %vm559, %v5157, 0
      %v5289 = vsel %vm559, %v5158, 0
      %v5292 = vsel %vm559, %v5159, 0
      %v5295 = vsel %vm559, %v5160, 0
      %v5298 = vsel %vm559, %v5161, 0
      %v5301 = vsel %vm559, %v5162, 0
      %v5304 = vsel %vm559, %v5163, 0
      %v5307 = vsel %vm559, %v5164, 0
      %v5310 = vsel %vm559, %v5165, 0
      %v5313 = vsel %vm559, %v5166, 0
      %v5316 = vsel %vm559, %v5167, 0
      %v5319 = vsel %vm559, %v5168, 0
      %v5322 = vsel %vm559, %v5169, 0
      %v5325 = vsel %vm559, %v5170, 0
      %v5328 = vsel %vm559, %v5171, 0
      %v5331 = vsel %vm559, %v5172, 0
      %v5334 = vsel %vm559, %v5173, 0
      %v5337 = vsel %vm559, %v5174, 0
      %v5340 = vsel %vm559, %v5175, 0
      %v5343 = vsel %vm559, %v5176, 0
      %v5346 = vsel %vm559, %v5177, 0
      %v5349 = vsel %vm559, %v5178, 0
      %v5352 = vsel %vm559, %v5179, 0
      %v5355 = vsel %vm559, %v5180, 0
      %v5358 = vsel %vm559, %v5181, 0
      %v5361 = vsel %vm559, %v5182, 0
      %v5364 = vsel %vm559, %v5183, 0
      %v5367 = vsel %vm559, %v5184, 0
      %v5370 = vsel %vm559, %v5185, 0
      %v5373 = vsel %vm559, %v5186, 0
      %v5376 = vsel %vm559, %v5187, 0
      %v5379 = vsel %vm559, %v5188, 0
      %v5382 = vsel %vm559, %v5189, 0
      %v5385 = vand.u32 %v5191, %v755
      %5387 = vmatpush.bf16.msra.mxu0 0
      %5388 = vmatpush.bf16.msra.mxu0 0
      %5389 = vmatpush.bf16.msra.mxu0 0
      %5390 = vmatpush.bf16.msra.mxu0 0
      %5391 = vmatpush.bf16.msra.mxu0 0
      %5392 = vmatpush.bf16.msra.mxu0 0
      %5393 = vmatpush.bf16.msra.mxu0 0
      %5394 = vmatpush.bf16.msra.mxu0 %v5385
      %5395 = vmatmul.bf16.gmra.mxu0 %v5193
      %v5396 = vpop.f32.mrf.mxu0
      %v5397 = vadd.f32 0.0, %v5396
      %v5398 = vpop.f32.mrf.mxu0
      %v5399 = vadd.f32 0.0, %v5398
      %5400 = vmatmul.bf16.gmra.mxu0 %v5196
      %v5401 = vpop.f32.mrf.mxu0
      %v5402 = vadd.f32 0.0, %v5401
      %v5403 = vpop.f32.mrf.mxu0
      %v5404 = vadd.f32 0.0, %v5403
      %5405 = vmatmul.bf16.gmra.mxu0 %v5199
      %v5406 = vpop.f32.mrf.mxu0
      %v5407 = vadd.f32 0.0, %v5406
      %v5408 = vpop.f32.mrf.mxu0
      %v5409 = vadd.f32 0.0, %v5408
      %5410 = vmatmul.bf16.gmra.mxu0 %v5202
      %v5411 = vpop.f32.mrf.mxu0
      %v5412 = vadd.f32 0.0, %v5411
      %v5413 = vpop.f32.mrf.mxu0
      %v5414 = vadd.f32 0.0, %v5413
      %5415 = vmatmul.bf16.gmra.mxu0 %v5205
      %v5416 = vpop.f32.mrf.mxu0
      %v5417 = vadd.f32 0.0, %v5416
      %v5418 = vpop.f32.mrf.mxu0
      %v5419 = vadd.f32 0.0, %v5418
      %5420 = vmatmul.bf16.gmra.mxu0 %v5208
      %v5421 = vpop.f32.mrf.mxu0
      %v5422 = vadd.f32 0.0, %v5421
      %v5423 = vpop.f32.mrf.mxu0
      %v5424 = vadd.f32 0.0, %v5423
      %5425 = vmatmul.bf16.gmra.mxu0 %v5211
      %v5426 = vpop.f32.mrf.mxu0
      %v5427 = vadd.f32 0.0, %v5426
      %v5428 = vpop.f32.mrf.mxu0
      %v5429 = vadd.f32 0.0, %v5428
      %5430 = vmatmul.bf16.gmra.mxu0 %v5214
      %v5431 = vpop.f32.mrf.mxu0
      %v5432 = vadd.f32 0.0, %v5431
      %v5433 = vpop.f32.mrf.mxu0
      %v5434 = vadd.f32 0.0, %v5433
      %5435 = vmatmul.bf16.gmra.mxu0 %v5217
      %v5436 = vpop.f32.mrf.mxu0
      %v5437 = vadd.f32 0.0, %v5436
      %v5438 = vpop.f32.mrf.mxu0
      %v5439 = vadd.f32 0.0, %v5438
      %5440 = vmatmul.bf16.gmra.mxu0 %v5220
      %v5441 = vpop.f32.mrf.mxu0
      %v5442 = vadd.f32 0.0, %v5441
      %v5443 = vpop.f32.mrf.mxu0
      %v5444 = vadd.f32 0.0, %v5443
      %5445 = vmatmul.bf16.gmra.mxu0 %v5223
      %v5446 = vpop.f32.mrf.mxu0
      %v5447 = vadd.f32 0.0, %v5446
      %v5448 = vpop.f32.mrf.mxu0
      %v5449 = vadd.f32 0.0, %v5448
      %5450 = vmatmul.bf16.gmra.mxu0 %v5226
      %v5451 = vpop.f32.mrf.mxu0
      %v5452 = vadd.f32 0.0, %v5451
      %v5453 = vpop.f32.mrf.mxu0
      %v5454 = vadd.f32 0.0, %v5453
      %5455 = vmatmul.bf16.gmra.mxu0 %v5229
      %v5456 = vpop.f32.mrf.mxu0
      %v5457 = vadd.f32 0.0, %v5456
      %v5458 = vpop.f32.mrf.mxu0
      %v5459 = vadd.f32 0.0, %v5458
      %5460 = vmatmul.bf16.gmra.mxu0 %v5232
      %v5461 = vpop.f32.mrf.mxu0
      %v5462 = vadd.f32 0.0, %v5461
      %v5463 = vpop.f32.mrf.mxu0
      %v5464 = vadd.f32 0.0, %v5463
      %5465 = vmatmul.bf16.gmra.mxu0 %v5235
      %v5466 = vpop.f32.mrf.mxu0
      %v5467 = vadd.f32 0.0, %v5466
      %v5468 = vpop.f32.mrf.mxu0
      %v5469 = vadd.f32 0.0, %v5468
      %5470 = vmatmul.bf16.gmra.mxu0 %v5238
      %v5471 = vpop.f32.mrf.mxu0
      %v5472 = vadd.f32 0.0, %v5471
      %v5473 = vpop.f32.mrf.mxu0
      %v5474 = vadd.f32 0.0, %v5473
      %5475 = vmatmul.bf16.gmra.mxu0 %v5241
      %v5476 = vpop.f32.mrf.mxu0
      %v5477 = vadd.f32 0.0, %v5476
      %v5478 = vpop.f32.mrf.mxu0
      %v5479 = vadd.f32 0.0, %v5478
      %5480 = vmatmul.bf16.gmra.mxu0 %v5244
      %v5481 = vpop.f32.mrf.mxu0
      %v5482 = vadd.f32 0.0, %v5481
      %v5483 = vpop.f32.mrf.mxu0
      %v5484 = vadd.f32 0.0, %v5483
      %5485 = vmatmul.bf16.gmra.mxu0 %v5247
      %v5486 = vpop.f32.mrf.mxu0
      %v5487 = vadd.f32 0.0, %v5486
      %v5488 = vpop.f32.mrf.mxu0
      %v5489 = vadd.f32 0.0, %v5488
      %5490 = vmatmul.bf16.gmra.mxu0 %v5250
      %v5491 = vpop.f32.mrf.mxu0
      %v5492 = vadd.f32 0.0, %v5491
      %v5493 = vpop.f32.mrf.mxu0
      %v5494 = vadd.f32 0.0, %v5493
      %5495 = vmatmul.bf16.gmra.mxu0 %v5253
      %v5496 = vpop.f32.mrf.mxu0
      %v5497 = vadd.f32 0.0, %v5496
      %v5498 = vpop.f32.mrf.mxu0
      %v5499 = vadd.f32 0.0, %v5498
      %5500 = vmatmul.bf16.gmra.mxu0 %v5256
      %v5501 = vpop.f32.mrf.mxu0
      %v5502 = vadd.f32 0.0, %v5501
      %v5503 = vpop.f32.mrf.mxu0
      %v5504 = vadd.f32 0.0, %v5503
      %5505 = vmatmul.bf16.gmra.mxu0 %v5259
      %v5506 = vpop.f32.mrf.mxu0
      %v5507 = vadd.f32 0.0, %v5506
      %v5508 = vpop.f32.mrf.mxu0
      %v5509 = vadd.f32 0.0, %v5508
      %5510 = vmatmul.bf16.gmra.mxu0 %v5262
      %v5511 = vpop.f32.mrf.mxu0
      %v5512 = vadd.f32 0.0, %v5511
      %v5513 = vpop.f32.mrf.mxu0
      %v5514 = vadd.f32 0.0, %v5513
      %5515 = vmatmul.bf16.gmra.mxu0 %v5265
      %v5516 = vpop.f32.mrf.mxu0
      %v5517 = vadd.f32 0.0, %v5516
      %v5518 = vpop.f32.mrf.mxu0
      %v5519 = vadd.f32 0.0, %v5518
      %5520 = vmatmul.bf16.gmra.mxu0 %v5268
      %v5521 = vpop.f32.mrf.mxu0
      %v5522 = vadd.f32 0.0, %v5521
      %v5523 = vpop.f32.mrf.mxu0
      %v5524 = vadd.f32 0.0, %v5523
      %5525 = vmatmul.bf16.gmra.mxu0 %v5271
      %v5526 = vpop.f32.mrf.mxu0
      %v5527 = vadd.f32 0.0, %v5526
      %v5528 = vpop.f32.mrf.mxu0
      %v5529 = vadd.f32 0.0, %v5528
      %5530 = vmatmul.bf16.gmra.mxu0 %v5274
      %v5531 = vpop.f32.mrf.mxu0
      %v5532 = vadd.f32 0.0, %v5531
      %v5533 = vpop.f32.mrf.mxu0
      %v5534 = vadd.f32 0.0, %v5533
      %5535 = vmatmul.bf16.gmra.mxu0 %v5277
      %v5536 = vpop.f32.mrf.mxu0
      %v5537 = vadd.f32 0.0, %v5536
      %v5538 = vpop.f32.mrf.mxu0
      %v5539 = vadd.f32 0.0, %v5538
      %5540 = vmatmul.bf16.gmra.mxu0 %v5280
      %v5541 = vpop.f32.mrf.mxu0
      %v5542 = vadd.f32 0.0, %v5541
      %v5543 = vpop.f32.mrf.mxu0
      %v5544 = vadd.f32 0.0, %v5543
      %5545 = vmatmul.bf16.gmra.mxu0 %v5283
      %v5546 = vpop.f32.mrf.mxu0
      %v5547 = vadd.f32 0.0, %v5546
      %v5548 = vpop.f32.mrf.mxu0
      %v5549 = vadd.f32 0.0, %v5548
      %5550 = vmatmul.bf16.gmra.mxu0 %v5286
      %v5551 = vpop.f32.mrf.mxu0
      %v5552 = vadd.f32 0.0, %v5551
      %v5553 = vpop.f32.mrf.mxu0
      %v5554 = vadd.f32 0.0, %v5553
      %5555 = vmatmul.bf16.gmra.mxu0 %v5289
      %v5556 = vpop.f32.mrf.mxu0
      %v5557 = vadd.f32 0.0, %v5556
      %v5558 = vpop.f32.mrf.mxu0
      %v5559 = vadd.f32 0.0, %v5558
      %5560 = vmatmul.bf16.gmra.mxu0 %v5292
      %v5561 = vpop.f32.mrf.mxu0
      %v5562 = vadd.f32 0.0, %v5561
      %v5563 = vpop.f32.mrf.mxu0
      %v5564 = vadd.f32 0.0, %v5563
      %5565 = vmatmul.bf16.gmra.mxu0 %v5295
      %v5566 = vpop.f32.mrf.mxu0
      %v5567 = vadd.f32 0.0, %v5566
      %v5568 = vpop.f32.mrf.mxu0
      %v5569 = vadd.f32 0.0, %v5568
      %5570 = vmatmul.bf16.gmra.mxu0 %v5298
      %v5571 = vpop.f32.mrf.mxu0
      %v5572 = vadd.f32 0.0, %v5571
      %v5573 = vpop.f32.mrf.mxu0
      %v5574 = vadd.f32 0.0, %v5573
      %5575 = vmatmul.bf16.gmra.mxu0 %v5301
      %v5576 = vpop.f32.mrf.mxu0
      %v5577 = vadd.f32 0.0, %v5576
      %v5578 = vpop.f32.mrf.mxu0
      %v5579 = vadd.f32 0.0, %v5578
      %5580 = vmatmul.bf16.gmra.mxu0 %v5304
      %v5581 = vpop.f32.mrf.mxu0
      %v5582 = vadd.f32 0.0, %v5581
      %v5583 = vpop.f32.mrf.mxu0
      %v5584 = vadd.f32 0.0, %v5583
      %5585 = vmatmul.bf16.gmra.mxu0 %v5307
      %v5586 = vpop.f32.mrf.mxu0
      %v5587 = vadd.f32 0.0, %v5586
      %v5588 = vpop.f32.mrf.mxu0
      %v5589 = vadd.f32 0.0, %v5588
      %5590 = vmatmul.bf16.gmra.mxu0 %v5310
      %v5591 = vpop.f32.mrf.mxu0
      %v5592 = vadd.f32 0.0, %v5591
      %v5593 = vpop.f32.mrf.mxu0
      %v5594 = vadd.f32 0.0, %v5593
      %5595 = vmatmul.bf16.gmra.mxu0 %v5313
      %v5596 = vpop.f32.mrf.mxu0
      %v5597 = vadd.f32 0.0, %v5596
      %v5598 = vpop.f32.mrf.mxu0
      %v5599 = vadd.f32 0.0, %v5598
      %5600 = vmatmul.bf16.gmra.mxu0 %v5316
      %v5601 = vpop.f32.mrf.mxu0
      %v5602 = vadd.f32 0.0, %v5601
      %v5603 = vpop.f32.mrf.mxu0
      %v5604 = vadd.f32 0.0, %v5603
      %5605 = vmatmul.bf16.gmra.mxu0 %v5319
      %v5606 = vpop.f32.mrf.mxu0
      %v5607 = vadd.f32 0.0, %v5606
      %v5608 = vpop.f32.mrf.mxu0
      %v5609 = vadd.f32 0.0, %v5608
      %5610 = vmatmul.bf16.gmra.mxu0 %v5322
      %v5611 = vpop.f32.mrf.mxu0
      %v5612 = vadd.f32 0.0, %v5611
      %v5613 = vpop.f32.mrf.mxu0
      %v5614 = vadd.f32 0.0, %v5613
      %5615 = vmatmul.bf16.gmra.mxu0 %v5325
      %v5616 = vpop.f32.mrf.mxu0
      %v5617 = vadd.f32 0.0, %v5616
      %v5618 = vpop.f32.mrf.mxu0
      %v5619 = vadd.f32 0.0, %v5618
      %5620 = vmatmul.bf16.gmra.mxu0 %v5328
      %v5621 = vpop.f32.mrf.mxu0
      %v5622 = vadd.f32 0.0, %v5621
      %v5623 = vpop.f32.mrf.mxu0
      %v5624 = vadd.f32 0.0, %v5623
      %5625 = vmatmul.bf16.gmra.mxu0 %v5331
      %v5626 = vpop.f32.mrf.mxu0
      %v5627 = vadd.f32 0.0, %v5626
      %v5628 = vpop.f32.mrf.mxu0
      %v5629 = vadd.f32 0.0, %v5628
      %5630 = vmatmul.bf16.gmra.mxu0 %v5334
      %v5631 = vpop.f32.mrf.mxu0
      %v5632 = vadd.f32 0.0, %v5631
      %v5633 = vpop.f32.mrf.mxu0
      %v5634 = vadd.f32 0.0, %v5633
      %5635 = vmatmul.bf16.gmra.mxu0 %v5337
      %v5636 = vpop.f32.mrf.mxu0
      %v5637 = vadd.f32 0.0, %v5636
      %v5638 = vpop.f32.mrf.mxu0
      %v5639 = vadd.f32 0.0, %v5638
      %5640 = vmatmul.bf16.gmra.mxu0 %v5340
      %v5641 = vpop.f32.mrf.mxu0
      %v5642 = vadd.f32 0.0, %v5641
      %v5643 = vpop.f32.mrf.mxu0
      %v5644 = vadd.f32 0.0, %v5643
      %5645 = vmatmul.bf16.gmra.mxu0 %v5343
      %v5646 = vpop.f32.mrf.mxu0
      %v5647 = vadd.f32 0.0, %v5646
      %v5648 = vpop.f32.mrf.mxu0
      %v5649 = vadd.f32 0.0, %v5648
      %5650 = vmatmul.bf16.gmra.mxu0 %v5346
      %v5651 = vpop.f32.mrf.mxu0
      %v5652 = vadd.f32 0.0, %v5651
      %v5653 = vpop.f32.mrf.mxu0
      %v5654 = vadd.f32 0.0, %v5653
      %5655 = vmatmul.bf16.gmra.mxu0 %v5349
      %v5656 = vpop.f32.mrf.mxu0
      %v5657 = vadd.f32 0.0, %v5656
      %v5658 = vpop.f32.mrf.mxu0
      %v5659 = vadd.f32 0.0, %v5658
      %5660 = vmatmul.bf16.gmra.mxu0 %v5352
      %v5661 = vpop.f32.mrf.mxu0
      %v5662 = vadd.f32 0.0, %v5661
      %v5663 = vpop.f32.mrf.mxu0
      %v5664 = vadd.f32 0.0, %v5663
      %5665 = vmatmul.bf16.gmra.mxu0 %v5355
      %v5666 = vpop.f32.mrf.mxu0
      %v5667 = vadd.f32 0.0, %v5666
      %v5668 = vpop.f32.mrf.mxu0
      %v5669 = vadd.f32 0.0, %v5668
      %5670 = vmatmul.bf16.gmra.mxu0 %v5358
      %v5671 = vpop.f32.mrf.mxu0
      %v5672 = vadd.f32 0.0, %v5671
      %v5673 = vpop.f32.mrf.mxu0
      %v5674 = vadd.f32 0.0, %v5673
      %5675 = vmatmul.bf16.gmra.mxu0 %v5361
      %v5676 = vpop.f32.mrf.mxu0
      %v5677 = vadd.f32 0.0, %v5676
      %v5678 = vpop.f32.mrf.mxu0
      %v5679 = vadd.f32 0.0, %v5678
      %5680 = vmatmul.bf16.gmra.mxu0 %v5364
      %v5681 = vpop.f32.mrf.mxu0
      %v5682 = vadd.f32 0.0, %v5681
      %v5683 = vpop.f32.mrf.mxu0
      %v5684 = vadd.f32 0.0, %v5683
      %5685 = vmatmul.bf16.gmra.mxu0 %v5367
      %v5686 = vpop.f32.mrf.mxu0
      %v5687 = vadd.f32 0.0, %v5686
      %v5688 = vpop.f32.mrf.mxu0
      %v5689 = vadd.f32 0.0, %v5688
      %5690 = vmatmul.bf16.gmra.mxu0 %v5370
      %v5691 = vpop.f32.mrf.mxu0
      %v5692 = vadd.f32 0.0, %v5691
      %v5693 = vpop.f32.mrf.mxu0
      %v5694 = vadd.f32 0.0, %v5693
      %5695 = vmatmul.bf16.gmra.mxu0 %v5373
      %v5696 = vpop.f32.mrf.mxu0
      %v5697 = vadd.f32 0.0, %v5696
      %v5698 = vpop.f32.mrf.mxu0
      %v5699 = vadd.f32 0.0, %v5698
      %5700 = vmatmul.bf16.gmra.mxu0 %v5376
      %v5701 = vpop.f32.mrf.mxu0
      %v5702 = vadd.f32 0.0, %v5701
      %v5703 = vpop.f32.mrf.mxu0
      %v5704 = vadd.f32 0.0, %v5703
      %5705 = vmatmul.bf16.gmra.mxu0 %v5379
      %v5706 = vpop.f32.mrf.mxu0
      %v5707 = vadd.f32 0.0, %v5706
      %v5708 = vpop.f32.mrf.mxu0
      %v5709 = vadd.f32 0.0, %v5708
      %5710 = vmatmul.bf16.gmra.mxu0 %v5382
      %v5711 = vpop.f32.mrf.mxu0
      %v5712 = vadd.f32 0.0, %v5711
      %v5713 = vpop.f32.mrf.mxu0
      %v5714 = vadd.f32 0.0, %v5713
      %5715 = vdwg.mxu0
      %v5716 = vadd.f32 %v4869, %v5397
      %v5717 = vadd.f32 %v4870, %v5399
      %v5718 = vadd.f32 %v4871, %v5402
      %v5719 = vadd.f32 %v4872, %v5404
      %v5720 = vadd.f32 %v4873, %v5407
      %v5721 = vadd.f32 %v4874, %v5409
      %v5722 = vadd.f32 %v4875, %v5412
      %v5723 = vadd.f32 %v4876, %v5414
      %v5724 = vadd.f32 %v4877, %v5417
      %v5725 = vadd.f32 %v4878, %v5419
      %v5726 = vadd.f32 %v4879, %v5422
      %v5727 = vadd.f32 %v4880, %v5424
      %v5728 = vadd.f32 %v4881, %v5427
      %v5729 = vadd.f32 %v4882, %v5429
      %v5730 = vadd.f32 %v4883, %v5432
      %v5731 = vadd.f32 %v4884, %v5434
      %v5732 = vadd.f32 %v4885, %v5437
      %v5733 = vadd.f32 %v4886, %v5439
      %v5734 = vadd.f32 %v4887, %v5442
      %v5735 = vadd.f32 %v4888, %v5444
      %v5736 = vadd.f32 %v4889, %v5447
      %v5737 = vadd.f32 %v4890, %v5449
      %v5738 = vadd.f32 %v4891, %v5452
      %v5739 = vadd.f32 %v4892, %v5454
      %v5740 = vadd.f32 %v4893, %v5457
      %v5741 = vadd.f32 %v4894, %v5459
      %v5742 = vadd.f32 %v4895, %v5462
      %v5743 = vadd.f32 %v4896, %v5464
      %v5744 = vadd.f32 %v4897, %v5467
      %v5745 = vadd.f32 %v4898, %v5469
      %v5746 = vadd.f32 %v4899, %v5472
      %v5747 = vadd.f32 %v4900, %v5474
      %v5748 = vadd.f32 %v4901, %v5477
      %v5749 = vadd.f32 %v4902, %v5479
      %v5750 = vadd.f32 %v4903, %v5482
      %v5751 = vadd.f32 %v4904, %v5484
      %v5752 = vadd.f32 %v4905, %v5487
      %v5753 = vadd.f32 %v4906, %v5489
      %v5754 = vadd.f32 %v4907, %v5492
      %v5755 = vadd.f32 %v4908, %v5494
      %v5756 = vadd.f32 %v4909, %v5497
      %v5757 = vadd.f32 %v4910, %v5499
      %v5758 = vadd.f32 %v4911, %v5502
      %v5759 = vadd.f32 %v4912, %v5504
      %v5760 = vadd.f32 %v4913, %v5507
      %v5761 = vadd.f32 %v4914, %v5509
      %v5762 = vadd.f32 %v4915, %v5512
      %v5763 = vadd.f32 %v4916, %v5514
      %v5764 = vadd.f32 %v4917, %v5517
      %v5765 = vadd.f32 %v4918, %v5519
      %v5766 = vadd.f32 %v4919, %v5522
      %v5767 = vadd.f32 %v4920, %v5524
      %v5768 = vadd.f32 %v4921, %v5527
      %v5769 = vadd.f32 %v4922, %v5529
      %v5770 = vadd.f32 %v4923, %v5532
      %v5771 = vadd.f32 %v4924, %v5534
      %v5772 = vadd.f32 %v4925, %v5537
      %v5773 = vadd.f32 %v4926, %v5539
      %v5774 = vadd.f32 %v4927, %v5542
      %v5775 = vadd.f32 %v4928, %v5544
      %v5776 = vadd.f32 %v4929, %v5547
      %v5777 = vadd.f32 %v4930, %v5549
      %v5778 = vadd.f32 %v4931, %v5552
      %v5779 = vadd.f32 %v4932, %v5554
      %v5780 = vadd.f32 %v4933, %v5557
      %v5781 = vadd.f32 %v4934, %v5559
      %v5782 = vadd.f32 %v4935, %v5562
      %v5783 = vadd.f32 %v4936, %v5564
      %v5784 = vadd.f32 %v4937, %v5567
      %v5785 = vadd.f32 %v4938, %v5569
      %v5786 = vadd.f32 %v4939, %v5572
      %v5787 = vadd.f32 %v4940, %v5574
      %v5788 = vadd.f32 %v4941, %v5577
      %v5789 = vadd.f32 %v4942, %v5579
      %v5790 = vadd.f32 %v4943, %v5582
      %v5791 = vadd.f32 %v4944, %v5584
      %v5792 = vadd.f32 %v4945, %v5587
      %v5793 = vadd.f32 %v4946, %v5589
      %v5794 = vadd.f32 %v4947, %v5592
      %v5795 = vadd.f32 %v4948, %v5594
      %v5796 = vadd.f32 %v4949, %v5597
      %v5797 = vadd.f32 %v4950, %v5599
      %v5798 = vadd.f32 %v4951, %v5602
      %v5799 = vadd.f32 %v4952, %v5604
      %v5800 = vadd.f32 %v4953, %v5607
      %v5801 = vadd.f32 %v4954, %v5609
      %v5802 = vadd.f32 %v4955, %v5612
      %v5803 = vadd.f32 %v4956, %v5614
      %v5804 = vadd.f32 %v4957, %v5617
      %v5805 = vadd.f32 %v4958, %v5619
      %v5806 = vadd.f32 %v4959, %v5622
      %v5807 = vadd.f32 %v4960, %v5624
      %v5808 = vadd.f32 %v4961, %v5627
      %v5809 = vadd.f32 %v4962, %v5629
      %v5810 = vadd.f32 %v4963, %v5632
      %v5811 = vadd.f32 %v4964, %v5634
      %v5812 = vadd.f32 %v4965, %v5637
      %v5813 = vadd.f32 %v4966, %v5639
      %v5814 = vadd.f32 %v4967, %v5642
      %v5815 = vadd.f32 %v4968, %v5644
      %v5816 = vadd.f32 %v4969, %v5647
      %v5817 = vadd.f32 %v4970, %v5649
      %v5818 = vadd.f32 %v4971, %v5652
      %v5819 = vadd.f32 %v4972, %v5654
      %v5820 = vadd.f32 %v4973, %v5657
      %v5821 = vadd.f32 %v4974, %v5659
      %v5822 = vadd.f32 %v4975, %v5662
      %v5823 = vadd.f32 %v4976, %v5664
      %v5824 = vadd.f32 %v4977, %v5667
      %v5825 = vadd.f32 %v4978, %v5669
      %v5826 = vadd.f32 %v4979, %v5672
      %v5827 = vadd.f32 %v4980, %v5674
      %v5828 = vadd.f32 %v4981, %v5677
      %v5829 = vadd.f32 %v4982, %v5679
      %v5830 = vadd.f32 %v4983, %v5682
      %v5831 = vadd.f32 %v4984, %v5684
      %v5832 = vadd.f32 %v4985, %v5687
      %v5833 = vadd.f32 %v4986, %v5689
      %v5834 = vadd.f32 %v4987, %v5692
      %v5835 = vadd.f32 %v4988, %v5694
      %v5836 = vadd.f32 %v4989, %v5697
      %v5837 = vadd.f32 %v4990, %v5699
      %v5838 = vadd.f32 %v4991, %v5702
      %v5839 = vadd.f32 %v4992, %v5704
      %v5840 = vadd.f32 %v4993, %v5707
      %v5841 = vadd.f32 %v4994, %v5709
      %v5842 = vadd.f32 %v4995, %v5712
      %v5843 = vadd.f32 %v4996, %v5714
      %v5844 = vld [vmem:[%s4997 + $0x1] sm:$0xff]
      %v5845 = vld [vmem:[%s4997 + $0x9] sm:$0xff]
      %v5846 = vld [vmem:[%s4997 + $0x11] sm:$0xff]
      %v5847 = vld [vmem:[%s4997 + $0x19] sm:$0xff]
      %v5848 = vld [vmem:[%s4997 + $0x29] sm:$0xff]
      %v5849 = vld [vmem:[%s4997 + $0x31] sm:$0xff]
      %v5850 = vld [vmem:[%s4997 + $0x39] sm:$0xff]
      %v5851 = vld [vmem:[%s4997 + $0x41] sm:$0xff]
      %v5852 = vld [vmem:[%s4997 + $0x51] sm:$0xff]
      %v5853 = vld [vmem:[%s4997 + $0x59] sm:$0xff]
      %v5854 = vld [vmem:[%s4997 + $0x61] sm:$0xff]
      %v5855 = vld [vmem:[%s4997 + $0x69] sm:$0xff]
      %v5856 = vld [vmem:[%s4997 + $0x79] sm:$0xff]
      %v5857 = vld [vmem:[%s4997 + $0x81] sm:$0xff]
      %v5858 = vld [vmem:[%s4997 + $0x89] sm:$0xff]
      %v5859 = vld [vmem:[%s4997 + $0x91] sm:$0xff]
      %v5860 = vld [vmem:[%s4997 + $0xa1] sm:$0xff]
      %v5861 = vld [vmem:[%s4997 + $0xa9] sm:$0xff]
      %v5862 = vld [vmem:[%s4997 + $0xb1] sm:$0xff]
      %v5863 = vld [vmem:[%s4997 + $0xb9] sm:$0xff]
      %v5864 = vld [vmem:[%s4997 + $0xc9] sm:$0xff]
      %v5865 = vld [vmem:[%s4997 + $0xd1] sm:$0xff]
      %v5866 = vld [vmem:[%s4997 + $0xd9] sm:$0xff]
      %v5867 = vld [vmem:[%s4997 + $0xe1] sm:$0xff]
      %v5868 = vld [vmem:[%s4997 + $0xf1] sm:$0xff]
      %v5869 = vld [vmem:[%s4997 + $0xf9] sm:$0xff]
      %v5870 = vld [vmem:[%s4997 + $0x101] sm:$0xff]
      %v5871 = vld [vmem:[%s4997 + $0x109] sm:$0xff]
      %v5872 = vld [vmem:[%s4997 + $0x119] sm:$0xff]
      %v5873 = vld [vmem:[%s4997 + $0x121] sm:$0xff]
      %v5874 = vld [vmem:[%s4997 + $0x129] sm:$0xff]
      %v5875 = vld [vmem:[%s4997 + $0x131] sm:$0xff]
      %v5876 = vld [vmem:[%s4997 + $0x141] sm:$0xff]
      %v5877 = vld [vmem:[%s4997 + $0x149] sm:$0xff]
      %v5878 = vld [vmem:[%s4997 + $0x151] sm:$0xff]
      %v5879 = vld [vmem:[%s4997 + $0x159] sm:$0xff]
      %v5880 = vld [vmem:[%s4997 + $0x169] sm:$0xff]
      %v5881 = vld [vmem:[%s4997 + $0x171] sm:$0xff]
      %v5882 = vld [vmem:[%s4997 + $0x179] sm:$0xff]
      %v5883 = vld [vmem:[%s4997 + $0x181] sm:$0xff]
      %v5884 = vld [vmem:[%s4997 + $0x191] sm:$0xff]
      %v5885 = vld [vmem:[%s4997 + $0x199] sm:$0xff]
      %v5886 = vld [vmem:[%s4997 + $0x1a1] sm:$0xff]
      %v5887 = vld [vmem:[%s4997 + $0x1a9] sm:$0xff]
      %v5888 = vld [vmem:[%s4997 + $0x1b9] sm:$0xff]
      %v5889 = vld [vmem:[%s4997 + $0x1c1] sm:$0xff]
      %v5890 = vld [vmem:[%s4997 + $0x1c9] sm:$0xff]
      %v5891 = vld [vmem:[%s4997 + $0x1d1] sm:$0xff]
      %v5892 = vld [vmem:[%s4997 + $0x1e1] sm:$0xff]
      %v5893 = vld [vmem:[%s4997 + $0x1e9] sm:$0xff]
      %v5894 = vld [vmem:[%s4997 + $0x1f1] sm:$0xff]
      %v5895 = vld [vmem:[%s4997 + $0x1f9] sm:$0xff]
      %v5896 = vld [vmem:[%s4997 + $0x209] sm:$0xff]
      %v5897 = vld [vmem:[%s4997 + $0x211] sm:$0xff]
      %v5898 = vld [vmem:[%s4997 + $0x219] sm:$0xff]
      %v5899 = vld [vmem:[%s4997 + $0x221] sm:$0xff]
      %v5900 = vld [vmem:[%s4997 + $0x231] sm:$0xff]
      %v5901 = vld [vmem:[%s4997 + $0x239] sm:$0xff]
      %v5902 = vld [vmem:[%s4997 + $0x241] sm:$0xff]
      %v5903 = vld [vmem:[%s4997 + $0x249] sm:$0xff]
      %v5904 = vld [vmem:[%s4997 + $0x259] sm:$0xff]
      %v5905 = vld [vmem:[%s4997 + $0x261] sm:$0xff]
      %v5906 = vld [vmem:[%s4997 + $0x269] sm:$0xff]
      %v5907 = vld [vmem:[%s4997 + $0x271] sm:$0xff]
      %v5908 = vld [vmem:[%s4997 + $0x281] sm:$0xff]
      %v5909 = vld [vmem:[%s4997 + $0x289] sm:$0xff]
      %v5910 = vld [vmem:[%s4997 + $0x291] sm:$0xff]
      %v5911 = vld [vmem:[%s4997 + $0x299] sm:$0xff]
      %v5912 = vld [vmem:[%s4997 + $0x2a9] sm:$0xff]
      %v5913 = vld [vmem:[%s4997 + $0x2b1] sm:$0xff]
      %v5914 = vld [vmem:[%s4997 + $0x2b9] sm:$0xff]
      %v5915 = vld [vmem:[%s4997 + $0x2c1] sm:$0xff]
      %v5916 = vld [vmem:[%s4997 + $0x2d1] sm:$0xff]
      %v5917 = vld [vmem:[%s4997 + $0x2d9] sm:$0xff]
      %v5918 = vld [vmem:[%s4997 + $0x2e1] sm:$0xff]
      %v5919 = vld [vmem:[%s4997 + $0x2e9] sm:$0xff]
      %v5920 = vld [vmem:[%s4997 + $0x2f9] sm:$0xff]
      %v5921 = vld [vmem:[%s4997 + $0x301] sm:$0xff]
      %v5922 = vld [vmem:[%s4997 + $0x309] sm:$0xff]
      %v5923 = vld [vmem:[%s4997 + $0x311] sm:$0xff]
      %v5924 = vld [vmem:[%s4997 + $0x321] sm:$0xff]
      %v5925 = vld [vmem:[%s4997 + $0x329] sm:$0xff]
      %v5926 = vld [vmem:[%s4997 + $0x331] sm:$0xff]
      %v5927 = vld [vmem:[%s4997 + $0x339] sm:$0xff]
      %v5928 = vld [vmem:[%s4997 + $0x349] sm:$0xff]
      %v5929 = vld [vmem:[%s4997 + $0x351] sm:$0xff]
      %v5930 = vld [vmem:[%s4997 + $0x359] sm:$0xff]
      %v5931 = vld [vmem:[%s4997 + $0x361] sm:$0xff]
      %v5932 = vld [vmem:[%s4997 + $0x371] sm:$0xff]
      %v5933 = vld [vmem:[%s4997 + $0x379] sm:$0xff]
      %v5934 = vld [vmem:[%s4997 + $0x381] sm:$0xff]
      %v5935 = vld [vmem:[%s4997 + $0x389] sm:$0xff]
      %v5936 = vld [vmem:[%s4997 + $0x399] sm:$0xff]
      %v5937 = vld [vmem:[%s4997 + $0x3a1] sm:$0xff]
      %v5938 = vld [vmem:[%s4997 + $0x3a9] sm:$0xff]
      %v5939 = vld [vmem:[%s4997 + $0x3b1] sm:$0xff]
      %v5940 = vld [vmem:[%s4997 + $0x3c1] sm:$0xff]
      %v5941 = vld [vmem:[%s4997 + $0x3c9] sm:$0xff]
      %v5942 = vld [vmem:[%s4997 + $0x3d1] sm:$0xff]
      %v5943 = vld [vmem:[%s4997 + $0x3d9] sm:$0xff]
      %v5944 = vld [vmem:[%s4997 + $0x3e9] sm:$0xff]
      %v5945 = vld [vmem:[%s4997 + $0x3f1] sm:$0xff]
      %v5946 = vld [vmem:[%s4997 + $0x3f9] sm:$0xff]
      %v5947 = vld [vmem:[%s4997 + $0x401] sm:$0xff]
      %v5948 = vld [vmem:[%s4997 + $0x411] sm:$0xff]
      %v5949 = vld [vmem:[%s4997 + $0x419] sm:$0xff]
      %v5950 = vld [vmem:[%s4997 + $0x421] sm:$0xff]
      %v5951 = vld [vmem:[%s4997 + $0x429] sm:$0xff]
      %v5952 = vld [vmem:[%s4997 + $0x439] sm:$0xff]
      %v5953 = vld [vmem:[%s4997 + $0x441] sm:$0xff]
      %v5954 = vld [vmem:[%s4997 + $0x449] sm:$0xff]
      %v5955 = vld [vmem:[%s4997 + $0x451] sm:$0xff]
      %v5956 = vld [vmem:[%s4997 + $0x461] sm:$0xff]
      %v5957 = vld [vmem:[%s4997 + $0x469] sm:$0xff]
      %v5958 = vld [vmem:[%s4997 + $0x471] sm:$0xff]
      %v5959 = vld [vmem:[%s4997 + $0x479] sm:$0xff]
      %v5960 = vld [vmem:[%s4997 + $0x489] sm:$0xff]
      %v5961 = vld [vmem:[%s4997 + $0x491] sm:$0xff]
      %v5962 = vld [vmem:[%s4997 + $0x499] sm:$0xff]
      %v5963 = vld [vmem:[%s4997 + $0x4a1] sm:$0xff]
      %v5964 = vld [vmem:[%s4997 + $0x4b1] sm:$0xff]
      %v5965 = vld [vmem:[%s4997 + $0x4b9] sm:$0xff]
      %v5966 = vld [vmem:[%s4997 + $0x4c1] sm:$0xff]
      %v5967 = vld [vmem:[%s4997 + $0x4c9] sm:$0xff]
      %v5968 = vld [vmem:[%s4997 + $0x4d9] sm:$0xff]
      %v5969 = vld [vmem:[%s4997 + $0x4e1] sm:$0xff]
      %v5970 = vld [vmem:[%s4997 + $0x4e9] sm:$0xff]
      %v5971 = vld [vmem:[%s4997 + $0x4f1] sm:$0xff]
      %v5972 = vpack.c.bf16 %v5845, %v5844
      %v5973 = vpack.c.bf16 %v5847, %v5846
      %v5974 = vpack.c.bf16 %v5849, %v5848
      %v5975 = vpack.c.bf16 %v5851, %v5850
      %v5976 = vpack.c.bf16 %v5853, %v5852
      %v5977 = vpack.c.bf16 %v5855, %v5854
      %v5978 = vpack.c.bf16 %v5857, %v5856
      %v5979 = vpack.c.bf16 %v5859, %v5858
      %v5980 = vpack.c.bf16 %v5861, %v5860
      %v5981 = vpack.c.bf16 %v5863, %v5862
      %v5982 = vpack.c.bf16 %v5865, %v5864
      %v5983 = vpack.c.bf16 %v5867, %v5866
      %v5984 = vpack.c.bf16 %v5869, %v5868
      %v5985 = vpack.c.bf16 %v5871, %v5870
      %v5986 = vpack.c.bf16 %v5873, %v5872
      %v5987 = vpack.c.bf16 %v5875, %v5874
      %v5988 = vpack.c.bf16 %v5877, %v5876
      %v5989 = vpack.c.bf16 %v5879, %v5878
      %v5990 = vpack.c.bf16 %v5881, %v5880
      %v5991 = vpack.c.bf16 %v5883, %v5882
      %v5992 = vpack.c.bf16 %v5885, %v5884
      %v5993 = vpack.c.bf16 %v5887, %v5886
      %v5994 = vpack.c.bf16 %v5889, %v5888
      %v5995 = vpack.c.bf16 %v5891, %v5890
      %v5996 = vpack.c.bf16 %v5893, %v5892
      %v5997 = vpack.c.bf16 %v5895, %v5894
      %v5998 = vpack.c.bf16 %v5897, %v5896
      %v5999 = vpack.c.bf16 %v5899, %v5898
      %v6000 = vpack.c.bf16 %v5901, %v5900
      %v6001 = vpack.c.bf16 %v5903, %v5902
      %v6002 = vpack.c.bf16 %v5905, %v5904
      %v6003 = vpack.c.bf16 %v5907, %v5906
      %v6004 = vpack.c.bf16 %v5909, %v5908
      %v6005 = vpack.c.bf16 %v5911, %v5910
      %v6006 = vpack.c.bf16 %v5913, %v5912
      %v6007 = vpack.c.bf16 %v5915, %v5914
      %v6008 = vpack.c.bf16 %v5917, %v5916
      %v6009 = vpack.c.bf16 %v5919, %v5918
      %v6010 = vpack.c.bf16 %v5921, %v5920
      %v6011 = vpack.c.bf16 %v5923, %v5922
      %v6012 = vpack.c.bf16 %v5925, %v5924
      %v6013 = vpack.c.bf16 %v5927, %v5926
      %v6014 = vpack.c.bf16 %v5929, %v5928
      %v6015 = vpack.c.bf16 %v5931, %v5930
      %v6016 = vpack.c.bf16 %v5933, %v5932
      %v6017 = vpack.c.bf16 %v5935, %v5934
      %v6018 = vpack.c.bf16 %v5937, %v5936
      %v6019 = vpack.c.bf16 %v5939, %v5938
      %v6020 = vpack.c.bf16 %v5941, %v5940
      %v6021 = vpack.c.bf16 %v5943, %v5942
      %v6022 = vpack.c.bf16 %v5945, %v5944
      %v6023 = vpack.c.bf16 %v5947, %v5946
      %v6024 = vpack.c.bf16 %v5949, %v5948
      %v6025 = vpack.c.bf16 %v5951, %v5950
      %v6026 = vpack.c.bf16 %v5953, %v5952
      %v6027 = vpack.c.bf16 %v5955, %v5954
      %v6028 = vpack.c.bf16 %v5957, %v5956
      %v6029 = vpack.c.bf16 %v5959, %v5958
      %v6030 = vpack.c.bf16 %v5961, %v5960
      %v6031 = vpack.c.bf16 %v5963, %v5962
      %v6032 = vpack.c.bf16 %v5965, %v5964
      %v6033 = vpack.c.bf16 %v5967, %v5966
      %v6034 = vpack.c.bf16 %v5969, %v5968
      %v6035 = vpack.c.bf16 %v5971, %v5970
      %s6036 = scalar_lea.vmem %s1, 14
      %v6037 = vld [vmem:[%s6036] sm:$0x3]
      %v6039 = vsel %vm559, %v5972, 0
      %v6042 = vsel %vm559, %v5973, 0
      %v6045 = vsel %vm559, %v5974, 0
      %v6048 = vsel %vm559, %v5975, 0
      %v6051 = vsel %vm559, %v5976, 0
      %v6054 = vsel %vm559, %v5977, 0
      %v6057 = vsel %vm559, %v5978, 0
      %v6060 = vsel %vm559, %v5979, 0
      %v6063 = vsel %vm559, %v5980, 0
      %v6066 = vsel %vm559, %v5981, 0
      %v6069 = vsel %vm559, %v5982, 0
      %v6072 = vsel %vm559, %v5983, 0
      %v6075 = vsel %vm559, %v5984, 0
      %v6078 = vsel %vm559, %v5985, 0
      %v6081 = vsel %vm559, %v5986, 0
      %v6084 = vsel %vm559, %v5987, 0
      %v6087 = vsel %vm559, %v5988, 0
      %v6090 = vsel %vm559, %v5989, 0
      %v6093 = vsel %vm559, %v5990, 0
      %v6096 = vsel %vm559, %v5991, 0
      %v6099 = vsel %vm559, %v5992, 0
      %v6102 = vsel %vm559, %v5993, 0
      %v6105 = vsel %vm559, %v5994, 0
      %v6108 = vsel %vm559, %v5995, 0
      %v6111 = vsel %vm559, %v5996, 0
      %v6114 = vsel %vm559, %v5997, 0
      %v6117 = vsel %vm559, %v5998, 0
      %v6120 = vsel %vm559, %v5999, 0
      %v6123 = vsel %vm559, %v6000, 0
      %v6126 = vsel %vm559, %v6001, 0
      %v6129 = vsel %vm559, %v6002, 0
      %v6132 = vsel %vm559, %v6003, 0
      %v6135 = vsel %vm559, %v6004, 0
      %v6138 = vsel %vm559, %v6005, 0
      %v6141 = vsel %vm559, %v6006, 0
      %v6144 = vsel %vm559, %v6007, 0
      %v6147 = vsel %vm559, %v6008, 0
      %v6150 = vsel %vm559, %v6009, 0
      %v6153 = vsel %vm559, %v6010, 0
      %v6156 = vsel %vm559, %v6011, 0
      %v6159 = vsel %vm559, %v6012, 0
      %v6162 = vsel %vm559, %v6013, 0
      %v6165 = vsel %vm559, %v6014, 0
      %v6168 = vsel %vm559, %v6015, 0
      %v6171 = vsel %vm559, %v6016, 0
      %v6174 = vsel %vm559, %v6017, 0
      %v6177 = vsel %vm559, %v6018, 0
      %v6180 = vsel %vm559, %v6019, 0
      %v6183 = vsel %vm559, %v6020, 0
      %v6186 = vsel %vm559, %v6021, 0
      %v6189 = vsel %vm559, %v6022, 0
      %v6192 = vsel %vm559, %v6023, 0
      %v6195 = vsel %vm559, %v6024, 0
      %v6198 = vsel %vm559, %v6025, 0
      %v6201 = vsel %vm559, %v6026, 0
      %v6204 = vsel %vm559, %v6027, 0
      %v6207 = vsel %vm559, %v6028, 0
      %v6210 = vsel %vm559, %v6029, 0
      %v6213 = vsel %vm559, %v6030, 0
      %v6216 = vsel %vm559, %v6031, 0
      %v6219 = vsel %vm559, %v6032, 0
      %v6222 = vsel %vm559, %v6033, 0
      %v6225 = vsel %vm559, %v6034, 0
      %v6228 = vsel %vm559, %v6035, 0
      %v6231 = vand.u32 %v6037, %v755
      %6233 = vmatpush.bf16.msra.mxu0 0
      %6234 = vmatpush.bf16.msra.mxu0 0
      %6235 = vmatpush.bf16.msra.mxu0 0
      %6236 = vmatpush.bf16.msra.mxu0 0
      %6237 = vmatpush.bf16.msra.mxu0 0
      %6238 = vmatpush.bf16.msra.mxu0 0
      %6239 = vmatpush.bf16.msra.mxu0 0
      %6240 = vmatpush.bf16.msra.mxu0 %v6231
      %6241 = vmatmul.bf16.gmra.mxu0 %v6039
      %v6242 = vpop.f32.mrf.mxu0
      %v6243 = vadd.f32 0.0, %v6242
      %v6244 = vpop.f32.mrf.mxu0
      %v6245 = vadd.f32 0.0, %v6244
      %6246 = vmatmul.bf16.gmra.mxu0 %v6042
      %v6247 = vpop.f32.mrf.mxu0
      %v6248 = vadd.f32 0.0, %v6247
      %v6249 = vpop.f32.mrf.mxu0
      %v6250 = vadd.f32 0.0, %v6249
      %6251 = vmatmul.bf16.gmra.mxu0 %v6045
      %v6252 = vpop.f32.mrf.mxu0
      %v6253 = vadd.f32 0.0, %v6252
      %v6254 = vpop.f32.mrf.mxu0
      %v6255 = vadd.f32 0.0, %v6254
      %6256 = vmatmul.bf16.gmra.mxu0 %v6048
      %v6257 = vpop.f32.mrf.mxu0
      %v6258 = vadd.f32 0.0, %v6257
      %v6259 = vpop.f32.mrf.mxu0
      %v6260 = vadd.f32 0.0, %v6259
      %6261 = vmatmul.bf16.gmra.mxu0 %v6051
      %v6262 = vpop.f32.mrf.mxu0
      %v6263 = vadd.f32 0.0, %v6262
      %v6264 = vpop.f32.mrf.mxu0
      %v6265 = vadd.f32 0.0, %v6264
      %6266 = vmatmul.bf16.gmra.mxu0 %v6054
      %v6267 = vpop.f32.mrf.mxu0
      %v6268 = vadd.f32 0.0, %v6267
      %v6269 = vpop.f32.mrf.mxu0
      %v6270 = vadd.f32 0.0, %v6269
      %6271 = vmatmul.bf16.gmra.mxu0 %v6057
      %v6272 = vpop.f32.mrf.mxu0
      %v6273 = vadd.f32 0.0, %v6272
      %v6274 = vpop.f32.mrf.mxu0
      %v6275 = vadd.f32 0.0, %v6274
      %6276 = vmatmul.bf16.gmra.mxu0 %v6060
      %v6277 = vpop.f32.mrf.mxu0
      %v6278 = vadd.f32 0.0, %v6277
      %v6279 = vpop.f32.mrf.mxu0
      %v6280 = vadd.f32 0.0, %v6279
      %6281 = vmatmul.bf16.gmra.mxu0 %v6063
      %v6282 = vpop.f32.mrf.mxu0
      %v6283 = vadd.f32 0.0, %v6282
      %v6284 = vpop.f32.mrf.mxu0
      %v6285 = vadd.f32 0.0, %v6284
      %6286 = vmatmul.bf16.gmra.mxu0 %v6066
      %v6287 = vpop.f32.mrf.mxu0
      %v6288 = vadd.f32 0.0, %v6287
      %v6289 = vpop.f32.mrf.mxu0
      %v6290 = vadd.f32 0.0, %v6289
      %6291 = vmatmul.bf16.gmra.mxu0 %v6069
      %v6292 = vpop.f32.mrf.mxu0
      %v6293 = vadd.f32 0.0, %v6292
      %v6294 = vpop.f32.mrf.mxu0
      %v6295 = vadd.f32 0.0, %v6294
      %6296 = vmatmul.bf16.gmra.mxu0 %v6072
      %v6297 = vpop.f32.mrf.mxu0
      %v6298 = vadd.f32 0.0, %v6297
      %v6299 = vpop.f32.mrf.mxu0
      %v6300 = vadd.f32 0.0, %v6299
      %6301 = vmatmul.bf16.gmra.mxu0 %v6075
      %v6302 = vpop.f32.mrf.mxu0
      %v6303 = vadd.f32 0.0, %v6302
      %v6304 = vpop.f32.mrf.mxu0
      %v6305 = vadd.f32 0.0, %v6304
      %6306 = vmatmul.bf16.gmra.mxu0 %v6078
      %v6307 = vpop.f32.mrf.mxu0
      %v6308 = vadd.f32 0.0, %v6307
      %v6309 = vpop.f32.mrf.mxu0
      %v6310 = vadd.f32 0.0, %v6309
      %6311 = vmatmul.bf16.gmra.mxu0 %v6081
      %v6312 = vpop.f32.mrf.mxu0
      %v6313 = vadd.f32 0.0, %v6312
      %v6314 = vpop.f32.mrf.mxu0
      %v6315 = vadd.f32 0.0, %v6314
      %6316 = vmatmul.bf16.gmra.mxu0 %v6084
      %v6317 = vpop.f32.mrf.mxu0
      %v6318 = vadd.f32 0.0, %v6317
      %v6319 = vpop.f32.mrf.mxu0
      %v6320 = vadd.f32 0.0, %v6319
      %6321 = vmatmul.bf16.gmra.mxu0 %v6087
      %v6322 = vpop.f32.mrf.mxu0
      %v6323 = vadd.f32 0.0, %v6322
      %v6324 = vpop.f32.mrf.mxu0
      %v6325 = vadd.f32 0.0, %v6324
      %6326 = vmatmul.bf16.gmra.mxu0 %v6090
      %v6327 = vpop.f32.mrf.mxu0
      %v6328 = vadd.f32 0.0, %v6327
      %v6329 = vpop.f32.mrf.mxu0
      %v6330 = vadd.f32 0.0, %v6329
      %6331 = vmatmul.bf16.gmra.mxu0 %v6093
      %v6332 = vpop.f32.mrf.mxu0
      %v6333 = vadd.f32 0.0, %v6332
      %v6334 = vpop.f32.mrf.mxu0
      %v6335 = vadd.f32 0.0, %v6334
      %6336 = vmatmul.bf16.gmra.mxu0 %v6096
      %v6337 = vpop.f32.mrf.mxu0
      %v6338 = vadd.f32 0.0, %v6337
      %v6339 = vpop.f32.mrf.mxu0
      %v6340 = vadd.f32 0.0, %v6339
      %6341 = vmatmul.bf16.gmra.mxu0 %v6099
      %v6342 = vpop.f32.mrf.mxu0
      %v6343 = vadd.f32 0.0, %v6342
      %v6344 = vpop.f32.mrf.mxu0
      %v6345 = vadd.f32 0.0, %v6344
      %6346 = vmatmul.bf16.gmra.mxu0 %v6102
      %v6347 = vpop.f32.mrf.mxu0
      %v6348 = vadd.f32 0.0, %v6347
      %v6349 = vpop.f32.mrf.mxu0
      %v6350 = vadd.f32 0.0, %v6349
      %6351 = vmatmul.bf16.gmra.mxu0 %v6105
      %v6352 = vpop.f32.mrf.mxu0
      %v6353 = vadd.f32 0.0, %v6352
      %v6354 = vpop.f32.mrf.mxu0
      %v6355 = vadd.f32 0.0, %v6354
      %6356 = vmatmul.bf16.gmra.mxu0 %v6108
      %v6357 = vpop.f32.mrf.mxu0
      %v6358 = vadd.f32 0.0, %v6357
      %v6359 = vpop.f32.mrf.mxu0
      %v6360 = vadd.f32 0.0, %v6359
      %6361 = vmatmul.bf16.gmra.mxu0 %v6111
      %v6362 = vpop.f32.mrf.mxu0
      %v6363 = vadd.f32 0.0, %v6362
      %v6364 = vpop.f32.mrf.mxu0
      %v6365 = vadd.f32 0.0, %v6364
      %6366 = vmatmul.bf16.gmra.mxu0 %v6114
      %v6367 = vpop.f32.mrf.mxu0
      %v6368 = vadd.f32 0.0, %v6367
      %v6369 = vpop.f32.mrf.mxu0
      %v6370 = vadd.f32 0.0, %v6369
      %6371 = vmatmul.bf16.gmra.mxu0 %v6117
      %v6372 = vpop.f32.mrf.mxu0
      %v6373 = vadd.f32 0.0, %v6372
      %v6374 = vpop.f32.mrf.mxu0
      %v6375 = vadd.f32 0.0, %v6374
      %6376 = vmatmul.bf16.gmra.mxu0 %v6120
      %v6377 = vpop.f32.mrf.mxu0
      %v6378 = vadd.f32 0.0, %v6377
      %v6379 = vpop.f32.mrf.mxu0
      %v6380 = vadd.f32 0.0, %v6379
      %6381 = vmatmul.bf16.gmra.mxu0 %v6123
      %v6382 = vpop.f32.mrf.mxu0
      %v6383 = vadd.f32 0.0, %v6382
      %v6384 = vpop.f32.mrf.mxu0
      %v6385 = vadd.f32 0.0, %v6384
      %6386 = vmatmul.bf16.gmra.mxu0 %v6126
      %v6387 = vpop.f32.mrf.mxu0
      %v6388 = vadd.f32 0.0, %v6387
      %v6389 = vpop.f32.mrf.mxu0
      %v6390 = vadd.f32 0.0, %v6389
      %6391 = vmatmul.bf16.gmra.mxu0 %v6129
      %v6392 = vpop.f32.mrf.mxu0
      %v6393 = vadd.f32 0.0, %v6392
      %v6394 = vpop.f32.mrf.mxu0
      %v6395 = vadd.f32 0.0, %v6394
      %6396 = vmatmul.bf16.gmra.mxu0 %v6132
      %v6397 = vpop.f32.mrf.mxu0
      %v6398 = vadd.f32 0.0, %v6397
      %v6399 = vpop.f32.mrf.mxu0
      %v6400 = vadd.f32 0.0, %v6399
      %6401 = vmatmul.bf16.gmra.mxu0 %v6135
      %v6402 = vpop.f32.mrf.mxu0
      %v6403 = vadd.f32 0.0, %v6402
      %v6404 = vpop.f32.mrf.mxu0
      %v6405 = vadd.f32 0.0, %v6404
      %6406 = vmatmul.bf16.gmra.mxu0 %v6138
      %v6407 = vpop.f32.mrf.mxu0
      %v6408 = vadd.f32 0.0, %v6407
      %v6409 = vpop.f32.mrf.mxu0
      %v6410 = vadd.f32 0.0, %v6409
      %6411 = vmatmul.bf16.gmra.mxu0 %v6141
      %v6412 = vpop.f32.mrf.mxu0
      %v6413 = vadd.f32 0.0, %v6412
      %v6414 = vpop.f32.mrf.mxu0
      %v6415 = vadd.f32 0.0, %v6414
      %6416 = vmatmul.bf16.gmra.mxu0 %v6144
      %v6417 = vpop.f32.mrf.mxu0
      %v6418 = vadd.f32 0.0, %v6417
      %v6419 = vpop.f32.mrf.mxu0
      %v6420 = vadd.f32 0.0, %v6419
      %6421 = vmatmul.bf16.gmra.mxu0 %v6147
      %v6422 = vpop.f32.mrf.mxu0
      %v6423 = vadd.f32 0.0, %v6422
      %v6424 = vpop.f32.mrf.mxu0
      %v6425 = vadd.f32 0.0, %v6424
      %6426 = vmatmul.bf16.gmra.mxu0 %v6150
      %v6427 = vpop.f32.mrf.mxu0
      %v6428 = vadd.f32 0.0, %v6427
      %v6429 = vpop.f32.mrf.mxu0
      %v6430 = vadd.f32 0.0, %v6429
      %6431 = vmatmul.bf16.gmra.mxu0 %v6153
      %v6432 = vpop.f32.mrf.mxu0
      %v6433 = vadd.f32 0.0, %v6432
      %v6434 = vpop.f32.mrf.mxu0
      %v6435 = vadd.f32 0.0, %v6434
      %6436 = vmatmul.bf16.gmra.mxu0 %v6156
      %v6437 = vpop.f32.mrf.mxu0
      %v6438 = vadd.f32 0.0, %v6437
      %v6439 = vpop.f32.mrf.mxu0
      %v6440 = vadd.f32 0.0, %v6439
      %6441 = vmatmul.bf16.gmra.mxu0 %v6159
      %v6442 = vpop.f32.mrf.mxu0
      %v6443 = vadd.f32 0.0, %v6442
      %v6444 = vpop.f32.mrf.mxu0
      %v6445 = vadd.f32 0.0, %v6444
      %6446 = vmatmul.bf16.gmra.mxu0 %v6162
      %v6447 = vpop.f32.mrf.mxu0
      %v6448 = vadd.f32 0.0, %v6447
      %v6449 = vpop.f32.mrf.mxu0
      %v6450 = vadd.f32 0.0, %v6449
      %6451 = vmatmul.bf16.gmra.mxu0 %v6165
      %v6452 = vpop.f32.mrf.mxu0
      %v6453 = vadd.f32 0.0, %v6452
      %v6454 = vpop.f32.mrf.mxu0
      %v6455 = vadd.f32 0.0, %v6454
      %6456 = vmatmul.bf16.gmra.mxu0 %v6168
      %v6457 = vpop.f32.mrf.mxu0
      %v6458 = vadd.f32 0.0, %v6457
      %v6459 = vpop.f32.mrf.mxu0
      %v6460 = vadd.f32 0.0, %v6459
      %6461 = vmatmul.bf16.gmra.mxu0 %v6171
      %v6462 = vpop.f32.mrf.mxu0
      %v6463 = vadd.f32 0.0, %v6462
      %v6464 = vpop.f32.mrf.mxu0
      %v6465 = vadd.f32 0.0, %v6464
      %6466 = vmatmul.bf16.gmra.mxu0 %v6174
      %v6467 = vpop.f32.mrf.mxu0
      %v6468 = vadd.f32 0.0, %v6467
      %v6469 = vpop.f32.mrf.mxu0
      %v6470 = vadd.f32 0.0, %v6469
      %6471 = vmatmul.bf16.gmra.mxu0 %v6177
      %v6472 = vpop.f32.mrf.mxu0
      %v6473 = vadd.f32 0.0, %v6472
      %v6474 = vpop.f32.mrf.mxu0
      %v6475 = vadd.f32 0.0, %v6474
      %6476 = vmatmul.bf16.gmra.mxu0 %v6180
      %v6477 = vpop.f32.mrf.mxu0
      %v6478 = vadd.f32 0.0, %v6477
      %v6479 = vpop.f32.mrf.mxu0
      %v6480 = vadd.f32 0.0, %v6479
      %6481 = vmatmul.bf16.gmra.mxu0 %v6183
      %v6482 = vpop.f32.mrf.mxu0
      %v6483 = vadd.f32 0.0, %v6482
      %v6484 = vpop.f32.mrf.mxu0
      %v6485 = vadd.f32 0.0, %v6484
      %6486 = vmatmul.bf16.gmra.mxu0 %v6186
      %v6487 = vpop.f32.mrf.mxu0
      %v6488 = vadd.f32 0.0, %v6487
      %v6489 = vpop.f32.mrf.mxu0
      %v6490 = vadd.f32 0.0, %v6489
      %6491 = vmatmul.bf16.gmra.mxu0 %v6189
      %v6492 = vpop.f32.mrf.mxu0
      %v6493 = vadd.f32 0.0, %v6492
      %v6494 = vpop.f32.mrf.mxu0
      %v6495 = vadd.f32 0.0, %v6494
      %6496 = vmatmul.bf16.gmra.mxu0 %v6192
      %v6497 = vpop.f32.mrf.mxu0
      %v6498 = vadd.f32 0.0, %v6497
      %v6499 = vpop.f32.mrf.mxu0
      %v6500 = vadd.f32 0.0, %v6499
      %6501 = vmatmul.bf16.gmra.mxu0 %v6195
      %v6502 = vpop.f32.mrf.mxu0
      %v6503 = vadd.f32 0.0, %v6502
      %v6504 = vpop.f32.mrf.mxu0
      %v6505 = vadd.f32 0.0, %v6504
      %6506 = vmatmul.bf16.gmra.mxu0 %v6198
      %v6507 = vpop.f32.mrf.mxu0
      %v6508 = vadd.f32 0.0, %v6507
      %v6509 = vpop.f32.mrf.mxu0
      %v6510 = vadd.f32 0.0, %v6509
      %6511 = vmatmul.bf16.gmra.mxu0 %v6201
      %v6512 = vpop.f32.mrf.mxu0
      %v6513 = vadd.f32 0.0, %v6512
      %v6514 = vpop.f32.mrf.mxu0
      %v6515 = vadd.f32 0.0, %v6514
      %6516 = vmatmul.bf16.gmra.mxu0 %v6204
      %v6517 = vpop.f32.mrf.mxu0
      %v6518 = vadd.f32 0.0, %v6517
      %v6519 = vpop.f32.mrf.mxu0
      %v6520 = vadd.f32 0.0, %v6519
      %6521 = vmatmul.bf16.gmra.mxu0 %v6207
      %v6522 = vpop.f32.mrf.mxu0
      %v6523 = vadd.f32 0.0, %v6522
      %v6524 = vpop.f32.mrf.mxu0
      %v6525 = vadd.f32 0.0, %v6524
      %6526 = vmatmul.bf16.gmra.mxu0 %v6210
      %v6527 = vpop.f32.mrf.mxu0
      %v6528 = vadd.f32 0.0, %v6527
      %v6529 = vpop.f32.mrf.mxu0
      %v6530 = vadd.f32 0.0, %v6529
      %6531 = vmatmul.bf16.gmra.mxu0 %v6213
      %v6532 = vpop.f32.mrf.mxu0
      %v6533 = vadd.f32 0.0, %v6532
      %v6534 = vpop.f32.mrf.mxu0
      %v6535 = vadd.f32 0.0, %v6534
      %6536 = vmatmul.bf16.gmra.mxu0 %v6216
      %v6537 = vpop.f32.mrf.mxu0
      %v6538 = vadd.f32 0.0, %v6537
      %v6539 = vpop.f32.mrf.mxu0
      %v6540 = vadd.f32 0.0, %v6539
      %6541 = vmatmul.bf16.gmra.mxu0 %v6219
      %v6542 = vpop.f32.mrf.mxu0
      %v6543 = vadd.f32 0.0, %v6542
      %v6544 = vpop.f32.mrf.mxu0
      %v6545 = vadd.f32 0.0, %v6544
      %6546 = vmatmul.bf16.gmra.mxu0 %v6222
      %v6547 = vpop.f32.mrf.mxu0
      %v6548 = vadd.f32 0.0, %v6547
      %v6549 = vpop.f32.mrf.mxu0
      %v6550 = vadd.f32 0.0, %v6549
      %6551 = vmatmul.bf16.gmra.mxu0 %v6225
      %v6552 = vpop.f32.mrf.mxu0
      %v6553 = vadd.f32 0.0, %v6552
      %v6554 = vpop.f32.mrf.mxu0
      %v6555 = vadd.f32 0.0, %v6554
      %6556 = vmatmul.bf16.gmra.mxu0 %v6228
      %v6557 = vpop.f32.mrf.mxu0
      %v6558 = vadd.f32 0.0, %v6557
      %v6559 = vpop.f32.mrf.mxu0
      %v6560 = vadd.f32 0.0, %v6559
      %6561 = vdwg.mxu0
      %v6562 = vadd.f32 %v5716, %v6243
      %v6563 = vadd.f32 %v5717, %v6245
      %v6564 = vadd.f32 %v5718, %v6248
      %v6565 = vadd.f32 %v5719, %v6250
      %v6566 = vadd.f32 %v5720, %v6253
      %v6567 = vadd.f32 %v5721, %v6255
      %v6568 = vadd.f32 %v5722, %v6258
      %v6569 = vadd.f32 %v5723, %v6260
      %v6570 = vadd.f32 %v5724, %v6263
      %v6571 = vadd.f32 %v5725, %v6265
      %v6572 = vadd.f32 %v5726, %v6268
      %v6573 = vadd.f32 %v5727, %v6270
      %v6574 = vadd.f32 %v5728, %v6273
      %v6575 = vadd.f32 %v5729, %v6275
      %v6576 = vadd.f32 %v5730, %v6278
      %v6577 = vadd.f32 %v5731, %v6280
      %v6578 = vadd.f32 %v5732, %v6283
      %v6579 = vadd.f32 %v5733, %v6285
      %v6580 = vadd.f32 %v5734, %v6288
      %v6581 = vadd.f32 %v5735, %v6290
      %v6582 = vadd.f32 %v5736, %v6293
      %v6583 = vadd.f32 %v5737, %v6295
      %v6584 = vadd.f32 %v5738, %v6298
      %v6585 = vadd.f32 %v5739, %v6300
      %v6586 = vadd.f32 %v5740, %v6303
      %v6587 = vadd.f32 %v5741, %v6305
      %v6588 = vadd.f32 %v5742, %v6308
      %v6589 = vadd.f32 %v5743, %v6310
      %v6590 = vadd.f32 %v5744, %v6313
      %v6591 = vadd.f32 %v5745, %v6315
      %v6592 = vadd.f32 %v5746, %v6318
      %v6593 = vadd.f32 %v5747, %v6320
      %v6594 = vadd.f32 %v5748, %v6323
      %v6595 = vadd.f32 %v5749, %v6325
      %v6596 = vadd.f32 %v5750, %v6328
      %v6597 = vadd.f32 %v5751, %v6330
      %v6598 = vadd.f32 %v5752, %v6333
      %v6599 = vadd.f32 %v5753, %v6335
      %v6600 = vadd.f32 %v5754, %v6338
      %v6601 = vadd.f32 %v5755, %v6340
      %v6602 = vadd.f32 %v5756, %v6343
      %v6603 = vadd.f32 %v5757, %v6345
      %v6604 = vadd.f32 %v5758, %v6348
      %v6605 = vadd.f32 %v5759, %v6350
      %v6606 = vadd.f32 %v5760, %v6353
      %v6607 = vadd.f32 %v5761, %v6355
      %v6608 = vadd.f32 %v5762, %v6358
      %v6609 = vadd.f32 %v5763, %v6360
      %v6610 = vadd.f32 %v5764, %v6363
      %v6611 = vadd.f32 %v5765, %v6365
      %v6612 = vadd.f32 %v5766, %v6368
      %v6613 = vadd.f32 %v5767, %v6370
      %v6614 = vadd.f32 %v5768, %v6373
      %v6615 = vadd.f32 %v5769, %v6375
      %v6616 = vadd.f32 %v5770, %v6378
      %v6617 = vadd.f32 %v5771, %v6380
      %v6618 = vadd.f32 %v5772, %v6383
      %v6619 = vadd.f32 %v5773, %v6385
      %v6620 = vadd.f32 %v5774, %v6388
      %v6621 = vadd.f32 %v5775, %v6390
      %v6622 = vadd.f32 %v5776, %v6393
      %v6623 = vadd.f32 %v5777, %v6395
      %v6624 = vadd.f32 %v5778, %v6398
      %v6625 = vadd.f32 %v5779, %v6400
      %v6626 = vadd.f32 %v5780, %v6403
      %v6627 = vadd.f32 %v5781, %v6405
      %v6628 = vadd.f32 %v5782, %v6408
      %v6629 = vadd.f32 %v5783, %v6410
      %v6630 = vadd.f32 %v5784, %v6413
      %v6631 = vadd.f32 %v5785, %v6415
      %v6632 = vadd.f32 %v5786, %v6418
      %v6633 = vadd.f32 %v5787, %v6420
      %v6634 = vadd.f32 %v5788, %v6423
      %v6635 = vadd.f32 %v5789, %v6425
      %v6636 = vadd.f32 %v5790, %v6428
      %v6637 = vadd.f32 %v5791, %v6430
      %v6638 = vadd.f32 %v5792, %v6433
      %v6639 = vadd.f32 %v5793, %v6435
      %v6640 = vadd.f32 %v5794, %v6438
      %v6641 = vadd.f32 %v5795, %v6440
      %v6642 = vadd.f32 %v5796, %v6443
      %v6643 = vadd.f32 %v5797, %v6445
      %v6644 = vadd.f32 %v5798, %v6448
      %v6645 = vadd.f32 %v5799, %v6450
      %v6646 = vadd.f32 %v5800, %v6453
      %v6647 = vadd.f32 %v5801, %v6455
      %v6648 = vadd.f32 %v5802, %v6458
      %v6649 = vadd.f32 %v5803, %v6460
      %v6650 = vadd.f32 %v5804, %v6463
      %v6651 = vadd.f32 %v5805, %v6465
      %v6652 = vadd.f32 %v5806, %v6468
      %v6653 = vadd.f32 %v5807, %v6470
      %v6654 = vadd.f32 %v5808, %v6473
      %v6655 = vadd.f32 %v5809, %v6475
      %v6656 = vadd.f32 %v5810, %v6478
      %v6657 = vadd.f32 %v5811, %v6480
      %v6658 = vadd.f32 %v5812, %v6483
      %v6659 = vadd.f32 %v5813, %v6485
      %v6660 = vadd.f32 %v5814, %v6488
      %v6661 = vadd.f32 %v5815, %v6490
      %v6662 = vadd.f32 %v5816, %v6493
      %v6663 = vadd.f32 %v5817, %v6495
      %v6664 = vadd.f32 %v5818, %v6498
      %v6665 = vadd.f32 %v5819, %v6500
      %v6666 = vadd.f32 %v5820, %v6503
      %v6667 = vadd.f32 %v5821, %v6505
      %v6668 = vadd.f32 %v5822, %v6508
      %v6669 = vadd.f32 %v5823, %v6510
      %v6670 = vadd.f32 %v5824, %v6513
      %v6671 = vadd.f32 %v5825, %v6515
      %v6672 = vadd.f32 %v5826, %v6518
      %v6673 = vadd.f32 %v5827, %v6520
      %v6674 = vadd.f32 %v5828, %v6523
      %v6675 = vadd.f32 %v5829, %v6525
      %v6676 = vadd.f32 %v5830, %v6528
      %v6677 = vadd.f32 %v5831, %v6530
      %v6678 = vadd.f32 %v5832, %v6533
      %v6679 = vadd.f32 %v5833, %v6535
      %v6680 = vadd.f32 %v5834, %v6538
      %v6681 = vadd.f32 %v5835, %v6540
      %v6682 = vadd.f32 %v5836, %v6543
      %v6683 = vadd.f32 %v5837, %v6545
      %v6684 = vadd.f32 %v5838, %v6548
      %v6685 = vadd.f32 %v5839, %v6550
      %v6686 = vadd.f32 %v5840, %v6553
      %v6687 = vadd.f32 %v5841, %v6555
      %v6688 = vadd.f32 %v5842, %v6558
      %v6689 = vadd.f32 %v5843, %v6560
      %v6690 = vld [vmem:[%s4997 + $0x2] sm:$0xff]
      %v6691 = vld [vmem:[%s4997 + $0xa] sm:$0xff]
      %v6692 = vld [vmem:[%s4997 + $0x12] sm:$0xff]
      %v6693 = vld [vmem:[%s4997 + $0x1a] sm:$0xff]
      %v6694 = vld [vmem:[%s4997 + $0x2a] sm:$0xff]
      %v6695 = vld [vmem:[%s4997 + $0x32] sm:$0xff]
      %v6696 = vld [vmem:[%s4997 + $0x3a] sm:$0xff]
      %v6697 = vld [vmem:[%s4997 + $0x42] sm:$0xff]
      %v6698 = vld [vmem:[%s4997 + $0x52] sm:$0xff]
      %v6699 = vld [vmem:[%s4997 + $0x5a] sm:$0xff]
      %v6700 = vld [vmem:[%s4997 + $0x62] sm:$0xff]
      %v6701 = vld [vmem:[%s4997 + $0x6a] sm:$0xff]
      %v6702 = vld [vmem:[%s4997 + $0x7a] sm:$0xff]
      %v6703 = vld [vmem:[%s4997 + $0x82] sm:$0xff]
      %v6704 = vld [vmem:[%s4997 + $0x8a] sm:$0xff]
      %v6705 = vld [vmem:[%s4997 + $0x92] sm:$0xff]
      %v6706 = vld [vmem:[%s4997 + $0xa2] sm:$0xff]
      %v6707 = vld [vmem:[%s4997 + $0xaa] sm:$0xff]
      %v6708 = vld [vmem:[%s4997 + $0xb2] sm:$0xff]
      %v6709 = vld [vmem:[%s4997 + $0xba] sm:$0xff]
      %v6710 = vld [vmem:[%s4997 + $0xca] sm:$0xff]
      %v6711 = vld [vmem:[%s4997 + $0xd2] sm:$0xff]
      %v6712 = vld [vmem:[%s4997 + $0xda] sm:$0xff]
      %v6713 = vld [vmem:[%s4997 + $0xe2] sm:$0xff]
      %v6714 = vld [vmem:[%s4997 + $0xf2] sm:$0xff]
      %v6715 = vld [vmem:[%s4997 + $0xfa] sm:$0xff]
      %v6716 = vld [vmem:[%s4997 + $0x102] sm:$0xff]
      %v6717 = vld [vmem:[%s4997 + $0x10a] sm:$0xff]
      %v6718 = vld [vmem:[%s4997 + $0x11a] sm:$0xff]
      %v6719 = vld [vmem:[%s4997 + $0x122] sm:$0xff]
      %v6720 = vld [vmem:[%s4997 + $0x12a] sm:$0xff]
      %v6721 = vld [vmem:[%s4997 + $0x132] sm:$0xff]
      %v6722 = vld [vmem:[%s4997 + $0x142] sm:$0xff]
      %v6723 = vld [vmem:[%s4997 + $0x14a] sm:$0xff]
      %v6724 = vld [vmem:[%s4997 + $0x152] sm:$0xff]
      %v6725 = vld [vmem:[%s4997 + $0x15a] sm:$0xff]
      %v6726 = vld [vmem:[%s4997 + $0x16a] sm:$0xff]
      %v6727 = vld [vmem:[%s4997 + $0x172] sm:$0xff]
      %v6728 = vld [vmem:[%s4997 + $0x17a] sm:$0xff]
      %v6729 = vld [vmem:[%s4997 + $0x182] sm:$0xff]
      %v6730 = vld [vmem:[%s4997 + $0x192] sm:$0xff]
      %v6731 = vld [vmem:[%s4997 + $0x19a] sm:$0xff]
      %v6732 = vld [vmem:[%s4997 + $0x1a2] sm:$0xff]
      %v6733 = vld [vmem:[%s4997 + $0x1aa] sm:$0xff]
      %v6734 = vld [vmem:[%s4997 + $0x1ba] sm:$0xff]
      %v6735 = vld [vmem:[%s4997 + $0x1c2] sm:$0xff]
      %v6736 = vld [vmem:[%s4997 + $0x1ca] sm:$0xff]
      %v6737 = vld [vmem:[%s4997 + $0x1d2] sm:$0xff]
      %v6738 = vld [vmem:[%s4997 + $0x1e2] sm:$0xff]
      %v6739 = vld [vmem:[%s4997 + $0x1ea] sm:$0xff]
      %v6740 = vld [vmem:[%s4997 + $0x1f2] sm:$0xff]
      %v6741 = vld [vmem:[%s4997 + $0x1fa] sm:$0xff]
      %v6742 = vld [vmem:[%s4997 + $0x20a] sm:$0xff]
      %v6743 = vld [vmem:[%s4997 + $0x212] sm:$0xff]
      %v6744 = vld [vmem:[%s4997 + $0x21a] sm:$0xff]
      %v6745 = vld [vmem:[%s4997 + $0x222] sm:$0xff]
      %v6746 = vld [vmem:[%s4997 + $0x232] sm:$0xff]
      %v6747 = vld [vmem:[%s4997 + $0x23a] sm:$0xff]
      %v6748 = vld [vmem:[%s4997 + $0x242] sm:$0xff]
      %v6749 = vld [vmem:[%s4997 + $0x24a] sm:$0xff]
      %v6750 = vld [vmem:[%s4997 + $0x25a] sm:$0xff]
      %v6751 = vld [vmem:[%s4997 + $0x262] sm:$0xff]
      %v6752 = vld [vmem:[%s4997 + $0x26a] sm:$0xff]
      %v6753 = vld [vmem:[%s4997 + $0x272] sm:$0xff]
      %v6754 = vld [vmem:[%s4997 + $0x282] sm:$0xff]
      %v6755 = vld [vmem:[%s4997 + $0x28a] sm:$0xff]
      %v6756 = vld [vmem:[%s4997 + $0x292] sm:$0xff]
      %v6757 = vld [vmem:[%s4997 + $0x29a] sm:$0xff]
      %v6758 = vld [vmem:[%s4997 + $0x2aa] sm:$0xff]
      %v6759 = vld [vmem:[%s4997 + $0x2b2] sm:$0xff]
      %v6760 = vld [vmem:[%s4997 + $0x2ba] sm:$0xff]
      %v6761 = vld [vmem:[%s4997 + $0x2c2] sm:$0xff]
      %v6762 = vld [vmem:[%s4997 + $0x2d2] sm:$0xff]
      %v6763 = vld [vmem:[%s4997 + $0x2da] sm:$0xff]
      %v6764 = vld [vmem:[%s4997 + $0x2e2] sm:$0xff]
      %v6765 = vld [vmem:[%s4997 + $0x2ea] sm:$0xff]
      %v6766 = vld [vmem:[%s4997 + $0x2fa] sm:$0xff]
      %v6767 = vld [vmem:[%s4997 + $0x302] sm:$0xff]
      %v6768 = vld [vmem:[%s4997 + $0x30a] sm:$0xff]
      %v6769 = vld [vmem:[%s4997 + $0x312] sm:$0xff]
      %v6770 = vld [vmem:[%s4997 + $0x322] sm:$0xff]
      %v6771 = vld [vmem:[%s4997 + $0x32a] sm:$0xff]
      %v6772 = vld [vmem:[%s4997 + $0x332] sm:$0xff]
      %v6773 = vld [vmem:[%s4997 + $0x33a] sm:$0xff]
      %v6774 = vld [vmem:[%s4997 + $0x34a] sm:$0xff]
      %v6775 = vld [vmem:[%s4997 + $0x352] sm:$0xff]
      %v6776 = vld [vmem:[%s4997 + $0x35a] sm:$0xff]
      %v6777 = vld [vmem:[%s4997 + $0x362] sm:$0xff]
      %v6778 = vld [vmem:[%s4997 + $0x372] sm:$0xff]
      %v6779 = vld [vmem:[%s4997 + $0x37a] sm:$0xff]
      %v6780 = vld [vmem:[%s4997 + $0x382] sm:$0xff]
      %v6781 = vld [vmem:[%s4997 + $0x38a] sm:$0xff]
      %v6782 = vld [vmem:[%s4997 + $0x39a] sm:$0xff]
      %v6783 = vld [vmem:[%s4997 + $0x3a2] sm:$0xff]
      %v6784 = vld [vmem:[%s4997 + $0x3aa] sm:$0xff]
      %v6785 = vld [vmem:[%s4997 + $0x3b2] sm:$0xff]
      %v6786 = vld [vmem:[%s4997 + $0x3c2] sm:$0xff]
      %v6787 = vld [vmem:[%s4997 + $0x3ca] sm:$0xff]
      %v6788 = vld [vmem:[%s4997 + $0x3d2] sm:$0xff]
      %v6789 = vld [vmem:[%s4997 + $0x3da] sm:$0xff]
      %v6790 = vld [vmem:[%s4997 + $0x3ea] sm:$0xff]
      %v6791 = vld [vmem:[%s4997 + $0x3f2] sm:$0xff]
      %v6792 = vld [vmem:[%s4997 + $0x3fa] sm:$0xff]
      %v6793 = vld [vmem:[%s4997 + $0x402] sm:$0xff]
      %v6794 = vld [vmem:[%s4997 + $0x412] sm:$0xff]
      %v6795 = vld [vmem:[%s4997 + $0x41a] sm:$0xff]
      %v6796 = vld [vmem:[%s4997 + $0x422] sm:$0xff]
      %v6797 = vld [vmem:[%s4997 + $0x42a] sm:$0xff]
      %v6798 = vld [vmem:[%s4997 + $0x43a] sm:$0xff]
      %v6799 = vld [vmem:[%s4997 + $0x442] sm:$0xff]
      %v6800 = vld [vmem:[%s4997 + $0x44a] sm:$0xff]
      %v6801 = vld [vmem:[%s4997 + $0x452] sm:$0xff]
      %v6802 = vld [vmem:[%s4997 + $0x462] sm:$0xff]
      %v6803 = vld [vmem:[%s4997 + $0x46a] sm:$0xff]
      %v6804 = vld [vmem:[%s4997 + $0x472] sm:$0xff]
      %v6805 = vld [vmem:[%s4997 + $0x47a] sm:$0xff]
      %v6806 = vld [vmem:[%s4997 + $0x48a] sm:$0xff]
      %v6807 = vld [vmem:[%s4997 + $0x492] sm:$0xff]
      %v6808 = vld [vmem:[%s4997 + $0x49a] sm:$0xff]
      %v6809 = vld [vmem:[%s4997 + $0x4a2] sm:$0xff]
      %v6810 = vld [vmem:[%s4997 + $0x4b2] sm:$0xff]
      %v6811 = vld [vmem:[%s4997 + $0x4ba] sm:$0xff]
      %v6812 = vld [vmem:[%s4997 + $0x4c2] sm:$0xff]
      %v6813 = vld [vmem:[%s4997 + $0x4ca] sm:$0xff]
      %v6814 = vld [vmem:[%s4997 + $0x4da] sm:$0xff]
      %v6815 = vld [vmem:[%s4997 + $0x4e2] sm:$0xff]
      %v6816 = vld [vmem:[%s4997 + $0x4ea] sm:$0xff]
      %v6817 = vld [vmem:[%s4997 + $0x4f2] sm:$0xff]
      %v6818 = vpack.c.bf16 %v6691, %v6690
      %v6819 = vpack.c.bf16 %v6693, %v6692
      %v6820 = vpack.c.bf16 %v6695, %v6694
      %v6821 = vpack.c.bf16 %v6697, %v6696
      %v6822 = vpack.c.bf16 %v6699, %v6698
      %v6823 = vpack.c.bf16 %v6701, %v6700
      %v6824 = vpack.c.bf16 %v6703, %v6702
      %v6825 = vpack.c.bf16 %v6705, %v6704
      %v6826 = vpack.c.bf16 %v6707, %v6706
      %v6827 = vpack.c.bf16 %v6709, %v6708
      %v6828 = vpack.c.bf16 %v6711, %v6710
      %v6829 = vpack.c.bf16 %v6713, %v6712
      %v6830 = vpack.c.bf16 %v6715, %v6714
      %v6831 = vpack.c.bf16 %v6717, %v6716
      %v6832 = vpack.c.bf16 %v6719, %v6718
      %v6833 = vpack.c.bf16 %v6721, %v6720
      %v6834 = vpack.c.bf16 %v6723, %v6722
      %v6835 = vpack.c.bf16 %v6725, %v6724
      %v6836 = vpack.c.bf16 %v6727, %v6726
      %v6837 = vpack.c.bf16 %v6729, %v6728
      %v6838 = vpack.c.bf16 %v6731, %v6730
      %v6839 = vpack.c.bf16 %v6733, %v6732
      %v6840 = vpack.c.bf16 %v6735, %v6734
      %v6841 = vpack.c.bf16 %v6737, %v6736
      %v6842 = vpack.c.bf16 %v6739, %v6738
      %v6843 = vpack.c.bf16 %v6741, %v6740
      %v6844 = vpack.c.bf16 %v6743, %v6742
      %v6845 = vpack.c.bf16 %v6745, %v6744
      %v6846 = vpack.c.bf16 %v6747, %v6746
      %v6847 = vpack.c.bf16 %v6749, %v6748
      %v6848 = vpack.c.bf16 %v6751, %v6750
      %v6849 = vpack.c.bf16 %v6753, %v6752
      %v6850 = vpack.c.bf16 %v6755, %v6754
      %v6851 = vpack.c.bf16 %v6757, %v6756
      %v6852 = vpack.c.bf16 %v6759, %v6758
      %v6853 = vpack.c.bf16 %v6761, %v6760
      %v6854 = vpack.c.bf16 %v6763, %v6762
      %v6855 = vpack.c.bf16 %v6765, %v6764
      %v6856 = vpack.c.bf16 %v6767, %v6766
      %v6857 = vpack.c.bf16 %v6769, %v6768
      %v6858 = vpack.c.bf16 %v6771, %v6770
      %v6859 = vpack.c.bf16 %v6773, %v6772
      %v6860 = vpack.c.bf16 %v6775, %v6774
      %v6861 = vpack.c.bf16 %v6777, %v6776
      %v6862 = vpack.c.bf16 %v6779, %v6778
      %v6863 = vpack.c.bf16 %v6781, %v6780
      %v6864 = vpack.c.bf16 %v6783, %v6782
      %v6865 = vpack.c.bf16 %v6785, %v6784
      %v6866 = vpack.c.bf16 %v6787, %v6786
      %v6867 = vpack.c.bf16 %v6789, %v6788
      %v6868 = vpack.c.bf16 %v6791, %v6790
      %v6869 = vpack.c.bf16 %v6793, %v6792
      %v6870 = vpack.c.bf16 %v6795, %v6794
      %v6871 = vpack.c.bf16 %v6797, %v6796
      %v6872 = vpack.c.bf16 %v6799, %v6798
      %v6873 = vpack.c.bf16 %v6801, %v6800
      %v6874 = vpack.c.bf16 %v6803, %v6802
      %v6875 = vpack.c.bf16 %v6805, %v6804
      %v6876 = vpack.c.bf16 %v6807, %v6806
      %v6877 = vpack.c.bf16 %v6809, %v6808
      %v6878 = vpack.c.bf16 %v6811, %v6810
      %v6879 = vpack.c.bf16 %v6813, %v6812
      %v6880 = vpack.c.bf16 %v6815, %v6814
      %v6881 = vpack.c.bf16 %v6817, %v6816
      %s6882 = scalar_lea.vmem %s1, 16
      %v6883 = vld [vmem:[%s6882] sm:$0x3]
      %v6885 = vsel %vm559, %v6818, 0
      %v6888 = vsel %vm559, %v6819, 0
      %v6891 = vsel %vm559, %v6820, 0
      %v6894 = vsel %vm559, %v6821, 0
      %v6897 = vsel %vm559, %v6822, 0
      %v6900 = vsel %vm559, %v6823, 0
      %v6903 = vsel %vm559, %v6824, 0
      %v6906 = vsel %vm559, %v6825, 0
      %v6909 = vsel %vm559, %v6826, 0
      %v6912 = vsel %vm559, %v6827, 0
      %v6915 = vsel %vm559, %v6828, 0
      %v6918 = vsel %vm559, %v6829, 0
      %v6921 = vsel %vm559, %v6830, 0
      %v6924 = vsel %vm559, %v6831, 0
      %v6927 = vsel %vm559, %v6832, 0
      %v6930 = vsel %vm559, %v6833, 0
      %v6933 = vsel %vm559, %v6834, 0
      %v6936 = vsel %vm559, %v6835, 0
      %v6939 = vsel %vm559, %v6836, 0
      %v6942 = vsel %vm559, %v6837, 0
      %v6945 = vsel %vm559, %v6838, 0
      %v6948 = vsel %vm559, %v6839, 0
      %v6951 = vsel %vm559, %v6840, 0
      %v6954 = vsel %vm559, %v6841, 0
      %v6957 = vsel %vm559, %v6842, 0
      %v6960 = vsel %vm559, %v6843, 0
      %v6963 = vsel %vm559, %v6844, 0
      %v6966 = vsel %vm559, %v6845, 0
      %v6969 = vsel %vm559, %v6846, 0
      %v6972 = vsel %vm559, %v6847, 0
      %v6975 = vsel %vm559, %v6848, 0
      %v6978 = vsel %vm559, %v6849, 0
      %v6981 = vsel %vm559, %v6850, 0
      %v6984 = vsel %vm559, %v6851, 0
      %v6987 = vsel %vm559, %v6852, 0
      %v6990 = vsel %vm559, %v6853, 0
      %v6993 = vsel %vm559, %v6854, 0
      %v6996 = vsel %vm559, %v6855, 0
      %v6999 = vsel %vm559, %v6856, 0
      %v7002 = vsel %vm559, %v6857, 0
      %v7005 = vsel %vm559, %v6858, 0
      %v7008 = vsel %vm559, %v6859, 0
      %v7011 = vsel %vm559, %v6860, 0
      %v7014 = vsel %vm559, %v6861, 0
      %v7017 = vsel %vm559, %v6862, 0
      %v7020 = vsel %vm559, %v6863, 0
      %v7023 = vsel %vm559, %v6864, 0
      %v7026 = vsel %vm559, %v6865, 0
      %v7029 = vsel %vm559, %v6866, 0
      %v7032 = vsel %vm559, %v6867, 0
      %v7035 = vsel %vm559, %v6868, 0
      %v7038 = vsel %vm559, %v6869, 0
      %v7041 = vsel %vm559, %v6870, 0
      %v7044 = vsel %vm559, %v6871, 0
      %v7047 = vsel %vm559, %v6872, 0
      %v7050 = vsel %vm559, %v6873, 0
      %v7053 = vsel %vm559, %v6874, 0
      %v7056 = vsel %vm559, %v6875, 0
      %v7059 = vsel %vm559, %v6876, 0
      %v7062 = vsel %vm559, %v6877, 0
      %v7065 = vsel %vm559, %v6878, 0
      %v7068 = vsel %vm559, %v6879, 0
      %v7071 = vsel %vm559, %v6880, 0
      %v7074 = vsel %vm559, %v6881, 0
      %v7077 = vand.u32 %v6883, %v755
      %7079 = vmatpush.bf16.msra.mxu0 0
      %7080 = vmatpush.bf16.msra.mxu0 0
      %7081 = vmatpush.bf16.msra.mxu0 0
      %7082 = vmatpush.bf16.msra.mxu0 0
      %7083 = vmatpush.bf16.msra.mxu0 0
      %7084 = vmatpush.bf16.msra.mxu0 0
      %7085 = vmatpush.bf16.msra.mxu0 0
      %7086 = vmatpush.bf16.msra.mxu0 %v7077
      %7087 = vmatmul.bf16.gmra.mxu0 %v6885
      %v7088 = vpop.f32.mrf.mxu0
      %v7089 = vadd.f32 0.0, %v7088
      %v7090 = vpop.f32.mrf.mxu0
      %v7091 = vadd.f32 0.0, %v7090
      %7092 = vmatmul.bf16.gmra.mxu0 %v6888
      %v7093 = vpop.f32.mrf.mxu0
      %v7094 = vadd.f32 0.0, %v7093
      %v7095 = vpop.f32.mrf.mxu0
      %v7096 = vadd.f32 0.0, %v7095
      %7097 = vmatmul.bf16.gmra.mxu0 %v6891
      %v7098 = vpop.f32.mrf.mxu0
      %v7099 = vadd.f32 0.0, %v7098
      %v7100 = vpop.f32.mrf.mxu0
      %v7101 = vadd.f32 0.0, %v7100
      %7102 = vmatmul.bf16.gmra.mxu0 %v6894
      %v7103 = vpop.f32.mrf.mxu0
      %v7104 = vadd.f32 0.0, %v7103
      %v7105 = vpop.f32.mrf.mxu0
      %v7106 = vadd.f32 0.0, %v7105
      %7107 = vmatmul.bf16.gmra.mxu0 %v6897
      %v7108 = vpop.f32.mrf.mxu0
      %v7109 = vadd.f32 0.0, %v7108
      %v7110 = vpop.f32.mrf.mxu0
      %v7111 = vadd.f32 0.0, %v7110
      %7112 = vmatmul.bf16.gmra.mxu0 %v6900
      %v7113 = vpop.f32.mrf.mxu0
      %v7114 = vadd.f32 0.0, %v7113
      %v7115 = vpop.f32.mrf.mxu0
      %v7116 = vadd.f32 0.0, %v7115
      %7117 = vmatmul.bf16.gmra.mxu0 %v6903
      %v7118 = vpop.f32.mrf.mxu0
      %v7119 = vadd.f32 0.0, %v7118
      %v7120 = vpop.f32.mrf.mxu0
      %v7121 = vadd.f32 0.0, %v7120
      %7122 = vmatmul.bf16.gmra.mxu0 %v6906
      %v7123 = vpop.f32.mrf.mxu0
      %v7124 = vadd.f32 0.0, %v7123
      %v7125 = vpop.f32.mrf.mxu0
      %v7126 = vadd.f32 0.0, %v7125
      %7127 = vmatmul.bf16.gmra.mxu0 %v6909
      %v7128 = vpop.f32.mrf.mxu0
      %v7129 = vadd.f32 0.0, %v7128
      %v7130 = vpop.f32.mrf.mxu0
      %v7131 = vadd.f32 0.0, %v7130
      %7132 = vmatmul.bf16.gmra.mxu0 %v6912
      %v7133 = vpop.f32.mrf.mxu0
      %v7134 = vadd.f32 0.0, %v7133
      %v7135 = vpop.f32.mrf.mxu0
      %v7136 = vadd.f32 0.0, %v7135
      %7137 = vmatmul.bf16.gmra.mxu0 %v6915
      %v7138 = vpop.f32.mrf.mxu0
      %v7139 = vadd.f32 0.0, %v7138
      %v7140 = vpop.f32.mrf.mxu0
      %v7141 = vadd.f32 0.0, %v7140
      %7142 = vmatmul.bf16.gmra.mxu0 %v6918
      %v7143 = vpop.f32.mrf.mxu0
      %v7144 = vadd.f32 0.0, %v7143
      %v7145 = vpop.f32.mrf.mxu0
      %v7146 = vadd.f32 0.0, %v7145
      %7147 = vmatmul.bf16.gmra.mxu0 %v6921
      %v7148 = vpop.f32.mrf.mxu0
      %v7149 = vadd.f32 0.0, %v7148
      %v7150 = vpop.f32.mrf.mxu0
      %v7151 = vadd.f32 0.0, %v7150
      %7152 = vmatmul.bf16.gmra.mxu0 %v6924
      %v7153 = vpop.f32.mrf.mxu0
      %v7154 = vadd.f32 0.0, %v7153
      %v7155 = vpop.f32.mrf.mxu0
      %v7156 = vadd.f32 0.0, %v7155
      %7157 = vmatmul.bf16.gmra.mxu0 %v6927
      %v7158 = vpop.f32.mrf.mxu0
      %v7159 = vadd.f32 0.0, %v7158
      %v7160 = vpop.f32.mrf.mxu0
      %v7161 = vadd.f32 0.0, %v7160
      %7162 = vmatmul.bf16.gmra.mxu0 %v6930
      %v7163 = vpop.f32.mrf.mxu0
      %v7164 = vadd.f32 0.0, %v7163
      %v7165 = vpop.f32.mrf.mxu0
      %v7166 = vadd.f32 0.0, %v7165
      %7167 = vmatmul.bf16.gmra.mxu0 %v6933
      %v7168 = vpop.f32.mrf.mxu0
      %v7169 = vadd.f32 0.0, %v7168
      %v7170 = vpop.f32.mrf.mxu0
      %v7171 = vadd.f32 0.0, %v7170
      %7172 = vmatmul.bf16.gmra.mxu0 %v6936
      %v7173 = vpop.f32.mrf.mxu0
      %v7174 = vadd.f32 0.0, %v7173
      %v7175 = vpop.f32.mrf.mxu0
      %v7176 = vadd.f32 0.0, %v7175
      %7177 = vmatmul.bf16.gmra.mxu0 %v6939
      %v7178 = vpop.f32.mrf.mxu0
      %v7179 = vadd.f32 0.0, %v7178
      %v7180 = vpop.f32.mrf.mxu0
      %v7181 = vadd.f32 0.0, %v7180
      %7182 = vmatmul.bf16.gmra.mxu0 %v6942
      %v7183 = vpop.f32.mrf.mxu0
      %v7184 = vadd.f32 0.0, %v7183
      %v7185 = vpop.f32.mrf.mxu0
      %v7186 = vadd.f32 0.0, %v7185
      %7187 = vmatmul.bf16.gmra.mxu0 %v6945
      %v7188 = vpop.f32.mrf.mxu0
      %v7189 = vadd.f32 0.0, %v7188
      %v7190 = vpop.f32.mrf.mxu0
      %v7191 = vadd.f32 0.0, %v7190
      %7192 = vmatmul.bf16.gmra.mxu0 %v6948
      %v7193 = vpop.f32.mrf.mxu0
      %v7194 = vadd.f32 0.0, %v7193
      %v7195 = vpop.f32.mrf.mxu0
      %v7196 = vadd.f32 0.0, %v7195
      %7197 = vmatmul.bf16.gmra.mxu0 %v6951
      %v7198 = vpop.f32.mrf.mxu0
      %v7199 = vadd.f32 0.0, %v7198
      %v7200 = vpop.f32.mrf.mxu0
      %v7201 = vadd.f32 0.0, %v7200
      %7202 = vmatmul.bf16.gmra.mxu0 %v6954
      %v7203 = vpop.f32.mrf.mxu0
      %v7204 = vadd.f32 0.0, %v7203
      %v7205 = vpop.f32.mrf.mxu0
      %v7206 = vadd.f32 0.0, %v7205
      %7207 = vmatmul.bf16.gmra.mxu0 %v6957
      %v7208 = vpop.f32.mrf.mxu0
      %v7209 = vadd.f32 0.0, %v7208
      %v7210 = vpop.f32.mrf.mxu0
      %v7211 = vadd.f32 0.0, %v7210
      %7212 = vmatmul.bf16.gmra.mxu0 %v6960
      %v7213 = vpop.f32.mrf.mxu0
      %v7214 = vadd.f32 0.0, %v7213
      %v7215 = vpop.f32.mrf.mxu0
      %v7216 = vadd.f32 0.0, %v7215
      %7217 = vmatmul.bf16.gmra.mxu0 %v6963
      %v7218 = vpop.f32.mrf.mxu0
      %v7219 = vadd.f32 0.0, %v7218
      %v7220 = vpop.f32.mrf.mxu0
      %v7221 = vadd.f32 0.0, %v7220
      %7222 = vmatmul.bf16.gmra.mxu0 %v6966
      %v7223 = vpop.f32.mrf.mxu0
      %v7224 = vadd.f32 0.0, %v7223
      %v7225 = vpop.f32.mrf.mxu0
      %v7226 = vadd.f32 0.0, %v7225
      %7227 = vmatmul.bf16.gmra.mxu0 %v6969
      %v7228 = vpop.f32.mrf.mxu0
      %v7229 = vadd.f32 0.0, %v7228
      %v7230 = vpop.f32.mrf.mxu0
      %v7231 = vadd.f32 0.0, %v7230
      %7232 = vmatmul.bf16.gmra.mxu0 %v6972
      %v7233 = vpop.f32.mrf.mxu0
      %v7234 = vadd.f32 0.0, %v7233
      %v7235 = vpop.f32.mrf.mxu0
      %v7236 = vadd.f32 0.0, %v7235
      %7237 = vmatmul.bf16.gmra.mxu0 %v6975
      %v7238 = vpop.f32.mrf.mxu0
      %v7239 = vadd.f32 0.0, %v7238
      %v7240 = vpop.f32.mrf.mxu0
      %v7241 = vadd.f32 0.0, %v7240
      %7242 = vmatmul.bf16.gmra.mxu0 %v6978
      %v7243 = vpop.f32.mrf.mxu0
      %v7244 = vadd.f32 0.0, %v7243
      %v7245 = vpop.f32.mrf.mxu0
      %v7246 = vadd.f32 0.0, %v7245
      %7247 = vmatmul.bf16.gmra.mxu0 %v6981
      %v7248 = vpop.f32.mrf.mxu0
      %v7249 = vadd.f32 0.0, %v7248
      %v7250 = vpop.f32.mrf.mxu0
      %v7251 = vadd.f32 0.0, %v7250
      %7252 = vmatmul.bf16.gmra.mxu0 %v6984
      %v7253 = vpop.f32.mrf.mxu0
      %v7254 = vadd.f32 0.0, %v7253
      %v7255 = vpop.f32.mrf.mxu0
      %v7256 = vadd.f32 0.0, %v7255
      %7257 = vmatmul.bf16.gmra.mxu0 %v6987
      %v7258 = vpop.f32.mrf.mxu0
      %v7259 = vadd.f32 0.0, %v7258
      %v7260 = vpop.f32.mrf.mxu0
      %v7261 = vadd.f32 0.0, %v7260
      %7262 = vmatmul.bf16.gmra.mxu0 %v6990
      %v7263 = vpop.f32.mrf.mxu0
      %v7264 = vadd.f32 0.0, %v7263
      %v7265 = vpop.f32.mrf.mxu0
      %v7266 = vadd.f32 0.0, %v7265
      %7267 = vmatmul.bf16.gmra.mxu0 %v6993
      %v7268 = vpop.f32.mrf.mxu0
      %v7269 = vadd.f32 0.0, %v7268
      %v7270 = vpop.f32.mrf.mxu0
      %v7271 = vadd.f32 0.0, %v7270
      %7272 = vmatmul.bf16.gmra.mxu0 %v6996
      %v7273 = vpop.f32.mrf.mxu0
      %v7274 = vadd.f32 0.0, %v7273
      %v7275 = vpop.f32.mrf.mxu0
      %v7276 = vadd.f32 0.0, %v7275
      %7277 = vmatmul.bf16.gmra.mxu0 %v6999
      %v7278 = vpop.f32.mrf.mxu0
      %v7279 = vadd.f32 0.0, %v7278
      %v7280 = vpop.f32.mrf.mxu0
      %v7281 = vadd.f32 0.0, %v7280
      %7282 = vmatmul.bf16.gmra.mxu0 %v7002
      %v7283 = vpop.f32.mrf.mxu0
      %v7284 = vadd.f32 0.0, %v7283
      %v7285 = vpop.f32.mrf.mxu0
      %v7286 = vadd.f32 0.0, %v7285
      %7287 = vmatmul.bf16.gmra.mxu0 %v7005
      %v7288 = vpop.f32.mrf.mxu0
      %v7289 = vadd.f32 0.0, %v7288
      %v7290 = vpop.f32.mrf.mxu0
      %v7291 = vadd.f32 0.0, %v7290
      %7292 = vmatmul.bf16.gmra.mxu0 %v7008
      %v7293 = vpop.f32.mrf.mxu0
      %v7294 = vadd.f32 0.0, %v7293
      %v7295 = vpop.f32.mrf.mxu0
      %v7296 = vadd.f32 0.0, %v7295
      %7297 = vmatmul.bf16.gmra.mxu0 %v7011
      %v7298 = vpop.f32.mrf.mxu0
      %v7299 = vadd.f32 0.0, %v7298
      %v7300 = vpop.f32.mrf.mxu0
      %v7301 = vadd.f32 0.0, %v7300
      %7302 = vmatmul.bf16.gmra.mxu0 %v7014
      %v7303 = vpop.f32.mrf.mxu0
      %v7304 = vadd.f32 0.0, %v7303
      %v7305 = vpop.f32.mrf.mxu0
      %v7306 = vadd.f32 0.0, %v7305
      %7307 = vmatmul.bf16.gmra.mxu0 %v7017
      %v7308 = vpop.f32.mrf.mxu0
      %v7309 = vadd.f32 0.0, %v7308
      %v7310 = vpop.f32.mrf.mxu0
      %v7311 = vadd.f32 0.0, %v7310
      %7312 = vmatmul.bf16.gmra.mxu0 %v7020
      %v7313 = vpop.f32.mrf.mxu0
      %v7314 = vadd.f32 0.0, %v7313
      %v7315 = vpop.f32.mrf.mxu0
      %v7316 = vadd.f32 0.0, %v7315
      %7317 = vmatmul.bf16.gmra.mxu0 %v7023
      %v7318 = vpop.f32.mrf.mxu0
      %v7319 = vadd.f32 0.0, %v7318
      %v7320 = vpop.f32.mrf.mxu0
      %v7321 = vadd.f32 0.0, %v7320
      %7322 = vmatmul.bf16.gmra.mxu0 %v7026
      %v7323 = vpop.f32.mrf.mxu0
      %v7324 = vadd.f32 0.0, %v7323
      %v7325 = vpop.f32.mrf.mxu0
      %v7326 = vadd.f32 0.0, %v7325
      %7327 = vmatmul.bf16.gmra.mxu0 %v7029
      %v7328 = vpop.f32.mrf.mxu0
      %v7329 = vadd.f32 0.0, %v7328
      %v7330 = vpop.f32.mrf.mxu0
      %v7331 = vadd.f32 0.0, %v7330
      %7332 = vmatmul.bf16.gmra.mxu0 %v7032
      %v7333 = vpop.f32.mrf.mxu0
      %v7334 = vadd.f32 0.0, %v7333
      %v7335 = vpop.f32.mrf.mxu0
      %v7336 = vadd.f32 0.0, %v7335
      %7337 = vmatmul.bf16.gmra.mxu0 %v7035
      %v7338 = vpop.f32.mrf.mxu0
      %v7339 = vadd.f32 0.0, %v7338
      %v7340 = vpop.f32.mrf.mxu0
      %v7341 = vadd.f32 0.0, %v7340
      %7342 = vmatmul.bf16.gmra.mxu0 %v7038
      %v7343 = vpop.f32.mrf.mxu0
      %v7344 = vadd.f32 0.0, %v7343
      %v7345 = vpop.f32.mrf.mxu0
      %v7346 = vadd.f32 0.0, %v7345
      %7347 = vmatmul.bf16.gmra.mxu0 %v7041
      %v7348 = vpop.f32.mrf.mxu0
      %v7349 = vadd.f32 0.0, %v7348
      %v7350 = vpop.f32.mrf.mxu0
      %v7351 = vadd.f32 0.0, %v7350
      %7352 = vmatmul.bf16.gmra.mxu0 %v7044
      %v7353 = vpop.f32.mrf.mxu0
      %v7354 = vadd.f32 0.0, %v7353
      %v7355 = vpop.f32.mrf.mxu0
      %v7356 = vadd.f32 0.0, %v7355
      %7357 = vmatmul.bf16.gmra.mxu0 %v7047
      %v7358 = vpop.f32.mrf.mxu0
      %v7359 = vadd.f32 0.0, %v7358
      %v7360 = vpop.f32.mrf.mxu0
      %v7361 = vadd.f32 0.0, %v7360
      %7362 = vmatmul.bf16.gmra.mxu0 %v7050
      %v7363 = vpop.f32.mrf.mxu0
      %v7364 = vadd.f32 0.0, %v7363
      %v7365 = vpop.f32.mrf.mxu0
      %v7366 = vadd.f32 0.0, %v7365
      %7367 = vmatmul.bf16.gmra.mxu0 %v7053
      %v7368 = vpop.f32.mrf.mxu0
      %v7369 = vadd.f32 0.0, %v7368
      %v7370 = vpop.f32.mrf.mxu0
      %v7371 = vadd.f32 0.0, %v7370
      %7372 = vmatmul.bf16.gmra.mxu0 %v7056
      %v7373 = vpop.f32.mrf.mxu0
      %v7374 = vadd.f32 0.0, %v7373
      %v7375 = vpop.f32.mrf.mxu0
      %v7376 = vadd.f32 0.0, %v7375
      %7377 = vmatmul.bf16.gmra.mxu0 %v7059
      %v7378 = vpop.f32.mrf.mxu0
      %v7379 = vadd.f32 0.0, %v7378
      %v7380 = vpop.f32.mrf.mxu0
      %v7381 = vadd.f32 0.0, %v7380
      %7382 = vmatmul.bf16.gmra.mxu0 %v7062
      %v7383 = vpop.f32.mrf.mxu0
      %v7384 = vadd.f32 0.0, %v7383
      %v7385 = vpop.f32.mrf.mxu0
      %v7386 = vadd.f32 0.0, %v7385
      %7387 = vmatmul.bf16.gmra.mxu0 %v7065
      %v7388 = vpop.f32.mrf.mxu0
      %v7389 = vadd.f32 0.0, %v7388
      %v7390 = vpop.f32.mrf.mxu0
      %v7391 = vadd.f32 0.0, %v7390
      %7392 = vmatmul.bf16.gmra.mxu0 %v7068
      %v7393 = vpop.f32.mrf.mxu0
      %v7394 = vadd.f32 0.0, %v7393
      %v7395 = vpop.f32.mrf.mxu0
      %v7396 = vadd.f32 0.0, %v7395
      %7397 = vmatmul.bf16.gmra.mxu0 %v7071
      %v7398 = vpop.f32.mrf.mxu0
      %v7399 = vadd.f32 0.0, %v7398
      %v7400 = vpop.f32.mrf.mxu0
      %v7401 = vadd.f32 0.0, %v7400
      %7402 = vmatmul.bf16.gmra.mxu0 %v7074
      %v7403 = vpop.f32.mrf.mxu0
      %v7404 = vadd.f32 0.0, %v7403
      %v7405 = vpop.f32.mrf.mxu0
      %v7406 = vadd.f32 0.0, %v7405
      %7407 = vdwg.mxu0
      %v7408 = vadd.f32 %v6562, %v7089
      %v7409 = vadd.f32 %v6563, %v7091
      %v7410 = vadd.f32 %v6564, %v7094
      %v7411 = vadd.f32 %v6565, %v7096
      %v7412 = vadd.f32 %v6566, %v7099
      %v7413 = vadd.f32 %v6567, %v7101
      %v7414 = vadd.f32 %v6568, %v7104
      %v7415 = vadd.f32 %v6569, %v7106
      %v7416 = vadd.f32 %v6570, %v7109
      %v7417 = vadd.f32 %v6571, %v7111
      %v7418 = vadd.f32 %v6572, %v7114
      %v7419 = vadd.f32 %v6573, %v7116
      %v7420 = vadd.f32 %v6574, %v7119
      %v7421 = vadd.f32 %v6575, %v7121
      %v7422 = vadd.f32 %v6576, %v7124
      %v7423 = vadd.f32 %v6577, %v7126
      %v7424 = vadd.f32 %v6578, %v7129
      %v7425 = vadd.f32 %v6579, %v7131
      %v7426 = vadd.f32 %v6580, %v7134
      %v7427 = vadd.f32 %v6581, %v7136
      %v7428 = vadd.f32 %v6582, %v7139
      %v7429 = vadd.f32 %v6583, %v7141
      %v7430 = vadd.f32 %v6584, %v7144
      %v7431 = vadd.f32 %v6585, %v7146
      %v7432 = vadd.f32 %v6586, %v7149
      %v7433 = vadd.f32 %v6587, %v7151
      %v7434 = vadd.f32 %v6588, %v7154
      %v7435 = vadd.f32 %v6589, %v7156
      %v7436 = vadd.f32 %v6590, %v7159
      %v7437 = vadd.f32 %v6591, %v7161
      %v7438 = vadd.f32 %v6592, %v7164
      %v7439 = vadd.f32 %v6593, %v7166
      %v7440 = vadd.f32 %v6594, %v7169
      %v7441 = vadd.f32 %v6595, %v7171
      %v7442 = vadd.f32 %v6596, %v7174
      %v7443 = vadd.f32 %v6597, %v7176
      %v7444 = vadd.f32 %v6598, %v7179
      %v7445 = vadd.f32 %v6599, %v7181
      %v7446 = vadd.f32 %v6600, %v7184
      %v7447 = vadd.f32 %v6601, %v7186
      %v7448 = vadd.f32 %v6602, %v7189
      %v7449 = vadd.f32 %v6603, %v7191
      %v7450 = vadd.f32 %v6604, %v7194
      %v7451 = vadd.f32 %v6605, %v7196
      %v7452 = vadd.f32 %v6606, %v7199
      %v7453 = vadd.f32 %v6607, %v7201
      %v7454 = vadd.f32 %v6608, %v7204
      %v7455 = vadd.f32 %v6609, %v7206
      %v7456 = vadd.f32 %v6610, %v7209
      %v7457 = vadd.f32 %v6611, %v7211
      %v7458 = vadd.f32 %v6612, %v7214
      %v7459 = vadd.f32 %v6613, %v7216
      %v7460 = vadd.f32 %v6614, %v7219
      %v7461 = vadd.f32 %v6615, %v7221
      %v7462 = vadd.f32 %v6616, %v7224
      %v7463 = vadd.f32 %v6617, %v7226
      %v7464 = vadd.f32 %v6618, %v7229
      %v7465 = vadd.f32 %v6619, %v7231
      %v7466 = vadd.f32 %v6620, %v7234
      %v7467 = vadd.f32 %v6621, %v7236
      %v7468 = vadd.f32 %v6622, %v7239
      %v7469 = vadd.f32 %v6623, %v7241
      %v7470 = vadd.f32 %v6624, %v7244
      %v7471 = vadd.f32 %v6625, %v7246
      %v7472 = vadd.f32 %v6626, %v7249
      %v7473 = vadd.f32 %v6627, %v7251
      %v7474 = vadd.f32 %v6628, %v7254
      %v7475 = vadd.f32 %v6629, %v7256
      %v7476 = vadd.f32 %v6630, %v7259
      %v7477 = vadd.f32 %v6631, %v7261
      %v7478 = vadd.f32 %v6632, %v7264
      %v7479 = vadd.f32 %v6633, %v7266
      %v7480 = vadd.f32 %v6634, %v7269
      %v7481 = vadd.f32 %v6635, %v7271
      %v7482 = vadd.f32 %v6636, %v7274
      %v7483 = vadd.f32 %v6637, %v7276
      %v7484 = vadd.f32 %v6638, %v7279
      %v7485 = vadd.f32 %v6639, %v7281
      %v7486 = vadd.f32 %v6640, %v7284
      %v7487 = vadd.f32 %v6641, %v7286
      %v7488 = vadd.f32 %v6642, %v7289
      %v7489 = vadd.f32 %v6643, %v7291
      %v7490 = vadd.f32 %v6644, %v7294
      %v7491 = vadd.f32 %v6645, %v7296
      %v7492 = vadd.f32 %v6646, %v7299
      %v7493 = vadd.f32 %v6647, %v7301
      %v7494 = vadd.f32 %v6648, %v7304
      %v7495 = vadd.f32 %v6649, %v7306
      %v7496 = vadd.f32 %v6650, %v7309
      %v7497 = vadd.f32 %v6651, %v7311
      %v7498 = vadd.f32 %v6652, %v7314
      %v7499 = vadd.f32 %v6653, %v7316
      %v7500 = vadd.f32 %v6654, %v7319
      %v7501 = vadd.f32 %v6655, %v7321
      %v7502 = vadd.f32 %v6656, %v7324
      %v7503 = vadd.f32 %v6657, %v7326
      %v7504 = vadd.f32 %v6658, %v7329
      %v7505 = vadd.f32 %v6659, %v7331
      %v7506 = vadd.f32 %v6660, %v7334
      %v7507 = vadd.f32 %v6661, %v7336
      %v7508 = vadd.f32 %v6662, %v7339
      %v7509 = vadd.f32 %v6663, %v7341
      %v7510 = vadd.f32 %v6664, %v7344
      %v7511 = vadd.f32 %v6665, %v7346
      %v7512 = vadd.f32 %v6666, %v7349
      %v7513 = vadd.f32 %v6667, %v7351
      %v7514 = vadd.f32 %v6668, %v7354
      %v7515 = vadd.f32 %v6669, %v7356
      %v7516 = vadd.f32 %v6670, %v7359
      %v7517 = vadd.f32 %v6671, %v7361
      %v7518 = vadd.f32 %v6672, %v7364
      %v7519 = vadd.f32 %v6673, %v7366
      %v7520 = vadd.f32 %v6674, %v7369
      %v7521 = vadd.f32 %v6675, %v7371
      %v7522 = vadd.f32 %v6676, %v7374
      %v7523 = vadd.f32 %v6677, %v7376
      %v7524 = vadd.f32 %v6678, %v7379
      %v7525 = vadd.f32 %v6679, %v7381
      %v7526 = vadd.f32 %v6680, %v7384
      %v7527 = vadd.f32 %v6681, %v7386
      %v7528 = vadd.f32 %v6682, %v7389
      %v7529 = vadd.f32 %v6683, %v7391
      %v7530 = vadd.f32 %v6684, %v7394
      %v7531 = vadd.f32 %v6685, %v7396
      %v7532 = vadd.f32 %v6686, %v7399
      %v7533 = vadd.f32 %v6687, %v7401
      %v7534 = vadd.f32 %v6688, %v7404
      %v7535 = vadd.f32 %v6689, %v7406
      %v7536 = vld [vmem:[%s2] sm:$0x1]
      %v7538 = vperm.slane %v7536, 0
      %v7540 = vadd.f32 %v7408, %v7538
      %v7541 = vadd.f32 %v7409, %v7538
      %v7542 = vadd.f32 %v7410, %v7538
      %v7543 = vadd.f32 %v7411, %v7538
      %v7544 = vadd.f32 %v7412, %v7538
      %v7545 = vadd.f32 %v7413, %v7538
      %v7546 = vadd.f32 %v7414, %v7538
      %v7547 = vadd.f32 %v7415, %v7538
      %v7548 = vadd.f32 %v7416, %v7538
      %v7549 = vadd.f32 %v7417, %v7538
      %v7550 = vadd.f32 %v7418, %v7538
      %v7551 = vadd.f32 %v7419, %v7538
      %v7552 = vadd.f32 %v7420, %v7538
      %v7553 = vadd.f32 %v7421, %v7538
      %v7554 = vadd.f32 %v7422, %v7538
      %v7555 = vadd.f32 %v7423, %v7538
      %v7556 = vadd.f32 %v7424, %v7538
      %v7557 = vadd.f32 %v7425, %v7538
      %v7558 = vadd.f32 %v7426, %v7538
      %v7559 = vadd.f32 %v7427, %v7538
      %v7560 = vadd.f32 %v7428, %v7538
      %v7561 = vadd.f32 %v7429, %v7538
      %v7562 = vadd.f32 %v7430, %v7538
      %v7563 = vadd.f32 %v7431, %v7538
      %v7564 = vadd.f32 %v7432, %v7538
      %v7565 = vadd.f32 %v7433, %v7538
      %v7566 = vadd.f32 %v7434, %v7538
      %v7567 = vadd.f32 %v7435, %v7538
      %v7568 = vadd.f32 %v7436, %v7538
      %v7569 = vadd.f32 %v7437, %v7538
      %v7570 = vadd.f32 %v7438, %v7538
      %v7571 = vadd.f32 %v7439, %v7538
      %v7572 = vadd.f32 %v7440, %v7538
      %v7573 = vadd.f32 %v7441, %v7538
      %v7574 = vadd.f32 %v7442, %v7538
      %v7575 = vadd.f32 %v7443, %v7538
      %v7576 = vadd.f32 %v7444, %v7538
      %v7577 = vadd.f32 %v7445, %v7538
      %v7578 = vadd.f32 %v7446, %v7538
      %v7579 = vadd.f32 %v7447, %v7538
      %v7580 = vadd.f32 %v7448, %v7538
      %v7581 = vadd.f32 %v7449, %v7538
      %v7582 = vadd.f32 %v7450, %v7538
      %v7583 = vadd.f32 %v7451, %v7538
      %v7584 = vadd.f32 %v7452, %v7538
      %v7585 = vadd.f32 %v7453, %v7538
      %v7586 = vadd.f32 %v7454, %v7538
      %v7587 = vadd.f32 %v7455, %v7538
      %v7588 = vadd.f32 %v7456, %v7538
      %v7589 = vadd.f32 %v7457, %v7538
      %v7590 = vadd.f32 %v7458, %v7538
      %v7591 = vadd.f32 %v7459, %v7538
      %v7592 = vadd.f32 %v7460, %v7538
      %v7593 = vadd.f32 %v7461, %v7538
      %v7594 = vadd.f32 %v7462, %v7538
      %v7595 = vadd.f32 %v7463, %v7538
      %v7596 = vadd.f32 %v7464, %v7538
      %v7597 = vadd.f32 %v7465, %v7538
      %v7598 = vadd.f32 %v7466, %v7538
      %v7599 = vadd.f32 %v7467, %v7538
      %v7600 = vadd.f32 %v7468, %v7538
      %v7601 = vadd.f32 %v7469, %v7538
      %v7602 = vadd.f32 %v7470, %v7538
      %v7603 = vadd.f32 %v7471, %v7538
      %v7604 = vadd.f32 %v7472, %v7538
      %v7605 = vadd.f32 %v7473, %v7538
      %v7606 = vadd.f32 %v7474, %v7538
      %v7607 = vadd.f32 %v7475, %v7538
      %v7608 = vadd.f32 %v7476, %v7538
      %v7609 = vadd.f32 %v7477, %v7538
      %v7610 = vadd.f32 %v7478, %v7538
      %v7611 = vadd.f32 %v7479, %v7538
      %v7612 = vadd.f32 %v7480, %v7538
      %v7613 = vadd.f32 %v7481, %v7538
      %v7614 = vadd.f32 %v7482, %v7538
      %v7615 = vadd.f32 %v7483, %v7538
      %v7616 = vadd.f32 %v7484, %v7538
      %v7617 = vadd.f32 %v7485, %v7538
      %v7618 = vadd.f32 %v7486, %v7538
      %v7619 = vadd.f32 %v7487, %v7538
      %v7620 = vadd.f32 %v7488, %v7538
      %v7621 = vadd.f32 %v7489, %v7538
      %v7622 = vadd.f32 %v7490, %v7538
      %v7623 = vadd.f32 %v7491, %v7538
      %v7624 = vadd.f32 %v7492, %v7538
      %v7625 = vadd.f32 %v7493, %v7538
      %v7626 = vadd.f32 %v7494, %v7538
      %v7627 = vadd.f32 %v7495, %v7538
      %v7628 = vadd.f32 %v7496, %v7538
      %v7629 = vadd.f32 %v7497, %v7538
      %v7630 = vadd.f32 %v7498, %v7538
      %v7631 = vadd.f32 %v7499, %v7538
      %v7632 = vadd.f32 %v7500, %v7538
      %v7633 = vadd.f32 %v7501, %v7538
      %v7634 = vadd.f32 %v7502, %v7538
      %v7635 = vadd.f32 %v7503, %v7538
      %v7636 = vadd.f32 %v7504, %v7538
      %v7637 = vadd.f32 %v7505, %v7538
      %v7638 = vadd.f32 %v7506, %v7538
      %v7639 = vadd.f32 %v7507, %v7538
      %v7640 = vadd.f32 %v7508, %v7538
      %v7641 = vadd.f32 %v7509, %v7538
      %v7642 = vadd.f32 %v7510, %v7538
      %v7643 = vadd.f32 %v7511, %v7538
      %v7644 = vadd.f32 %v7512, %v7538
      %v7645 = vadd.f32 %v7513, %v7538
      %v7646 = vadd.f32 %v7514, %v7538
      %v7647 = vadd.f32 %v7515, %v7538
      %v7648 = vadd.f32 %v7516, %v7538
      %v7649 = vadd.f32 %v7517, %v7538
      %v7650 = vadd.f32 %v7518, %v7538
      %v7651 = vadd.f32 %v7519, %v7538
      %v7652 = vadd.f32 %v7520, %v7538
      %v7653 = vadd.f32 %v7521, %v7538
      %v7654 = vadd.f32 %v7522, %v7538
      %v7655 = vadd.f32 %v7523, %v7538
      %v7656 = vadd.f32 %v7524, %v7538
      %v7657 = vadd.f32 %v7525, %v7538
      %v7658 = vadd.f32 %v7526, %v7538
      %v7659 = vadd.f32 %v7527, %v7538
      %v7660 = vadd.f32 %v7528, %v7538
      %v7661 = vadd.f32 %v7529, %v7538
      %v7662 = vadd.f32 %v7530, %v7538
      %v7663 = vadd.f32 %v7531, %v7538
      %v7664 = vadd.f32 %v7532, %v7538
      %v7665 = vadd.f32 %v7533, %v7538
      %v7666 = vadd.f32 %v7534, %v7538
      %v7667 = vadd.f32 %v7535, %v7538
      %vm7668 = vcmask 64512
      %7669 = vst.msk [vmem:[%s170] sm:$0xff] %vm7668, %v7540
      %7670 = vst.msk [vmem:[%s170 + $0x8] sm:$0xff] %vm7668, %v7541
      %7671 = vst.msk [vmem:[%s170 + $0x10] sm:$0xff] %vm7668, %v7542
      %7672 = vst.msk [vmem:[%s170 + $0x18] sm:$0xff] %vm7668, %v7543
      %7673 = vst.msk [vmem:[%s170 + $0x20] sm:$0xff] %vm7668, %v7544
      %7674 = vst.msk [vmem:[%s170 + $0x28] sm:$0xff] %vm7668, %v7545
      %7675 = vst.msk [vmem:[%s170 + $0x30] sm:$0xff] %vm7668, %v7546
      %7676 = vst.msk [vmem:[%s170 + $0x38] sm:$0xff] %vm7668, %v7547
      %7677 = vst.msk [vmem:[%s170 + $0x40] sm:$0xff] %vm7668, %v7548
      %7678 = vst.msk [vmem:[%s170 + $0x48] sm:$0xff] %vm7668, %v7549
      %7679 = vst.msk [vmem:[%s170 + $0x50] sm:$0xff] %vm7668, %v7550
      %7680 = vst.msk [vmem:[%s170 + $0x58] sm:$0xff] %vm7668, %v7551
      %7681 = vst.msk [vmem:[%s170 + $0x60] sm:$0xff] %vm7668, %v7552
      %7682 = vst.msk [vmem:[%s170 + $0x68] sm:$0xff] %vm7668, %v7553
      %7683 = vst.msk [vmem:[%s170 + $0x70] sm:$0xff] %vm7668, %v7554
      %7684 = vst.msk [vmem:[%s170 + $0x78] sm:$0xff] %vm7668, %v7555
      %7685 = vst.msk [vmem:[%s170 + $0x80] sm:$0xff] %vm7668, %v7556
      %7686 = vst.msk [vmem:[%s170 + $0x88] sm:$0xff] %vm7668, %v7557
      %7687 = vst.msk [vmem:[%s170 + $0x90] sm:$0xff] %vm7668, %v7558
      %7688 = vst.msk [vmem:[%s170 + $0x98] sm:$0xff] %vm7668, %v7559
      %7689 = vst.msk [vmem:[%s170 + $0xa0] sm:$0xff] %vm7668, %v7560
      %7690 = vst.msk [vmem:[%s170 + $0xa8] sm:$0xff] %vm7668, %v7561
      %7691 = vst.msk [vmem:[%s170 + $0xb0] sm:$0xff] %vm7668, %v7562
      %7692 = vst.msk [vmem:[%s170 + $0xb8] sm:$0xff] %vm7668, %v7563
      %7693 = vst.msk [vmem:[%s170 + $0xc0] sm:$0xff] %vm7668, %v7564
      %7694 = vst.msk [vmem:[%s170 + $0xc8] sm:$0xff] %vm7668, %v7565
      %7695 = vst.msk [vmem:[%s170 + $0xd0] sm:$0xff] %vm7668, %v7566
      %7696 = vst.msk [vmem:[%s170 + $0xd8] sm:$0xff] %vm7668, %v7567
      %7697 = vst.msk [vmem:[%s170 + $0xe0] sm:$0xff] %vm7668, %v7568
      %7698 = vst.msk [vmem:[%s170 + $0xe8] sm:$0xff] %vm7668, %v7569
      %7699 = vst.msk [vmem:[%s170 + $0xf0] sm:$0xff] %vm7668, %v7570
      %7700 = vst.msk [vmem:[%s170 + $0xf8] sm:$0xff] %vm7668, %v7571
      %7701 = vst.msk [vmem:[%s170 + $0x100] sm:$0xff] %vm7668, %v7572
      %7702 = vst.msk [vmem:[%s170 + $0x108] sm:$0xff] %vm7668, %v7573
      %7703 = vst.msk [vmem:[%s170 + $0x110] sm:$0xff] %vm7668, %v7574
      %7704 = vst.msk [vmem:[%s170 + $0x118] sm:$0xff] %vm7668, %v7575
      %7705 = vst.msk [vmem:[%s170 + $0x120] sm:$0xff] %vm7668, %v7576
      %7706 = vst.msk [vmem:[%s170 + $0x128] sm:$0xff] %vm7668, %v7577
      %7707 = vst.msk [vmem:[%s170 + $0x130] sm:$0xff] %vm7668, %v7578
      %7708 = vst.msk [vmem:[%s170 + $0x138] sm:$0xff] %vm7668, %v7579
      %7709 = vst.msk [vmem:[%s170 + $0x140] sm:$0xff] %vm7668, %v7580
      %7710 = vst.msk [vmem:[%s170 + $0x148] sm:$0xff] %vm7668, %v7581
      %7711 = vst.msk [vmem:[%s170 + $0x150] sm:$0xff] %vm7668, %v7582
      %7712 = vst.msk [vmem:[%s170 + $0x158] sm:$0xff] %vm7668, %v7583
      %7713 = vst.msk [vmem:[%s170 + $0x160] sm:$0xff] %vm7668, %v7584
      %7714 = vst.msk [vmem:[%s170 + $0x168] sm:$0xff] %vm7668, %v7585
      %7715 = vst.msk [vmem:[%s170 + $0x170] sm:$0xff] %vm7668, %v7586
      %7716 = vst.msk [vmem:[%s170 + $0x178] sm:$0xff] %vm7668, %v7587
      %7717 = vst.msk [vmem:[%s170 + $0x180] sm:$0xff] %vm7668, %v7588
      %7718 = vst.msk [vmem:[%s170 + $0x188] sm:$0xff] %vm7668, %v7589
      %7719 = vst.msk [vmem:[%s170 + $0x190] sm:$0xff] %vm7668, %v7590
      %7720 = vst.msk [vmem:[%s170 + $0x198] sm:$0xff] %vm7668, %v7591
      %7721 = vst.msk [vmem:[%s170 + $0x1a0] sm:$0xff] %vm7668, %v7592
      %7722 = vst.msk [vmem:[%s170 + $0x1a8] sm:$0xff] %vm7668, %v7593
      %7723 = vst.msk [vmem:[%s170 + $0x1b0] sm:$0xff] %vm7668, %v7594
      %7724 = vst.msk [vmem:[%s170 + $0x1b8] sm:$0xff] %vm7668, %v7595
      %7725 = vst.msk [vmem:[%s170 + $0x1c0] sm:$0xff] %vm7668, %v7596
      %7726 = vst.msk [vmem:[%s170 + $0x1c8] sm:$0xff] %vm7668, %v7597
      %7727 = vst.msk [vmem:[%s170 + $0x1d0] sm:$0xff] %vm7668, %v7598
      %7728 = vst.msk [vmem:[%s170 + $0x1d8] sm:$0xff] %vm7668, %v7599
      %7729 = vst.msk [vmem:[%s170 + $0x1e0] sm:$0xff] %vm7668, %v7600
      %7730 = vst.msk [vmem:[%s170 + $0x1e8] sm:$0xff] %vm7668, %v7601
      %7731 = vst.msk [vmem:[%s170 + $0x1f0] sm:$0xff] %vm7668, %v7602
      %7732 = vst.msk [vmem:[%s170 + $0x1f8] sm:$0xff] %vm7668, %v7603
      %7733 = vst.msk [vmem:[%s170 + $0x200] sm:$0xff] %vm7668, %v7604
      %7734 = vst.msk [vmem:[%s170 + $0x208] sm:$0xff] %vm7668, %v7605
      %7735 = vst.msk [vmem:[%s170 + $0x210] sm:$0xff] %vm7668, %v7606
      %7736 = vst.msk [vmem:[%s170 + $0x218] sm:$0xff] %vm7668, %v7607
      %7737 = vst.msk [vmem:[%s170 + $0x220] sm:$0xff] %vm7668, %v7608
      %7738 = vst.msk [vmem:[%s170 + $0x228] sm:$0xff] %vm7668, %v7609
      %7739 = vst.msk [vmem:[%s170 + $0x230] sm:$0xff] %vm7668, %v7610
      %7740 = vst.msk [vmem:[%s170 + $0x238] sm:$0xff] %vm7668, %v7611
      %7741 = vst.msk [vmem:[%s170 + $0x240] sm:$0xff] %vm7668, %v7612
      %7742 = vst.msk [vmem:[%s170 + $0x248] sm:$0xff] %vm7668, %v7613
      %7743 = vst.msk [vmem:[%s170 + $0x250] sm:$0xff] %vm7668, %v7614
      %7744 = vst.msk [vmem:[%s170 + $0x258] sm:$0xff] %vm7668, %v7615
      %7745 = vst.msk [vmem:[%s170 + $0x260] sm:$0xff] %vm7668, %v7616
      %7746 = vst.msk [vmem:[%s170 + $0x268] sm:$0xff] %vm7668, %v7617
      %7747 = vst.msk [vmem:[%s170 + $0x270] sm:$0xff] %vm7668, %v7618
      %7748 = vst.msk [vmem:[%s170 + $0x278] sm:$0xff] %vm7668, %v7619
      %7749 = vst.msk [vmem:[%s170 + $0x280] sm:$0xff] %vm7668, %v7620
      %7750 = vst.msk [vmem:[%s170 + $0x288] sm:$0xff] %vm7668, %v7621
      %7751 = vst.msk [vmem:[%s170 + $0x290] sm:$0xff] %vm7668, %v7622
      %7752 = vst.msk [vmem:[%s170 + $0x298] sm:$0xff] %vm7668, %v7623
      %7753 = vst.msk [vmem:[%s170 + $0x2a0] sm:$0xff] %vm7668, %v7624
      %7754 = vst.msk [vmem:[%s170 + $0x2a8] sm:$0xff] %vm7668, %v7625
      %7755 = vst.msk [vmem:[%s170 + $0x2b0] sm:$0xff] %vm7668, %v7626
      %7756 = vst.msk [vmem:[%s170 + $0x2b8] sm:$0xff] %vm7668, %v7627
      %7757 = vst.msk [vmem:[%s170 + $0x2c0] sm:$0xff] %vm7668, %v7628
      %7758 = vst.msk [vmem:[%s170 + $0x2c8] sm:$0xff] %vm7668, %v7629
      %7759 = vst.msk [vmem:[%s170 + $0x2d0] sm:$0xff] %vm7668, %v7630
      %7760 = vst.msk [vmem:[%s170 + $0x2d8] sm:$0xff] %vm7668, %v7631
      %7761 = vst.msk [vmem:[%s170 + $0x2e0] sm:$0xff] %vm7668, %v7632
      %7762 = vst.msk [vmem:[%s170 + $0x2e8] sm:$0xff] %vm7668, %v7633
      %7763 = vst.msk [vmem:[%s170 + $0x2f0] sm:$0xff] %vm7668, %v7634
      %7764 = vst.msk [vmem:[%s170 + $0x2f8] sm:$0xff] %vm7668, %v7635
      %7765 = vst.msk [vmem:[%s170 + $0x300] sm:$0xff] %vm7668, %v7636
      %7766 = vst.msk [vmem:[%s170 + $0x308] sm:$0xff] %vm7668, %v7637
      %7767 = vst.msk [vmem:[%s170 + $0x310] sm:$0xff] %vm7668, %v7638
      %7768 = vst.msk [vmem:[%s170 + $0x318] sm:$0xff] %vm7668, %v7639
      %7769 = vst.msk [vmem:[%s170 + $0x320] sm:$0xff] %vm7668, %v7640
      %7770 = vst.msk [vmem:[%s170 + $0x328] sm:$0xff] %vm7668, %v7641
      %7771 = vst.msk [vmem:[%s170 + $0x330] sm:$0xff] %vm7668, %v7642
      %7772 = vst.msk [vmem:[%s170 + $0x338] sm:$0xff] %vm7668, %v7643
      %7773 = vst.msk [vmem:[%s170 + $0x340] sm:$0xff] %vm7668, %v7644
      %7774 = vst.msk [vmem:[%s170 + $0x348] sm:$0xff] %vm7668, %v7645
      %7775 = vst.msk [vmem:[%s170 + $0x350] sm:$0xff] %vm7668, %v7646
      %7776 = vst.msk [vmem:[%s170 + $0x358] sm:$0xff] %vm7668, %v7647
      %7777 = vst.msk [vmem:[%s170 + $0x360] sm:$0xff] %vm7668, %v7648
      %7778 = vst.msk [vmem:[%s170 + $0x368] sm:$0xff] %vm7668, %v7649
      %7779 = vst.msk [vmem:[%s170 + $0x370] sm:$0xff] %vm7668, %v7650
      %7780 = vst.msk [vmem:[%s170 + $0x378] sm:$0xff] %vm7668, %v7651
      %7781 = vst.msk [vmem:[%s170 + $0x380] sm:$0xff] %vm7668, %v7652
      %7782 = vst.msk [vmem:[%s170 + $0x388] sm:$0xff] %vm7668, %v7653
      %7783 = vst.msk [vmem:[%s170 + $0x390] sm:$0xff] %vm7668, %v7654
      %7784 = vst.msk [vmem:[%s170 + $0x398] sm:$0xff] %vm7668, %v7655
      %7785 = vst.msk [vmem:[%s170 + $0x3a0] sm:$0xff] %vm7668, %v7656
      %7786 = vst.msk [vmem:[%s170 + $0x3a8] sm:$0xff] %vm7668, %v7657
      %7787 = vst.msk [vmem:[%s170 + $0x3b0] sm:$0xff] %vm7668, %v7658
      %7788 = vst.msk [vmem:[%s170 + $0x3b8] sm:$0xff] %vm7668, %v7659
      %7789 = vst.msk [vmem:[%s170 + $0x3c0] sm:$0xff] %vm7668, %v7660
      %7790 = vst.msk [vmem:[%s170 + $0x3c8] sm:$0xff] %vm7668, %v7661
      %7791 = vst.msk [vmem:[%s170 + $0x3d0] sm:$0xff] %vm7668, %v7662
      %7792 = vst.msk [vmem:[%s170 + $0x3d8] sm:$0xff] %vm7668, %v7663
      %7793 = vst.msk [vmem:[%s170 + $0x3e0] sm:$0xff] %vm7668, %v7664
      %7794 = vst.msk [vmem:[%s170 + $0x3e8] sm:$0xff] %vm7668, %v7665
      %7795 = vst.msk [vmem:[%s170 + $0x3f0] sm:$0xff] %vm7668, %v7666
      %7796 = vst.msk [vmem:[%s170 + $0x3f8] sm:$0xff] %vm7668, %v7667
      %p7797 = scmp.lt.s32.totalorder %s14, 1
      %s7798 = scalar_select %p7797, %s14, 1
      %s7799 = smul.addr %s7798, 128
      %s7800 = smul.addr %s7799, 8
      %s7801 = scalar_lea.vmem %s3, %s7800
      // Predicated region
      $region33: #{conv3x3_nchw.1} parent=31 // pred_check
        %p7802 = pneg %p100
      $region34: #{conv3x3_nchw.1} parent=31 // pred_check_branch
        %7804 = sbr.rel (%p7802) target = $region36
      $region35: #{conv3x3_nchw.1} parent=31 // pred_region
        _
      $region36: #{conv3x3_nchw.1} parent=31 // pred_fallthru
        _
    $region32: #{conv3x3_nchw.1} parent=5 // pred_fallthru
      _
    %p7805 = scmp.le.s32.totalorder 2, %s9
    // Predicated region
    $region37: #{conv3x3_nchw.1} parent=5 // pred_check
      %p7806 = pneg %p7805
    $region38: #{conv3x3_nchw.1} parent=5 // pred_check_branch
      %7808 = sbr.rel (%p7806) target = $region40
    $region39: #{conv3x3_nchw.1} parent=5 // pred_region
      %s7809 = ssub.s32 %s9, 2
      // Predicated region
      $region41: #{conv3x3_nchw.1} parent=39 // pred_check
        %p7810 = pneg %p106
      $region42: #{conv3x3_nchw.1} parent=39 // pred_check_branch
        %7812 = sbr.rel (%p7810) target = $region44
      $region43: #{conv3x3_nchw.1} parent=39 // pred_region
        %p7813 = scmp.lt.s32.totalorder %s15, 1
        %s7814 = scalar_select %p7813, %s15, 1
        %s7815 = smul.addr %s7814, 128
        %s7816 = smul.addr %s7815, 8
        %s7817 = scalar_lea.vmem %s3, %s7816
      $region44: #{conv3x3_nchw.1} parent=39 // pred_fallthru
        _
    $region40: #{conv3x3_nchw.1} parent=5 // pred_fallthru
      _
  $region6: #{conv3x3_nchw.1} parent=0 // loop_footer
    %s13 = sadd.s32 1, %s9
  $region7: #{conv3x3_nchw.1} parent=0 // loop_footer_branch
    %8 = sbr.rel target = $region3
  $region8: #{conv3x3_nchw.1} parent=0 // loop_exit
    _

</llo_original>
